<compile_context>
chip_gen: v7x
topology: tpu7x:2x2x1
jax: 0.10.0
libtpu: 0.0.40
codegen_flags: <defaults>
</compile_context>

<pallas_src>
import functools
import math

import jax
import jax.numpy as jnp
from jax import lax
from jax.experimental import pallas as pl
from jax.experimental.pallas import tpu as pltpu

_INV_SQRT2 = 0.7071067811865476


# ------------------------- fused decoder kernel -------------------------

def _decoder_forward_kernel(
    x_ref, mem_ref, mask_ref,
    sa_w_ref, sa_b_ref, sa_ow_ref, sa_ob_ref,
    ca_qw_ref, ca_qb_ref, ca_kvw_ref, ca_kvb_ref, ca_ow_ref, ca_ob_ref,
    l1w_ref, l1b_ref, l2w_ref, l2b_ref,
    n1g_ref, n1b_ref, n2g_ref, n2b_ref, n3g_ref, n3b_ref,
    fng_ref, fnb_ref, logw_ref, logb_ref,
    out_ref,
    *, nhead, B, T, S, depth, eps_layer, eps_final):
    D = x_ref.shape[-1]
    hd = D // nhead
    scale = 1.0 / math.sqrt(hd)

    x = x_ref[...]            # (B*T, D) residual stream, VMEM-resident
    mem = mem_ref[...]        # (B*S, D)
    mask = mask_ref[...]      # (T, T) additive mask

    def layer_norm(y, g, b, eps):
        mean = jnp.mean(y, axis=-1, keepdims=True)
        cen = y - mean
        var = jnp.mean(cen * cen, axis=-1, keepdims=True)
        return cen * lax.rsqrt(var + eps) * g + b

    def softmax_rows(s):
        s = s - jnp.max(s, axis=-1, keepdims=True)
        p = jnp.exp(s)
        denom = jnp.sum(p, axis=-1, keepdims=True)
        # reciprocal on the EUP slot instead of a per-element divide
        return p * pl.reciprocal(denom, approx=True)

    def gelu(y):  # exact erf-based GELU == torch.nn.functional.gelu default
        return 0.5 * y * (1.0 + lax.erf(y * _INV_SQRT2))

    def mha(q_src, q_off, k_src, k_off, v_src, v_off,
            w_out, b_out, kv_len, add_mask):
        # Multi-head attention with the output projection fused per head:
        #   concat_h(o_h) @ W_out == sum_h o_h @ W_out[h*hd:(h+1)*hd, :]
        # so no head merge/transpose is ever materialized.
        rows = []
        for b in range(B):
            acc = None
            for h in range(nhead):
                q_h = q_src[b * T:(b + 1) * T,
                            q_off + h * hd:q_off + (h + 1) * hd]
                k_h = k_src[b * kv_len:(b + 1) * kv_len,
                            k_off + h * hd:k_off + (h + 1) * hd]
                v_h = v_src[b * kv_len:(b + 1) * kv_len,
                            v_off + h * hd:v_off + (h + 1) * hd]
                s = lax.dot_general(
                    q_h, k_h, (((1,), (1,)), ((), ())),
                    preferred_element_type=jnp.float32) * scale
                if add_mask is not None:
                    s = s + add_mask
                p = softmax_rows(s)
                o_h = jnp.dot(p, v_h, preferred_element_type=jnp.float32)
                contrib = jnp.dot(o_h, w_out[h * hd:(h + 1) * hd, :],
                                  preferred_element_type=jnp.float32)
                acc = contrib if acc is None else acc + contrib
            rows.append(acc)                       # (T, D) per batch
        return jnp.concatenate(rows, axis=0) + b_out   # (B*T, D)

    for l in range(depth):
        # --- self-attention sublayer (post-LN, eps=1e-5) ---
        qkv = (jnp.dot(x, sa_w_ref[l], preferred_element_type=jnp.float32)
               + sa_b_ref[l])                                    # (B*T, 3D)
        sa = mha(qkv, 0, qkv, D, qkv, 2 * D,
                 sa_ow_ref[l], sa_ob_ref[l], T, mask)
        x = layer_norm(x + sa, n1g_ref[l], n1b_ref[l], eps_layer)

        # --- cross-attention sublayer (no mask) ---
        q = (jnp.dot(x, ca_qw_ref[l], preferred_element_type=jnp.float32)
             + ca_qb_ref[l])                                     # (B*T, D)
        kv = (jnp.dot(mem, ca_kvw_ref[l], preferred_element_type=jnp.float32)
              + ca_kvb_ref[l])                                   # (B*S, 2D)
        ca = mha(q, 0, kv, 0, kv, D,
                 ca_ow_ref[l], ca_ob_ref[l], S, None)
        x = layer_norm(x + ca, n2g_ref[l], n2b_ref[l], eps_layer)

        # --- feed-forward sublayer (erf GELU fused) ---
        h1 = gelu(jnp.dot(x, l1w_ref[l], preferred_element_type=jnp.float32)
                  + l1b_ref[l])                                  # (B*T, F)
        ff = (jnp.dot(h1, l2w_ref[l], preferred_element_type=jnp.float32)
              + l2b_ref[l])                                      # (B*T, D)
        x = layer_norm(x + ff, n3g_ref[l], n3b_ref[l], eps_layer)

    # final LayerNorm (eps=1e-6) fused with the lane-dense logits projection.
    x = layer_norm(x, fng_ref[...], fnb_ref[...], eps_final)
    out_ref[...] = (
        jnp.dot(x, logw_ref[...], preferred_element_type=jnp.float32)
        + logb_ref[...]
    )


# ------------------------- pallas_call wrapper -------------------------

def _full_spec(shape):
    nd = len(shape)
    return pl.BlockSpec(shape, lambda i, _nd=nd: (0,) * _nd)


@functools.partial(jax.jit, static_argnames=("nhead", "num_tokens"))
def latex_transformer_decoder(tgt, memory, packed, tgt_mask, *, nhead, num_tokens):
    """tgt: (B, T) int32, memory: (B, S, D) -> logits (B, T, num_tokens)."""
    B, T = tgt.shape
    S = memory.shape[1]
    D = packed["token_emb"].shape[1]
    depth = packed["sa_w"].shape[0]
    v_pad = packed["log_w"].shape[1]

    # embedding lookup + positional add kept as plain-JAX glue (one fused XLA op)
    x = jnp.take(packed["token_emb"], tgt, axis=0) + packed["pos_emb"][:T][None, :, :]
    x2d = x.reshape(B * T, D).astype(jnp.float32)
    mem2d = memory.reshape(B * S, D).astype(jnp.float32)
    if tgt_mask is None:
        tgt_mask = jnp.zeros((T, T), jnp.float32)
    else:
        tgt_mask = tgt_mask.astype(jnp.float32)

    inputs = [
        x2d, mem2d, tgt_mask,
        packed["sa_w"], packed["sa_b"], packed["sa_ow"], packed["sa_ob"],
        packed["ca_qw"], packed["ca_qb"], packed["ca_kvw"], packed["ca_kvb"],
        packed["ca_ow"], packed["ca_ob"],
        packed["l1_w"], packed["l1_b"], packed["l2_w"], packed["l2_b"],
        packed["n1_g"], packed["n1_b"], packed["n2_g"], packed["n2_b"],
        packed["n3_g"], packed["n3_b"],
        packed["fn_g"], packed["fn_b"], packed["log_w"], packed["log_b"],
    ]

    kern = functools.partial(
        _decoder_forward_kernel,
        nhead=nhead, B=B, T=T, S=S, depth=depth,
        eps_layer=1e-5, eps_final=1e-6,
    )

    out = pl.pallas_call(
        kern,
        out_shape=jax.ShapeDtypeStruct((B * T, v_pad), jnp.float32),
        grid=(1,),
        in_specs=[_full_spec(a.shape) for a in inputs],
        out_specs=pl.BlockSpec((B * T, v_pad), lambda i: (0, 0)),
        compiler_params=pltpu.CompilerParams(
            dimension_semantics=("arbitrary",)),
    )(*inputs)

    return out[:, :num_tokens].reshape(B, T, num_tokens)


# ------------------------- parameter init & packing -------------------------

def init_params(key, *, model_dim, nhead, ff_dim, depth, num_tokens, max_seq_len):
    """PyTorch-layout parameters (weights stored (out, in)), deterministic."""
    def normal(k, shape, scale=0.02):
        return (scale * jax.random.normal(k, shape)).astype(jnp.float32)

    keys = iter(jax.random.split(key, 8 + depth * 8))
    tok = normal(next(keys), (num_tokens, model_dim))
    tok = tok.at[0].set(0.0)  # padding_idx=0
    params = {
        "token_emb": tok,
        "pos_emb": normal(next(keys), (max_seq_len, model_dim)),
        "final_norm_g": jnp.ones((model_dim,), jnp.float32),
        "final_norm_b": jnp.zeros((model_dim,), jnp.float32),
        "logits_w": normal(next(keys), (num_tokens, model_dim)),
        "logits_b": jnp.zeros((num_tokens,), jnp.float32),
        "layers": [],
    }
    for _ in range(depth):
        layer = {
            "self_attn": {
                "in_w": normal(next(keys), (3 * model_dim, model_dim)),
                "in_b": jnp.zeros((3 * model_dim,), jnp.float32),
                "out_w": normal(next(keys), (model_dim, model_dim)),
                "out_b": jnp.zeros((model_dim,), jnp.float32),
            },
            "cross_attn": {
                "in_w": normal(next(keys), (3 * model_dim, model_dim)),
                "in_b": jnp.zeros((3 * model_dim,), jnp.float32),
                "out_w": normal(next(keys), (model_dim, model_dim)),
                "out_b": jnp.zeros((model_dim,), jnp.float32),
            },
            "lin1_w": normal(next(keys), (ff_dim, model_dim)),
            "lin1_b": jnp.zeros((ff_dim,), jnp.float32),
            "lin2_w": normal(next(keys), (model_dim, ff_dim)),
            "lin2_b": jnp.zeros((model_dim,), jnp.float32),
            "norm1_g": jnp.ones((model_dim,), jnp.float32),
            "norm1_b": jnp.zeros((model_dim,), jnp.float32),
            "norm2_g": jnp.ones((model_dim,), jnp.float32),
            "norm2_b": jnp.zeros((model_dim,), jnp.float32),
            "norm3_g": jnp.ones((model_dim,), jnp.float32),
            "norm3_b": jnp.zeros((model_dim,), jnp.float32),
        }
        params["layers"].append(layer)
    return params


def pack_params(params):
    """One-time pack: pre-transpose weights to (in, out), stack layers along a
    leading depth axis, pad the logits projection to a 128-lane multiple."""
    D = params["token_emb"].shape[1]
    layers = params["layers"]

    def stack(fn):
        return jnp.stack([fn(lp) for lp in layers], axis=0).astype(jnp.float32)

    num_tokens = params["logits_w"].shape[0]
    v_pad = ((num_tokens + 127) // 128) * 128
    log_w = jnp.pad(params["logits_w"].T, ((0, 0), (0, v_pad - num_tokens)))
    log_b = jnp.pad(params["logits_b"], (0, v_pad - num_tokens)).reshape(1, v_pad)

    return {
        "token_emb": params["token_emb"],
        "pos_emb": params["pos_emb"],
        "sa_w": stack(lambda lp: lp["self_attn"]["in_w"].T),                # (L, D, 3D)
        "sa_b": stack(lambda lp: lp["self_attn"]["in_b"].reshape(1, -1)),   # (L, 1, 3D)
        "sa_ow": stack(lambda lp: lp["self_attn"]["out_w"].T),              # (L, D, D)
        "sa_ob": stack(lambda lp: lp["self_attn"]["out_b"].reshape(1, -1)),
        "ca_qw": stack(lambda lp: lp["cross_attn"]["in_w"][:D].T),          # (L, D, D)
        "ca_qb": stack(lambda lp: lp["cross_attn"]["in_b"][:D].reshape(1, -1)),
        "ca_kvw": stack(lambda lp: lp["cross_attn"]["in_w"][D:].T),         # (L, D, 2D)
        "ca_kvb": stack(lambda lp: lp["cross_attn"]["in_b"][D:].reshape(1, -1)),
        "ca_ow": stack(lambda lp: lp["cross_attn"]["out_w"].T),
        "ca_ob": stack(lambda lp: lp["cross_attn"]["out_b"].reshape(1, -1)),
        "l1_w": stack(lambda lp: lp["lin1_w"].T),                           # (L, D, F)
        "l1_b": stack(lambda lp: lp["lin1_b"].reshape(1, -1)),
        "l2_w": stack(lambda lp: lp["lin2_w"].T),                           # (L, F, D)
        "l2_b": stack(lambda lp: lp["lin2_b"].reshape(1, -1)),
        "n1_g": stack(lambda lp: lp["norm1_g"].reshape(1, -1)),
        "n1_b": stack(lambda lp: lp["norm1_b"].reshape(1, -1)),
        "n2_g": stack(lambda lp: lp["norm2_g"].reshape(1, -1)),
        "n2_b": stack(lambda lp: lp["norm2_b"].reshape(1, -1)),
        "n3_g": stack(lambda lp: lp["norm3_g"].reshape(1, -1)),
        "n3_b": stack(lambda lp: lp["norm3_b"].reshape(1, -1)),
        "fn_g": params["final_norm_g"].reshape(1, -1),
        "fn_b": params["final_norm_b"].reshape(1, -1),
        "log_w": log_w.astype(jnp.float32),   # (D, Vpad) lane-dense
        "log_b": log_b.astype(jnp.float32),   # (1, Vpad)
    }


# ------------------------- main -------------------------

if __name__ == "__main__":
    # small config consistent with the module's forward
    MODEL_DIM, NHEAD, FF_DIM, DEPTH = 32, 4, 64, 2
    NUM_TOKENS, MAX_SEQ_LEN = 100, 16
    B, T, S = 2, 8, 16

    key = jax.random.PRNGKey(0)
    kp, kt, km = jax.random.split(key, 3)

    params = init_params(
        kp, model_dim=MODEL_DIM, nhead=NHEAD, ff_dim=FF_DIM,
        depth=DEPTH, num_tokens=NUM_TOKENS, max_seq_len=MAX_SEQ_LEN,
    )
    packed = pack_params(params)

    tgt = jax.random.randint(kt, (B, T), minval=1, maxval=NUM_TOKENS, dtype=jnp.int32)
    memory = jax.random.normal(km, (B, S, MODEL_DIM), dtype=jnp.float32)

    # causal additive mask (T, T): 0 on/below diagonal, large negative above.
    causal = jnp.tril(jnp.ones((T, T), jnp.bool_))
    tgt_mask = jnp.where(causal, 0.0, -1e9).astype(jnp.float32)

    # TODO(synk): key-padding masks / memory_mask not exercised here (the
    # PyTorch forward accepts them; they would fold into the additive masks).
    logits = latex_transformer_decoder(
        tgt, memory, packed, tgt_mask, nhead=NHEAD, num_tokens=NUM_TOKENS)
    logits = jax.block_until_ready(logits)

    assert logits.shape == (B, T, NUM_TOKENS)
    assert bool(jnp.all(jnp.isfinite(logits)))
    print("KERNEL_OK")
</pallas_src>

<mosaic_0001>
module attributes {stable_mosaic.version = 11 : i64} {
  func.func @_decoder_forward_kernel(%arg0: i32, %arg1: memref<16x32xf32, #tpu.memory_space<vmem>>, %arg2: memref<32x32xf32, #tpu.memory_space<vmem>>, %arg3: memref<8x8xf32, #tpu.memory_space<vmem>>, %arg4: memref<2x32x96xf32, #tpu.memory_space<vmem>>, %arg5: memref<2x1x96xf32, #tpu.memory_space<vmem>>, %arg6: memref<2x32x32xf32, #tpu.memory_space<vmem>>, %arg7: memref<2x1x32xf32, #tpu.memory_space<vmem>>, %arg8: memref<2x32x32xf32, #tpu.memory_space<vmem>>, %arg9: memref<2x1x32xf32, #tpu.memory_space<vmem>>, %arg10: memref<2x32x64xf32, #tpu.memory_space<vmem>>, %arg11: memref<2x1x64xf32, #tpu.memory_space<vmem>>, %arg12: memref<2x32x32xf32, #tpu.memory_space<vmem>>, %arg13: memref<2x1x32xf32, #tpu.memory_space<vmem>>, %arg14: memref<2x32x64xf32, #tpu.memory_space<vmem>>, %arg15: memref<2x1x64xf32, #tpu.memory_space<vmem>>, %arg16: memref<2x64x32xf32, #tpu.memory_space<vmem>>, %arg17: memref<2x1x32xf32, #tpu.memory_space<vmem>>, %arg18: memref<2x1x32xf32, #tpu.memory_space<vmem>>, %arg19: memref<2x1x32xf32, #tpu.memory_space<vmem>>, %arg20: memref<2x1x32xf32, #tpu.memory_space<vmem>>, %arg21: memref<2x1x32xf32, #tpu.memory_space<vmem>>, %arg22: memref<2x1x32xf32, #tpu.memory_space<vmem>>, %arg23: memref<2x1x32xf32, #tpu.memory_space<vmem>>, %arg24: memref<1x32xf32, #tpu.memory_space<vmem>>, %arg25: memref<1x32xf32, #tpu.memory_space<vmem>>, %arg26: memref<32x128xf32, #tpu.memory_space<vmem>>, %arg27: memref<1x128xf32, #tpu.memory_space<vmem>>, %arg28: memref<16x128xf32, #tpu.memory_space<vmem>>) attributes {dimension_semantics = [#tpu.dimension_semantics<arbitrary>], iteration_bounds = array<i64: 1>, scalar_prefetch = 0 : i64, scratch_operands = 0 : i64, tpu.core_type = #tpu.core_type<tc>, window_params = [{pipeline_mode = #tpu.pipeline_mode<synchronous>, transform_indices = @transform_0, window_bounds = array<i64: 16, 32>}, {pipeline_mode = #tpu.pipeline_mode<synchronous>, transform_indices = @transform_1, window_bounds = array<i64: 32, 32>}, {pipeline_mode = #tpu.pipeline_mode<synchronous>, transform_indices = @transform_2, window_bounds = array<i64: 8, 8>}, {pipeline_mode = #tpu.pipeline_mode<synchronous>, transform_indices = @transform_3, window_bounds = array<i64: 2, 32, 96>}, {pipeline_mode = #tpu.pipeline_mode<synchronous>, transform_indices = @transform_4, window_bounds = array<i64: 2, 1, 96>}, {pipeline_mode = #tpu.pipeline_mode<synchronous>, transform_indices = @transform_5, window_bounds = array<i64: 2, 32, 32>}, {pipeline_mode = #tpu.pipeline_mode<synchronous>, transform_indices = @transform_6, window_bounds = array<i64: 2, 1, 32>}, {pipeline_mode = #tpu.pipeline_mode<synchronous>, transform_indices = @transform_7, window_bounds = array<i64: 2, 32, 32>}, {pipeline_mode = #tpu.pipeline_mode<synchronous>, transform_indices = @transform_8, window_bounds = array<i64: 2, 1, 32>}, {pipeline_mode = #tpu.pipeline_mode<synchronous>, transform_indices = @transform_9, window_bounds = array<i64: 2, 32, 64>}, {pipeline_mode = #tpu.pipeline_mode<synchronous>, transform_indices = @transform_10, window_bounds = array<i64: 2, 1, 64>}, {pipeline_mode = #tpu.pipeline_mode<synchronous>, transform_indices = @transform_11, window_bounds = array<i64: 2, 32, 32>}, {pipeline_mode = #tpu.pipeline_mode<synchronous>, transform_indices = @transform_12, window_bounds = array<i64: 2, 1, 32>}, {pipeline_mode = #tpu.pipeline_mode<synchronous>, transform_indices = @transform_13, window_bounds = array<i64: 2, 32, 64>}, {pipeline_mode = #tpu.pipeline_mode<synchronous>, transform_indices = @transform_14, window_bounds = array<i64: 2, 1, 64>}, {pipeline_mode = #tpu.pipeline_mode<synchronous>, transform_indices = @transform_15, window_bounds = array<i64: 2, 64, 32>}, {pipeline_mode = #tpu.pipeline_mode<synchronous>, transform_indices = @transform_16, window_bounds = array<i64: 2, 1, 32>}, {pipeline_mode = #tpu.pipeline_mode<synchronous>, transform_indices = @transform_17, window_bounds = array<i64: 2, 1, 32>}, {pipeline_mode = #tpu.pipeline_mode<synchronous>, transform_indices = @transform_18, window_bounds = array<i64: 2, 1, 32>}, {pipeline_mode = #tpu.pipeline_mode<synchronous>, transform_indices = @transform_19, window_bounds = array<i64: 2, 1, 32>}, {pipeline_mode = #tpu.pipeline_mode<synchronous>, transform_indices = @transform_20, window_bounds = array<i64: 2, 1, 32>}, {pipeline_mode = #tpu.pipeline_mode<synchronous>, transform_indices = @transform_21, window_bounds = array<i64: 2, 1, 32>}, {pipeline_mode = #tpu.pipeline_mode<synchronous>, transform_indices = @transform_22, window_bounds = array<i64: 2, 1, 32>}, {pipeline_mode = #tpu.pipeline_mode<synchronous>, transform_indices = @transform_23, window_bounds = array<i64: 1, 32>}, {pipeline_mode = #tpu.pipeline_mode<synchronous>, transform_indices = @transform_24, window_bounds = array<i64: 1, 32>}, {pipeline_mode = #tpu.pipeline_mode<synchronous>, transform_indices = @transform_25, window_bounds = array<i64: 32, 128>}, {pipeline_mode = #tpu.pipeline_mode<synchronous>, transform_indices = @transform_26, window_bounds = array<i64: 1, 128>}, {pipeline_mode = #tpu.pipeline_mode<synchronous>, transform_indices = @transform_27, window_bounds = array<i64: 16, 128>}]} {
    %c0 = arith.constant 0 : index
    %c0_0 = arith.constant 0 : index
    %0 = vector.load %arg1[%c0, %c0_0] : memref<16x32xf32, #tpu.memory_space<vmem>>, vector<16x32xf32>
    %c0_1 = arith.constant 0 : index
    %c0_2 = arith.constant 0 : index
    %1 = vector.load %arg2[%c0_1, %c0_2] : memref<32x32xf32, #tpu.memory_space<vmem>>, vector<32x32xf32>
    %c0_3 = arith.constant 0 : index
    %c0_4 = arith.constant 0 : index
    %2 = vector.load %arg3[%c0_3, %c0_4] : memref<8x8xf32, #tpu.memory_space<vmem>>, vector<8x8xf32>
    %c0_5 = arith.constant 0 : index
    %c0_6 = arith.constant 0 : index
    %c0_7 = arith.constant 0 : index
    %3 = vector.load %arg4[%c0_5, %c0_6, %c0_7] : memref<2x32x96xf32, #tpu.memory_space<vmem>>, vector<1x32x96xf32>
    %4 = vector.shape_cast %3 : vector<1x32x96xf32> to vector<32x96xf32>
    %cst = arith.constant dense<0.000000e+00> : vector<16x96xf32>
    %5 = tpu.matmul %0, %4, %cst {dimension_numbers = #tpu.dot_dimension_numbers<[1], [0], [0], [1], [0, 0, 1, 1], [], []>} : vector<16x32xf32>, vector<32x96xf32>, vector<16x96xf32> -> vector<16x96xf32>
    %c0_8 = arith.constant 0 : index
    %c0_9 = arith.constant 0 : index
    %c0_10 = arith.constant 0 : index
    %6 = vector.load %arg5[%c0_8, %c0_9, %c0_10] : memref<2x1x96xf32, #tpu.memory_space<vmem>>, vector<1x1x96xf32>
    %7 = vector.shape_cast %6 : vector<1x1x96xf32> to vector<1x96xf32>
    %8 = vector.broadcast %7 : vector<1x96xf32> to vector<16x96xf32>
    %9 = arith.addf %5, %8 : vector<16x96xf32>
    %c0_11 = arith.constant 0 : index
    %c0_12 = arith.constant 0 : index
    %c0_13 = arith.constant 0 : index
    %10 = vector.load %arg6[%c0_11, %c0_12, %c0_13] : memref<2x32x32xf32, #tpu.memory_space<vmem>>, vector<1x32x32xf32>
    %11 = vector.shape_cast %10 : vector<1x32x32xf32> to vector<32x32xf32>
    %c0_14 = arith.constant 0 : index
    %c0_15 = arith.constant 0 : index
    %c0_16 = arith.constant 0 : index
    %12 = vector.load %arg7[%c0_14, %c0_15, %c0_16] : memref<2x1x32xf32, #tpu.memory_space<vmem>>, vector<1x1x32xf32>
    %13 = vector.shape_cast %12 : vector<1x1x32xf32> to vector<1x32xf32>
    %14 = vector.extract_strided_slice %9 {offsets = [0, 0], sizes = [8, 8], strides = [1, 1]} : vector<16x96xf32> to vector<8x8xf32>
    %15 = vector.extract_strided_slice %9 {offsets = [0, 32], sizes = [8, 8], strides = [1, 1]} : vector<16x96xf32> to vector<8x8xf32>
    %16 = vector.extract_strided_slice %9 {offsets = [0, 64], sizes = [8, 8], strides = [1, 1]} : vector<16x96xf32> to vector<8x8xf32>
    %cst_17 = arith.constant dense<0.000000e+00> : vector<8x8xf32>
    %17 = tpu.matmul %14, %15, %cst_17 {dimension_numbers = #tpu.dot_dimension_numbers<[1], [1], [0], [0], [0, 0, 1, 0], [], []>} : vector<8x8xf32>, vector<8x8xf32>, vector<8x8xf32> -> vector<8x8xf32>
    %cst_18 = arith.constant 0.353553385 : f32
    %18 = vector.broadcast %cst_18 : f32 to vector<8x8xf32>
    %19 = arith.mulf %17, %18 : vector<8x8xf32>
    %20 = arith.addf %19, %2 : vector<8x8xf32>
    %cst_19 = arith.constant dense<0xFF800000> : vector<8xf32>
    %21 = vector.multi_reduction <maximumf>, %20, %cst_19 [1] : vector<8x8xf32> to vector<8xf32>
    %22 = vector.shape_cast %21 : vector<8xf32> to vector<8x1xf32>
    %23 = vector.broadcast %22 : vector<8x1xf32> to vector<8x8xf32>
    %24 = arith.subf %20, %23 : vector<8x8xf32>
    %25 = math.exp %24 : vector<8x8xf32>
    %cst_20 = arith.constant dense<0.000000e+00> : vector<8xf32>
    %26 = vector.multi_reduction <add>, %25, %cst_20 [1] : vector<8x8xf32> to vector<8xf32>
    %27 = vector.shape_cast %26 : vector<8xf32> to vector<8x1xf32>
    %28 = tpu.reciprocal %27 {approx = true} : vector<8x1xf32> -> vector<8x1xf32>
    %29 = vector.broadcast %28 : vector<8x1xf32> to vector<8x8xf32>
    %30 = arith.mulf %25, %29 : vector<8x8xf32>
    %cst_21 = arith.constant dense<0.000000e+00> : vector<8x8xf32>
    %31 = tpu.matmul %30, %16, %cst_21 {dimension_numbers = #tpu.dot_dimension_numbers<[1], [0], [0], [1], [0, 0, 1, 1], [], []>} : vector<8x8xf32>, vector<8x8xf32>, vector<8x8xf32> -> vector<8x8xf32>
    %32 = vector.extract_strided_slice %11 {offsets = [0, 0], sizes = [8, 32], strides = [1, 1]} : vector<32x32xf32> to vector<8x32xf32>
    %cst_22 = arith.constant dense<0.000000e+00> : vector<8x32xf32>
    %33 = tpu.matmul %31, %32, %cst_22 {dimension_numbers = #tpu.dot_dimension_numbers<[1], [0], [0], [1], [0, 0, 1, 1], [], []>} : vector<8x8xf32>, vector<8x32xf32>, vector<8x32xf32> -> vector<8x32xf32>
    %34 = vector.extract_strided_slice %9 {offsets = [0, 8], sizes = [8, 8], strides = [1, 1]} : vector<16x96xf32> to vector<8x8xf32>
    %35 = vector.extract_strided_slice %9 {offsets = [0, 40], sizes = [8, 8], strides = [1, 1]} : vector<16x96xf32> to vector<8x8xf32>
    %36 = vector.extract_strided_slice %9 {offsets = [0, 72], sizes = [8, 8], strides = [1, 1]} : vector<16x96xf32> to vector<8x8xf32>
    %cst_23 = arith.constant dense<0.000000e+00> : vector<8x8xf32>
    %37 = tpu.matmul %34, %35, %cst_23 {dimension_numbers = #tpu.dot_dimension_numbers<[1], [1], [0], [0], [0, 0, 1, 0], [], []>} : vector<8x8xf32>, vector<8x8xf32>, vector<8x8xf32> -> vector<8x8xf32>
    %cst_24 = arith.constant 0.353553385 : f32
    %38 = vector.broadcast %cst_24 : f32 to vector<8x8xf32>
    %39 = arith.mulf %37, %38 : vector<8x8xf32>
    %40 = arith.addf %39, %2 : vector<8x8xf32>
    %cst_25 = arith.constant dense<0xFF800000> : vector<8xf32>
    %41 = vector.multi_reduction <maximumf>, %40, %cst_25 [1] : vector<8x8xf32> to vector<8xf32>
    %42 = vector.shape_cast %41 : vector<8xf32> to vector<8x1xf32>
    %43 = vector.broadcast %42 : vector<8x1xf32> to vector<8x8xf32>
    %44 = arith.subf %40, %43 : vector<8x8xf32>
    %45 = math.exp %44 : vector<8x8xf32>
    %cst_26 = arith.constant dense<0.000000e+00> : vector<8xf32>
    %46 = vector.multi_reduction <add>, %45, %cst_26 [1] : vector<8x8xf32> to vector<8xf32>
    %47 = vector.shape_cast %46 : vector<8xf32> to vector<8x1xf32>
    %48 = tpu.reciprocal %47 {approx = true} : vector<8x1xf32> -> vector<8x1xf32>
    %49 = vector.broadcast %48 : vector<8x1xf32> to vector<8x8xf32>
    %50 = arith.mulf %45, %49 : vector<8x8xf32>
    %cst_27 = arith.constant dense<0.000000e+00> : vector<8x8xf32>
    %51 = tpu.matmul %50, %36, %cst_27 {dimension_numbers = #tpu.dot_dimension_numbers<[1], [0], [0], [1], [0, 0, 1, 1], [], []>} : vector<8x8xf32>, vector<8x8xf32>, vector<8x8xf32> -> vector<8x8xf32>
    %52 = vector.extract_strided_slice %11 {offsets = [8, 0], sizes = [8, 32], strides = [1, 1]} : vector<32x32xf32> to vector<8x32xf32>
    %cst_28 = arith.constant dense<0.000000e+00> : vector<8x32xf32>
    %53 = tpu.matmul %51, %52, %cst_28 {dimension_numbers = #tpu.dot_dimension_numbers<[1], [0], [0], [1], [0, 0, 1, 1], [], []>} : vector<8x8xf32>, vector<8x32xf32>, vector<8x32xf32> -> vector<8x32xf32>
    %54 = arith.addf %33, %53 : vector<8x32xf32>
    %55 = vector.extract_strided_slice %9 {offsets = [0, 16], sizes = [8, 8], strides = [1, 1]} : vector<16x96xf32> to vector<8x8xf32>
    %56 = vector.extract_strided_slice %9 {offsets = [0, 48], sizes = [8, 8], strides = [1, 1]} : vector<16x96xf32> to vector<8x8xf32>
    %57 = vector.extract_strided_slice %9 {offsets = [0, 80], sizes = [8, 8], strides = [1, 1]} : vector<16x96xf32> to vector<8x8xf32>
    %cst_29 = arith.constant dense<0.000000e+00> : vector<8x8xf32>
    %58 = tpu.matmul %55, %56, %cst_29 {dimension_numbers = #tpu.dot_dimension_numbers<[1], [1], [0], [0], [0, 0, 1, 0], [], []>} : vector<8x8xf32>, vector<8x8xf32>, vector<8x8xf32> -> vector<8x8xf32>
    %cst_30 = arith.constant 0.353553385 : f32
    %59 = vector.broadcast %cst_30 : f32 to vector<8x8xf32>
    %60 = arith.mulf %58, %59 : vector<8x8xf32>
    %61 = arith.addf %60, %2 : vector<8x8xf32>
    %cst_31 = arith.constant dense<0xFF800000> : vector<8xf32>
    %62 = vector.multi_reduction <maximumf>, %61, %cst_31 [1] : vector<8x8xf32> to vector<8xf32>
    %63 = vector.shape_cast %62 : vector<8xf32> to vector<8x1xf32>
    %64 = vector.broadcast %63 : vector<8x1xf32> to vector<8x8xf32>
    %65 = arith.subf %61, %64 : vector<8x8xf32>
    %66 = math.exp %65 : vector<8x8xf32>
    %cst_32 = arith.constant dense<0.000000e+00> : vector<8xf32>
    %67 = vector.multi_reduction <add>, %66, %cst_32 [1] : vector<8x8xf32> to vector<8xf32>
    %68 = vector.shape_cast %67 : vector<8xf32> to vector<8x1xf32>
    %69 = tpu.reciprocal %68 {approx = true} : vector<8x1xf32> -> vector<8x1xf32>
    %70 = vector.broadcast %69 : vector<8x1xf32> to vector<8x8xf32>
    %71 = arith.mulf %66, %70 : vector<8x8xf32>
    %cst_33 = arith.constant dense<0.000000e+00> : vector<8x8xf32>
    %72 = tpu.matmul %71, %57, %cst_33 {dimension_numbers = #tpu.dot_dimension_numbers<[1], [0], [0], [1], [0, 0, 1, 1], [], []>} : vector<8x8xf32>, vector<8x8xf32>, vector<8x8xf32> -> vector<8x8xf32>
    %73 = vector.extract_strided_slice %11 {offsets = [16, 0], sizes = [8, 32], strides = [1, 1]} : vector<32x32xf32> to vector<8x32xf32>
    %cst_34 = arith.constant dense<0.000000e+00> : vector<8x32xf32>
    %74 = tpu.matmul %72, %73, %cst_34 {dimension_numbers = #tpu.dot_dimension_numbers<[1], [0], [0], [1], [0, 0, 1, 1], [], []>} : vector<8x8xf32>, vector<8x32xf32>, vector<8x32xf32> -> vector<8x32xf32>
    %75 = arith.addf %54, %74 : vector<8x32xf32>
    %76 = vector.extract_strided_slice %9 {offsets = [0, 24], sizes = [8, 8], strides = [1, 1]} : vector<16x96xf32> to vector<8x8xf32>
    %77 = vector.extract_strided_slice %9 {offsets = [0, 56], sizes = [8, 8], strides = [1, 1]} : vector<16x96xf32> to vector<8x8xf32>
    %78 = vector.extract_strided_slice %9 {offsets = [0, 88], sizes = [8, 8], strides = [1, 1]} : vector<16x96xf32> to vector<8x8xf32>
    %cst_35 = arith.constant dense<0.000000e+00> : vector<8x8xf32>
    %79 = tpu.matmul %76, %77, %cst_35 {dimension_numbers = #tpu.dot_dimension_numbers<[1], [1], [0], [0], [0, 0, 1, 0], [], []>} : vector<8x8xf32>, vector<8x8xf32>, vector<8x8xf32> -> vector<8x8xf32>
    %cst_36 = arith.constant 0.353553385 : f32
    %80 = vector.broadcast %cst_36 : f32 to vector<8x8xf32>
    %81 = arith.mulf %79, %80 : vector<8x8xf32>
    %82 = arith.addf %81, %2 : vector<8x8xf32>
    %cst_37 = arith.constant dense<0xFF800000> : vector<8xf32>
    %83 = vector.multi_reduction <maximumf>, %82, %cst_37 [1] : vector<8x8xf32> to vector<8xf32>
    %84 = vector.shape_cast %83 : vector<8xf32> to vector<8x1xf32>
    %85 = vector.broadcast %84 : vector<8x1xf32> to vector<8x8xf32>
    %86 = arith.subf %82, %85 : vector<8x8xf32>
    %87 = math.exp %86 : vector<8x8xf32>
    %cst_38 = arith.constant dense<0.000000e+00> : vector<8xf32>
    %88 = vector.multi_reduction <add>, %87, %cst_38 [1] : vector<8x8xf32> to vector<8xf32>
    %89 = vector.shape_cast %88 : vector<8xf32> to vector<8x1xf32>
    %90 = tpu.reciprocal %89 {approx = true} : vector<8x1xf32> -> vector<8x1xf32>
    %91 = vector.broadcast %90 : vector<8x1xf32> to vector<8x8xf32>
    %92 = arith.mulf %87, %91 : vector<8x8xf32>
    %cst_39 = arith.constant dense<0.000000e+00> : vector<8x8xf32>
    %93 = tpu.matmul %92, %78, %cst_39 {dimension_numbers = #tpu.dot_dimension_numbers<[1], [0], [0], [1], [0, 0, 1, 1], [], []>} : vector<8x8xf32>, vector<8x8xf32>, vector<8x8xf32> -> vector<8x8xf32>
    %94 = vector.extract_strided_slice %11 {offsets = [24, 0], sizes = [8, 32], strides = [1, 1]} : vector<32x32xf32> to vector<8x32xf32>
    %cst_40 = arith.constant dense<0.000000e+00> : vector<8x32xf32>
    %95 = tpu.matmul %93, %94, %cst_40 {dimension_numbers = #tpu.dot_dimension_numbers<[1], [0], [0], [1], [0, 0, 1, 1], [], []>} : vector<8x8xf32>, vector<8x32xf32>, vector<8x32xf32> -> vector<8x32xf32>
    %96 = arith.addf %75, %95 : vector<8x32xf32>
    %97 = vector.extract_strided_slice %9 {offsets = [8, 0], sizes = [8, 8], strides = [1, 1]} : vector<16x96xf32> to vector<8x8xf32>
    %98 = vector.extract_strided_slice %9 {offsets = [8, 32], sizes = [8, 8], strides = [1, 1]} : vector<16x96xf32> to vector<8x8xf32>
    %99 = vector.extract_strided_slice %9 {offsets = [8, 64], sizes = [8, 8], strides = [1, 1]} : vector<16x96xf32> to vector<8x8xf32>
    %cst_41 = arith.constant dense<0.000000e+00> : vector<8x8xf32>
    %100 = tpu.matmul %97, %98, %cst_41 {dimension_numbers = #tpu.dot_dimension_numbers<[1], [1], [0], [0], [0, 0, 1, 0], [], []>} : vector<8x8xf32>, vector<8x8xf32>, vector<8x8xf32> -> vector<8x8xf32>
    %cst_42 = arith.constant 0.353553385 : f32
    %101 = vector.broadcast %cst_42 : f32 to vector<8x8xf32>
    %102 = arith.mulf %100, %101 : vector<8x8xf32>
    %103 = arith.addf %102, %2 : vector<8x8xf32>
    %cst_43 = arith.constant dense<0xFF800000> : vector<8xf32>
    %104 = vector.multi_reduction <maximumf>, %103, %cst_43 [1] : vector<8x8xf32> to vector<8xf32>
    %105 = vector.shape_cast %104 : vector<8xf32> to vector<8x1xf32>
    %106 = vector.broadcast %105 : vector<8x1xf32> to vector<8x8xf32>
    %107 = arith.subf %103, %106 : vector<8x8xf32>
    %108 = math.exp %107 : vector<8x8xf32>
    %cst_44 = arith.constant dense<0.000000e+00> : vector<8xf32>
    %109 = vector.multi_reduction <add>, %108, %cst_44 [1] : vector<8x8xf32> to vector<8xf32>
    %110 = vector.shape_cast %109 : vector<8xf32> to vector<8x1xf32>
    %111 = tpu.reciprocal %110 {approx = true} : vector<8x1xf32> -> vector<8x1xf32>
    %112 = vector.broadcast %111 : vector<8x1xf32> to vector<8x8xf32>
    %113 = arith.mulf %108, %112 : vector<8x8xf32>
    %cst_45 = arith.constant dense<0.000000e+00> : vector<8x8xf32>
    %114 = tpu.matmul %113, %99, %cst_45 {dimension_numbers = #tpu.dot_dimension_numbers<[1], [0], [0], [1], [0, 0, 1, 1], [], []>} : vector<8x8xf32>, vector<8x8xf32>, vector<8x8xf32> -> vector<8x8xf32>
    %115 = vector.extract_strided_slice %11 {offsets = [0, 0], sizes = [8, 32], strides = [1, 1]} : vector<32x32xf32> to vector<8x32xf32>
    %cst_46 = arith.constant dense<0.000000e+00> : vector<8x32xf32>
    %116 = tpu.matmul %114, %115, %cst_46 {dimension_numbers = #tpu.dot_dimension_numbers<[1], [0], [0], [1], [0, 0, 1, 1], [], []>} : vector<8x8xf32>, vector<8x32xf32>, vector<8x32xf32> -> vector<8x32xf32>
    %117 = vector.extract_strided_slice %9 {offsets = [8, 8], sizes = [8, 8], strides = [1, 1]} : vector<16x96xf32> to vector<8x8xf32>
    %118 = vector.extract_strided_slice %9 {offsets = [8, 40], sizes = [8, 8], strides = [1, 1]} : vector<16x96xf32> to vector<8x8xf32>
    %119 = vector.extract_strided_slice %9 {offsets = [8, 72], sizes = [8, 8], strides = [1, 1]} : vector<16x96xf32> to vector<8x8xf32>
    %cst_47 = arith.constant dense<0.000000e+00> : vector<8x8xf32>
    %120 = tpu.matmul %117, %118, %cst_47 {dimension_numbers = #tpu.dot_dimension_numbers<[1], [1], [0], [0], [0, 0, 1, 0], [], []>} : vector<8x8xf32>, vector<8x8xf32>, vector<8x8xf32> -> vector<8x8xf32>
    %cst_48 = arith.constant 0.353553385 : f32
    %121 = vector.broadcast %cst_48 : f32 to vector<8x8xf32>
    %122 = arith.mulf %120, %121 : vector<8x8xf32>
    %123 = arith.addf %122, %2 : vector<8x8xf32>
    %cst_49 = arith.constant dense<0xFF800000> : vector<8xf32>
    %124 = vector.multi_reduction <maximumf>, %123, %cst_49 [1] : vector<8x8xf32> to vector<8xf32>
    %125 = vector.shape_cast %124 : vector<8xf32> to vector<8x1xf32>
    %126 = vector.broadcast %125 : vector<8x1xf32> to vector<8x8xf32>
    %127 = arith.subf %123, %126 : vector<8x8xf32>
    %128 = math.exp %127 : vector<8x8xf32>
    %cst_50 = arith.constant dense<0.000000e+00> : vector<8xf32>
    %129 = vector.multi_reduction <add>, %128, %cst_50 [1] : vector<8x8xf32> to vector<8xf32>
    %130 = vector.shape_cast %129 : vector<8xf32> to vector<8x1xf32>
    %131 = tpu.reciprocal %130 {approx = true} : vector<8x1xf32> -> vector<8x1xf32>
    %132 = vector.broadcast %131 : vector<8x1xf32> to vector<8x8xf32>
    %133 = arith.mulf %128, %132 : vector<8x8xf32>
    %cst_51 = arith.constant dense<0.000000e+00> : vector<8x8xf32>
    %134 = tpu.matmul %133, %119, %cst_51 {dimension_numbers = #tpu.dot_dimension_numbers<[1], [0], [0], [1], [0, 0, 1, 1], [], []>} : vector<8x8xf32>, vector<8x8xf32>, vector<8x8xf32> -> vector<8x8xf32>
    %135 = vector.extract_strided_slice %11 {offsets = [8, 0], sizes = [8, 32], strides = [1, 1]} : vector<32x32xf32> to vector<8x32xf32>
    %cst_52 = arith.constant dense<0.000000e+00> : vector<8x32xf32>
    %136 = tpu.matmul %134, %135, %cst_52 {dimension_numbers = #tpu.dot_dimension_numbers<[1], [0], [0], [1], [0, 0, 1, 1], [], []>} : vector<8x8xf32>, vector<8x32xf32>, vector<8x32xf32> -> vector<8x32xf32>
    %137 = arith.addf %116, %136 : vector<8x32xf32>
    %138 = vector.extract_strided_slice %9 {offsets = [8, 16], sizes = [8, 8], strides = [1, 1]} : vector<16x96xf32> to vector<8x8xf32>
    %139 = vector.extract_strided_slice %9 {offsets = [8, 48], sizes = [8, 8], strides = [1, 1]} : vector<16x96xf32> to vector<8x8xf32>
    %140 = vector.extract_strided_slice %9 {offsets = [8, 80], sizes = [8, 8], strides = [1, 1]} : vector<16x96xf32> to vector<8x8xf32>
    %cst_53 = arith.constant dense<0.000000e+00> : vector<8x8xf32>
    %141 = tpu.matmul %138, %139, %cst_53 {dimension_numbers = #tpu.dot_dimension_numbers<[1], [1], [0], [0], [0, 0, 1, 0], [], []>} : vector<8x8xf32>, vector<8x8xf32>, vector<8x8xf32> -> vector<8x8xf32>
    %cst_54 = arith.constant 0.353553385 : f32
    %142 = vector.broadcast %cst_54 : f32 to vector<8x8xf32>
    %143 = arith.mulf %141, %142 : vector<8x8xf32>
    %144 = arith.addf %143, %2 : vector<8x8xf32>
    %cst_55 = arith.constant dense<0xFF800000> : vector<8xf32>
    %145 = vector.multi_reduction <maximumf>, %144, %cst_55 [1] : vector<8x8xf32> to vector<8xf32>
    %146 = vector.shape_cast %145 : vector<8xf32> to vector<8x1xf32>
    %147 = vector.broadcast %146 : vector<8x1xf32> to vector<8x8xf32>
    %148 = arith.subf %144, %147 : vector<8x8xf32>
    %149 = math.exp %148 : vector<8x8xf32>
    %cst_56 = arith.constant dense<0.000000e+00> : vector<8xf32>
    %150 = vector.multi_reduction <add>, %149, %cst_56 [1] : vector<8x8xf32> to vector<8xf32>
    %151 = vector.shape_cast %150 : vector<8xf32> to vector<8x1xf32>
    %152 = tpu.reciprocal %151 {approx = true} : vector<8x1xf32> -> vector<8x1xf32>
    %153 = vector.broadcast %152 : vector<8x1xf32> to vector<8x8xf32>
    %154 = arith.mulf %149, %153 : vector<8x8xf32>
    %cst_57 = arith.constant dense<0.000000e+00> : vector<8x8xf32>
    %155 = tpu.matmul %154, %140, %cst_57 {dimension_numbers = #tpu.dot_dimension_numbers<[1], [0], [0], [1], [0, 0, 1, 1], [], []>} : vector<8x8xf32>, vector<8x8xf32>, vector<8x8xf32> -> vector<8x8xf32>
    %156 = vector.extract_strided_slice %11 {offsets = [16, 0], sizes = [8, 32], strides = [1, 1]} : vector<32x32xf32> to vector<8x32xf32>
    %cst_58 = arith.constant dense<0.000000e+00> : vector<8x32xf32>
    %157 = tpu.matmul %155, %156, %cst_58 {dimension_numbers = #tpu.dot_dimension_numbers<[1], [0], [0], [1], [0, 0, 1, 1], [], []>} : vector<8x8xf32>, vector<8x32xf32>, vector<8x32xf32> -> vector<8x32xf32>
    %158 = arith.addf %137, %157 : vector<8x32xf32>
    %159 = vector.extract_strided_slice %9 {offsets = [8, 24], sizes = [8, 8], strides = [1, 1]} : vector<16x96xf32> to vector<8x8xf32>
    %160 = vector.extract_strided_slice %9 {offsets = [8, 56], sizes = [8, 8], strides = [1, 1]} : vector<16x96xf32> to vector<8x8xf32>
    %161 = vector.extract_strided_slice %9 {offsets = [8, 88], sizes = [8, 8], strides = [1, 1]} : vector<16x96xf32> to vector<8x8xf32>
    %cst_59 = arith.constant dense<0.000000e+00> : vector<8x8xf32>
    %162 = tpu.matmul %159, %160, %cst_59 {dimension_numbers = #tpu.dot_dimension_numbers<[1], [1], [0], [0], [0, 0, 1, 0], [], []>} : vector<8x8xf32>, vector<8x8xf32>, vector<8x8xf32> -> vector<8x8xf32>
    %cst_60 = arith.constant 0.353553385 : f32
    %163 = vector.broadcast %cst_60 : f32 to vector<8x8xf32>
    %164 = arith.mulf %162, %163 : vector<8x8xf32>
    %165 = arith.addf %164, %2 : vector<8x8xf32>
    %cst_61 = arith.constant dense<0xFF800000> : vector<8xf32>
    %166 = vector.multi_reduction <maximumf>, %165, %cst_61 [1] : vector<8x8xf32> to vector<8xf32>
    %167 = vector.shape_cast %166 : vector<8xf32> to vector<8x1xf32>
    %168 = vector.broadcast %167 : vector<8x1xf32> to vector<8x8xf32>
    %169 = arith.subf %165, %168 : vector<8x8xf32>
    %170 = math.exp %169 : vector<8x8xf32>
    %cst_62 = arith.constant dense<0.000000e+00> : vector<8xf32>
    %171 = vector.multi_reduction <add>, %170, %cst_62 [1] : vector<8x8xf32> to vector<8xf32>
    %172 = vector.shape_cast %171 : vector<8xf32> to vector<8x1xf32>
    %173 = tpu.reciprocal %172 {approx = true} : vector<8x1xf32> -> vector<8x1xf32>
    %174 = vector.broadcast %173 : vector<8x1xf32> to vector<8x8xf32>
    %175 = arith.mulf %170, %174 : vector<8x8xf32>
    %cst_63 = arith.constant dense<0.000000e+00> : vector<8x8xf32>
    %176 = tpu.matmul %175, %161, %cst_63 {dimension_numbers = #tpu.dot_dimension_numbers<[1], [0], [0], [1], [0, 0, 1, 1], [], []>} : vector<8x8xf32>, vector<8x8xf32>, vector<8x8xf32> -> vector<8x8xf32>
    %177 = vector.extract_strided_slice %11 {offsets = [24, 0], sizes = [8, 32], strides = [1, 1]} : vector<32x32xf32> to vector<8x32xf32>
    %cst_64 = arith.constant dense<0.000000e+00> : vector<8x32xf32>
    %178 = tpu.matmul %176, %177, %cst_64 {dimension_numbers = #tpu.dot_dimension_numbers<[1], [0], [0], [1], [0, 0, 1, 1], [], []>} : vector<8x8xf32>, vector<8x32xf32>, vector<8x32xf32> -> vector<8x32xf32>
    %179 = arith.addf %158, %178 : vector<8x32xf32>
    %180 = tpu.concatenate %96, %179 in 0 : vector<8x32xf32>, vector<8x32xf32> -> vector<16x32xf32>
    %181 = vector.broadcast %13 : vector<1x32xf32> to vector<16x32xf32>
    %182 = arith.addf %180, %181 : vector<16x32xf32>
    %183 = arith.addf %0, %182 : vector<16x32xf32>
    %c0_65 = arith.constant 0 : index
    %c0_66 = arith.constant 0 : index
    %c0_67 = arith.constant 0 : index
    %184 = vector.load %arg18[%c0_65, %c0_66, %c0_67] : memref<2x1x32xf32, #tpu.memory_space<vmem>>, vector<1x1x32xf32>
    %185 = vector.shape_cast %184 : vector<1x1x32xf32> to vector<1x32xf32>
    %c0_68 = arith.constant 0 : index
    %c0_69 = arith.constant 0 : index
    %c0_70 = arith.constant 0 : index
    %186 = vector.load %arg19[%c0_68, %c0_69, %c0_70] : memref<2x1x32xf32, #tpu.memory_space<vmem>>, vector<1x1x32xf32>
    %187 = vector.shape_cast %186 : vector<1x1x32xf32> to vector<1x32xf32>
    %cst_71 = arith.constant dense<0.000000e+00> : vector<16xf32>
    %188 = vector.multi_reduction <add>, %183, %cst_71 [1] : vector<16x32xf32> to vector<16xf32>
    %189 = vector.shape_cast %188 : vector<16xf32> to vector<16x1xf32>
    %cst_72 = arith.constant 3.200000e+01 : f32
    %190 = vector.broadcast %cst_72 : f32 to vector<16x1xf32>
    %191 = arith.divf %189, %190 : vector<16x1xf32>
    %192 = vector.broadcast %191 : vector<16x1xf32> to vector<16x32xf32>
    %193 = arith.subf %183, %192 : vector<16x32xf32>
    %194 = arith.mulf %193, %193 : vector<16x32xf32>
    %cst_73 = arith.constant dense<0.000000e+00> : vector<16xf32>
    %195 = vector.multi_reduction <add>, %194, %cst_73 [1] : vector<16x32xf32> to vector<16xf32>
    %196 = vector.shape_cast %195 : vector<16xf32> to vector<16x1xf32>
    %cst_74 = arith.constant 3.200000e+01 : f32
    %197 = vector.broadcast %cst_74 : f32 to vector<16x1xf32>
    %198 = arith.divf %196, %197 : vector<16x1xf32>
    %cst_75 = arith.constant 9.99999974E-6 : f32
    %199 = vector.broadcast %cst_75 : f32 to vector<16x1xf32>
    %200 = arith.addf %198, %199 : vector<16x1xf32>
    %201 = math.rsqrt %200 : vector<16x1xf32>
    %202 = vector.broadcast %201 : vector<16x1xf32> to vector<16x32xf32>
    %203 = arith.mulf %193, %202 : vector<16x32xf32>
    %204 = vector.broadcast %185 : vector<1x32xf32> to vector<16x32xf32>
    %205 = arith.mulf %203, %204 : vector<16x32xf32>
    %206 = vector.broadcast %187 : vector<1x32xf32> to vector<16x32xf32>
    %207 = arith.addf %205, %206 : vector<16x32xf32>
    %c0_76 = arith.constant 0 : index
    %c0_77 = arith.constant 0 : index
    %c0_78 = arith.constant 0 : index
    %208 = vector.load %arg8[%c0_76, %c0_77, %c0_78] : memref<2x32x32xf32, #tpu.memory_space<vmem>>, vector<1x32x32xf32>
    %209 = vector.shape_cast %208 : vector<1x32x32xf32> to vector<32x32xf32>
    %cst_79 = arith.constant dense<0.000000e+00> : vector<16x32xf32>
    %210 = tpu.matmul %207, %209, %cst_79 {dimension_numbers = #tpu.dot_dimension_numbers<[1], [0], [0], [1], [0, 0, 1, 1], [], []>} : vector<16x32xf32>, vector<32x32xf32>, vector<16x32xf32> -> vector<16x32xf32>
    %c0_80 = arith.constant 0 : index
    %c0_81 = arith.constant 0 : index
    %c0_82 = arith.constant 0 : index
    %211 = vector.load %arg9[%c0_80, %c0_81, %c0_82] : memref<2x1x32xf32, #tpu.memory_space<vmem>>, vector<1x1x32xf32>
    %212 = vector.shape_cast %211 : vector<1x1x32xf32> to vector<1x32xf32>
    %213 = vector.broadcast %212 : vector<1x32xf32> to vector<16x32xf32>
    %214 = arith.addf %210, %213 : vector<16x32xf32>
    %c0_83 = arith.constant 0 : index
    %c0_84 = arith.constant 0 : index
    %c0_85 = arith.constant 0 : index
    %215 = vector.load %arg10[%c0_83, %c0_84, %c0_85] : memref<2x32x64xf32, #tpu.memory_space<vmem>>, vector<1x32x64xf32>
    %216 = vector.shape_cast %215 : vector<1x32x64xf32> to vector<32x64xf32>
    %cst_86 = arith.constant dense<0.000000e+00> : vector<32x64xf32>
    %217 = tpu.matmul %1, %216, %cst_86 {dimension_numbers = #tpu.dot_dimension_numbers<[1], [0], [0], [1], [0, 0, 1, 1], [], []>} : vector<32x32xf32>, vector<32x64xf32>, vector<32x64xf32> -> vector<32x64xf32>
    %c0_87 = arith.constant 0 : index
    %c0_88 = arith.constant 0 : index
    %c0_89 = arith.constant 0 : index
    %218 = vector.load %arg11[%c0_87, %c0_88, %c0_89] : memref<2x1x64xf32, #tpu.memory_space<vmem>>, vector<1x1x64xf32>
    %219 = vector.shape_cast %218 : vector<1x1x64xf32> to vector<1x64xf32>
    %220 = vector.broadcast %219 : vector<1x64xf32> to vector<32x64xf32>
    %221 = arith.addf %217, %220 : vector<32x64xf32>
    %c0_90 = arith.constant 0 : index
    %c0_91 = arith.constant 0 : index
    %c0_92 = arith.constant 0 : index
    %222 = vector.load %arg12[%c0_90, %c0_91, %c0_92] : memref<2x32x32xf32, #tpu.memory_space<vmem>>, vector<1x32x32xf32>
    %223 = vector.shape_cast %222 : vector<1x32x32xf32> to vector<32x32xf32>
    %c0_93 = arith.constant 0 : index
    %c0_94 = arith.constant 0 : index
    %c0_95 = arith.constant 0 : index
    %224 = vector.load %arg13[%c0_93, %c0_94, %c0_95] : memref<2x1x32xf32, #tpu.memory_space<vmem>>, vector<1x1x32xf32>
    %225 = vector.shape_cast %224 : vector<1x1x32xf32> to vector<1x32xf32>
    %226 = vector.extract_strided_slice %214 {offsets = [0, 0], sizes = [8, 8], strides = [1, 1]} : vector<16x32xf32> to vector<8x8xf32>
    %227 = vector.extract_strided_slice %221 {offsets = [0, 0], sizes = [16, 8], strides = [1, 1]} : vector<32x64xf32> to vector<16x8xf32>
    %228 = vector.extract_strided_slice %221 {offsets = [0, 32], sizes = [16, 8], strides = [1, 1]} : vector<32x64xf32> to vector<16x8xf32>
    %cst_96 = arith.constant dense<0.000000e+00> : vector<8x16xf32>
    %229 = tpu.matmul %226, %227, %cst_96 {dimension_numbers = #tpu.dot_dimension_numbers<[1], [1], [0], [0], [0, 0, 1, 0], [], []>} : vector<8x8xf32>, vector<16x8xf32>, vector<8x16xf32> -> vector<8x16xf32>
    %cst_97 = arith.constant 0.353553385 : f32
    %230 = vector.broadcast %cst_97 : f32 to vector<8x16xf32>
    %231 = arith.mulf %229, %230 : vector<8x16xf32>
    %cst_98 = arith.constant dense<0xFF800000> : vector<8xf32>
    %232 = vector.multi_reduction <maximumf>, %231, %cst_98 [1] : vector<8x16xf32> to vector<8xf32>
    %233 = vector.shape_cast %232 : vector<8xf32> to vector<8x1xf32>
    %234 = vector.broadcast %233 : vector<8x1xf32> to vector<8x16xf32>
    %235 = arith.subf %231, %234 : vector<8x16xf32>
    %236 = math.exp %235 : vector<8x16xf32>
    %cst_99 = arith.constant dense<0.000000e+00> : vector<8xf32>
    %237 = vector.multi_reduction <add>, %236, %cst_99 [1] : vector<8x16xf32> to vector<8xf32>
    %238 = vector.shape_cast %237 : vector<8xf32> to vector<8x1xf32>
    %239 = tpu.reciprocal %238 {approx = true} : vector<8x1xf32> -> vector<8x1xf32>
    %240 = vector.broadcast %239 : vector<8x1xf32> to vector<8x16xf32>
    %241 = arith.mulf %236, %240 : vector<8x16xf32>
    %cst_100 = arith.constant dense<0.000000e+00> : vector<8x8xf32>
    %242 = tpu.matmul %241, %228, %cst_100 {dimension_numbers = #tpu.dot_dimension_numbers<[1], [0], [0], [1], [0, 0, 1, 1], [], []>} : vector<8x16xf32>, vector<16x8xf32>, vector<8x8xf32> -> vector<8x8xf32>
    %243 = vector.extract_strided_slice %223 {offsets = [0, 0], sizes = [8, 32], strides = [1, 1]} : vector<32x32xf32> to vector<8x32xf32>
    %cst_101 = arith.constant dense<0.000000e+00> : vector<8x32xf32>
    %244 = tpu.matmul %242, %243, %cst_101 {dimension_numbers = #tpu.dot_dimension_numbers<[1], [0], [0], [1], [0, 0, 1, 1], [], []>} : vector<8x8xf32>, vector<8x32xf32>, vector<8x32xf32> -> vector<8x32xf32>
    %245 = vector.extract_strided_slice %214 {offsets = [0, 8], sizes = [8, 8], strides = [1, 1]} : vector<16x32xf32> to vector<8x8xf32>
    %246 = vector.extract_strided_slice %221 {offsets = [0, 8], sizes = [16, 8], strides = [1, 1]} : vector<32x64xf32> to vector<16x8xf32>
    %247 = vector.extract_strided_slice %221 {offsets = [0, 40], sizes = [16, 8], strides = [1, 1]} : vector<32x64xf32> to vector<16x8xf32>
    %cst_102 = arith.constant dense<0.000000e+00> : vector<8x16xf32>
    %248 = tpu.matmul %245, %246, %cst_102 {dimension_numbers = #tpu.dot_dimension_numbers<[1], [1], [0], [0], [0, 0, 1, 0], [], []>} : vector<8x8xf32>, vector<16x8xf32>, vector<8x16xf32> -> vector<8x16xf32>
    %cst_103 = arith.constant 0.353553385 : f32
    %249 = vector.broadcast %cst_103 : f32 to vector<8x16xf32>
    %250 = arith.mulf %248, %249 : vector<8x16xf32>
    %cst_104 = arith.constant dense<0xFF800000> : vector<8xf32>
    %251 = vector.multi_reduction <maximumf>, %250, %cst_104 [1] : vector<8x16xf32> to vector<8xf32>
    %252 = vector.shape_cast %251 : vector<8xf32> to vector<8x1xf32>
    %253 = vector.broadcast %252 : vector<8x1xf32> to vector<8x16xf32>
    %254 = arith.subf %250, %253 : vector<8x16xf32>
    %255 = math.exp %254 : vector<8x16xf32>
    %cst_105 = arith.constant dense<0.000000e+00> : vector<8xf32>
    %256 = vector.multi_reduction <add>, %255, %cst_105 [1] : vector<8x16xf32> to vector<8xf32>
    %257 = vector.shape_cast %256 : vector<8xf32> to vector<8x1xf32>
    %258 = tpu.reciprocal %257 {approx = true} : vector<8x1xf32> -> vector<8x1xf32>
    %259 = vector.broadcast %258 : vector<8x1xf32> to vector<8x16xf32>
    %260 = arith.mulf %255, %259 : vector<8x16xf32>
    %cst_106 = arith.constant dense<0.000000e+00> : vector<8x8xf32>
    %261 = tpu.matmul %260, %247, %cst_106 {dimension_numbers = #tpu.dot_dimension_numbers<[1], [0], [0], [1], [0, 0, 1, 1], [], []>} : vector<8x16xf32>, vector<16x8xf32>, vector<8x8xf32> -> vector<8x8xf32>
    %262 = vector.extract_strided_slice %223 {offsets = [8, 0], sizes = [8, 32], strides = [1, 1]} : vector<32x32xf32> to vector<8x32xf32>
    %cst_107 = arith.constant dense<0.000000e+00> : vector<8x32xf32>
    %263 = tpu.matmul %261, %262, %cst_107 {dimension_numbers = #tpu.dot_dimension_numbers<[1], [0], [0], [1], [0, 0, 1, 1], [], []>} : vector<8x8xf32>, vector<8x32xf32>, vector<8x32xf32> -> vector<8x32xf32>
    %264 = arith.addf %244, %263 : vector<8x32xf32>
    %265 = vector.extract_strided_slice %214 {offsets = [0, 16], sizes = [8, 8], strides = [1, 1]} : vector<16x32xf32> to vector<8x8xf32>
    %266 = vector.extract_strided_slice %221 {offsets = [0, 16], sizes = [16, 8], strides = [1, 1]} : vector<32x64xf32> to vector<16x8xf32>
    %267 = vector.extract_strided_slice %221 {offsets = [0, 48], sizes = [16, 8], strides = [1, 1]} : vector<32x64xf32> to vector<16x8xf32>
    %cst_108 = arith.constant dense<0.000000e+00> : vector<8x16xf32>
    %268 = tpu.matmul %265, %266, %cst_108 {dimension_numbers = #tpu.dot_dimension_numbers<[1], [1], [0], [0], [0, 0, 1, 0], [], []>} : vector<8x8xf32>, vector<16x8xf32>, vector<8x16xf32> -> vector<8x16xf32>
    %cst_109 = arith.constant 0.353553385 : f32
    %269 = vector.broadcast %cst_109 : f32 to vector<8x16xf32>
    %270 = arith.mulf %268, %269 : vector<8x16xf32>
    %cst_110 = arith.constant dense<0xFF800000> : vector<8xf32>
    %271 = vector.multi_reduction <maximumf>, %270, %cst_110 [1] : vector<8x16xf32> to vector<8xf32>
    %272 = vector.shape_cast %271 : vector<8xf32> to vector<8x1xf32>
    %273 = vector.broadcast %272 : vector<8x1xf32> to vector<8x16xf32>
    %274 = arith.subf %270, %273 : vector<8x16xf32>
    %275 = math.exp %274 : vector<8x16xf32>
    %cst_111 = arith.constant dense<0.000000e+00> : vector<8xf32>
    %276 = vector.multi_reduction <add>, %275, %cst_111 [1] : vector<8x16xf32> to vector<8xf32>
    %277 = vector.shape_cast %276 : vector<8xf32> to vector<8x1xf32>
    %278 = tpu.reciprocal %277 {approx = true} : vector<8x1xf32> -> vector<8x1xf32>
    %279 = vector.broadcast %278 : vector<8x1xf32> to vector<8x16xf32>
    %280 = arith.mulf %275, %279 : vector<8x16xf32>
    %cst_112 = arith.constant dense<0.000000e+00> : vector<8x8xf32>
    %281 = tpu.matmul %280, %267, %cst_112 {dimension_numbers = #tpu.dot_dimension_numbers<[1], [0], [0], [1], [0, 0, 1, 1], [], []>} : vector<8x16xf32>, vector<16x8xf32>, vector<8x8xf32> -> vector<8x8xf32>
    %282 = vector.extract_strided_slice %223 {offsets = [16, 0], sizes = [8, 32], strides = [1, 1]} : vector<32x32xf32> to vector<8x32xf32>
    %cst_113 = arith.constant dense<0.000000e+00> : vector<8x32xf32>
    %283 = tpu.matmul %281, %282, %cst_113 {dimension_numbers = #tpu.dot_dimension_numbers<[1], [0], [0], [1], [0, 0, 1, 1], [], []>} : vector<8x8xf32>, vector<8x32xf32>, vector<8x32xf32> -> vector<8x32xf32>
    %284 = arith.addf %264, %283 : vector<8x32xf32>
    %285 = vector.extract_strided_slice %214 {offsets = [0, 24], sizes = [8, 8], strides = [1, 1]} : vector<16x32xf32> to vector<8x8xf32>
    %286 = vector.extract_strided_slice %221 {offsets = [0, 24], sizes = [16, 8], strides = [1, 1]} : vector<32x64xf32> to vector<16x8xf32>
    %287 = vector.extract_strided_slice %221 {offsets = [0, 56], sizes = [16, 8], strides = [1, 1]} : vector<32x64xf32> to vector<16x8xf32>
    %cst_114 = arith.constant dense<0.000000e+00> : vector<8x16xf32>
    %288 = tpu.matmul %285, %286, %cst_114 {dimension_numbers = #tpu.dot_dimension_numbers<[1], [1], [0], [0], [0, 0, 1, 0], [], []>} : vector<8x8xf32>, vector<16x8xf32>, vector<8x16xf32> -> vector<8x16xf32>
    %cst_115 = arith.constant 0.353553385 : f32
    %289 = vector.broadcast %cst_115 : f32 to vector<8x16xf32>
    %290 = arith.mulf %288, %289 : vector<8x16xf32>
    %cst_116 = arith.constant dense<0xFF800000> : vector<8xf32>
    %291 = vector.multi_reduction <maximumf>, %290, %cst_116 [1] : vector<8x16xf32> to vector<8xf32>
    %292 = vector.shape_cast %291 : vector<8xf32> to vector<8x1xf32>
    %293 = vector.broadcast %292 : vector<8x1xf32> to vector<8x16xf32>
    %294 = arith.subf %290, %293 : vector<8x16xf32>
    %295 = math.exp %294 : vector<8x16xf32>
    %cst_117 = arith.constant dense<0.000000e+00> : vector<8xf32>
    %296 = vector.multi_reduction <add>, %295, %cst_117 [1] : vector<8x16xf32> to vector<8xf32>
    %297 = vector.shape_cast %296 : vector<8xf32> to vector<8x1xf32>
    %298 = tpu.reciprocal %297 {approx = true} : vector<8x1xf32> -> vector<8x1xf32>
    %299 = vector.broadcast %298 : vector<8x1xf32> to vector<8x16xf32>
    %300 = arith.mulf %295, %299 : vector<8x16xf32>
    %cst_118 = arith.constant dense<0.000000e+00> : vector<8x8xf32>
    %301 = tpu.matmul %300, %287, %cst_118 {dimension_numbers = #tpu.dot_dimension_numbers<[1], [0], [0], [1], [0, 0, 1, 1], [], []>} : vector<8x16xf32>, vector<16x8xf32>, vector<8x8xf32> -> vector<8x8xf32>
    %302 = vector.extract_strided_slice %223 {offsets = [24, 0], sizes = [8, 32], strides = [1, 1]} : vector<32x32xf32> to vector<8x32xf32>
    %cst_119 = arith.constant dense<0.000000e+00> : vector<8x32xf32>
    %303 = tpu.matmul %301, %302, %cst_119 {dimension_numbers = #tpu.dot_dimension_numbers<[1], [0], [0], [1], [0, 0, 1, 1], [], []>} : vector<8x8xf32>, vector<8x32xf32>, vector<8x32xf32> -> vector<8x32xf32>
    %304 = arith.addf %284, %303 : vector<8x32xf32>
    %305 = vector.extract_strided_slice %214 {offsets = [8, 0], sizes = [8, 8], strides = [1, 1]} : vector<16x32xf32> to vector<8x8xf32>
    %306 = vector.extract_strided_slice %221 {offsets = [16, 0], sizes = [16, 8], strides = [1, 1]} : vector<32x64xf32> to vector<16x8xf32>
    %307 = vector.extract_strided_slice %221 {offsets = [16, 32], sizes = [16, 8], strides = [1, 1]} : vector<32x64xf32> to vector<16x8xf32>
    %cst_120 = arith.constant dense<0.000000e+00> : vector<8x16xf32>
    %308 = tpu.matmul %305, %306, %cst_120 {dimension_numbers = #tpu.dot_dimension_numbers<[1], [1], [0], [0], [0, 0, 1, 0], [], []>} : vector<8x8xf32>, vector<16x8xf32>, vector<8x16xf32> -> vector<8x16xf32>
    %cst_121 = arith.constant 0.353553385 : f32
    %309 = vector.broadcast %cst_121 : f32 to vector<8x16xf32>
    %310 = arith.mulf %308, %309 : vector<8x16xf32>
    %cst_122 = arith.constant dense<0xFF800000> : vector<8xf32>
    %311 = vector.multi_reduction <maximumf>, %310, %cst_122 [1] : vector<8x16xf32> to vector<8xf32>
    %312 = vector.shape_cast %311 : vector<8xf32> to vector<8x1xf32>
    %313 = vector.broadcast %312 : vector<8x1xf32> to vector<8x16xf32>
    %314 = arith.subf %310, %313 : vector<8x16xf32>
    %315 = math.exp %314 : vector<8x16xf32>
    %cst_123 = arith.constant dense<0.000000e+00> : vector<8xf32>
    %316 = vector.multi_reduction <add>, %315, %cst_123 [1] : vector<8x16xf32> to vector<8xf32>
    %317 = vector.shape_cast %316 : vector<8xf32> to vector<8x1xf32>
    %318 = tpu.reciprocal %317 {approx = true} : vector<8x1xf32> -> vector<8x1xf32>
    %319 = vector.broadcast %318 : vector<8x1xf32> to vector<8x16xf32>
    %320 = arith.mulf %315, %319 : vector<8x16xf32>
    %cst_124 = arith.constant dense<0.000000e+00> : vector<8x8xf32>
    %321 = tpu.matmul %320, %307, %cst_124 {dimension_numbers = #tpu.dot_dimension_numbers<[1], [0], [0], [1], [0, 0, 1, 1], [], []>} : vector<8x16xf32>, vector<16x8xf32>, vector<8x8xf32> -> vector<8x8xf32>
    %322 = vector.extract_strided_slice %223 {offsets = [0, 0], sizes = [8, 32], strides = [1, 1]} : vector<32x32xf32> to vector<8x32xf32>
    %cst_125 = arith.constant dense<0.000000e+00> : vector<8x32xf32>
    %323 = tpu.matmul %321, %322, %cst_125 {dimension_numbers = #tpu.dot_dimension_numbers<[1], [0], [0], [1], [0, 0, 1, 1], [], []>} : vector<8x8xf32>, vector<8x32xf32>, vector<8x32xf32> -> vector<8x32xf32>
    %324 = vector.extract_strided_slice %214 {offsets = [8, 8], sizes = [8, 8], strides = [1, 1]} : vector<16x32xf32> to vector<8x8xf32>
    %325 = vector.extract_strided_slice %221 {offsets = [16, 8], sizes = [16, 8], strides = [1, 1]} : vector<32x64xf32> to vector<16x8xf32>
    %326 = vector.extract_strided_slice %221 {offsets = [16, 40], sizes = [16, 8], strides = [1, 1]} : vector<32x64xf32> to vector<16x8xf32>
    %cst_126 = arith.constant dense<0.000000e+00> : vector<8x16xf32>
    %327 = tpu.matmul %324, %325, %cst_126 {dimension_numbers = #tpu.dot_dimension_numbers<[1], [1], [0], [0], [0, 0, 1, 0], [], []>} : vector<8x8xf32>, vector<16x8xf32>, vector<8x16xf32> -> vector<8x16xf32>
    %cst_127 = arith.constant 0.353553385 : f32
    %328 = vector.broadcast %cst_127 : f32 to vector<8x16xf32>
    %329 = arith.mulf %327, %328 : vector<8x16xf32>
    %cst_128 = arith.constant dense<0xFF800000> : vector<8xf32>
    %330 = vector.multi_reduction <maximumf>, %329, %cst_128 [1] : vector<8x16xf32> to vector<8xf32>
    %331 = vector.shape_cast %330 : vector<8xf32> to vector<8x1xf32>
    %332 = vector.broadcast %331 : vector<8x1xf32> to vector<8x16xf32>
    %333 = arith.subf %329, %332 : vector<8x16xf32>
    %334 = math.exp %333 : vector<8x16xf32>
    %cst_129 = arith.constant dense<0.000000e+00> : vector<8xf32>
    %335 = vector.multi_reduction <add>, %334, %cst_129 [1] : vector<8x16xf32> to vector<8xf32>
    %336 = vector.shape_cast %335 : vector<8xf32> to vector<8x1xf32>
    %337 = tpu.reciprocal %336 {approx = true} : vector<8x1xf32> -> vector<8x1xf32>
    %338 = vector.broadcast %337 : vector<8x1xf32> to vector<8x16xf32>
    %339 = arith.mulf %334, %338 : vector<8x16xf32>
    %cst_130 = arith.constant dense<0.000000e+00> : vector<8x8xf32>
    %340 = tpu.matmul %339, %326, %cst_130 {dimension_numbers = #tpu.dot_dimension_numbers<[1], [0], [0], [1], [0, 0, 1, 1], [], []>} : vector<8x16xf32>, vector<16x8xf32>, vector<8x8xf32> -> vector<8x8xf32>
    %341 = vector.extract_strided_slice %223 {offsets = [8, 0], sizes = [8, 32], strides = [1, 1]} : vector<32x32xf32> to vector<8x32xf32>
    %cst_131 = arith.constant dense<0.000000e+00> : vector<8x32xf32>
    %342 = tpu.matmul %340, %341, %cst_131 {dimension_numbers = #tpu.dot_dimension_numbers<[1], [0], [0], [1], [0, 0, 1, 1], [], []>} : vector<8x8xf32>, vector<8x32xf32>, vector<8x32xf32> -> vector<8x32xf32>
    %343 = arith.addf %323, %342 : vector<8x32xf32>
    %344 = vector.extract_strided_slice %214 {offsets = [8, 16], sizes = [8, 8], strides = [1, 1]} : vector<16x32xf32> to vector<8x8xf32>
    %345 = vector.extract_strided_slice %221 {offsets = [16, 16], sizes = [16, 8], strides = [1, 1]} : vector<32x64xf32> to vector<16x8xf32>
    %346 = vector.extract_strided_slice %221 {offsets = [16, 48], sizes = [16, 8], strides = [1, 1]} : vector<32x64xf32> to vector<16x8xf32>
    %cst_132 = arith.constant dense<0.000000e+00> : vector<8x16xf32>
    %347 = tpu.matmul %344, %345, %cst_132 {dimension_numbers = #tpu.dot_dimension_numbers<[1], [1], [0], [0], [0, 0, 1, 0], [], []>} : vector<8x8xf32>, vector<16x8xf32>, vector<8x16xf32> -> vector<8x16xf32>
    %cst_133 = arith.constant 0.353553385 : f32
    %348 = vector.broadcast %cst_133 : f32 to vector<8x16xf32>
    %349 = arith.mulf %347, %348 : vector<8x16xf32>
    %cst_134 = arith.constant dense<0xFF800000> : vector<8xf32>
    %350 = vector.multi_reduction <maximumf>, %349, %cst_134 [1] : vector<8x16xf32> to vector<8xf32>
    %351 = vector.shape_cast %350 : vector<8xf32> to vector<8x1xf32>
    %352 = vector.broadcast %351 : vector<8x1xf32> to vector<8x16xf32>
    %353 = arith.subf %349, %352 : vector<8x16xf32>
    %354 = math.exp %353 : vector<8x16xf32>
    %cst_135 = arith.constant dense<0.000000e+00> : vector<8xf32>
    %355 = vector.multi_reduction <add>, %354, %cst_135 [1] : vector<8x16xf32> to vector<8xf32>
    %356 = vector.shape_cast %355 : vector<8xf32> to vector<8x1xf32>
    %357 = tpu.reciprocal %356 {approx = true} : vector<8x1xf32> -> vector<8x1xf32>
    %358 = vector.broadcast %357 : vector<8x1xf32> to vector<8x16xf32>
    %359 = arith.mulf %354, %358 : vector<8x16xf32>
    %cst_136 = arith.constant dense<0.000000e+00> : vector<8x8xf32>
    %360 = tpu.matmul %359, %346, %cst_136 {dimension_numbers = #tpu.dot_dimension_numbers<[1], [0], [0], [1], [0, 0, 1, 1], [], []>} : vector<8x16xf32>, vector<16x8xf32>, vector<8x8xf32> -> vector<8x8xf32>
    %361 = vector.extract_strided_slice %223 {offsets = [16, 0], sizes = [8, 32], strides = [1, 1]} : vector<32x32xf32> to vector<8x32xf32>
    %cst_137 = arith.constant dense<0.000000e+00> : vector<8x32xf32>
    %362 = tpu.matmul %360, %361, %cst_137 {dimension_numbers = #tpu.dot_dimension_numbers<[1], [0], [0], [1], [0, 0, 1, 1], [], []>} : vector<8x8xf32>, vector<8x32xf32>, vector<8x32xf32> -> vector<8x32xf32>
    %363 = arith.addf %343, %362 : vector<8x32xf32>
    %364 = vector.extract_strided_slice %214 {offsets = [8, 24], sizes = [8, 8], strides = [1, 1]} : vector<16x32xf32> to vector<8x8xf32>
    %365 = vector.extract_strided_slice %221 {offsets = [16, 24], sizes = [16, 8], strides = [1, 1]} : vector<32x64xf32> to vector<16x8xf32>
    %366 = vector.extract_strided_slice %221 {offsets = [16, 56], sizes = [16, 8], strides = [1, 1]} : vector<32x64xf32> to vector<16x8xf32>
    %cst_138 = arith.constant dense<0.000000e+00> : vector<8x16xf32>
    %367 = tpu.matmul %364, %365, %cst_138 {dimension_numbers = #tpu.dot_dimension_numbers<[1], [1], [0], [0], [0, 0, 1, 0], [], []>} : vector<8x8xf32>, vector<16x8xf32>, vector<8x16xf32> -> vector<8x16xf32>
    %cst_139 = arith.constant 0.353553385 : f32
    %368 = vector.broadcast %cst_139 : f32 to vector<8x16xf32>
    %369 = arith.mulf %367, %368 : vector<8x16xf32>
    %cst_140 = arith.constant dense<0xFF800000> : vector<8xf32>
    %370 = vector.multi_reduction <maximumf>, %369, %cst_140 [1] : vector<8x16xf32> to vector<8xf32>
    %371 = vector.shape_cast %370 : vector<8xf32> to vector<8x1xf32>
    %372 = vector.broadcast %371 : vector<8x1xf32> to vector<8x16xf32>
    %373 = arith.subf %369, %372 : vector<8x16xf32>
    %374 = math.exp %373 : vector<8x16xf32>
    %cst_141 = arith.constant dense<0.000000e+00> : vector<8xf32>
    %375 = vector.multi_reduction <add>, %374, %cst_141 [1] : vector<8x16xf32> to vector<8xf32>
    %376 = vector.shape_cast %375 : vector<8xf32> to vector<8x1xf32>
    %377 = tpu.reciprocal %376 {approx = true} : vector<8x1xf32> -> vector<8x1xf32>
    %378 = vector.broadcast %377 : vector<8x1xf32> to vector<8x16xf32>
    %379 = arith.mulf %374, %378 : vector<8x16xf32>
    %cst_142 = arith.constant dense<0.000000e+00> : vector<8x8xf32>
    %380 = tpu.matmul %379, %366, %cst_142 {dimension_numbers = #tpu.dot_dimension_numbers<[1], [0], [0], [1], [0, 0, 1, 1], [], []>} : vector<8x16xf32>, vector<16x8xf32>, vector<8x8xf32> -> vector<8x8xf32>
    %381 = vector.extract_strided_slice %223 {offsets = [24, 0], sizes = [8, 32], strides = [1, 1]} : vector<32x32xf32> to vector<8x32xf32>
    %cst_143 = arith.constant dense<0.000000e+00> : vector<8x32xf32>
    %382 = tpu.matmul %380, %381, %cst_143 {dimension_numbers = #tpu.dot_dimension_numbers<[1], [0], [0], [1], [0, 0, 1, 1], [], []>} : vector<8x8xf32>, vector<8x32xf32>, vector<8x32xf32> -> vector<8x32xf32>
    %383 = arith.addf %363, %382 : vector<8x32xf32>
    %384 = tpu.concatenate %304, %383 in 0 : vector<8x32xf32>, vector<8x32xf32> -> vector<16x32xf32>
    %385 = vector.broadcast %225 : vector<1x32xf32> to vector<16x32xf32>
    %386 = arith.addf %384, %385 : vector<16x32xf32>
    %387 = arith.addf %207, %386 : vector<16x32xf32>
    %c0_144 = arith.constant 0 : index
    %c0_145 = arith.constant 0 : index
    %c0_146 = arith.constant 0 : index
    %388 = vector.load %arg20[%c0_144, %c0_145, %c0_146] : memref<2x1x32xf32, #tpu.memory_space<vmem>>, vector<1x1x32xf32>
    %389 = vector.shape_cast %388 : vector<1x1x32xf32> to vector<1x32xf32>
    %c0_147 = arith.constant 0 : index
    %c0_148 = arith.constant 0 : index
    %c0_149 = arith.constant 0 : index
    %390 = vector.load %arg21[%c0_147, %c0_148, %c0_149] : memref<2x1x32xf32, #tpu.memory_space<vmem>>, vector<1x1x32xf32>
    %391 = vector.shape_cast %390 : vector<1x1x32xf32> to vector<1x32xf32>
    %cst_150 = arith.constant dense<0.000000e+00> : vector<16xf32>
    %392 = vector.multi_reduction <add>, %387, %cst_150 [1] : vector<16x32xf32> to vector<16xf32>
    %393 = vector.shape_cast %392 : vector<16xf32> to vector<16x1xf32>
    %cst_151 = arith.constant 3.200000e+01 : f32
    %394 = vector.broadcast %cst_151 : f32 to vector<16x1xf32>
    %395 = arith.divf %393, %394 : vector<16x1xf32>
    %396 = vector.broadcast %395 : vector<16x1xf32> to vector<16x32xf32>
    %397 = arith.subf %387, %396 : vector<16x32xf32>
    %398 = arith.mulf %397, %397 : vector<16x32xf32>
    %cst_152 = arith.constant dense<0.000000e+00> : vector<16xf32>
    %399 = vector.multi_reduction <add>, %398, %cst_152 [1] : vector<16x32xf32> to vector<16xf32>
    %400 = vector.shape_cast %399 : vector<16xf32> to vector<16x1xf32>
    %cst_153 = arith.constant 3.200000e+01 : f32
    %401 = vector.broadcast %cst_153 : f32 to vector<16x1xf32>
    %402 = arith.divf %400, %401 : vector<16x1xf32>
    %cst_154 = arith.constant 9.99999974E-6 : f32
    %403 = vector.broadcast %cst_154 : f32 to vector<16x1xf32>
    %404 = arith.addf %402, %403 : vector<16x1xf32>
    %405 = math.rsqrt %404 : vector<16x1xf32>
    %406 = vector.broadcast %405 : vector<16x1xf32> to vector<16x32xf32>
    %407 = arith.mulf %397, %406 : vector<16x32xf32>
    %408 = vector.broadcast %389 : vector<1x32xf32> to vector<16x32xf32>
    %409 = arith.mulf %407, %408 : vector<16x32xf32>
    %410 = vector.broadcast %391 : vector<1x32xf32> to vector<16x32xf32>
    %411 = arith.addf %409, %410 : vector<16x32xf32>
    %c0_155 = arith.constant 0 : index
    %c0_156 = arith.constant 0 : index
    %c0_157 = arith.constant 0 : index
    %412 = vector.load %arg14[%c0_155, %c0_156, %c0_157] : memref<2x32x64xf32, #tpu.memory_space<vmem>>, vector<1x32x64xf32>
    %413 = vector.shape_cast %412 : vector<1x32x64xf32> to vector<32x64xf32>
    %cst_158 = arith.constant dense<0.000000e+00> : vector<16x64xf32>
    %414 = tpu.matmul %411, %413, %cst_158 {dimension_numbers = #tpu.dot_dimension_numbers<[1], [0], [0], [1], [0, 0, 1, 1], [], []>} : vector<16x32xf32>, vector<32x64xf32>, vector<16x64xf32> -> vector<16x64xf32>
    %c0_159 = arith.constant 0 : index
    %c0_160 = arith.constant 0 : index
    %c0_161 = arith.constant 0 : index
    %415 = vector.load %arg15[%c0_159, %c0_160, %c0_161] : memref<2x1x64xf32, #tpu.memory_space<vmem>>, vector<1x1x64xf32>
    %416 = vector.shape_cast %415 : vector<1x1x64xf32> to vector<1x64xf32>
    %417 = vector.broadcast %416 : vector<1x64xf32> to vector<16x64xf32>
    %418 = arith.addf %414, %417 : vector<16x64xf32>
    %cst_162 = arith.constant 5.000000e-01 : f32
    %419 = vector.broadcast %cst_162 : f32 to vector<16x64xf32>
    %420 = arith.mulf %419, %418 : vector<16x64xf32>
    %cst_163 = arith.constant 0.707106769 : f32
    %421 = vector.broadcast %cst_163 : f32 to vector<16x64xf32>
    %422 = arith.mulf %418, %421 : vector<16x64xf32>
    %423 = math.erf %422 : vector<16x64xf32>
    %cst_164 = arith.constant 1.000000e+00 : f32
    %424 = vector.broadcast %cst_164 : f32 to vector<16x64xf32>
    %425 = arith.addf %424, %423 : vector<16x64xf32>
    %426 = arith.mulf %420, %425 : vector<16x64xf32>
    %c0_165 = arith.constant 0 : index
    %c0_166 = arith.constant 0 : index
    %c0_167 = arith.constant 0 : index
    %427 = vector.load %arg16[%c0_165, %c0_166, %c0_167] : memref<2x64x32xf32, #tpu.memory_space<vmem>>, vector<1x64x32xf32>
    %428 = vector.shape_cast %427 : vector<1x64x32xf32> to vector<64x32xf32>
    %cst_168 = arith.constant dense<0.000000e+00> : vector<16x32xf32>
    %429 = tpu.matmul %426, %428, %cst_168 {dimension_numbers = #tpu.dot_dimension_numbers<[1], [0], [0], [1], [0, 0, 1, 1], [], []>} : vector<16x64xf32>, vector<64x32xf32>, vector<16x32xf32> -> vector<16x32xf32>
    %c0_169 = arith.constant 0 : index
    %c0_170 = arith.constant 0 : index
    %c0_171 = arith.constant 0 : index
    %430 = vector.load %arg17[%c0_169, %c0_170, %c0_171] : memref<2x1x32xf32, #tpu.memory_space<vmem>>, vector<1x1x32xf32>
    %431 = vector.shape_cast %430 : vector<1x1x32xf32> to vector<1x32xf32>
    %432 = vector.broadcast %431 : vector<1x32xf32> to vector<16x32xf32>
    %433 = arith.addf %429, %432 : vector<16x32xf32>
    %434 = arith.addf %411, %433 : vector<16x32xf32>
    %c0_172 = arith.constant 0 : index
    %c0_173 = arith.constant 0 : index
    %c0_174 = arith.constant 0 : index
    %435 = vector.load %arg22[%c0_172, %c0_173, %c0_174] : memref<2x1x32xf32, #tpu.memory_space<vmem>>, vector<1x1x32xf32>
    %436 = vector.shape_cast %435 : vector<1x1x32xf32> to vector<1x32xf32>
    %c0_175 = arith.constant 0 : index
    %c0_176 = arith.constant 0 : index
    %c0_177 = arith.constant 0 : index
    %437 = vector.load %arg23[%c0_175, %c0_176, %c0_177] : memref<2x1x32xf32, #tpu.memory_space<vmem>>, vector<1x1x32xf32>
    %438 = vector.shape_cast %437 : vector<1x1x32xf32> to vector<1x32xf32>
    %cst_178 = arith.constant dense<0.000000e+00> : vector<16xf32>
    %439 = vector.multi_reduction <add>, %434, %cst_178 [1] : vector<16x32xf32> to vector<16xf32>
    %440 = vector.shape_cast %439 : vector<16xf32> to vector<16x1xf32>
    %cst_179 = arith.constant 3.200000e+01 : f32
    %441 = vector.broadcast %cst_179 : f32 to vector<16x1xf32>
    %442 = arith.divf %440, %441 : vector<16x1xf32>
    %443 = vector.broadcast %442 : vector<16x1xf32> to vector<16x32xf32>
    %444 = arith.subf %434, %443 : vector<16x32xf32>
    %445 = arith.mulf %444, %444 : vector<16x32xf32>
    %cst_180 = arith.constant dense<0.000000e+00> : vector<16xf32>
    %446 = vector.multi_reduction <add>, %445, %cst_180 [1] : vector<16x32xf32> to vector<16xf32>
    %447 = vector.shape_cast %446 : vector<16xf32> to vector<16x1xf32>
    %cst_181 = arith.constant 3.200000e+01 : f32
    %448 = vector.broadcast %cst_181 : f32 to vector<16x1xf32>
    %449 = arith.divf %447, %448 : vector<16x1xf32>
    %cst_182 = arith.constant 9.99999974E-6 : f32
    %450 = vector.broadcast %cst_182 : f32 to vector<16x1xf32>
    %451 = arith.addf %449, %450 : vector<16x1xf32>
    %452 = math.rsqrt %451 : vector<16x1xf32>
    %453 = vector.broadcast %452 : vector<16x1xf32> to vector<16x32xf32>
    %454 = arith.mulf %444, %453 : vector<16x32xf32>
    %455 = vector.broadcast %436 : vector<1x32xf32> to vector<16x32xf32>
    %456 = arith.mulf %454, %455 : vector<16x32xf32>
    %457 = vector.broadcast %438 : vector<1x32xf32> to vector<16x32xf32>
    %458 = arith.addf %456, %457 : vector<16x32xf32>
    %c1 = arith.constant 1 : index
    %c0_183 = arith.constant 0 : index
    %c0_184 = arith.constant 0 : index
    %459 = vector.load %arg4[%c1, %c0_183, %c0_184] : memref<2x32x96xf32, #tpu.memory_space<vmem>>, vector<1x32x96xf32>
    %460 = vector.shape_cast %459 : vector<1x32x96xf32> to vector<32x96xf32>
    %cst_185 = arith.constant dense<0.000000e+00> : vector<16x96xf32>
    %461 = tpu.matmul %458, %460, %cst_185 {dimension_numbers = #tpu.dot_dimension_numbers<[1], [0], [0], [1], [0, 0, 1, 1], [], []>} : vector<16x32xf32>, vector<32x96xf32>, vector<16x96xf32> -> vector<16x96xf32>
    %c1_186 = arith.constant 1 : index
    %c0_187 = arith.constant 0 : index
    %c0_188 = arith.constant 0 : index
    %462 = vector.load %arg5[%c1_186, %c0_187, %c0_188] : memref<2x1x96xf32, #tpu.memory_space<vmem>>, vector<1x1x96xf32>
    %463 = vector.shape_cast %462 : vector<1x1x96xf32> to vector<1x96xf32>
    %464 = vector.broadcast %463 : vector<1x96xf32> to vector<16x96xf32>
    %465 = arith.addf %461, %464 : vector<16x96xf32>
    %c1_189 = arith.constant 1 : index
    %c0_190 = arith.constant 0 : index
    %c0_191 = arith.constant 0 : index
    %466 = vector.load %arg6[%c1_189, %c0_190, %c0_191] : memref<2x32x32xf32, #tpu.memory_space<vmem>>, vector<1x32x32xf32>
    %467 = vector.shape_cast %466 : vector<1x32x32xf32> to vector<32x32xf32>
    %c1_192 = arith.constant 1 : index
    %c0_193 = arith.constant 0 : index
    %c0_194 = arith.constant 0 : index
    %468 = vector.load %arg7[%c1_192, %c0_193, %c0_194] : memref<2x1x32xf32, #tpu.memory_space<vmem>>, vector<1x1x32xf32>
    %469 = vector.shape_cast %468 : vector<1x1x32xf32> to vector<1x32xf32>
    %470 = vector.extract_strided_slice %465 {offsets = [0, 0], sizes = [8, 8], strides = [1, 1]} : vector<16x96xf32> to vector<8x8xf32>
    %471 = vector.extract_strided_slice %465 {offsets = [0, 32], sizes = [8, 8], strides = [1, 1]} : vector<16x96xf32> to vector<8x8xf32>
    %472 = vector.extract_strided_slice %465 {offsets = [0, 64], sizes = [8, 8], strides = [1, 1]} : vector<16x96xf32> to vector<8x8xf32>
    %cst_195 = arith.constant dense<0.000000e+00> : vector<8x8xf32>
    %473 = tpu.matmul %470, %471, %cst_195 {dimension_numbers = #tpu.dot_dimension_numbers<[1], [1], [0], [0], [0, 0, 1, 0], [], []>} : vector<8x8xf32>, vector<8x8xf32>, vector<8x8xf32> -> vector<8x8xf32>
    %cst_196 = arith.constant 0.353553385 : f32
    %474 = vector.broadcast %cst_196 : f32 to vector<8x8xf32>
    %475 = arith.mulf %473, %474 : vector<8x8xf32>
    %476 = arith.addf %475, %2 : vector<8x8xf32>
    %cst_197 = arith.constant dense<0xFF800000> : vector<8xf32>
    %477 = vector.multi_reduction <maximumf>, %476, %cst_197 [1] : vector<8x8xf32> to vector<8xf32>
    %478 = vector.shape_cast %477 : vector<8xf32> to vector<8x1xf32>
    %479 = vector.broadcast %478 : vector<8x1xf32> to vector<8x8xf32>
    %480 = arith.subf %476, %479 : vector<8x8xf32>
    %481 = math.exp %480 : vector<8x8xf32>
    %cst_198 = arith.constant dense<0.000000e+00> : vector<8xf32>
    %482 = vector.multi_reduction <add>, %481, %cst_198 [1] : vector<8x8xf32> to vector<8xf32>
    %483 = vector.shape_cast %482 : vector<8xf32> to vector<8x1xf32>
    %484 = tpu.reciprocal %483 {approx = true} : vector<8x1xf32> -> vector<8x1xf32>
    %485 = vector.broadcast %484 : vector<8x1xf32> to vector<8x8xf32>
    %486 = arith.mulf %481, %485 : vector<8x8xf32>
    %cst_199 = arith.constant dense<0.000000e+00> : vector<8x8xf32>
    %487 = tpu.matmul %486, %472, %cst_199 {dimension_numbers = #tpu.dot_dimension_numbers<[1], [0], [0], [1], [0, 0, 1, 1], [], []>} : vector<8x8xf32>, vector<8x8xf32>, vector<8x8xf32> -> vector<8x8xf32>
    %488 = vector.extract_strided_slice %467 {offsets = [0, 0], sizes = [8, 32], strides = [1, 1]} : vector<32x32xf32> to vector<8x32xf32>
    %cst_200 = arith.constant dense<0.000000e+00> : vector<8x32xf32>
    %489 = tpu.matmul %487, %488, %cst_200 {dimension_numbers = #tpu.dot_dimension_numbers<[1], [0], [0], [1], [0, 0, 1, 1], [], []>} : vector<8x8xf32>, vector<8x32xf32>, vector<8x32xf32> -> vector<8x32xf32>
    %490 = vector.extract_strided_slice %465 {offsets = [0, 8], sizes = [8, 8], strides = [1, 1]} : vector<16x96xf32> to vector<8x8xf32>
    %491 = vector.extract_strided_slice %465 {offsets = [0, 40], sizes = [8, 8], strides = [1, 1]} : vector<16x96xf32> to vector<8x8xf32>
    %492 = vector.extract_strided_slice %465 {offsets = [0, 72], sizes = [8, 8], strides = [1, 1]} : vector<16x96xf32> to vector<8x8xf32>
    %cst_201 = arith.constant dense<0.000000e+00> : vector<8x8xf32>
    %493 = tpu.matmul %490, %491, %cst_201 {dimension_numbers = #tpu.dot_dimension_numbers<[1], [1], [0], [0], [0, 0, 1, 0], [], []>} : vector<8x8xf32>, vector<8x8xf32>, vector<8x8xf32> -> vector<8x8xf32>
    %cst_202 = arith.constant 0.353553385 : f32
    %494 = vector.broadcast %cst_202 : f32 to vector<8x8xf32>
    %495 = arith.mulf %493, %494 : vector<8x8xf32>
    %496 = arith.addf %495, %2 : vector<8x8xf32>
    %cst_203 = arith.constant dense<0xFF800000> : vector<8xf32>
    %497 = vector.multi_reduction <maximumf>, %496, %cst_203 [1] : vector<8x8xf32> to vector<8xf32>
    %498 = vector.shape_cast %497 : vector<8xf32> to vector<8x1xf32>
    %499 = vector.broadcast %498 : vector<8x1xf32> to vector<8x8xf32>
    %500 = arith.subf %496, %499 : vector<8x8xf32>
    %501 = math.exp %500 : vector<8x8xf32>
    %cst_204 = arith.constant dense<0.000000e+00> : vector<8xf32>
    %502 = vector.multi_reduction <add>, %501, %cst_204 [1] : vector<8x8xf32> to vector<8xf32>
    %503 = vector.shape_cast %502 : vector<8xf32> to vector<8x1xf32>
    %504 = tpu.reciprocal %503 {approx = true} : vector<8x1xf32> -> vector<8x1xf32>
    %505 = vector.broadcast %504 : vector<8x1xf32> to vector<8x8xf32>
    %506 = arith.mulf %501, %505 : vector<8x8xf32>
    %cst_205 = arith.constant dense<0.000000e+00> : vector<8x8xf32>
    %507 = tpu.matmul %506, %492, %cst_205 {dimension_numbers = #tpu.dot_dimension_numbers<[1], [0], [0], [1], [0, 0, 1, 1], [], []>} : vector<8x8xf32>, vector<8x8xf32>, vector<8x8xf32> -> vector<8x8xf32>
    %508 = vector.extract_strided_slice %467 {offsets = [8, 0], sizes = [8, 32], strides = [1, 1]} : vector<32x32xf32> to vector<8x32xf32>
    %cst_206 = arith.constant dense<0.000000e+00> : vector<8x32xf32>
    %509 = tpu.matmul %507, %508, %cst_206 {dimension_numbers = #tpu.dot_dimension_numbers<[1], [0], [0], [1], [0, 0, 1, 1], [], []>} : vector<8x8xf32>, vector<8x32xf32>, vector<8x32xf32> -> vector<8x32xf32>
    %510 = arith.addf %489, %509 : vector<8x32xf32>
    %511 = vector.extract_strided_slice %465 {offsets = [0, 16], sizes = [8, 8], strides = [1, 1]} : vector<16x96xf32> to vector<8x8xf32>
    %512 = vector.extract_strided_slice %465 {offsets = [0, 48], sizes = [8, 8], strides = [1, 1]} : vector<16x96xf32> to vector<8x8xf32>
    %513 = vector.extract_strided_slice %465 {offsets = [0, 80], sizes = [8, 8], strides = [1, 1]} : vector<16x96xf32> to vector<8x8xf32>
    %cst_207 = arith.constant dense<0.000000e+00> : vector<8x8xf32>
    %514 = tpu.matmul %511, %512, %cst_207 {dimension_numbers = #tpu.dot_dimension_numbers<[1], [1], [0], [0], [0, 0, 1, 0], [], []>} : vector<8x8xf32>, vector<8x8xf32>, vector<8x8xf32> -> vector<8x8xf32>
    %cst_208 = arith.constant 0.353553385 : f32
    %515 = vector.broadcast %cst_208 : f32 to vector<8x8xf32>
    %516 = arith.mulf %514, %515 : vector<8x8xf32>
    %517 = arith.addf %516, %2 : vector<8x8xf32>
    %cst_209 = arith.constant dense<0xFF800000> : vector<8xf32>
    %518 = vector.multi_reduction <maximumf>, %517, %cst_209 [1] : vector<8x8xf32> to vector<8xf32>
    %519 = vector.shape_cast %518 : vector<8xf32> to vector<8x1xf32>
    %520 = vector.broadcast %519 : vector<8x1xf32> to vector<8x8xf32>
    %521 = arith.subf %517, %520 : vector<8x8xf32>
    %522 = math.exp %521 : vector<8x8xf32>
    %cst_210 = arith.constant dense<0.000000e+00> : vector<8xf32>
    %523 = vector.multi_reduction <add>, %522, %cst_210 [1] : vector<8x8xf32> to vector<8xf32>
    %524 = vector.shape_cast %523 : vector<8xf32> to vector<8x1xf32>
    %525 = tpu.reciprocal %524 {approx = true} : vector<8x1xf32> -> vector<8x1xf32>
    %526 = vector.broadcast %525 : vector<8x1xf32> to vector<8x8xf32>
    %527 = arith.mulf %522, %526 : vector<8x8xf32>
    %cst_211 = arith.constant dense<0.000000e+00> : vector<8x8xf32>
    %528 = tpu.matmul %527, %513, %cst_211 {dimension_numbers = #tpu.dot_dimension_numbers<[1], [0], [0], [1], [0, 0, 1, 1], [], []>} : vector<8x8xf32>, vector<8x8xf32>, vector<8x8xf32> -> vector<8x8xf32>
    %529 = vector.extract_strided_slice %467 {offsets = [16, 0], sizes = [8, 32], strides = [1, 1]} : vector<32x32xf32> to vector<8x32xf32>
    %cst_212 = arith.constant dense<0.000000e+00> : vector<8x32xf32>
    %530 = tpu.matmul %528, %529, %cst_212 {dimension_numbers = #tpu.dot_dimension_numbers<[1], [0], [0], [1], [0, 0, 1, 1], [], []>} : vector<8x8xf32>, vector<8x32xf32>, vector<8x32xf32> -> vector<8x32xf32>
    %531 = arith.addf %510, %530 : vector<8x32xf32>
    %532 = vector.extract_strided_slice %465 {offsets = [0, 24], sizes = [8, 8], strides = [1, 1]} : vector<16x96xf32> to vector<8x8xf32>
    %533 = vector.extract_strided_slice %465 {offsets = [0, 56], sizes = [8, 8], strides = [1, 1]} : vector<16x96xf32> to vector<8x8xf32>
    %534 = vector.extract_strided_slice %465 {offsets = [0, 88], sizes = [8, 8], strides = [1, 1]} : vector<16x96xf32> to vector<8x8xf32>
    %cst_213 = arith.constant dense<0.000000e+00> : vector<8x8xf32>
    %535 = tpu.matmul %532, %533, %cst_213 {dimension_numbers = #tpu.dot_dimension_numbers<[1], [1], [0], [0], [0, 0, 1, 0], [], []>} : vector<8x8xf32>, vector<8x8xf32>, vector<8x8xf32> -> vector<8x8xf32>
    %cst_214 = arith.constant 0.353553385 : f32
    %536 = vector.broadcast %cst_214 : f32 to vector<8x8xf32>
    %537 = arith.mulf %535, %536 : vector<8x8xf32>
    %538 = arith.addf %537, %2 : vector<8x8xf32>
    %cst_215 = arith.constant dense<0xFF800000> : vector<8xf32>
    %539 = vector.multi_reduction <maximumf>, %538, %cst_215 [1] : vector<8x8xf32> to vector<8xf32>
    %540 = vector.shape_cast %539 : vector<8xf32> to vector<8x1xf32>
    %541 = vector.broadcast %540 : vector<8x1xf32> to vector<8x8xf32>
    %542 = arith.subf %538, %541 : vector<8x8xf32>
    %543 = math.exp %542 : vector<8x8xf32>
    %cst_216 = arith.constant dense<0.000000e+00> : vector<8xf32>
    %544 = vector.multi_reduction <add>, %543, %cst_216 [1] : vector<8x8xf32> to vector<8xf32>
    %545 = vector.shape_cast %544 : vector<8xf32> to vector<8x1xf32>
    %546 = tpu.reciprocal %545 {approx = true} : vector<8x1xf32> -> vector<8x1xf32>
    %547 = vector.broadcast %546 : vector<8x1xf32> to vector<8x8xf32>
    %548 = arith.mulf %543, %547 : vector<8x8xf32>
    %cst_217 = arith.constant dense<0.000000e+00> : vector<8x8xf32>
    %549 = tpu.matmul %548, %534, %cst_217 {dimension_numbers = #tpu.dot_dimension_numbers<[1], [0], [0], [1], [0, 0, 1, 1], [], []>} : vector<8x8xf32>, vector<8x8xf32>, vector<8x8xf32> -> vector<8x8xf32>
    %550 = vector.extract_strided_slice %467 {offsets = [24, 0], sizes = [8, 32], strides = [1, 1]} : vector<32x32xf32> to vector<8x32xf32>
    %cst_218 = arith.constant dense<0.000000e+00> : vector<8x32xf32>
    %551 = tpu.matmul %549, %550, %cst_218 {dimension_numbers = #tpu.dot_dimension_numbers<[1], [0], [0], [1], [0, 0, 1, 1], [], []>} : vector<8x8xf32>, vector<8x32xf32>, vector<8x32xf32> -> vector<8x32xf32>
    %552 = arith.addf %531, %551 : vector<8x32xf32>
    %553 = vector.extract_strided_slice %465 {offsets = [8, 0], sizes = [8, 8], strides = [1, 1]} : vector<16x96xf32> to vector<8x8xf32>
    %554 = vector.extract_strided_slice %465 {offsets = [8, 32], sizes = [8, 8], strides = [1, 1]} : vector<16x96xf32> to vector<8x8xf32>
    %555 = vector.extract_strided_slice %465 {offsets = [8, 64], sizes = [8, 8], strides = [1, 1]} : vector<16x96xf32> to vector<8x8xf32>
    %cst_219 = arith.constant dense<0.000000e+00> : vector<8x8xf32>
    %556 = tpu.matmul %553, %554, %cst_219 {dimension_numbers = #tpu.dot_dimension_numbers<[1], [1], [0], [0], [0, 0, 1, 0], [], []>} : vector<8x8xf32>, vector<8x8xf32>, vector<8x8xf32> -> vector<8x8xf32>
    %cst_220 = arith.constant 0.353553385 : f32
    %557 = vector.broadcast %cst_220 : f32 to vector<8x8xf32>
    %558 = arith.mulf %556, %557 : vector<8x8xf32>
    %559 = arith.addf %558, %2 : vector<8x8xf32>
    %cst_221 = arith.constant dense<0xFF800000> : vector<8xf32>
    %560 = vector.multi_reduction <maximumf>, %559, %cst_221 [1] : vector<8x8xf32> to vector<8xf32>
    %561 = vector.shape_cast %560 : vector<8xf32> to vector<8x1xf32>
    %562 = vector.broadcast %561 : vector<8x1xf32> to vector<8x8xf32>
    %563 = arith.subf %559, %562 : vector<8x8xf32>
    %564 = math.exp %563 : vector<8x8xf32>
    %cst_222 = arith.constant dense<0.000000e+00> : vector<8xf32>
    %565 = vector.multi_reduction <add>, %564, %cst_222 [1] : vector<8x8xf32> to vector<8xf32>
    %566 = vector.shape_cast %565 : vector<8xf32> to vector<8x1xf32>
    %567 = tpu.reciprocal %566 {approx = true} : vector<8x1xf32> -> vector<8x1xf32>
    %568 = vector.broadcast %567 : vector<8x1xf32> to vector<8x8xf32>
    %569 = arith.mulf %564, %568 : vector<8x8xf32>
    %cst_223 = arith.constant dense<0.000000e+00> : vector<8x8xf32>
    %570 = tpu.matmul %569, %555, %cst_223 {dimension_numbers = #tpu.dot_dimension_numbers<[1], [0], [0], [1], [0, 0, 1, 1], [], []>} : vector<8x8xf32>, vector<8x8xf32>, vector<8x8xf32> -> vector<8x8xf32>
    %571 = vector.extract_strided_slice %467 {offsets = [0, 0], sizes = [8, 32], strides = [1, 1]} : vector<32x32xf32> to vector<8x32xf32>
    %cst_224 = arith.constant dense<0.000000e+00> : vector<8x32xf32>
    %572 = tpu.matmul %570, %571, %cst_224 {dimension_numbers = #tpu.dot_dimension_numbers<[1], [0], [0], [1], [0, 0, 1, 1], [], []>} : vector<8x8xf32>, vector<8x32xf32>, vector<8x32xf32> -> vector<8x32xf32>
    %573 = vector.extract_strided_slice %465 {offsets = [8, 8], sizes = [8, 8], strides = [1, 1]} : vector<16x96xf32> to vector<8x8xf32>
    %574 = vector.extract_strided_slice %465 {offsets = [8, 40], sizes = [8, 8], strides = [1, 1]} : vector<16x96xf32> to vector<8x8xf32>
    %575 = vector.extract_strided_slice %465 {offsets = [8, 72], sizes = [8, 8], strides = [1, 1]} : vector<16x96xf32> to vector<8x8xf32>
    %cst_225 = arith.constant dense<0.000000e+00> : vector<8x8xf32>
    %576 = tpu.matmul %573, %574, %cst_225 {dimension_numbers = #tpu.dot_dimension_numbers<[1], [1], [0], [0], [0, 0, 1, 0], [], []>} : vector<8x8xf32>, vector<8x8xf32>, vector<8x8xf32> -> vector<8x8xf32>
    %cst_226 = arith.constant 0.353553385 : f32
    %577 = vector.broadcast %cst_226 : f32 to vector<8x8xf32>
    %578 = arith.mulf %576, %577 : vector<8x8xf32>
    %579 = arith.addf %578, %2 : vector<8x8xf32>
    %cst_227 = arith.constant dense<0xFF800000> : vector<8xf32>
    %580 = vector.multi_reduction <maximumf>, %579, %cst_227 [1] : vector<8x8xf32> to vector<8xf32>
    %581 = vector.shape_cast %580 : vector<8xf32> to vector<8x1xf32>
    %582 = vector.broadcast %581 : vector<8x1xf32> to vector<8x8xf32>
    %583 = arith.subf %579, %582 : vector<8x8xf32>
    %584 = math.exp %583 : vector<8x8xf32>
    %cst_228 = arith.constant dense<0.000000e+00> : vector<8xf32>
    %585 = vector.multi_reduction <add>, %584, %cst_228 [1] : vector<8x8xf32> to vector<8xf32>
    %586 = vector.shape_cast %585 : vector<8xf32> to vector<8x1xf32>
    %587 = tpu.reciprocal %586 {approx = true} : vector<8x1xf32> -> vector<8x1xf32>
    %588 = vector.broadcast %587 : vector<8x1xf32> to vector<8x8xf32>
    %589 = arith.mulf %584, %588 : vector<8x8xf32>
    %cst_229 = arith.constant dense<0.000000e+00> : vector<8x8xf32>
    %590 = tpu.matmul %589, %575, %cst_229 {dimension_numbers = #tpu.dot_dimension_numbers<[1], [0], [0], [1], [0, 0, 1, 1], [], []>} : vector<8x8xf32>, vector<8x8xf32>, vector<8x8xf32> -> vector<8x8xf32>
    %591 = vector.extract_strided_slice %467 {offsets = [8, 0], sizes = [8, 32], strides = [1, 1]} : vector<32x32xf32> to vector<8x32xf32>
    %cst_230 = arith.constant dense<0.000000e+00> : vector<8x32xf32>
    %592 = tpu.matmul %590, %591, %cst_230 {dimension_numbers = #tpu.dot_dimension_numbers<[1], [0], [0], [1], [0, 0, 1, 1], [], []>} : vector<8x8xf32>, vector<8x32xf32>, vector<8x32xf32> -> vector<8x32xf32>
    %593 = arith.addf %572, %592 : vector<8x32xf32>
    %594 = vector.extract_strided_slice %465 {offsets = [8, 16], sizes = [8, 8], strides = [1, 1]} : vector<16x96xf32> to vector<8x8xf32>
    %595 = vector.extract_strided_slice %465 {offsets = [8, 48], sizes = [8, 8], strides = [1, 1]} : vector<16x96xf32> to vector<8x8xf32>
    %596 = vector.extract_strided_slice %465 {offsets = [8, 80], sizes = [8, 8], strides = [1, 1]} : vector<16x96xf32> to vector<8x8xf32>
    %cst_231 = arith.constant dense<0.000000e+00> : vector<8x8xf32>
    %597 = tpu.matmul %594, %595, %cst_231 {dimension_numbers = #tpu.dot_dimension_numbers<[1], [1], [0], [0], [0, 0, 1, 0], [], []>} : vector<8x8xf32>, vector<8x8xf32>, vector<8x8xf32> -> vector<8x8xf32>
    %cst_232 = arith.constant 0.353553385 : f32
    %598 = vector.broadcast %cst_232 : f32 to vector<8x8xf32>
    %599 = arith.mulf %597, %598 : vector<8x8xf32>
    %600 = arith.addf %599, %2 : vector<8x8xf32>
    %cst_233 = arith.constant dense<0xFF800000> : vector<8xf32>
    %601 = vector.multi_reduction <maximumf>, %600, %cst_233 [1] : vector<8x8xf32> to vector<8xf32>
    %602 = vector.shape_cast %601 : vector<8xf32> to vector<8x1xf32>
    %603 = vector.broadcast %602 : vector<8x1xf32> to vector<8x8xf32>
    %604 = arith.subf %600, %603 : vector<8x8xf32>
    %605 = math.exp %604 : vector<8x8xf32>
    %cst_234 = arith.constant dense<0.000000e+00> : vector<8xf32>
    %606 = vector.multi_reduction <add>, %605, %cst_234 [1] : vector<8x8xf32> to vector<8xf32>
    %607 = vector.shape_cast %606 : vector<8xf32> to vector<8x1xf32>
    %608 = tpu.reciprocal %607 {approx = true} : vector<8x1xf32> -> vector<8x1xf32>
    %609 = vector.broadcast %608 : vector<8x1xf32> to vector<8x8xf32>
    %610 = arith.mulf %605, %609 : vector<8x8xf32>
    %cst_235 = arith.constant dense<0.000000e+00> : vector<8x8xf32>
    %611 = tpu.matmul %610, %596, %cst_235 {dimension_numbers = #tpu.dot_dimension_numbers<[1], [0], [0], [1], [0, 0, 1, 1], [], []>} : vector<8x8xf32>, vector<8x8xf32>, vector<8x8xf32> -> vector<8x8xf32>
    %612 = vector.extract_strided_slice %467 {offsets = [16, 0], sizes = [8, 32], strides = [1, 1]} : vector<32x32xf32> to vector<8x32xf32>
    %cst_236 = arith.constant dense<0.000000e+00> : vector<8x32xf32>
    %613 = tpu.matmul %611, %612, %cst_236 {dimension_numbers = #tpu.dot_dimension_numbers<[1], [0], [0], [1], [0, 0, 1, 1], [], []>} : vector<8x8xf32>, vector<8x32xf32>, vector<8x32xf32> -> vector<8x32xf32>
    %614 = arith.addf %593, %613 : vector<8x32xf32>
    %615 = vector.extract_strided_slice %465 {offsets = [8, 24], sizes = [8, 8], strides = [1, 1]} : vector<16x96xf32> to vector<8x8xf32>
    %616 = vector.extract_strided_slice %465 {offsets = [8, 56], sizes = [8, 8], strides = [1, 1]} : vector<16x96xf32> to vector<8x8xf32>
    %617 = vector.extract_strided_slice %465 {offsets = [8, 88], sizes = [8, 8], strides = [1, 1]} : vector<16x96xf32> to vector<8x8xf32>
    %cst_237 = arith.constant dense<0.000000e+00> : vector<8x8xf32>
    %618 = tpu.matmul %615, %616, %cst_237 {dimension_numbers = #tpu.dot_dimension_numbers<[1], [1], [0], [0], [0, 0, 1, 0], [], []>} : vector<8x8xf32>, vector<8x8xf32>, vector<8x8xf32> -> vector<8x8xf32>
    %cst_238 = arith.constant 0.353553385 : f32
    %619 = vector.broadcast %cst_238 : f32 to vector<8x8xf32>
    %620 = arith.mulf %618, %619 : vector<8x8xf32>
    %621 = arith.addf %620, %2 : vector<8x8xf32>
    %cst_239 = arith.constant dense<0xFF800000> : vector<8xf32>
    %622 = vector.multi_reduction <maximumf>, %621, %cst_239 [1] : vector<8x8xf32> to vector<8xf32>
    %623 = vector.shape_cast %622 : vector<8xf32> to vector<8x1xf32>
    %624 = vector.broadcast %623 : vector<8x1xf32> to vector<8x8xf32>
    %625 = arith.subf %621, %624 : vector<8x8xf32>
    %626 = math.exp %625 : vector<8x8xf32>
    %cst_240 = arith.constant dense<0.000000e+00> : vector<8xf32>
    %627 = vector.multi_reduction <add>, %626, %cst_240 [1] : vector<8x8xf32> to vector<8xf32>
    %628 = vector.shape_cast %627 : vector<8xf32> to vector<8x1xf32>
    %629 = tpu.reciprocal %628 {approx = true} : vector<8x1xf32> -> vector<8x1xf32>
    %630 = vector.broadcast %629 : vector<8x1xf32> to vector<8x8xf32>
    %631 = arith.mulf %626, %630 : vector<8x8xf32>
    %cst_241 = arith.constant dense<0.000000e+00> : vector<8x8xf32>
    %632 = tpu.matmul %631, %617, %cst_241 {dimension_numbers = #tpu.dot_dimension_numbers<[1], [0], [0], [1], [0, 0, 1, 1], [], []>} : vector<8x8xf32>, vector<8x8xf32>, vector<8x8xf32> -> vector<8x8xf32>
    %633 = vector.extract_strided_slice %467 {offsets = [24, 0], sizes = [8, 32], strides = [1, 1]} : vector<32x32xf32> to vector<8x32xf32>
    %cst_242 = arith.constant dense<0.000000e+00> : vector<8x32xf32>
    %634 = tpu.matmul %632, %633, %cst_242 {dimension_numbers = #tpu.dot_dimension_numbers<[1], [0], [0], [1], [0, 0, 1, 1], [], []>} : vector<8x8xf32>, vector<8x32xf32>, vector<8x32xf32> -> vector<8x32xf32>
    %635 = arith.addf %614, %634 : vector<8x32xf32>
    %636 = tpu.concatenate %552, %635 in 0 : vector<8x32xf32>, vector<8x32xf32> -> vector<16x32xf32>
    %637 = vector.broadcast %469 : vector<1x32xf32> to vector<16x32xf32>
    %638 = arith.addf %636, %637 : vector<16x32xf32>
    %639 = arith.addf %458, %638 : vector<16x32xf32>
    %c1_243 = arith.constant 1 : index
    %c0_244 = arith.constant 0 : index
    %c0_245 = arith.constant 0 : index
    %640 = vector.load %arg18[%c1_243, %c0_244, %c0_245] : memref<2x1x32xf32, #tpu.memory_space<vmem>>, vector<1x1x32xf32>
    %641 = vector.shape_cast %640 : vector<1x1x32xf32> to vector<1x32xf32>
    %c1_246 = arith.constant 1 : index
    %c0_247 = arith.constant 0 : index
    %c0_248 = arith.constant 0 : index
    %642 = vector.load %arg19[%c1_246, %c0_247, %c0_248] : memref<2x1x32xf32, #tpu.memory_space<vmem>>, vector<1x1x32xf32>
    %643 = vector.shape_cast %642 : vector<1x1x32xf32> to vector<1x32xf32>
    %cst_249 = arith.constant dense<0.000000e+00> : vector<16xf32>
    %644 = vector.multi_reduction <add>, %639, %cst_249 [1] : vector<16x32xf32> to vector<16xf32>
    %645 = vector.shape_cast %644 : vector<16xf32> to vector<16x1xf32>
    %cst_250 = arith.constant 3.200000e+01 : f32
    %646 = vector.broadcast %cst_250 : f32 to vector<16x1xf32>
    %647 = arith.divf %645, %646 : vector<16x1xf32>
    %648 = vector.broadcast %647 : vector<16x1xf32> to vector<16x32xf32>
    %649 = arith.subf %639, %648 : vector<16x32xf32>
    %650 = arith.mulf %649, %649 : vector<16x32xf32>
    %cst_251 = arith.constant dense<0.000000e+00> : vector<16xf32>
    %651 = vector.multi_reduction <add>, %650, %cst_251 [1] : vector<16x32xf32> to vector<16xf32>
    %652 = vector.shape_cast %651 : vector<16xf32> to vector<16x1xf32>
    %cst_252 = arith.constant 3.200000e+01 : f32
    %653 = vector.broadcast %cst_252 : f32 to vector<16x1xf32>
    %654 = arith.divf %652, %653 : vector<16x1xf32>
    %cst_253 = arith.constant 9.99999974E-6 : f32
    %655 = vector.broadcast %cst_253 : f32 to vector<16x1xf32>
    %656 = arith.addf %654, %655 : vector<16x1xf32>
    %657 = math.rsqrt %656 : vector<16x1xf32>
    %658 = vector.broadcast %657 : vector<16x1xf32> to vector<16x32xf32>
    %659 = arith.mulf %649, %658 : vector<16x32xf32>
    %660 = vector.broadcast %641 : vector<1x32xf32> to vector<16x32xf32>
    %661 = arith.mulf %659, %660 : vector<16x32xf32>
    %662 = vector.broadcast %643 : vector<1x32xf32> to vector<16x32xf32>
    %663 = arith.addf %661, %662 : vector<16x32xf32>
    %c1_254 = arith.constant 1 : index
    %c0_255 = arith.constant 0 : index
    %c0_256 = arith.constant 0 : index
    %664 = vector.load %arg8[%c1_254, %c0_255, %c0_256] : memref<2x32x32xf32, #tpu.memory_space<vmem>>, vector<1x32x32xf32>
    %665 = vector.shape_cast %664 : vector<1x32x32xf32> to vector<32x32xf32>
    %cst_257 = arith.constant dense<0.000000e+00> : vector<16x32xf32>
    %666 = tpu.matmul %663, %665, %cst_257 {dimension_numbers = #tpu.dot_dimension_numbers<[1], [0], [0], [1], [0, 0, 1, 1], [], []>} : vector<16x32xf32>, vector<32x32xf32>, vector<16x32xf32> -> vector<16x32xf32>
    %c1_258 = arith.constant 1 : index
    %c0_259 = arith.constant 0 : index
    %c0_260 = arith.constant 0 : index
    %667 = vector.load %arg9[%c1_258, %c0_259, %c0_260] : memref<2x1x32xf32, #tpu.memory_space<vmem>>, vector<1x1x32xf32>
    %668 = vector.shape_cast %667 : vector<1x1x32xf32> to vector<1x32xf32>
    %669 = vector.broadcast %668 : vector<1x32xf32> to vector<16x32xf32>
    %670 = arith.addf %666, %669 : vector<16x32xf32>
    %c1_261 = arith.constant 1 : index
    %c0_262 = arith.constant 0 : index
    %c0_263 = arith.constant 0 : index
    %671 = vector.load %arg10[%c1_261, %c0_262, %c0_263] : memref<2x32x64xf32, #tpu.memory_space<vmem>>, vector<1x32x64xf32>
    %672 = vector.shape_cast %671 : vector<1x32x64xf32> to vector<32x64xf32>
    %cst_264 = arith.constant dense<0.000000e+00> : vector<32x64xf32>
    %673 = tpu.matmul %1, %672, %cst_264 {dimension_numbers = #tpu.dot_dimension_numbers<[1], [0], [0], [1], [0, 0, 1, 1], [], []>} : vector<32x32xf32>, vector<32x64xf32>, vector<32x64xf32> -> vector<32x64xf32>
    %c1_265 = arith.constant 1 : index
    %c0_266 = arith.constant 0 : index
    %c0_267 = arith.constant 0 : index
    %674 = vector.load %arg11[%c1_265, %c0_266, %c0_267] : memref<2x1x64xf32, #tpu.memory_space<vmem>>, vector<1x1x64xf32>
    %675 = vector.shape_cast %674 : vector<1x1x64xf32> to vector<1x64xf32>
    %676 = vector.broadcast %675 : vector<1x64xf32> to vector<32x64xf32>
    %677 = arith.addf %673, %676 : vector<32x64xf32>
    %c1_268 = arith.constant 1 : index
    %c0_269 = arith.constant 0 : index
    %c0_270 = arith.constant 0 : index
    %678 = vector.load %arg12[%c1_268, %c0_269, %c0_270] : memref<2x32x32xf32, #tpu.memory_space<vmem>>, vector<1x32x32xf32>
    %679 = vector.shape_cast %678 : vector<1x32x32xf32> to vector<32x32xf32>
    %c1_271 = arith.constant 1 : index
    %c0_272 = arith.constant 0 : index
    %c0_273 = arith.constant 0 : index
    %680 = vector.load %arg13[%c1_271, %c0_272, %c0_273] : memref<2x1x32xf32, #tpu.memory_space<vmem>>, vector<1x1x32xf32>
    %681 = vector.shape_cast %680 : vector<1x1x32xf32> to vector<1x32xf32>
    %682 = vector.extract_strided_slice %670 {offsets = [0, 0], sizes = [8, 8], strides = [1, 1]} : vector<16x32xf32> to vector<8x8xf32>
    %683 = vector.extract_strided_slice %677 {offsets = [0, 0], sizes = [16, 8], strides = [1, 1]} : vector<32x64xf32> to vector<16x8xf32>
    %684 = vector.extract_strided_slice %677 {offsets = [0, 32], sizes = [16, 8], strides = [1, 1]} : vector<32x64xf32> to vector<16x8xf32>
    %cst_274 = arith.constant dense<0.000000e+00> : vector<8x16xf32>
    %685 = tpu.matmul %682, %683, %cst_274 {dimension_numbers = #tpu.dot_dimension_numbers<[1], [1], [0], [0], [0, 0, 1, 0], [], []>} : vector<8x8xf32>, vector<16x8xf32>, vector<8x16xf32> -> vector<8x16xf32>
    %cst_275 = arith.constant 0.353553385 : f32
    %686 = vector.broadcast %cst_275 : f32 to vector<8x16xf32>
    %687 = arith.mulf %685, %686 : vector<8x16xf32>
    %cst_276 = arith.constant dense<0xFF800000> : vector<8xf32>
    %688 = vector.multi_reduction <maximumf>, %687, %cst_276 [1] : vector<8x16xf32> to vector<8xf32>
    %689 = vector.shape_cast %688 : vector<8xf32> to vector<8x1xf32>
    %690 = vector.broadcast %689 : vector<8x1xf32> to vector<8x16xf32>
    %691 = arith.subf %687, %690 : vector<8x16xf32>
    %692 = math.exp %691 : vector<8x16xf32>
    %cst_277 = arith.constant dense<0.000000e+00> : vector<8xf32>
    %693 = vector.multi_reduction <add>, %692, %cst_277 [1] : vector<8x16xf32> to vector<8xf32>
    %694 = vector.shape_cast %693 : vector<8xf32> to vector<8x1xf32>
    %695 = tpu.reciprocal %694 {approx = true} : vector<8x1xf32> -> vector<8x1xf32>
    %696 = vector.broadcast %695 : vector<8x1xf32> to vector<8x16xf32>
    %697 = arith.mulf %692, %696 : vector<8x16xf32>
    %cst_278 = arith.constant dense<0.000000e+00> : vector<8x8xf32>
    %698 = tpu.matmul %697, %684, %cst_278 {dimension_numbers = #tpu.dot_dimension_numbers<[1], [0], [0], [1], [0, 0, 1, 1], [], []>} : vector<8x16xf32>, vector<16x8xf32>, vector<8x8xf32> -> vector<8x8xf32>
    %699 = vector.extract_strided_slice %679 {offsets = [0, 0], sizes = [8, 32], strides = [1, 1]} : vector<32x32xf32> to vector<8x32xf32>
    %cst_279 = arith.constant dense<0.000000e+00> : vector<8x32xf32>
    %700 = tpu.matmul %698, %699, %cst_279 {dimension_numbers = #tpu.dot_dimension_numbers<[1], [0], [0], [1], [0, 0, 1, 1], [], []>} : vector<8x8xf32>, vector<8x32xf32>, vector<8x32xf32> -> vector<8x32xf32>
    %701 = vector.extract_strided_slice %670 {offsets = [0, 8], sizes = [8, 8], strides = [1, 1]} : vector<16x32xf32> to vector<8x8xf32>
    %702 = vector.extract_strided_slice %677 {offsets = [0, 8], sizes = [16, 8], strides = [1, 1]} : vector<32x64xf32> to vector<16x8xf32>
    %703 = vector.extract_strided_slice %677 {offsets = [0, 40], sizes = [16, 8], strides = [1, 1]} : vector<32x64xf32> to vector<16x8xf32>
    %cst_280 = arith.constant dense<0.000000e+00> : vector<8x16xf32>
    %704 = tpu.matmul %701, %702, %cst_280 {dimension_numbers = #tpu.dot_dimension_numbers<[1], [1], [0], [0], [0, 0, 1, 0], [], []>} : vector<8x8xf32>, vector<16x8xf32>, vector<8x16xf32> -> vector<8x16xf32>
    %cst_281 = arith.constant 0.353553385 : f32
    %705 = vector.broadcast %cst_281 : f32 to vector<8x16xf32>
    %706 = arith.mulf %704, %705 : vector<8x16xf32>
    %cst_282 = arith.constant dense<0xFF800000> : vector<8xf32>
    %707 = vector.multi_reduction <maximumf>, %706, %cst_282 [1] : vector<8x16xf32> to vector<8xf32>
    %708 = vector.shape_cast %707 : vector<8xf32> to vector<8x1xf32>
    %709 = vector.broadcast %708 : vector<8x1xf32> to vector<8x16xf32>
    %710 = arith.subf %706, %709 : vector<8x16xf32>
    %711 = math.exp %710 : vector<8x16xf32>
    %cst_283 = arith.constant dense<0.000000e+00> : vector<8xf32>
    %712 = vector.multi_reduction <add>, %711, %cst_283 [1] : vector<8x16xf32> to vector<8xf32>
    %713 = vector.shape_cast %712 : vector<8xf32> to vector<8x1xf32>
    %714 = tpu.reciprocal %713 {approx = true} : vector<8x1xf32> -> vector<8x1xf32>
    %715 = vector.broadcast %714 : vector<8x1xf32> to vector<8x16xf32>
    %716 = arith.mulf %711, %715 : vector<8x16xf32>
    %cst_284 = arith.constant dense<0.000000e+00> : vector<8x8xf32>
    %717 = tpu.matmul %716, %703, %cst_284 {dimension_numbers = #tpu.dot_dimension_numbers<[1], [0], [0], [1], [0, 0, 1, 1], [], []>} : vector<8x16xf32>, vector<16x8xf32>, vector<8x8xf32> -> vector<8x8xf32>
    %718 = vector.extract_strided_slice %679 {offsets = [8, 0], sizes = [8, 32], strides = [1, 1]} : vector<32x32xf32> to vector<8x32xf32>
    %cst_285 = arith.constant dense<0.000000e+00> : vector<8x32xf32>
    %719 = tpu.matmul %717, %718, %cst_285 {dimension_numbers = #tpu.dot_dimension_numbers<[1], [0], [0], [1], [0, 0, 1, 1], [], []>} : vector<8x8xf32>, vector<8x32xf32>, vector<8x32xf32> -> vector<8x32xf32>
    %720 = arith.addf %700, %719 : vector<8x32xf32>
    %721 = vector.extract_strided_slice %670 {offsets = [0, 16], sizes = [8, 8], strides = [1, 1]} : vector<16x32xf32> to vector<8x8xf32>
    %722 = vector.extract_strided_slice %677 {offsets = [0, 16], sizes = [16, 8], strides = [1, 1]} : vector<32x64xf32> to vector<16x8xf32>
    %723 = vector.extract_strided_slice %677 {offsets = [0, 48], sizes = [16, 8], strides = [1, 1]} : vector<32x64xf32> to vector<16x8xf32>
    %cst_286 = arith.constant dense<0.000000e+00> : vector<8x16xf32>
    %724 = tpu.matmul %721, %722, %cst_286 {dimension_numbers = #tpu.dot_dimension_numbers<[1], [1], [0], [0], [0, 0, 1, 0], [], []>} : vector<8x8xf32>, vector<16x8xf32>, vector<8x16xf32> -> vector<8x16xf32>
    %cst_287 = arith.constant 0.353553385 : f32
    %725 = vector.broadcast %cst_287 : f32 to vector<8x16xf32>
    %726 = arith.mulf %724, %725 : vector<8x16xf32>
    %cst_288 = arith.constant dense<0xFF800000> : vector<8xf32>
    %727 = vector.multi_reduction <maximumf>, %726, %cst_288 [1] : vector<8x16xf32> to vector<8xf32>
    %728 = vector.shape_cast %727 : vector<8xf32> to vector<8x1xf32>
    %729 = vector.broadcast %728 : vector<8x1xf32> to vector<8x16xf32>
    %730 = arith.subf %726, %729 : vector<8x16xf32>
    %731 = math.exp %730 : vector<8x16xf32>
    %cst_289 = arith.constant dense<0.000000e+00> : vector<8xf32>
    %732 = vector.multi_reduction <add>, %731, %cst_289 [1] : vector<8x16xf32> to vector<8xf32>
    %733 = vector.shape_cast %732 : vector<8xf32> to vector<8x1xf32>
    %734 = tpu.reciprocal %733 {approx = true} : vector<8x1xf32> -> vector<8x1xf32>
    %735 = vector.broadcast %734 : vector<8x1xf32> to vector<8x16xf32>
    %736 = arith.mulf %731, %735 : vector<8x16xf32>
    %cst_290 = arith.constant dense<0.000000e+00> : vector<8x8xf32>
    %737 = tpu.matmul %736, %723, %cst_290 {dimension_numbers = #tpu.dot_dimension_numbers<[1], [0], [0], [1], [0, 0, 1, 1], [], []>} : vector<8x16xf32>, vector<16x8xf32>, vector<8x8xf32> -> vector<8x8xf32>
    %738 = vector.extract_strided_slice %679 {offsets = [16, 0], sizes = [8, 32], strides = [1, 1]} : vector<32x32xf32> to vector<8x32xf32>
    %cst_291 = arith.constant dense<0.000000e+00> : vector<8x32xf32>
    %739 = tpu.matmul %737, %738, %cst_291 {dimension_numbers = #tpu.dot_dimension_numbers<[1], [0], [0], [1], [0, 0, 1, 1], [], []>} : vector<8x8xf32>, vector<8x32xf32>, vector<8x32xf32> -> vector<8x32xf32>
    %740 = arith.addf %720, %739 : vector<8x32xf32>
    %741 = vector.extract_strided_slice %670 {offsets = [0, 24], sizes = [8, 8], strides = [1, 1]} : vector<16x32xf32> to vector<8x8xf32>
    %742 = vector.extract_strided_slice %677 {offsets = [0, 24], sizes = [16, 8], strides = [1, 1]} : vector<32x64xf32> to vector<16x8xf32>
    %743 = vector.extract_strided_slice %677 {offsets = [0, 56], sizes = [16, 8], strides = [1, 1]} : vector<32x64xf32> to vector<16x8xf32>
    %cst_292 = arith.constant dense<0.000000e+00> : vector<8x16xf32>
    %744 = tpu.matmul %741, %742, %cst_292 {dimension_numbers = #tpu.dot_dimension_numbers<[1], [1], [0], [0], [0, 0, 1, 0], [], []>} : vector<8x8xf32>, vector<16x8xf32>, vector<8x16xf32> -> vector<8x16xf32>
    %cst_293 = arith.constant 0.353553385 : f32
    %745 = vector.broadcast %cst_293 : f32 to vector<8x16xf32>
    %746 = arith.mulf %744, %745 : vector<8x16xf32>
    %cst_294 = arith.constant dense<0xFF800000> : vector<8xf32>
    %747 = vector.multi_reduction <maximumf>, %746, %cst_294 [1] : vector<8x16xf32> to vector<8xf32>
    %748 = vector.shape_cast %747 : vector<8xf32> to vector<8x1xf32>
    %749 = vector.broadcast %748 : vector<8x1xf32> to vector<8x16xf32>
    %750 = arith.subf %746, %749 : vector<8x16xf32>
    %751 = math.exp %750 : vector<8x16xf32>
    %cst_295 = arith.constant dense<0.000000e+00> : vector<8xf32>
    %752 = vector.multi_reduction <add>, %751, %cst_295 [1] : vector<8x16xf32> to vector<8xf32>
    %753 = vector.shape_cast %752 : vector<8xf32> to vector<8x1xf32>
    %754 = tpu.reciprocal %753 {approx = true} : vector<8x1xf32> -> vector<8x1xf32>
    %755 = vector.broadcast %754 : vector<8x1xf32> to vector<8x16xf32>
    %756 = arith.mulf %751, %755 : vector<8x16xf32>
    %cst_296 = arith.constant dense<0.000000e+00> : vector<8x8xf32>
    %757 = tpu.matmul %756, %743, %cst_296 {dimension_numbers = #tpu.dot_dimension_numbers<[1], [0], [0], [1], [0, 0, 1, 1], [], []>} : vector<8x16xf32>, vector<16x8xf32>, vector<8x8xf32> -> vector<8x8xf32>
    %758 = vector.extract_strided_slice %679 {offsets = [24, 0], sizes = [8, 32], strides = [1, 1]} : vector<32x32xf32> to vector<8x32xf32>
    %cst_297 = arith.constant dense<0.000000e+00> : vector<8x32xf32>
    %759 = tpu.matmul %757, %758, %cst_297 {dimension_numbers = #tpu.dot_dimension_numbers<[1], [0], [0], [1], [0, 0, 1, 1], [], []>} : vector<8x8xf32>, vector<8x32xf32>, vector<8x32xf32> -> vector<8x32xf32>
    %760 = arith.addf %740, %759 : vector<8x32xf32>
    %761 = vector.extract_strided_slice %670 {offsets = [8, 0], sizes = [8, 8], strides = [1, 1]} : vector<16x32xf32> to vector<8x8xf32>
    %762 = vector.extract_strided_slice %677 {offsets = [16, 0], sizes = [16, 8], strides = [1, 1]} : vector<32x64xf32> to vector<16x8xf32>
    %763 = vector.extract_strided_slice %677 {offsets = [16, 32], sizes = [16, 8], strides = [1, 1]} : vector<32x64xf32> to vector<16x8xf32>
    %cst_298 = arith.constant dense<0.000000e+00> : vector<8x16xf32>
    %764 = tpu.matmul %761, %762, %cst_298 {dimension_numbers = #tpu.dot_dimension_numbers<[1], [1], [0], [0], [0, 0, 1, 0], [], []>} : vector<8x8xf32>, vector<16x8xf32>, vector<8x16xf32> -> vector<8x16xf32>
    %cst_299 = arith.constant 0.353553385 : f32
    %765 = vector.broadcast %cst_299 : f32 to vector<8x16xf32>
    %766 = arith.mulf %764, %765 : vector<8x16xf32>
    %cst_300 = arith.constant dense<0xFF800000> : vector<8xf32>
    %767 = vector.multi_reduction <maximumf>, %766, %cst_300 [1] : vector<8x16xf32> to vector<8xf32>
    %768 = vector.shape_cast %767 : vector<8xf32> to vector<8x1xf32>
    %769 = vector.broadcast %768 : vector<8x1xf32> to vector<8x16xf32>
    %770 = arith.subf %766, %769 : vector<8x16xf32>
    %771 = math.exp %770 : vector<8x16xf32>
    %cst_301 = arith.constant dense<0.000000e+00> : vector<8xf32>
    %772 = vector.multi_reduction <add>, %771, %cst_301 [1] : vector<8x16xf32> to vector<8xf32>
    %773 = vector.shape_cast %772 : vector<8xf32> to vector<8x1xf32>
    %774 = tpu.reciprocal %773 {approx = true} : vector<8x1xf32> -> vector<8x1xf32>
    %775 = vector.broadcast %774 : vector<8x1xf32> to vector<8x16xf32>
    %776 = arith.mulf %771, %775 : vector<8x16xf32>
    %cst_302 = arith.constant dense<0.000000e+00> : vector<8x8xf32>
    %777 = tpu.matmul %776, %763, %cst_302 {dimension_numbers = #tpu.dot_dimension_numbers<[1], [0], [0], [1], [0, 0, 1, 1], [], []>} : vector<8x16xf32>, vector<16x8xf32>, vector<8x8xf32> -> vector<8x8xf32>
    %778 = vector.extract_strided_slice %679 {offsets = [0, 0], sizes = [8, 32], strides = [1, 1]} : vector<32x32xf32> to vector<8x32xf32>
    %cst_303 = arith.constant dense<0.000000e+00> : vector<8x32xf32>
    %779 = tpu.matmul %777, %778, %cst_303 {dimension_numbers = #tpu.dot_dimension_numbers<[1], [0], [0], [1], [0, 0, 1, 1], [], []>} : vector<8x8xf32>, vector<8x32xf32>, vector<8x32xf32> -> vector<8x32xf32>
    %780 = vector.extract_strided_slice %670 {offsets = [8, 8], sizes = [8, 8], strides = [1, 1]} : vector<16x32xf32> to vector<8x8xf32>
    %781 = vector.extract_strided_slice %677 {offsets = [16, 8], sizes = [16, 8], strides = [1, 1]} : vector<32x64xf32> to vector<16x8xf32>
    %782 = vector.extract_strided_slice %677 {offsets = [16, 40], sizes = [16, 8], strides = [1, 1]} : vector<32x64xf32> to vector<16x8xf32>
    %cst_304 = arith.constant dense<0.000000e+00> : vector<8x16xf32>
    %783 = tpu.matmul %780, %781, %cst_304 {dimension_numbers = #tpu.dot_dimension_numbers<[1], [1], [0], [0], [0, 0, 1, 0], [], []>} : vector<8x8xf32>, vector<16x8xf32>, vector<8x16xf32> -> vector<8x16xf32>
    %cst_305 = arith.constant 0.353553385 : f32
    %784 = vector.broadcast %cst_305 : f32 to vector<8x16xf32>
    %785 = arith.mulf %783, %784 : vector<8x16xf32>
    %cst_306 = arith.constant dense<0xFF800000> : vector<8xf32>
    %786 = vector.multi_reduction <maximumf>, %785, %cst_306 [1] : vector<8x16xf32> to vector<8xf32>
    %787 = vector.shape_cast %786 : vector<8xf32> to vector<8x1xf32>
    %788 = vector.broadcast %787 : vector<8x1xf32> to vector<8x16xf32>
    %789 = arith.subf %785, %788 : vector<8x16xf32>
    %790 = math.exp %789 : vector<8x16xf32>
    %cst_307 = arith.constant dense<0.000000e+00> : vector<8xf32>
    %791 = vector.multi_reduction <add>, %790, %cst_307 [1] : vector<8x16xf32> to vector<8xf32>
    %792 = vector.shape_cast %791 : vector<8xf32> to vector<8x1xf32>
    %793 = tpu.reciprocal %792 {approx = true} : vector<8x1xf32> -> vector<8x1xf32>
    %794 = vector.broadcast %793 : vector<8x1xf32> to vector<8x16xf32>
    %795 = arith.mulf %790, %794 : vector<8x16xf32>
    %cst_308 = arith.constant dense<0.000000e+00> : vector<8x8xf32>
    %796 = tpu.matmul %795, %782, %cst_308 {dimension_numbers = #tpu.dot_dimension_numbers<[1], [0], [0], [1], [0, 0, 1, 1], [], []>} : vector<8x16xf32>, vector<16x8xf32>, vector<8x8xf32> -> vector<8x8xf32>
    %797 = vector.extract_strided_slice %679 {offsets = [8, 0], sizes = [8, 32], strides = [1, 1]} : vector<32x32xf32> to vector<8x32xf32>
    %cst_309 = arith.constant dense<0.000000e+00> : vector<8x32xf32>
    %798 = tpu.matmul %796, %797, %cst_309 {dimension_numbers = #tpu.dot_dimension_numbers<[1], [0], [0], [1], [0, 0, 1, 1], [], []>} : vector<8x8xf32>, vector<8x32xf32>, vector<8x32xf32> -> vector<8x32xf32>
    %799 = arith.addf %779, %798 : vector<8x32xf32>
    %800 = vector.extract_strided_slice %670 {offsets = [8, 16], sizes = [8, 8], strides = [1, 1]} : vector<16x32xf32> to vector<8x8xf32>
    %801 = vector.extract_strided_slice %677 {offsets = [16, 16], sizes = [16, 8], strides = [1, 1]} : vector<32x64xf32> to vector<16x8xf32>
    %802 = vector.extract_strided_slice %677 {offsets = [16, 48], sizes = [16, 8], strides = [1, 1]} : vector<32x64xf32> to vector<16x8xf32>
    %cst_310 = arith.constant dense<0.000000e+00> : vector<8x16xf32>
    %803 = tpu.matmul %800, %801, %cst_310 {dimension_numbers = #tpu.dot_dimension_numbers<[1], [1], [0], [0], [0, 0, 1, 0], [], []>} : vector<8x8xf32>, vector<16x8xf32>, vector<8x16xf32> -> vector<8x16xf32>
    %cst_311 = arith.constant 0.353553385 : f32
    %804 = vector.broadcast %cst_311 : f32 to vector<8x16xf32>
    %805 = arith.mulf %803, %804 : vector<8x16xf32>
    %cst_312 = arith.constant dense<0xFF800000> : vector<8xf32>
    %806 = vector.multi_reduction <maximumf>, %805, %cst_312 [1] : vector<8x16xf32> to vector<8xf32>
    %807 = vector.shape_cast %806 : vector<8xf32> to vector<8x1xf32>
    %808 = vector.broadcast %807 : vector<8x1xf32> to vector<8x16xf32>
    %809 = arith.subf %805, %808 : vector<8x16xf32>
    %810 = math.exp %809 : vector<8x16xf32>
    %cst_313 = arith.constant dense<0.000000e+00> : vector<8xf32>
    %811 = vector.multi_reduction <add>, %810, %cst_313 [1] : vector<8x16xf32> to vector<8xf32>
    %812 = vector.shape_cast %811 : vector<8xf32> to vector<8x1xf32>
    %813 = tpu.reciprocal %812 {approx = true} : vector<8x1xf32> -> vector<8x1xf32>
    %814 = vector.broadcast %813 : vector<8x1xf32> to vector<8x16xf32>
    %815 = arith.mulf %810, %814 : vector<8x16xf32>
    %cst_314 = arith.constant dense<0.000000e+00> : vector<8x8xf32>
    %816 = tpu.matmul %815, %802, %cst_314 {dimension_numbers = #tpu.dot_dimension_numbers<[1], [0], [0], [1], [0, 0, 1, 1], [], []>} : vector<8x16xf32>, vector<16x8xf32>, vector<8x8xf32> -> vector<8x8xf32>
    %817 = vector.extract_strided_slice %679 {offsets = [16, 0], sizes = [8, 32], strides = [1, 1]} : vector<32x32xf32> to vector<8x32xf32>
    %cst_315 = arith.constant dense<0.000000e+00> : vector<8x32xf32>
    %818 = tpu.matmul %816, %817, %cst_315 {dimension_numbers = #tpu.dot_dimension_numbers<[1], [0], [0], [1], [0, 0, 1, 1], [], []>} : vector<8x8xf32>, vector<8x32xf32>, vector<8x32xf32> -> vector<8x32xf32>
    %819 = arith.addf %799, %818 : vector<8x32xf32>
    %820 = vector.extract_strided_slice %670 {offsets = [8, 24], sizes = [8, 8], strides = [1, 1]} : vector<16x32xf32> to vector<8x8xf32>
    %821 = vector.extract_strided_slice %677 {offsets = [16, 24], sizes = [16, 8], strides = [1, 1]} : vector<32x64xf32> to vector<16x8xf32>
    %822 = vector.extract_strided_slice %677 {offsets = [16, 56], sizes = [16, 8], strides = [1, 1]} : vector<32x64xf32> to vector<16x8xf32>
    %cst_316 = arith.constant dense<0.000000e+00> : vector<8x16xf32>
    %823 = tpu.matmul %820, %821, %cst_316 {dimension_numbers = #tpu.dot_dimension_numbers<[1], [1], [0], [0], [0, 0, 1, 0], [], []>} : vector<8x8xf32>, vector<16x8xf32>, vector<8x16xf32> -> vector<8x16xf32>
    %cst_317 = arith.constant 0.353553385 : f32
    %824 = vector.broadcast %cst_317 : f32 to vector<8x16xf32>
    %825 = arith.mulf %823, %824 : vector<8x16xf32>
    %cst_318 = arith.constant dense<0xFF800000> : vector<8xf32>
    %826 = vector.multi_reduction <maximumf>, %825, %cst_318 [1] : vector<8x16xf32> to vector<8xf32>
    %827 = vector.shape_cast %826 : vector<8xf32> to vector<8x1xf32>
    %828 = vector.broadcast %827 : vector<8x1xf32> to vector<8x16xf32>
    %829 = arith.subf %825, %828 : vector<8x16xf32>
    %830 = math.exp %829 : vector<8x16xf32>
    %cst_319 = arith.constant dense<0.000000e+00> : vector<8xf32>
    %831 = vector.multi_reduction <add>, %830, %cst_319 [1] : vector<8x16xf32> to vector<8xf32>
    %832 = vector.shape_cast %831 : vector<8xf32> to vector<8x1xf32>
    %833 = tpu.reciprocal %832 {approx = true} : vector<8x1xf32> -> vector<8x1xf32>
    %834 = vector.broadcast %833 : vector<8x1xf32> to vector<8x16xf32>
    %835 = arith.mulf %830, %834 : vector<8x16xf32>
    %cst_320 = arith.constant dense<0.000000e+00> : vector<8x8xf32>
    %836 = tpu.matmul %835, %822, %cst_320 {dimension_numbers = #tpu.dot_dimension_numbers<[1], [0], [0], [1], [0, 0, 1, 1], [], []>} : vector<8x16xf32>, vector<16x8xf32>, vector<8x8xf32> -> vector<8x8xf32>
    %837 = vector.extract_strided_slice %679 {offsets = [24, 0], sizes = [8, 32], strides = [1, 1]} : vector<32x32xf32> to vector<8x32xf32>
    %cst_321 = arith.constant dense<0.000000e+00> : vector<8x32xf32>
    %838 = tpu.matmul %836, %837, %cst_321 {dimension_numbers = #tpu.dot_dimension_numbers<[1], [0], [0], [1], [0, 0, 1, 1], [], []>} : vector<8x8xf32>, vector<8x32xf32>, vector<8x32xf32> -> vector<8x32xf32>
    %839 = arith.addf %819, %838 : vector<8x32xf32>
    %840 = tpu.concatenate %760, %839 in 0 : vector<8x32xf32>, vector<8x32xf32> -> vector<16x32xf32>
    %841 = vector.broadcast %681 : vector<1x32xf32> to vector<16x32xf32>
    %842 = arith.addf %840, %841 : vector<16x32xf32>
    %843 = arith.addf %663, %842 : vector<16x32xf32>
    %c1_322 = arith.constant 1 : index
    %c0_323 = arith.constant 0 : index
    %c0_324 = arith.constant 0 : index
    %844 = vector.load %arg20[%c1_322, %c0_323, %c0_324] : memref<2x1x32xf32, #tpu.memory_space<vmem>>, vector<1x1x32xf32>
    %845 = vector.shape_cast %844 : vector<1x1x32xf32> to vector<1x32xf32>
    %c1_325 = arith.constant 1 : index
    %c0_326 = arith.constant 0 : index
    %c0_327 = arith.constant 0 : index
    %846 = vector.load %arg21[%c1_325, %c0_326, %c0_327] : memref<2x1x32xf32, #tpu.memory_space<vmem>>, vector<1x1x32xf32>
    %847 = vector.shape_cast %846 : vector<1x1x32xf32> to vector<1x32xf32>
    %cst_328 = arith.constant dense<0.000000e+00> : vector<16xf32>
    %848 = vector.multi_reduction <add>, %843, %cst_328 [1] : vector<16x32xf32> to vector<16xf32>
    %849 = vector.shape_cast %848 : vector<16xf32> to vector<16x1xf32>
    %cst_329 = arith.constant 3.200000e+01 : f32
    %850 = vector.broadcast %cst_329 : f32 to vector<16x1xf32>
    %851 = arith.divf %849, %850 : vector<16x1xf32>
    %852 = vector.broadcast %851 : vector<16x1xf32> to vector<16x32xf32>
    %853 = arith.subf %843, %852 : vector<16x32xf32>
    %854 = arith.mulf %853, %853 : vector<16x32xf32>
    %cst_330 = arith.constant dense<0.000000e+00> : vector<16xf32>
    %855 = vector.multi_reduction <add>, %854, %cst_330 [1] : vector<16x32xf32> to vector<16xf32>
    %856 = vector.shape_cast %855 : vector<16xf32> to vector<16x1xf32>
    %cst_331 = arith.constant 3.200000e+01 : f32
    %857 = vector.broadcast %cst_331 : f32 to vector<16x1xf32>
    %858 = arith.divf %856, %857 : vector<16x1xf32>
    %cst_332 = arith.constant 9.99999974E-6 : f32
    %859 = vector.broadcast %cst_332 : f32 to vector<16x1xf32>
    %860 = arith.addf %858, %859 : vector<16x1xf32>
    %861 = math.rsqrt %860 : vector<16x1xf32>
    %862 = vector.broadcast %861 : vector<16x1xf32> to vector<16x32xf32>
    %863 = arith.mulf %853, %862 : vector<16x32xf32>
    %864 = vector.broadcast %845 : vector<1x32xf32> to vector<16x32xf32>
    %865 = arith.mulf %863, %864 : vector<16x32xf32>
    %866 = vector.broadcast %847 : vector<1x32xf32> to vector<16x32xf32>
    %867 = arith.addf %865, %866 : vector<16x32xf32>
    %c1_333 = arith.constant 1 : index
    %c0_334 = arith.constant 0 : index
    %c0_335 = arith.constant 0 : index
    %868 = vector.load %arg14[%c1_333, %c0_334, %c0_335] : memref<2x32x64xf32, #tpu.memory_space<vmem>>, vector<1x32x64xf32>
    %869 = vector.shape_cast %868 : vector<1x32x64xf32> to vector<32x64xf32>
    %cst_336 = arith.constant dense<0.000000e+00> : vector<16x64xf32>
    %870 = tpu.matmul %867, %869, %cst_336 {dimension_numbers = #tpu.dot_dimension_numbers<[1], [0], [0], [1], [0, 0, 1, 1], [], []>} : vector<16x32xf32>, vector<32x64xf32>, vector<16x64xf32> -> vector<16x64xf32>
    %c1_337 = arith.constant 1 : index
    %c0_338 = arith.constant 0 : index
    %c0_339 = arith.constant 0 : index
    %871 = vector.load %arg15[%c1_337, %c0_338, %c0_339] : memref<2x1x64xf32, #tpu.memory_space<vmem>>, vector<1x1x64xf32>
    %872 = vector.shape_cast %871 : vector<1x1x64xf32> to vector<1x64xf32>
    %873 = vector.broadcast %872 : vector<1x64xf32> to vector<16x64xf32>
    %874 = arith.addf %870, %873 : vector<16x64xf32>
    %cst_340 = arith.constant 5.000000e-01 : f32
    %875 = vector.broadcast %cst_340 : f32 to vector<16x64xf32>
    %876 = arith.mulf %875, %874 : vector<16x64xf32>
    %cst_341 = arith.constant 0.707106769 : f32
    %877 = vector.broadcast %cst_341 : f32 to vector<16x64xf32>
    %878 = arith.mulf %874, %877 : vector<16x64xf32>
    %879 = math.erf %878 : vector<16x64xf32>
    %cst_342 = arith.constant 1.000000e+00 : f32
    %880 = vector.broadcast %cst_342 : f32 to vector<16x64xf32>
    %881 = arith.addf %880, %879 : vector<16x64xf32>
    %882 = arith.mulf %876, %881 : vector<16x64xf32>
    %c1_343 = arith.constant 1 : index
    %c0_344 = arith.constant 0 : index
    %c0_345 = arith.constant 0 : index
    %883 = vector.load %arg16[%c1_343, %c0_344, %c0_345] : memref<2x64x32xf32, #tpu.memory_space<vmem>>, vector<1x64x32xf32>
    %884 = vector.shape_cast %883 : vector<1x64x32xf32> to vector<64x32xf32>
    %cst_346 = arith.constant dense<0.000000e+00> : vector<16x32xf32>
    %885 = tpu.matmul %882, %884, %cst_346 {dimension_numbers = #tpu.dot_dimension_numbers<[1], [0], [0], [1], [0, 0, 1, 1], [], []>} : vector<16x64xf32>, vector<64x32xf32>, vector<16x32xf32> -> vector<16x32xf32>
    %c1_347 = arith.constant 1 : index
    %c0_348 = arith.constant 0 : index
    %c0_349 = arith.constant 0 : index
    %886 = vector.load %arg17[%c1_347, %c0_348, %c0_349] : memref<2x1x32xf32, #tpu.memory_space<vmem>>, vector<1x1x32xf32>
    %887 = vector.shape_cast %886 : vector<1x1x32xf32> to vector<1x32xf32>
    %888 = vector.broadcast %887 : vector<1x32xf32> to vector<16x32xf32>
    %889 = arith.addf %885, %888 : vector<16x32xf32>
    %890 = arith.addf %867, %889 : vector<16x32xf32>
    %c1_350 = arith.constant 1 : index
    %c0_351 = arith.constant 0 : index
    %c0_352 = arith.constant 0 : index
    %891 = vector.load %arg22[%c1_350, %c0_351, %c0_352] : memref<2x1x32xf32, #tpu.memory_space<vmem>>, vector<1x1x32xf32>
    %892 = vector.shape_cast %891 : vector<1x1x32xf32> to vector<1x32xf32>
    %c1_353 = arith.constant 1 : index
    %c0_354 = arith.constant 0 : index
    %c0_355 = arith.constant 0 : index
    %893 = vector.load %arg23[%c1_353, %c0_354, %c0_355] : memref<2x1x32xf32, #tpu.memory_space<vmem>>, vector<1x1x32xf32>
    %894 = vector.shape_cast %893 : vector<1x1x32xf32> to vector<1x32xf32>
    %cst_356 = arith.constant dense<0.000000e+00> : vector<16xf32>
    %895 = vector.multi_reduction <add>, %890, %cst_356 [1] : vector<16x32xf32> to vector<16xf32>
    %896 = vector.shape_cast %895 : vector<16xf32> to vector<16x1xf32>
    %cst_357 = arith.constant 3.200000e+01 : f32
    %897 = vector.broadcast %cst_357 : f32 to vector<16x1xf32>
    %898 = arith.divf %896, %897 : vector<16x1xf32>
    %899 = vector.broadcast %898 : vector<16x1xf32> to vector<16x32xf32>
    %900 = arith.subf %890, %899 : vector<16x32xf32>
    %901 = arith.mulf %900, %900 : vector<16x32xf32>
    %cst_358 = arith.constant dense<0.000000e+00> : vector<16xf32>
    %902 = vector.multi_reduction <add>, %901, %cst_358 [1] : vector<16x32xf32> to vector<16xf32>
    %903 = vector.shape_cast %902 : vector<16xf32> to vector<16x1xf32>
    %cst_359 = arith.constant 3.200000e+01 : f32
    %904 = vector.broadcast %cst_359 : f32 to vector<16x1xf32>
    %905 = arith.divf %903, %904 : vector<16x1xf32>
    %cst_360 = arith.constant 9.99999974E-6 : f32
    %906 = vector.broadcast %cst_360 : f32 to vector<16x1xf32>
    %907 = arith.addf %905, %906 : vector<16x1xf32>
    %908 = math.rsqrt %907 : vector<16x1xf32>
    %909 = vector.broadcast %908 : vector<16x1xf32> to vector<16x32xf32>
    %910 = arith.mulf %900, %909 : vector<16x32xf32>
    %911 = vector.broadcast %892 : vector<1x32xf32> to vector<16x32xf32>
    %912 = arith.mulf %910, %911 : vector<16x32xf32>
    %913 = vector.broadcast %894 : vector<1x32xf32> to vector<16x32xf32>
    %914 = arith.addf %912, %913 : vector<16x32xf32>
    %c0_361 = arith.constant 0 : index
    %c0_362 = arith.constant 0 : index
    %915 = vector.load %arg24[%c0_361, %c0_362] : memref<1x32xf32, #tpu.memory_space<vmem>>, vector<1x32xf32>
    %c0_363 = arith.constant 0 : index
    %c0_364 = arith.constant 0 : index
    %916 = vector.load %arg25[%c0_363, %c0_364] : memref<1x32xf32, #tpu.memory_space<vmem>>, vector<1x32xf32>
    %cst_365 = arith.constant dense<0.000000e+00> : vector<16xf32>
    %917 = vector.multi_reduction <add>, %914, %cst_365 [1] : vector<16x32xf32> to vector<16xf32>
    %918 = vector.shape_cast %917 : vector<16xf32> to vector<16x1xf32>
    %cst_366 = arith.constant 3.200000e+01 : f32
    %919 = vector.broadcast %cst_366 : f32 to vector<16x1xf32>
    %920 = arith.divf %918, %919 : vector<16x1xf32>
    %921 = vector.broadcast %920 : vector<16x1xf32> to vector<16x32xf32>
    %922 = arith.subf %914, %921 : vector<16x32xf32>
    %923 = arith.mulf %922, %922 : vector<16x32xf32>
    %cst_367 = arith.constant dense<0.000000e+00> : vector<16xf32>
    %924 = vector.multi_reduction <add>, %923, %cst_367 [1] : vector<16x32xf32> to vector<16xf32>
    %925 = vector.shape_cast %924 : vector<16xf32> to vector<16x1xf32>
    %cst_368 = arith.constant 3.200000e+01 : f32
    %926 = vector.broadcast %cst_368 : f32 to vector<16x1xf32>
    %927 = arith.divf %925, %926 : vector<16x1xf32>
    %cst_369 = arith.constant 9.99999997E-7 : f32
    %928 = vector.broadcast %cst_369 : f32 to vector<16x1xf32>
    %929 = arith.addf %927, %928 : vector<16x1xf32>
    %930 = math.rsqrt %929 : vector<16x1xf32>
    %931 = vector.broadcast %930 : vector<16x1xf32> to vector<16x32xf32>
    %932 = arith.mulf %922, %931 : vector<16x32xf32>
    %933 = vector.broadcast %915 : vector<1x32xf32> to vector<16x32xf32>
    %934 = arith.mulf %932, %933 : vector<16x32xf32>
    %935 = vector.broadcast %916 : vector<1x32xf32> to vector<16x32xf32>
    %936 = arith.addf %934, %935 : vector<16x32xf32>
    %c0_370 = arith.constant 0 : index
    %c0_371 = arith.constant 0 : index
    %937 = vector.load %arg26[%c0_370, %c0_371] : memref<32x128xf32, #tpu.memory_space<vmem>>, vector<32x128xf32>
    %cst_372 = arith.constant dense<0.000000e+00> : vector<16x128xf32>
    %938 = tpu.matmul %936, %937, %cst_372 {dimension_numbers = #tpu.dot_dimension_numbers<[1], [0], [0], [1], [0, 0, 1, 1], [], []>} : vector<16x32xf32>, vector<32x128xf32>, vector<16x128xf32> -> vector<16x128xf32>
    %c0_373 = arith.constant 0 : index
    %c0_374 = arith.constant 0 : index
    %939 = vector.load %arg27[%c0_373, %c0_374] : memref<1x128xf32, #tpu.memory_space<vmem>>, vector<1x128xf32>
    %940 = vector.broadcast %939 : vector<1x128xf32> to vector<16x128xf32>
    %941 = arith.addf %938, %940 : vector<16x128xf32>
    %c0_375 = arith.constant 0 : index
    %c0_376 = arith.constant 0 : index
    %942 = vector.load %arg28[%c0_375, %c0_376] : memref<16x128xf32, #tpu.memory_space<vmem>>, vector<16x128xf32>
    tpu.vector_store %arg28[%c0_375, %c0_376], %941 {strides = array<i32>} : memref<16x128xf32, #tpu.memory_space<vmem>>, vector<16x128xf32>,
    return
  }
  func.func @transform_0(%arg0: i32) -> (i32, i32) {
    %c0_i32 = arith.constant 0 : i32
    %c0_i32_0 = arith.constant 0 : i32
    %c0_i32_1 = arith.constant 0 : i32
    return %c0_i32, %c0_i32_0 : i32, i32
  }
  func.func @transform_1(%arg0: i32) -> (i32, i32) {
    %c0_i32 = arith.constant 0 : i32
    %c0_i32_0 = arith.constant 0 : i32
    %c0_i32_1 = arith.constant 0 : i32
    return %c0_i32, %c0_i32_0 : i32, i32
  }
  func.func @transform_2(%arg0: i32) -> (i32, i32) {
    %c0_i32 = arith.constant 0 : i32
    %c0_i32_0 = arith.constant 0 : i32
    %c0_i32_1 = arith.constant 0 : i32
    return %c0_i32, %c0_i32_0 : i32, i32
  }
  func.func @transform_3(%arg0: i32) -> (i32, i32, i32) {
    %c0_i32 = arith.constant 0 : i32
    %c0_i32_0 = arith.constant 0 : i32
    %c0_i32_1 = arith.constant 0 : i32
    %c0_i32_2 = arith.constant 0 : i32
    return %c0_i32, %c0_i32_0, %c0_i32_1 : i32, i32, i32
  }
  func.func @transform_4(%arg0: i32) -> (i32, i32, i32) {
    %c0_i32 = arith.constant 0 : i32
    %c0_i32_0 = arith.constant 0 : i32
    %c0_i32_1 = arith.constant 0 : i32
    %c0_i32_2 = arith.constant 0 : i32
    return %c0_i32, %c0_i32_0, %c0_i32_1 : i32, i32, i32
  }
  func.func @transform_5(%arg0: i32) -> (i32, i32, i32) {
    %c0_i32 = arith.constant 0 : i32
    %c0_i32_0 = arith.constant 0 : i32
    %c0_i32_1 = arith.constant 0 : i32
    %c0_i32_2 = arith.constant 0 : i32
    return %c0_i32, %c0_i32_0, %c0_i32_1 : i32, i32, i32
  }
  func.func @transform_6(%arg0: i32) -> (i32, i32, i32) {
    %c0_i32 = arith.constant 0 : i32
    %c0_i32_0 = arith.constant 0 : i32
    %c0_i32_1 = arith.constant 0 : i32
    %c0_i32_2 = arith.constant 0 : i32
    return %c0_i32, %c0_i32_0, %c0_i32_1 : i32, i32, i32
  }
  func.func @transform_7(%arg0: i32) -> (i32, i32, i32) {
    %c0_i32 = arith.constant 0 : i32
    %c0_i32_0 = arith.constant 0 : i32
    %c0_i32_1 = arith.constant 0 : i32
    %c0_i32_2 = arith.constant 0 : i32
    return %c0_i32, %c0_i32_0, %c0_i32_1 : i32, i32, i32
  }
  func.func @transform_8(%arg0: i32) -> (i32, i32, i32) {
    %c0_i32 = arith.constant 0 : i32
    %c0_i32_0 = arith.constant 0 : i32
    %c0_i32_1 = arith.constant 0 : i32
    %c0_i32_2 = arith.constant 0 : i32
    return %c0_i32, %c0_i32_0, %c0_i32_1 : i32, i32, i32
  }
  func.func @transform_9(%arg0: i32) -> (i32, i32, i32) {
    %c0_i32 = arith.constant 0 : i32
    %c0_i32_0 = arith.constant 0 : i32
    %c0_i32_1 = arith.constant 0 : i32
    %c0_i32_2 = arith.constant 0 : i32
    return %c0_i32, %c0_i32_0, %c0_i32_1 : i32, i32, i32
  }
  func.func @transform_10(%arg0: i32) -> (i32, i32, i32) {
    %c0_i32 = arith.constant 0 : i32
    %c0_i32_0 = arith.constant 0 : i32
    %c0_i32_1 = arith.constant 0 : i32
    %c0_i32_2 = arith.constant 0 : i32
    return %c0_i32, %c0_i32_0, %c0_i32_1 : i32, i32, i32
  }
  func.func @transform_11(%arg0: i32) -> (i32, i32, i32) {
    %c0_i32 = arith.constant 0 : i32
    %c0_i32_0 = arith.constant 0 : i32
    %c0_i32_1 = arith.constant 0 : i32
    %c0_i32_2 = arith.constant 0 : i32
    return %c0_i32, %c0_i32_0, %c0_i32_1 : i32, i32, i32
  }
  func.func @transform_12(%arg0: i32) -> (i32, i32, i32) {
    %c0_i32 = arith.constant 0 : i32
    %c0_i32_0 = arith.constant 0 : i32
    %c0_i32_1 = arith.constant 0 : i32
    %c0_i32_2 = arith.constant 0 : i32
    return %c0_i32, %c0_i32_0, %c0_i32_1 : i32, i32, i32
  }
  func.func @transform_13(%arg0: i32) -> (i32, i32, i32) {
    %c0_i32 = arith.constant 0 : i32
    %c0_i32_0 = arith.constant 0 : i32
    %c0_i32_1 = arith.constant 0 : i32
    %c0_i32_2 = arith.constant 0 : i32
    return %c0_i32, %c0_i32_0, %c0_i32_1 : i32, i32, i32
  }
  func.func @transform_14(%arg0: i32) -> (i32, i32, i32) {
    %c0_i32 = arith.constant 0 : i32
    %c0_i32_0 = arith.constant 0 : i32
    %c0_i32_1 = arith.constant 0 : i32
    %c0_i32_2 = arith.constant 0 : i32
    return %c0_i32, %c0_i32_0, %c0_i32_1 : i32, i32, i32
  }
  func.func @transform_15(%arg0: i32) -> (i32, i32, i32) {
    %c0_i32 = arith.constant 0 : i32
    %c0_i32_0 = arith.constant 0 : i32
    %c0_i32_1 = arith.constant 0 : i32
    %c0_i32_2 = arith.constant 0 : i32
    return %c0_i32, %c0_i32_0, %c0_i32_1 : i32, i32, i32
  }
  func.func @transform_16(%arg0: i32) -> (i32, i32, i32) {
    %c0_i32 = arith.constant 0 : i32
    %c0_i32_0 = arith.constant 0 : i32
    %c0_i32_1 = arith.constant 0 : i32
    %c0_i32_2 = arith.constant 0 : i32
    return %c0_i32, %c0_i32_0, %c0_i32_1 : i32, i32, i32
  }
  func.func @transform_17(%arg0: i32) -> (i32, i32, i32) {
    %c0_i32 = arith.constant 0 : i32
    %c0_i32_0 = arith.constant 0 : i32
    %c0_i32_1 = arith.constant 0 : i32
    %c0_i32_2 = arith.constant 0 : i32
    return %c0_i32, %c0_i32_0, %c0_i32_1 : i32, i32, i32
  }
  func.func @transform_18(%arg0: i32) -> (i32, i32, i32) {
    %c0_i32 = arith.constant 0 : i32
    %c0_i32_0 = arith.constant 0 : i32
    %c0_i32_1 = arith.constant 0 : i32
    %c0_i32_2 = arith.constant 0 : i32
    return %c0_i32, %c0_i32_0, %c0_i32_1 : i32, i32, i32
  }
  func.func @transform_19(%arg0: i32) -> (i32, i32, i32) {
    %c0_i32 = arith.constant 0 : i32
    %c0_i32_0 = arith.constant 0 : i32
    %c0_i32_1 = arith.constant 0 : i32
    %c0_i32_2 = arith.constant 0 : i32
    return %c0_i32, %c0_i32_0, %c0_i32_1 : i32, i32, i32
  }
  func.func @transform_20(%arg0: i32) -> (i32, i32, i32) {
    %c0_i32 = arith.constant 0 : i32
    %c0_i32_0 = arith.constant 0 : i32
    %c0_i32_1 = arith.constant 0 : i32
    %c0_i32_2 = arith.constant 0 : i32
    return %c0_i32, %c0_i32_0, %c0_i32_1 : i32, i32, i32
  }
  func.func @transform_21(%arg0: i32) -> (i32, i32, i32) {
    %c0_i32 = arith.constant 0 : i32
    %c0_i32_0 = arith.constant 0 : i32
    %c0_i32_1 = arith.constant 0 : i32
    %c0_i32_2 = arith.constant 0 : i32
    return %c0_i32, %c0_i32_0, %c0_i32_1 : i32, i32, i32
  }
  func.func @transform_22(%arg0: i32) -> (i32, i32, i32) {
    %c0_i32 = arith.constant 0 : i32
    %c0_i32_0 = arith.constant 0 : i32
    %c0_i32_1 = arith.constant 0 : i32
    %c0_i32_2 = arith.constant 0 : i32
    return %c0_i32, %c0_i32_0, %c0_i32_1 : i32, i32, i32
  }
  func.func @transform_23(%arg0: i32) -> (i32, i32) {
    %c0_i32 = arith.constant 0 : i32
    %c0_i32_0 = arith.constant 0 : i32
    %c0_i32_1 = arith.constant 0 : i32
    return %c0_i32, %c0_i32_0 : i32, i32
  }
  func.func @transform_24(%arg0: i32) -> (i32, i32) {
    %c0_i32 = arith.constant 0 : i32
    %c0_i32_0 = arith.constant 0 : i32
    %c0_i32_1 = arith.constant 0 : i32
    return %c0_i32, %c0_i32_0 : i32, i32
  }
  func.func @transform_25(%arg0: i32) -> (i32, i32) {
    %c0_i32 = arith.constant 0 : i32
    %c0_i32_0 = arith.constant 0 : i32
    %c0_i32_1 = arith.constant 0 : i32
    return %c0_i32, %c0_i32_0 : i32, i32
  }
  func.func @transform_26(%arg0: i32) -> (i32, i32) {
    %c0_i32 = arith.constant 0 : i32
    %c0_i32_0 = arith.constant 0 : i32
    %c0_i32_1 = arith.constant 0 : i32
    return %c0_i32, %c0_i32_0 : i32, i32
  }
  func.func @transform_27(%arg0: i32) -> (i32, i32) {
    %c0_i32 = arith.constant 0 : i32
    %c0_i32_0 = arith.constant 0 : i32
    %c0_i32_1 = arith.constant 0 : i32
    return %c0_i32, %c0_i32_0 : i32, i32
  }
}

</mosaic_0001>

<llo_original>
// kernel: latex_transformer_decoder.1
$region0: #{latex_transformer_decoder.1}
  #allocation0 [shape = 'u32[]', space=smem, size = 0x4, offset = 0x4, fixed_abs, tag = 'smem constant byte address 0x4 - core index']
  #allocation1 [shape = 'u32[144,128]{1,0:T(1,128)}', space=vmem, size = 0x12000, scoped, tag = 'internal scratch']
  %s0 = inlined_call_operand.vmem [shape: f32[16,32], index: 0, kind: input, shape index: {}]
  %s1 = inlined_call_operand.vmem [shape: f32[32,32], index: 1, kind: input, shape index: {}]
  %s2 = inlined_call_operand.vmem [shape: f32[8,8], index: 2, kind: input, shape index: {}]
  %s3 = inlined_call_operand.vmem [shape: f32[2,32,96], index: 3, kind: input, shape index: {}]
  %s4 = inlined_call_operand.vmem [shape: f32[2,1,96], index: 4, kind: input, shape index: {}]
  %s5 = inlined_call_operand.vmem [shape: f32[2,32,32], index: 5, kind: input, shape index: {}]
  %s6 = inlined_call_operand.vmem [shape: f32[2,1,32], index: 6, kind: input, shape index: {}]
  %s7 = inlined_call_operand.vmem [shape: f32[2,32,32], index: 7, kind: input, shape index: {}]
  %s8 = inlined_call_operand.vmem [shape: f32[2,1,32], index: 8, kind: input, shape index: {}]
  %s9 = inlined_call_operand.vmem [shape: f32[2,32,64], index: 9, kind: input, shape index: {}]
  %s10 = inlined_call_operand.vmem [shape: f32[2,1,64], index: 10, kind: input, shape index: {}]
  %s11 = inlined_call_operand.vmem [shape: f32[2,32,32], index: 11, kind: input, shape index: {}]
  %s12 = inlined_call_operand.vmem [shape: f32[2,1,32], index: 12, kind: input, shape index: {}]
  %s13 = inlined_call_operand.vmem [shape: f32[2,32,64], index: 13, kind: input, shape index: {}]
  %s14 = inlined_call_operand.vmem [shape: f32[2,1,64], index: 14, kind: input, shape index: {}]
  %s15 = inlined_call_operand.vmem [shape: f32[2,64,32], index: 15, kind: input, shape index: {}]
  %s16 = inlined_call_operand.vmem [shape: f32[2,1,32], index: 16, kind: input, shape index: {}]
  %s17 = inlined_call_operand.vmem [shape: f32[2,1,32], index: 17, kind: input, shape index: {}]
  %s18 = inlined_call_operand.vmem [shape: f32[2,1,32], index: 18, kind: input, shape index: {}]
  %s19 = inlined_call_operand.vmem [shape: f32[2,1,32], index: 19, kind: input, shape index: {}]
  %s20 = inlined_call_operand.vmem [shape: f32[2,1,32], index: 20, kind: input, shape index: {}]
  %s21 = inlined_call_operand.vmem [shape: f32[2,1,32], index: 21, kind: input, shape index: {}]
  %s22 = inlined_call_operand.vmem [shape: f32[2,1,32], index: 22, kind: input, shape index: {}]
  %s23 = inlined_call_operand.vmem [shape: f32[1,32], index: 23, kind: input, shape index: {}]
  %s24 = inlined_call_operand.hbm [shape: f32[1,32], index: 24, kind: input, shape index: {}]
  %s25 = inlined_call_operand.vmem [shape: f32[32,128], index: 25, kind: input, shape index: {}]
  %s26 = inlined_call_operand.vmem [shape: f32[1,128], index: 26, kind: input, shape index: {}]
  %s27 = inlined_call_operand.vmem [shape: f32[16,128], index: 27, kind: output, shape index: {}]
  %s28 = sld [smem:[#allocation0]]
  $region122: #{latex_transformer_decoder.1} parent=0
    _
  %s30 = ssub.s32 1, %s28
  %s31 = scalar_select 0, %s30, %s28
  $region1: #{latex_transformer_decoder.1} parent=0
    #allocation2 [shape = 'u8[512]{0}', space=vmem, size = 0x400, scoped, tag = 'input window, operand 24, single buffered']
    #allocation3 [shape = 's32[1]{0}', space=sflag, size = 0x4, scoped, tag = 'scoped memory for latex_transformer_decoder.1']
    %32 = vsyncpa [#allocation3], 0
    // Predicated region
    $region2: #{latex_transformer_decoder.1} parent=1 // pred_check
      _
    $region3: #{latex_transformer_decoder.1} parent=1 // pred_check_branch
      %34 = sbr.rel (0) target = $region5
    $region4: #{latex_transformer_decoder.1} parent=1 // pred_region
      _
    $region5: #{latex_transformer_decoder.1} parent=1 // pred_fallthru
      _
    // Predicated region
    $region6: #{latex_transformer_decoder.1} parent=1 // pred_check
      _
    $region7: #{latex_transformer_decoder.1} parent=1 // pred_check_branch
      %36 = sbr.rel (0) target = $region9
    $region8: #{latex_transformer_decoder.1} parent=1 // pred_region
      _
    $region9: #{latex_transformer_decoder.1} parent=1 // pred_fallthru
      _
    // Predicated region
    $region10: #{latex_transformer_decoder.1} parent=1 // pred_check
      _
    $region11: #{latex_transformer_decoder.1} parent=1 // pred_check_branch
      %38 = sbr.rel (0) target = $region13
    $region12: #{latex_transformer_decoder.1} parent=1 // pred_region
      _
    $region13: #{latex_transformer_decoder.1} parent=1 // pred_fallthru
      _
    // Predicated region
    $region14: #{latex_transformer_decoder.1} parent=1 // pred_check
      _
    $region15: #{latex_transformer_decoder.1} parent=1 // pred_check_branch
      %40 = sbr.rel (0) target = $region17
    $region16: #{latex_transformer_decoder.1} parent=1 // pred_region
      _
    $region17: #{latex_transformer_decoder.1} parent=1 // pred_fallthru
      _
    // Predicated region
    $region18: #{latex_transformer_decoder.1} parent=1 // pred_check
      _
    $region19: #{latex_transformer_decoder.1} parent=1 // pred_check_branch
      %42 = sbr.rel (0) target = $region21
    $region20: #{latex_transformer_decoder.1} parent=1 // pred_region
      _
    $region21: #{latex_transformer_decoder.1} parent=1 // pred_fallthru
      _
    // Predicated region
    $region22: #{latex_transformer_decoder.1} parent=1 // pred_check
      _
    $region23: #{latex_transformer_decoder.1} parent=1 // pred_check_branch
      %44 = sbr.rel (0) target = $region25
    $region24: #{latex_transformer_decoder.1} parent=1 // pred_region
      _
    $region25: #{latex_transformer_decoder.1} parent=1 // pred_fallthru
      _
    // Predicated region
    $region26: #{latex_transformer_decoder.1} parent=1 // pred_check
      _
    $region27: #{latex_transformer_decoder.1} parent=1 // pred_check_branch
      %46 = sbr.rel (0) target = $region29
    $region28: #{latex_transformer_decoder.1} parent=1 // pred_region
      _
    $region29: #{latex_transformer_decoder.1} parent=1 // pred_fallthru
      _
    // Predicated region
    $region30: #{latex_transformer_decoder.1} parent=1 // pred_check
      _
    $region31: #{latex_transformer_decoder.1} parent=1 // pred_check_branch
      %48 = sbr.rel (0) target = $region33
    $region32: #{latex_transformer_decoder.1} parent=1 // pred_region
      _
    $region33: #{latex_transformer_decoder.1} parent=1 // pred_fallthru
      _
    // Predicated region
    $region34: #{latex_transformer_decoder.1} parent=1 // pred_check
      _
    $region35: #{latex_transformer_decoder.1} parent=1 // pred_check_branch
      %50 = sbr.rel (0) target = $region37
    $region36: #{latex_transformer_decoder.1} parent=1 // pred_region
      _
    $region37: #{latex_transformer_decoder.1} parent=1 // pred_fallthru
      _
    // Predicated region
    $region38: #{latex_transformer_decoder.1} parent=1 // pred_check
      _
    $region39: #{latex_transformer_decoder.1} parent=1 // pred_check_branch
      %52 = sbr.rel (0) target = $region41
    $region40: #{latex_transformer_decoder.1} parent=1 // pred_region
      _
    $region41: #{latex_transformer_decoder.1} parent=1 // pred_fallthru
      _
    // Predicated region
    $region42: #{latex_transformer_decoder.1} parent=1 // pred_check
      _
    $region43: #{latex_transformer_decoder.1} parent=1 // pred_check_branch
      %54 = sbr.rel (0) target = $region45
    $region44: #{latex_transformer_decoder.1} parent=1 // pred_region
      _
    $region45: #{latex_transformer_decoder.1} parent=1 // pred_fallthru
      _
    // Predicated region
    $region46: #{latex_transformer_decoder.1} parent=1 // pred_check
      _
    $region47: #{latex_transformer_decoder.1} parent=1 // pred_check_branch
      %56 = sbr.rel (0) target = $region49
    $region48: #{latex_transformer_decoder.1} parent=1 // pred_region
      _
    $region49: #{latex_transformer_decoder.1} parent=1 // pred_fallthru
      _
    // Predicated region
    $region50: #{latex_transformer_decoder.1} parent=1 // pred_check
      _
    $region51: #{latex_transformer_decoder.1} parent=1 // pred_check_branch
      %58 = sbr.rel (0) target = $region53
    $region52: #{latex_transformer_decoder.1} parent=1 // pred_region
      _
    $region53: #{latex_transformer_decoder.1} parent=1 // pred_fallthru
      _
    // Predicated region
    $region54: #{latex_transformer_decoder.1} parent=1 // pred_check
      _
    $region55: #{latex_transformer_decoder.1} parent=1 // pred_check_branch
      %60 = sbr.rel (0) target = $region57
    $region56: #{latex_transformer_decoder.1} parent=1 // pred_region
      _
    $region57: #{latex_transformer_decoder.1} parent=1 // pred_fallthru
      _
    // Predicated region
    $region58: #{latex_transformer_decoder.1} parent=1 // pred_check
      _
    $region59: #{latex_transformer_decoder.1} parent=1 // pred_check_branch
      %62 = sbr.rel (0) target = $region61
    $region60: #{latex_transformer_decoder.1} parent=1 // pred_region
      _
    $region61: #{latex_transformer_decoder.1} parent=1 // pred_fallthru
      _
    // Predicated region
    $region62: #{latex_transformer_decoder.1} parent=1 // pred_check
      _
    $region63: #{latex_transformer_decoder.1} parent=1 // pred_check_branch
      %64 = sbr.rel (0) target = $region65
    $region64: #{latex_transformer_decoder.1} parent=1 // pred_region
      _
    $region65: #{latex_transformer_decoder.1} parent=1 // pred_fallthru
      _
    // Predicated region
    $region66: #{latex_transformer_decoder.1} parent=1 // pred_check
      _
    $region67: #{latex_transformer_decoder.1} parent=1 // pred_check_branch
      %66 = sbr.rel (0) target = $region69
    $region68: #{latex_transformer_decoder.1} parent=1 // pred_region
      _
    $region69: #{latex_transformer_decoder.1} parent=1 // pred_fallthru
      _
    // Predicated region
    $region70: #{latex_transformer_decoder.1} parent=1 // pred_check
      _
    $region71: #{latex_transformer_decoder.1} parent=1 // pred_check_branch
      %68 = sbr.rel (0) target = $region73
    $region72: #{latex_transformer_decoder.1} parent=1 // pred_region
      _
    $region73: #{latex_transformer_decoder.1} parent=1 // pred_fallthru
      _
    // Predicated region
    $region74: #{latex_transformer_decoder.1} parent=1 // pred_check
      _
    $region75: #{latex_transformer_decoder.1} parent=1 // pred_check_branch
      %70 = sbr.rel (0) target = $region77
    $region76: #{latex_transformer_decoder.1} parent=1 // pred_region
      _
    $region77: #{latex_transformer_decoder.1} parent=1 // pred_fallthru
      _
    // Predicated region
    $region78: #{latex_transformer_decoder.1} parent=1 // pred_check
      _
    $region79: #{latex_transformer_decoder.1} parent=1 // pred_check_branch
      %72 = sbr.rel (0) target = $region81
    $region80: #{latex_transformer_decoder.1} parent=1 // pred_region
      _
    $region81: #{latex_transformer_decoder.1} parent=1 // pred_fallthru
      _
    // Predicated region
    $region82: #{latex_transformer_decoder.1} parent=1 // pred_check
      _
    $region83: #{latex_transformer_decoder.1} parent=1 // pred_check_branch
      %74 = sbr.rel (0) target = $region85
    $region84: #{latex_transformer_decoder.1} parent=1 // pred_region
      _
    $region85: #{latex_transformer_decoder.1} parent=1 // pred_fallthru
      _
    // Predicated region
    $region86: #{latex_transformer_decoder.1} parent=1 // pred_check
      _
    $region87: #{latex_transformer_decoder.1} parent=1 // pred_check_branch
      %76 = sbr.rel (0) target = $region89
    $region88: #{latex_transformer_decoder.1} parent=1 // pred_region
      _
    $region89: #{latex_transformer_decoder.1} parent=1 // pred_fallthru
      _
    // Predicated region
    $region90: #{latex_transformer_decoder.1} parent=1 // pred_check
      _
    $region91: #{latex_transformer_decoder.1} parent=1 // pred_check_branch
      %78 = sbr.rel (0) target = $region93
    $region92: #{latex_transformer_decoder.1} parent=1 // pred_region
      _
    $region93: #{latex_transformer_decoder.1} parent=1 // pred_fallthru
      _
    // Predicated region
    $region94: #{latex_transformer_decoder.1} parent=1 // pred_check
      _
    $region95: #{latex_transformer_decoder.1} parent=1 // pred_check_branch
      %80 = sbr.rel (0) target = $region97
    $region96: #{latex_transformer_decoder.1} parent=1 // pred_region
      _
    $region97: #{latex_transformer_decoder.1} parent=1 // pred_fallthru
      _
    // Predicated region
    $region98: #{latex_transformer_decoder.1} parent=1 // pred_check
      _
    $region99: #{latex_transformer_decoder.1} parent=1 // pred_check_branch
      %82 = sbr.rel (0) target = $region101
    $region100: #{latex_transformer_decoder.1} parent=1 // pred_region
      %s84 = ssub.s32 16, 16
      %85 = vsyncadd [#allocation3], %s84
      %s87 = sshll.u32 [#allocation2], 4
      %s88 = int_to_ptr.vmem [resolvable:$true] %s87
      %90 = dma.hbm_to_vmem [thread:$0]  %s24, 16, %s88, [#allocation3]
    $region101: #{latex_transformer_decoder.1} parent=1 // pred_fallthru
      _
    // Predicated region
    $region102: #{latex_transformer_decoder.1} parent=1 // pred_check
      _
    $region103: #{latex_transformer_decoder.1} parent=1 // pred_check_branch
      %92 = sbr.rel (0) target = $region105
    $region104: #{latex_transformer_decoder.1} parent=1 // pred_region
      _
    $region105: #{latex_transformer_decoder.1} parent=1 // pred_fallthru
      _
    // Predicated region
    $region106: #{latex_transformer_decoder.1} parent=1 // pred_check
      _
    $region107: #{latex_transformer_decoder.1} parent=1 // pred_check_branch
      %94 = sbr.rel (0) target = $region109
    $region108: #{latex_transformer_decoder.1} parent=1 // pred_region
      _
    $region109: #{latex_transformer_decoder.1} parent=1 // pred_fallthru
      _
    // Predicated region
    $region110: #{latex_transformer_decoder.1} parent=1 // pred_check
      _
    $region111: #{latex_transformer_decoder.1} parent=1 // pred_check_branch
      %96 = sbr.rel (0) target = $region113
    $region112: #{latex_transformer_decoder.1} parent=1 // pred_region
      %97 = dma.done [#allocation3], 16
    $region113: #{latex_transformer_decoder.1} parent=1 // pred_fallthru
      _
    %v98 = vld [vmem:[%s0] sm:$0xff]
    %v99 = vld [vmem:[%s0 + $0x8] sm:$0xff]
    %v100 = vld [vmem:[%s1] sm:$0xff]
    %v101 = vld [vmem:[%s1 + $0x8] sm:$0xff]
    %v102 = vld [vmem:[%s1 + $0x10] sm:$0xff]
    %v103 = vld [vmem:[%s1 + $0x18] sm:$0xff]
    %v104 = vld [vmem:[%s2] sm:$0xff]
    %v105 = vld [vmem:[%s3] sm:$0xff]
    %v106 = vld [vmem:[%s3 + $0x8] sm:$0xff]
    %v107 = vld [vmem:[%s3 + $0x10] sm:$0xff]
    %v108 = vld [vmem:[%s3 + $0x18] sm:$0xff]
    %v109 = vld [vmem:[%s4] sm:$0x1]
    %v111 = vlaneseq
    %v112 = vshrl.u32 %v111, 7
    %v113 = vsub.s32 0, %v112
    %v114 = vrot.slane %v109, %v113
    %vm116 = vcmask 261120
    %v118 = vsel %vm116, %v98, 0
    %v121 = vsel %vm116, %v99, 0
    %123 = vmatprep.subr.mxu0 0.0
    %124 = vmatpush1.msra.mxu0 %v105
    %125 = vmatprep.subr.mxu0 0.0
    %126 = vmatpush1.msra.mxu0 %v106
    %127 = vmatprep.subr.mxu0 0.0
    %128 = vmatpush1.msra.mxu0 %v107
    %129 = vmatprep.subr.mxu0 0.0
    %130 = vmatpush1.msra.mxu0 %v108
    %131 = vmatprep.subr.mxu0 0.0
    %132 = vmatpush1.msra.mxu0 0.0
    %133 = vmatprep.subr.mxu0 0.0
    %134 = vmatpush1.msra.mxu0 0.0
    %135 = vmatprep.subr.mxu0 0.0
    %136 = vmatpush1.msra.mxu0 0.0
    %137 = vmatprep.subr.mxu0 0.0
    %138 = vmatpush1.msra.mxu0 0.0
    %139 = vmatprep.subr.mxu0 0.0
    %140 = vmatpush1.msra.mxu0 0.0
    %141 = vmatprep.subr.mxu0 0.0
    %142 = vmatpush1.msra.mxu0 0.0
    %143 = vmatprep.subr.mxu0 0.0
    %144 = vmatpush1.msra.mxu0 0.0
    %145 = vmatprep.subr.mxu0 0.0
    %146 = vmatpush1.msra.mxu0 0.0
    %147 = vmatprep.subr.mxu0 0.0
    %148 = vmatpush1.msra.mxu0 0.0
    %149 = vmatprep.subr.mxu0 0.0
    %150 = vmatpush1.msra.mxu0 0.0
    %151 = vmatprep.subr.mxu0 0.0
    %152 = vmatpush1.msra.mxu0 0.0
    %153 = vmatprep.subr.mxu0 0.0
    %154 = vmatpush1.msra.mxu0 0.0
    %155 = vmatprep.subr.mxu0 0.0
    %156 = vmatpush1.msra.mxu0 0.0
    %157 = vmatprep.subr.mxu0 0.0
    %158 = vmatpush1.msra.mxu0 0.0
    %159 = vmatprep.subr.mxu0 0.0
    %160 = vmatpush1.msra.mxu0 0.0
    %161 = vmatprep.subr.mxu0 0.0
    %162 = vmatpush1.msra.mxu0 0.0
    %163 = vmatprep.subr.mxu0 0.0
    %164 = vmatpush1.msra.mxu0 0.0
    %165 = vmatprep.subr.mxu0 0.0
    %166 = vmatpush1.msra.mxu0 0.0
    %167 = vmatprep.subr.mxu0 0.0
    %168 = vmatpush1.msra.mxu0 0.0
    %169 = vmatprep.subr.mxu0 0.0
    %170 = vmatpush1.msra.mxu0 0.0
    %171 = vmatprep.subr.mxu0 0.0
    %172 = vmatpush1.msra.mxu0 0.0
    %173 = vmatprep.subr.mxu0 0.0
    %174 = vmatpush1.msra.mxu0 0.0
    %175 = vmatprep.subr.mxu0 0.0
    %176 = vmatpush1.msra.mxu0 0.0
    %177 = vmatprep.subr.mxu0 0.0
    %178 = vmatpush1.msra.mxu0 0.0
    %179 = vmatprep.subr.mxu0 0.0
    %180 = vmatpush1.msra.mxu0 0.0
    %181 = vmatprep.subr.mxu0 0.0
    %182 = vmatpush1.msra.mxu0 0.0
    %183 = vmatprep.subr.mxu0 0.0
    %184 = vmatpush1.msra.mxu0 0.0
    %185 = vmatprep.subr.mxu0 0.0
    %186 = vmatpush1.msra.mxu0 0.0
    %187 = vmatprep.mubr.f32.mxu0 0.0
    %188 = vmatmul.mubr.f32.gmra.mrb[0].mxu0 %v118
    %v189 = vpop.f32.mrb[0].mxu0
    %v190 = vadd.f32 %v114, %v189
    %v191 = vpop.f32.mrb[0].mxu0
    %192 = vmatprep.mubr.f32.mxu0 0.0
    %193 = vmatmul.mubr.f32.gmra.mrb[0].mxu0 %v121
    %v194 = vpop.f32.mrb[0].mxu0
    %v195 = vadd.f32 %v114, %v194
    %v196 = vpop.f32.mrb[0].mxu0
    %197 = vdwg.mxu0
    %v198 = vld [vmem:[%s5] sm:$0xff]
    %v199 = vld [vmem:[%s5 + $0x8] sm:$0xff]
    %v200 = vld [vmem:[%s5 + $0x10] sm:$0xff]
    %v201 = vld [vmem:[%s5 + $0x18] sm:$0xff]
    %v202 = vld [vmem:[%s6] sm:$0x1]
    %204 = vrot.lane.b32.xlu0 %v190, 96
    %v205 = vpop.permute.xlu0 %204
    %vm206 = vcmask 64512
    %v207 = vsel %vm206, %v190, 0
    %v209 = vsel %vm206, %v205, 0
    %211 = vmatprep.subr.mxu0 0.0
    %212 = vmatpush1.xpose.msra.mxu0 %v209
    %213 = vmatprep.subr.mxu0 0.0
    %214 = vmatpush1.xpose.msra.mxu0 0.0
    %215 = vmatprep.subr.mxu0 0.0
    %216 = vmatpush1.xpose.msra.mxu0 0.0
    %217 = vmatprep.subr.mxu0 0.0
    %218 = vmatpush1.xpose.msra.mxu0 0.0
    %219 = vmatprep.subr.mxu0 0.0
    %220 = vmatpush1.xpose.msra.mxu0 0.0
    %221 = vmatprep.subr.mxu0 0.0
    %222 = vmatpush1.xpose.msra.mxu0 0.0
    %223 = vmatprep.subr.mxu0 0.0
    %224 = vmatpush1.xpose.msra.mxu0 0.0
    %225 = vmatprep.subr.mxu0 0.0
    %226 = vmatpush1.xpose.msra.mxu0 0.0
    %227 = vmatprep.subr.mxu0 0.0
    %228 = vmatpush1.xpose.msra.mxu0 0.0
    %229 = vmatprep.subr.mxu0 0.0
    %230 = vmatpush1.xpose.msra.mxu0 0.0
    %231 = vmatprep.subr.mxu0 0.0
    %232 = vmatpush1.xpose.msra.mxu0 0.0
    %233 = vmatprep.subr.mxu0 0.0
    %234 = vmatpush1.xpose.msra.mxu0 0.0
    %235 = vmatprep.subr.mxu0 0.0
    %236 = vmatpush1.xpose.msra.mxu0 0.0
    %237 = vmatprep.subr.mxu0 0.0
    %238 = vmatpush1.xpose.msra.mxu0 0.0
    %239 = vmatprep.subr.mxu0 0.0
    %240 = vmatpush1.xpose.msra.mxu0 0.0
    %241 = vmatprep.subr.mxu0 0.0
    %242 = vmatpush1.xpose.msra.mxu0 0.0
    %243 = vmatprep.subr.mxu0 0.0
    %244 = vmatpush1.xpose.msra.mxu0 0.0
    %245 = vmatprep.subr.mxu0 0.0
    %246 = vmatpush1.xpose.msra.mxu0 0.0
    %247 = vmatprep.subr.mxu0 0.0
    %248 = vmatpush1.xpose.msra.mxu0 0.0
    %249 = vmatprep.subr.mxu0 0.0
    %250 = vmatpush1.xpose.msra.mxu0 0.0
    %251 = vmatprep.subr.mxu0 0.0
    %252 = vmatpush1.xpose.msra.mxu0 0.0
    %253 = vmatprep.subr.mxu0 0.0
    %254 = vmatpush1.xpose.msra.mxu0 0.0
    %255 = vmatprep.subr.mxu0 0.0
    %256 = vmatpush1.xpose.msra.mxu0 0.0
    %257 = vmatprep.subr.mxu0 0.0
    %258 = vmatpush1.xpose.msra.mxu0 0.0
    %259 = vmatprep.subr.mxu0 0.0
    %260 = vmatpush1.xpose.msra.mxu0 0.0
    %261 = vmatprep.subr.mxu0 0.0
    %262 = vmatpush1.xpose.msra.mxu0 0.0
    %263 = vmatprep.subr.mxu0 0.0
    %264 = vmatpush1.xpose.msra.mxu0 0.0
    %265 = vmatprep.subr.mxu0 0.0
    %266 = vmatpush1.xpose.msra.mxu0 0.0
    %267 = vmatprep.subr.mxu0 0.0
    %268 = vmatpush1.xpose.msra.mxu0 0.0
    %269 = vmatprep.subr.mxu0 0.0
    %270 = vmatpush1.xpose.msra.mxu0 0.0
    %271 = vmatprep.subr.mxu0 0.0
    %272 = vmatpush1.xpose.msra.mxu0 0.0
    %273 = vmatprep.subr.mxu0 0.0
    %274 = vmatpush1.xpose.msra.mxu0 0.0
    %275 = vmatprep.mubr.f32.mxu0 0.0
    %276 = vmatmul.mubr.f32.gmra.mrb[0].mxu0 %v207
    %v277 = vpop.f32.mrb[0].mxu0
    %v278 = vadd.f32 0.0, %v277
    %v279 = vpop.f32.mrb[0].mxu0
    %280 = vdwg.mxu0
    %v281 = vmul.f32 %v278, 0.35355338
    %v282 = vadd.f32 %v281, %v104
    %v283 = vsel %vm206, %v282, -inf
    %284 = vmax.xlane.f32.xlu0 %v283
    %v285 = vpop.xlane.xlu0 %284
    %v286 = vsub.f32 %v282, %v285
    %v287 = vmul.f32 %v286, 1.442695
    %v288 = vpow.pop %v287
    %v289 = vsel %vm206, %v288, 0.0
    %290 = vadd.xlane.f32.xlu0 %v289
    %v291 = vpop.xlane.xlu0 %290
    %v292 = vrcp.pop %v291
    %v293 = vmul.f32 %v288, %v292
    %294 = vrot.lane.b32.xlu0 %v190, 64
    %v295 = vpop.permute.xlu0 %294
    %v298 = vsel %vm206, %v293, 0
    %300 = vmatprep.subr.mxu0 0.0
    %301 = vmatpush1.msra.mxu0 %v295
    %302 = vmatprep.subr.mxu0 0.0
    %303 = vmatpush1.msra.mxu0 0.0
    %304 = vmatprep.subr.mxu0 0.0
    %305 = vmatpush1.msra.mxu0 0.0
    %306 = vmatprep.subr.mxu0 0.0
    %307 = vmatpush1.msra.mxu0 0.0
    %308 = vmatprep.subr.mxu0 0.0
    %309 = vmatpush1.msra.mxu0 0.0
    %310 = vmatprep.subr.mxu0 0.0
    %311 = vmatpush1.msra.mxu0 0.0
    %312 = vmatprep.subr.mxu0 0.0
    %313 = vmatpush1.msra.mxu0 0.0
    %314 = vmatprep.subr.mxu0 0.0
    %315 = vmatpush1.msra.mxu0 0.0
    %316 = vmatprep.subr.mxu0 0.0
    %317 = vmatpush1.msra.mxu0 0.0
    %318 = vmatprep.subr.mxu0 0.0
    %319 = vmatpush1.msra.mxu0 0.0
    %320 = vmatprep.subr.mxu0 0.0
    %321 = vmatpush1.msra.mxu0 0.0
    %322 = vmatprep.subr.mxu0 0.0
    %323 = vmatpush1.msra.mxu0 0.0
    %324 = vmatprep.subr.mxu0 0.0
    %325 = vmatpush1.msra.mxu0 0.0
    %326 = vmatprep.subr.mxu0 0.0
    %327 = vmatpush1.msra.mxu0 0.0
    %328 = vmatprep.subr.mxu0 0.0
    %329 = vmatpush1.msra.mxu0 0.0
    %330 = vmatprep.subr.mxu0 0.0
    %331 = vmatpush1.msra.mxu0 0.0
    %332 = vmatprep.subr.mxu0 0.0
    %333 = vmatpush1.msra.mxu0 0.0
    %334 = vmatprep.subr.mxu0 0.0
    %335 = vmatpush1.msra.mxu0 0.0
    %336 = vmatprep.subr.mxu0 0.0
    %337 = vmatpush1.msra.mxu0 0.0
    %338 = vmatprep.subr.mxu0 0.0
    %339 = vmatpush1.msra.mxu0 0.0
    %340 = vmatprep.subr.mxu0 0.0
    %341 = vmatpush1.msra.mxu0 0.0
    %342 = vmatprep.subr.mxu0 0.0
    %343 = vmatpush1.msra.mxu0 0.0
    %344 = vmatprep.subr.mxu0 0.0
    %345 = vmatpush1.msra.mxu0 0.0
    %346 = vmatprep.subr.mxu0 0.0
    %347 = vmatpush1.msra.mxu0 0.0
    %348 = vmatprep.subr.mxu0 0.0
    %349 = vmatpush1.msra.mxu0 0.0
    %350 = vmatprep.subr.mxu0 0.0
    %351 = vmatpush1.msra.mxu0 0.0
    %352 = vmatprep.subr.mxu0 0.0
    %353 = vmatpush1.msra.mxu0 0.0
    %354 = vmatprep.subr.mxu0 0.0
    %355 = vmatpush1.msra.mxu0 0.0
    %356 = vmatprep.subr.mxu0 0.0
    %357 = vmatpush1.msra.mxu0 0.0
    %358 = vmatprep.subr.mxu0 0.0
    %359 = vmatpush1.msra.mxu0 0.0
    %360 = vmatprep.subr.mxu0 0.0
    %361 = vmatpush1.msra.mxu0 0.0
    %362 = vmatprep.subr.mxu0 0.0
    %363 = vmatpush1.msra.mxu0 0.0
    %364 = vmatprep.mubr.f32.mxu0 0.0
    %365 = vmatmul.mubr.f32.gmra.mrb[0].mxu0 %v298
    %v366 = vpop.f32.mrb[0].mxu0
    %v367 = vadd.f32 0.0, %v366
    %v368 = vpop.f32.mrb[0].mxu0
    %369 = vdwg.mxu0
    %370 = vrot.lane.b32.xlu0 %v190, 120
    %v371 = vpop.permute.xlu0 %370
    %372 = vrot.lane.b32.xlu0 %v190, 88
    %v373 = vpop.permute.xlu0 %372
    %v374 = vsel %vm206, %v371, 0
    %v376 = vsel %vm206, %v373, 0
    %378 = vmatprep.subr.mxu0 0.0
    %379 = vmatpush1.xpose.msra.mxu0 %v376
    %380 = vmatprep.subr.mxu0 0.0
    %381 = vmatpush1.xpose.msra.mxu0 0.0
    %382 = vmatprep.subr.mxu0 0.0
    %383 = vmatpush1.xpose.msra.mxu0 0.0
    %384 = vmatprep.subr.mxu0 0.0
    %385 = vmatpush1.xpose.msra.mxu0 0.0
    %386 = vmatprep.subr.mxu0 0.0
    %387 = vmatpush1.xpose.msra.mxu0 0.0
    %388 = vmatprep.subr.mxu0 0.0
    %389 = vmatpush1.xpose.msra.mxu0 0.0
    %390 = vmatprep.subr.mxu0 0.0
    %391 = vmatpush1.xpose.msra.mxu0 0.0
    %392 = vmatprep.subr.mxu0 0.0
    %393 = vmatpush1.xpose.msra.mxu0 0.0
    %394 = vmatprep.subr.mxu0 0.0
    %395 = vmatpush1.xpose.msra.mxu0 0.0
    %396 = vmatprep.subr.mxu0 0.0
    %397 = vmatpush1.xpose.msra.mxu0 0.0
    %398 = vmatprep.subr.mxu0 0.0
    %399 = vmatpush1.xpose.msra.mxu0 0.0
    %400 = vmatprep.subr.mxu0 0.0
    %401 = vmatpush1.xpose.msra.mxu0 0.0
    %402 = vmatprep.subr.mxu0 0.0
    %403 = vmatpush1.xpose.msra.mxu0 0.0
    %404 = vmatprep.subr.mxu0 0.0
    %405 = vmatpush1.xpose.msra.mxu0 0.0
    %406 = vmatprep.subr.mxu0 0.0
    %407 = vmatpush1.xpose.msra.mxu0 0.0
    %408 = vmatprep.subr.mxu0 0.0
    %409 = vmatpush1.xpose.msra.mxu0 0.0
    %410 = vmatprep.subr.mxu0 0.0
    %411 = vmatpush1.xpose.msra.mxu0 0.0
    %412 = vmatprep.subr.mxu0 0.0
    %413 = vmatpush1.xpose.msra.mxu0 0.0
    %414 = vmatprep.subr.mxu0 0.0
    %415 = vmatpush1.xpose.msra.mxu0 0.0
    %416 = vmatprep.subr.mxu0 0.0
    %417 = vmatpush1.xpose.msra.mxu0 0.0
    %418 = vmatprep.subr.mxu0 0.0
    %419 = vmatpush1.xpose.msra.mxu0 0.0
    %420 = vmatprep.subr.mxu0 0.0
    %421 = vmatpush1.xpose.msra.mxu0 0.0
    %422 = vmatprep.subr.mxu0 0.0
    %423 = vmatpush1.xpose.msra.mxu0 0.0
    %424 = vmatprep.subr.mxu0 0.0
    %425 = vmatpush1.xpose.msra.mxu0 0.0
    %426 = vmatprep.subr.mxu0 0.0
    %427 = vmatpush1.xpose.msra.mxu0 0.0
    %428 = vmatprep.subr.mxu0 0.0
    %429 = vmatpush1.xpose.msra.mxu0 0.0
    %430 = vmatprep.subr.mxu0 0.0
    %431 = vmatpush1.xpose.msra.mxu0 0.0
    %432 = vmatprep.subr.mxu0 0.0
    %433 = vmatpush1.xpose.msra.mxu0 0.0
    %434 = vmatprep.subr.mxu0 0.0
    %435 = vmatpush1.xpose.msra.mxu0 0.0
    %436 = vmatprep.subr.mxu0 0.0
    %437 = vmatpush1.xpose.msra.mxu0 0.0
    %438 = vmatprep.subr.mxu0 0.0
    %439 = vmatpush1.xpose.msra.mxu0 0.0
    %440 = vmatprep.subr.mxu0 0.0
    %441 = vmatpush1.xpose.msra.mxu0 0.0
    %442 = vmatprep.mubr.f32.mxu0 0.0
    %443 = vmatmul.mubr.f32.gmra.mrb[0].mxu0 %v374
    %v444 = vpop.f32.mrb[0].mxu0
    %v445 = vadd.f32 0.0, %v444
    %v446 = vpop.f32.mrb[0].mxu0
    %447 = vdwg.mxu0
    %v448 = vmul.f32 %v445, 0.35355338
    %v449 = vadd.f32 %v448, %v104
    %v450 = vsel %vm206, %v449, -inf
    %451 = vmax.xlane.f32.xlu0 %v450
    %v452 = vpop.xlane.xlu0 %451
    %v453 = vsub.f32 %v449, %v452
    %v454 = vmul.f32 %v453, 1.442695
    %v455 = vpow.pop %v454
    %v456 = vsel %vm206, %v455, 0.0
    %457 = vadd.xlane.f32.xlu0 %v456
    %v458 = vpop.xlane.xlu0 %457
    %v459 = vrcp.pop %v458
    %v460 = vmul.f32 %v455, %v459
    %461 = vrot.lane.b32.xlu0 %v190, 56
    %v462 = vpop.permute.xlu0 %461
    %v465 = vsel %vm206, %v460, 0
    %467 = vmatprep.subr.mxu0 0.0
    %468 = vmatpush1.msra.mxu0 %v462
    %469 = vmatprep.subr.mxu0 0.0
    %470 = vmatpush1.msra.mxu0 0.0
    %471 = vmatprep.subr.mxu0 0.0
    %472 = vmatpush1.msra.mxu0 0.0
    %473 = vmatprep.subr.mxu0 0.0
    %474 = vmatpush1.msra.mxu0 0.0
    %475 = vmatprep.subr.mxu0 0.0
    %476 = vmatpush1.msra.mxu0 0.0
    %477 = vmatprep.subr.mxu0 0.0
    %478 = vmatpush1.msra.mxu0 0.0
    %479 = vmatprep.subr.mxu0 0.0
    %480 = vmatpush1.msra.mxu0 0.0
    %481 = vmatprep.subr.mxu0 0.0
    %482 = vmatpush1.msra.mxu0 0.0
    %483 = vmatprep.subr.mxu0 0.0
    %484 = vmatpush1.msra.mxu0 0.0
    %485 = vmatprep.subr.mxu0 0.0
    %486 = vmatpush1.msra.mxu0 0.0
    %487 = vmatprep.subr.mxu0 0.0
    %488 = vmatpush1.msra.mxu0 0.0
    %489 = vmatprep.subr.mxu0 0.0
    %490 = vmatpush1.msra.mxu0 0.0
    %491 = vmatprep.subr.mxu0 0.0
    %492 = vmatpush1.msra.mxu0 0.0
    %493 = vmatprep.subr.mxu0 0.0
    %494 = vmatpush1.msra.mxu0 0.0
    %495 = vmatprep.subr.mxu0 0.0
    %496 = vmatpush1.msra.mxu0 0.0
    %497 = vmatprep.subr.mxu0 0.0
    %498 = vmatpush1.msra.mxu0 0.0
    %499 = vmatprep.subr.mxu0 0.0
    %500 = vmatpush1.msra.mxu0 0.0
    %501 = vmatprep.subr.mxu0 0.0
    %502 = vmatpush1.msra.mxu0 0.0
    %503 = vmatprep.subr.mxu0 0.0
    %504 = vmatpush1.msra.mxu0 0.0
    %505 = vmatprep.subr.mxu0 0.0
    %506 = vmatpush1.msra.mxu0 0.0
    %507 = vmatprep.subr.mxu0 0.0
    %508 = vmatpush1.msra.mxu0 0.0
    %509 = vmatprep.subr.mxu0 0.0
    %510 = vmatpush1.msra.mxu0 0.0
    %511 = vmatprep.subr.mxu0 0.0
    %512 = vmatpush1.msra.mxu0 0.0
    %513 = vmatprep.subr.mxu0 0.0
    %514 = vmatpush1.msra.mxu0 0.0
    %515 = vmatprep.subr.mxu0 0.0
    %516 = vmatpush1.msra.mxu0 0.0
    %517 = vmatprep.subr.mxu0 0.0
    %518 = vmatpush1.msra.mxu0 0.0
    %519 = vmatprep.subr.mxu0 0.0
    %520 = vmatpush1.msra.mxu0 0.0
    %521 = vmatprep.subr.mxu0 0.0
    %522 = vmatpush1.msra.mxu0 0.0
    %523 = vmatprep.subr.mxu0 0.0
    %524 = vmatpush1.msra.mxu0 0.0
    %525 = vmatprep.subr.mxu0 0.0
    %526 = vmatpush1.msra.mxu0 0.0
    %527 = vmatprep.subr.mxu0 0.0
    %528 = vmatpush1.msra.mxu0 0.0
    %529 = vmatprep.subr.mxu0 0.0
    %530 = vmatpush1.msra.mxu0 0.0
    %531 = vmatprep.mubr.f32.mxu0 0.0
    %532 = vmatmul.mubr.f32.gmra.mrb[0].mxu0 %v465
    %v533 = vpop.f32.mrb[0].mxu0
    %v534 = vadd.f32 0.0, %v533
    %v535 = vpop.f32.mrb[0].mxu0
    %536 = vdwg.mxu0
    %v538 = vsel %vm206, %v534, 0
    %540 = vmatprep.subr.mxu0 0.0
    %541 = vmatpush1.msra.mxu0 %v199
    %542 = vmatprep.subr.mxu0 0.0
    %543 = vmatpush1.msra.mxu0 0.0
    %544 = vmatprep.subr.mxu0 0.0
    %545 = vmatpush1.msra.mxu0 0.0
    %546 = vmatprep.subr.mxu0 0.0
    %547 = vmatpush1.msra.mxu0 0.0
    %548 = vmatprep.subr.mxu0 0.0
    %549 = vmatpush1.msra.mxu0 0.0
    %550 = vmatprep.subr.mxu0 0.0
    %551 = vmatpush1.msra.mxu0 0.0
    %552 = vmatprep.subr.mxu0 0.0
    %553 = vmatpush1.msra.mxu0 0.0
    %554 = vmatprep.subr.mxu0 0.0
    %555 = vmatpush1.msra.mxu0 0.0
    %556 = vmatprep.subr.mxu0 0.0
    %557 = vmatpush1.msra.mxu0 0.0
    %558 = vmatprep.subr.mxu0 0.0
    %559 = vmatpush1.msra.mxu0 0.0
    %560 = vmatprep.subr.mxu0 0.0
    %561 = vmatpush1.msra.mxu0 0.0
    %562 = vmatprep.subr.mxu0 0.0
    %563 = vmatpush1.msra.mxu0 0.0
    %564 = vmatprep.subr.mxu0 0.0
    %565 = vmatpush1.msra.mxu0 0.0
    %566 = vmatprep.subr.mxu0 0.0
    %567 = vmatpush1.msra.mxu0 0.0
    %568 = vmatprep.subr.mxu0 0.0
    %569 = vmatpush1.msra.mxu0 0.0
    %570 = vmatprep.subr.mxu0 0.0
    %571 = vmatpush1.msra.mxu0 0.0
    %572 = vmatprep.subr.mxu0 0.0
    %573 = vmatpush1.msra.mxu0 0.0
    %574 = vmatprep.subr.mxu0 0.0
    %575 = vmatpush1.msra.mxu0 0.0
    %576 = vmatprep.subr.mxu0 0.0
    %577 = vmatpush1.msra.mxu0 0.0
    %578 = vmatprep.subr.mxu0 0.0
    %579 = vmatpush1.msra.mxu0 0.0
    %580 = vmatprep.subr.mxu0 0.0
    %581 = vmatpush1.msra.mxu0 0.0
    %582 = vmatprep.subr.mxu0 0.0
    %583 = vmatpush1.msra.mxu0 0.0
    %584 = vmatprep.subr.mxu0 0.0
    %585 = vmatpush1.msra.mxu0 0.0
    %586 = vmatprep.subr.mxu0 0.0
    %587 = vmatpush1.msra.mxu0 0.0
    %588 = vmatprep.subr.mxu0 0.0
    %589 = vmatpush1.msra.mxu0 0.0
    %590 = vmatprep.subr.mxu0 0.0
    %591 = vmatpush1.msra.mxu0 0.0
    %592 = vmatprep.subr.mxu0 0.0
    %593 = vmatpush1.msra.mxu0 0.0
    %594 = vmatprep.subr.mxu0 0.0
    %595 = vmatpush1.msra.mxu0 0.0
    %596 = vmatprep.subr.mxu0 0.0
    %597 = vmatpush1.msra.mxu0 0.0
    %598 = vmatprep.subr.mxu0 0.0
    %599 = vmatpush1.msra.mxu0 0.0
    %600 = vmatprep.subr.mxu0 0.0
    %601 = vmatpush1.msra.mxu0 0.0
    %602 = vmatprep.subr.mxu0 0.0
    %603 = vmatpush1.msra.mxu0 0.0
    %604 = vmatprep.mubr.f32.mxu0 0.0
    %605 = vmatmul.mubr.f32.gmra.mrb[0].mxu0 %v538
    %v606 = vpop.f32.mrb[0].mxu0
    %v607 = vadd.f32 0.0, %v606
    %v608 = vpop.f32.mrb[0].mxu0
    %609 = vdwg.mxu0
    %v611 = vsel %vm206, %v367, 0
    %613 = vmatprep.subr.mxu0 0.0
    %614 = vmatpush1.msra.mxu0 %v198
    %615 = vmatprep.subr.mxu0 0.0
    %616 = vmatpush1.msra.mxu0 0.0
    %617 = vmatprep.subr.mxu0 0.0
    %618 = vmatpush1.msra.mxu0 0.0
    %619 = vmatprep.subr.mxu0 0.0
    %620 = vmatpush1.msra.mxu0 0.0
    %621 = vmatprep.subr.mxu0 0.0
    %622 = vmatpush1.msra.mxu0 0.0
    %623 = vmatprep.subr.mxu0 0.0
    %624 = vmatpush1.msra.mxu0 0.0
    %625 = vmatprep.subr.mxu0 0.0
    %626 = vmatpush1.msra.mxu0 0.0
    %627 = vmatprep.subr.mxu0 0.0
    %628 = vmatpush1.msra.mxu0 0.0
    %629 = vmatprep.subr.mxu0 0.0
    %630 = vmatpush1.msra.mxu0 0.0
    %631 = vmatprep.subr.mxu0 0.0
    %632 = vmatpush1.msra.mxu0 0.0
    %633 = vmatprep.subr.mxu0 0.0
    %634 = vmatpush1.msra.mxu0 0.0
    %635 = vmatprep.subr.mxu0 0.0
    %636 = vmatpush1.msra.mxu0 0.0
    %637 = vmatprep.subr.mxu0 0.0
    %638 = vmatpush1.msra.mxu0 0.0
    %639 = vmatprep.subr.mxu0 0.0
    %640 = vmatpush1.msra.mxu0 0.0
    %641 = vmatprep.subr.mxu0 0.0
    %642 = vmatpush1.msra.mxu0 0.0
    %643 = vmatprep.subr.mxu0 0.0
    %644 = vmatpush1.msra.mxu0 0.0
    %645 = vmatprep.subr.mxu0 0.0
    %646 = vmatpush1.msra.mxu0 0.0
    %647 = vmatprep.subr.mxu0 0.0
    %648 = vmatpush1.msra.mxu0 0.0
    %649 = vmatprep.subr.mxu0 0.0
    %650 = vmatpush1.msra.mxu0 0.0
    %651 = vmatprep.subr.mxu0 0.0
    %652 = vmatpush1.msra.mxu0 0.0
    %653 = vmatprep.subr.mxu0 0.0
    %654 = vmatpush1.msra.mxu0 0.0
    %655 = vmatprep.subr.mxu0 0.0
    %656 = vmatpush1.msra.mxu0 0.0
    %657 = vmatprep.subr.mxu0 0.0
    %658 = vmatpush1.msra.mxu0 0.0
    %659 = vmatprep.subr.mxu0 0.0
    %660 = vmatpush1.msra.mxu0 0.0
    %661 = vmatprep.subr.mxu0 0.0
    %662 = vmatpush1.msra.mxu0 0.0
    %663 = vmatprep.subr.mxu0 0.0
    %664 = vmatpush1.msra.mxu0 0.0
    %665 = vmatprep.subr.mxu0 0.0
    %666 = vmatpush1.msra.mxu0 0.0
    %667 = vmatprep.subr.mxu0 0.0
    %668 = vmatpush1.msra.mxu0 0.0
    %669 = vmatprep.subr.mxu0 0.0
    %670 = vmatpush1.msra.mxu0 0.0
    %671 = vmatprep.subr.mxu0 0.0
    %672 = vmatpush1.msra.mxu0 0.0
    %673 = vmatprep.subr.mxu0 0.0
    %674 = vmatpush1.msra.mxu0 0.0
    %675 = vmatprep.subr.mxu0 0.0
    %676 = vmatpush1.msra.mxu0 0.0
    %677 = vmatprep.mubr.f32.mxu0 0.0
    %678 = vmatmul.mubr.f32.gmra.mrb[0].mxu0 %v611
    %v679 = vpop.f32.mrb[0].mxu0
    %v680 = vadd.f32 %v607, %v679
    %v681 = vpop.f32.mrb[0].mxu0
    %682 = vdwg.mxu0
    %683 = vrot.lane.b32.xlu0 %v190, 112
    %v684 = vpop.permute.xlu0 %683
    %685 = vrot.lane.b32.xlu0 %v190, 80
    %v686 = vpop.permute.xlu0 %685
    %v687 = vsel %vm206, %v684, 0
    %v689 = vsel %vm206, %v686, 0
    %691 = vmatprep.subr.mxu0 0.0
    %692 = vmatpush1.xpose.msra.mxu0 %v689
    %693 = vmatprep.subr.mxu0 0.0
    %694 = vmatpush1.xpose.msra.mxu0 0.0
    %695 = vmatprep.subr.mxu0 0.0
    %696 = vmatpush1.xpose.msra.mxu0 0.0
    %697 = vmatprep.subr.mxu0 0.0
    %698 = vmatpush1.xpose.msra.mxu0 0.0
    %699 = vmatprep.subr.mxu0 0.0
    %700 = vmatpush1.xpose.msra.mxu0 0.0
    %701 = vmatprep.subr.mxu0 0.0
    %702 = vmatpush1.xpose.msra.mxu0 0.0
    %703 = vmatprep.subr.mxu0 0.0
    %704 = vmatpush1.xpose.msra.mxu0 0.0
    %705 = vmatprep.subr.mxu0 0.0
    %706 = vmatpush1.xpose.msra.mxu0 0.0
    %707 = vmatprep.subr.mxu0 0.0
    %708 = vmatpush1.xpose.msra.mxu0 0.0
    %709 = vmatprep.subr.mxu0 0.0
    %710 = vmatpush1.xpose.msra.mxu0 0.0
    %711 = vmatprep.subr.mxu0 0.0
    %712 = vmatpush1.xpose.msra.mxu0 0.0
    %713 = vmatprep.subr.mxu0 0.0
    %714 = vmatpush1.xpose.msra.mxu0 0.0
    %715 = vmatprep.subr.mxu0 0.0
    %716 = vmatpush1.xpose.msra.mxu0 0.0
    %717 = vmatprep.subr.mxu0 0.0
    %718 = vmatpush1.xpose.msra.mxu0 0.0
    %719 = vmatprep.subr.mxu0 0.0
    %720 = vmatpush1.xpose.msra.mxu0 0.0
    %721 = vmatprep.subr.mxu0 0.0
    %722 = vmatpush1.xpose.msra.mxu0 0.0
    %723 = vmatprep.subr.mxu0 0.0
    %724 = vmatpush1.xpose.msra.mxu0 0.0
    %725 = vmatprep.subr.mxu0 0.0
    %726 = vmatpush1.xpose.msra.mxu0 0.0
    %727 = vmatprep.subr.mxu0 0.0
    %728 = vmatpush1.xpose.msra.mxu0 0.0
    %729 = vmatprep.subr.mxu0 0.0
    %730 = vmatpush1.xpose.msra.mxu0 0.0
    %731 = vmatprep.subr.mxu0 0.0
    %732 = vmatpush1.xpose.msra.mxu0 0.0
    %733 = vmatprep.subr.mxu0 0.0
    %734 = vmatpush1.xpose.msra.mxu0 0.0
    %735 = vmatprep.subr.mxu0 0.0
    %736 = vmatpush1.xpose.msra.mxu0 0.0
    %737 = vmatprep.subr.mxu0 0.0
    %738 = vmatpush1.xpose.msra.mxu0 0.0
    %739 = vmatprep.subr.mxu0 0.0
    %740 = vmatpush1.xpose.msra.mxu0 0.0
    %741 = vmatprep.subr.mxu0 0.0
    %742 = vmatpush1.xpose.msra.mxu0 0.0
    %743 = vmatprep.subr.mxu0 0.0
    %744 = vmatpush1.xpose.msra.mxu0 0.0
    %745 = vmatprep.subr.mxu0 0.0
    %746 = vmatpush1.xpose.msra.mxu0 0.0
    %747 = vmatprep.subr.mxu0 0.0
    %748 = vmatpush1.xpose.msra.mxu0 0.0
    %749 = vmatprep.subr.mxu0 0.0
    %750 = vmatpush1.xpose.msra.mxu0 0.0
    %751 = vmatprep.subr.mxu0 0.0
    %752 = vmatpush1.xpose.msra.mxu0 0.0
    %753 = vmatprep.subr.mxu0 0.0
    %754 = vmatpush1.xpose.msra.mxu0 0.0
    %755 = vmatprep.mubr.f32.mxu0 0.0
    %756 = vmatmul.mubr.f32.gmra.mrb[0].mxu0 %v687
    %v757 = vpop.f32.mrb[0].mxu0
    %v758 = vadd.f32 0.0, %v757
    %v759 = vpop.f32.mrb[0].mxu0
    %760 = vdwg.mxu0
    %v761 = vmul.f32 %v758, 0.35355338
    %v762 = vadd.f32 %v761, %v104
    %v763 = vsel %vm206, %v762, -inf
    %764 = vmax.xlane.f32.xlu0 %v763
    %v765 = vpop.xlane.xlu0 %764
    %v766 = vsub.f32 %v762, %v765
    %v767 = vmul.f32 %v766, 1.442695
    %v768 = vpow.pop %v767
    %v769 = vsel %vm206, %v768, 0.0
    %770 = vadd.xlane.f32.xlu0 %v769
    %v771 = vpop.xlane.xlu0 %770
    %v772 = vrcp.pop %v771
    %v773 = vmul.f32 %v768, %v772
    %774 = vrot.lane.b32.xlu0 %v190, 48
    %v775 = vpop.permute.xlu0 %774
    %v778 = vsel %vm206, %v773, 0
    %780 = vmatprep.subr.mxu0 0.0
    %781 = vmatpush1.msra.mxu0 %v775
    %782 = vmatprep.subr.mxu0 0.0
    %783 = vmatpush1.msra.mxu0 0.0
    %784 = vmatprep.subr.mxu0 0.0
    %785 = vmatpush1.msra.mxu0 0.0
    %786 = vmatprep.subr.mxu0 0.0
    %787 = vmatpush1.msra.mxu0 0.0
    %788 = vmatprep.subr.mxu0 0.0
    %789 = vmatpush1.msra.mxu0 0.0
    %790 = vmatprep.subr.mxu0 0.0
    %791 = vmatpush1.msra.mxu0 0.0
    %792 = vmatprep.subr.mxu0 0.0
    %793 = vmatpush1.msra.mxu0 0.0
    %794 = vmatprep.subr.mxu0 0.0
    %795 = vmatpush1.msra.mxu0 0.0
    %796 = vmatprep.subr.mxu0 0.0
    %797 = vmatpush1.msra.mxu0 0.0
    %798 = vmatprep.subr.mxu0 0.0
    %799 = vmatpush1.msra.mxu0 0.0
    %800 = vmatprep.subr.mxu0 0.0
    %801 = vmatpush1.msra.mxu0 0.0
    %802 = vmatprep.subr.mxu0 0.0
    %803 = vmatpush1.msra.mxu0 0.0
    %804 = vmatprep.subr.mxu0 0.0
    %805 = vmatpush1.msra.mxu0 0.0
    %806 = vmatprep.subr.mxu0 0.0
    %807 = vmatpush1.msra.mxu0 0.0
    %808 = vmatprep.subr.mxu0 0.0
    %809 = vmatpush1.msra.mxu0 0.0
    %810 = vmatprep.subr.mxu0 0.0
    %811 = vmatpush1.msra.mxu0 0.0
    %812 = vmatprep.subr.mxu0 0.0
    %813 = vmatpush1.msra.mxu0 0.0
    %814 = vmatprep.subr.mxu0 0.0
    %815 = vmatpush1.msra.mxu0 0.0
    %816 = vmatprep.subr.mxu0 0.0
    %817 = vmatpush1.msra.mxu0 0.0
    %818 = vmatprep.subr.mxu0 0.0
    %819 = vmatpush1.msra.mxu0 0.0
    %820 = vmatprep.subr.mxu0 0.0
    %821 = vmatpush1.msra.mxu0 0.0
    %822 = vmatprep.subr.mxu0 0.0
    %823 = vmatpush1.msra.mxu0 0.0
    %824 = vmatprep.subr.mxu0 0.0
    %825 = vmatpush1.msra.mxu0 0.0
    %826 = vmatprep.subr.mxu0 0.0
    %827 = vmatpush1.msra.mxu0 0.0
    %828 = vmatprep.subr.mxu0 0.0
    %829 = vmatpush1.msra.mxu0 0.0
    %830 = vmatprep.subr.mxu0 0.0
    %831 = vmatpush1.msra.mxu0 0.0
    %832 = vmatprep.subr.mxu0 0.0
    %833 = vmatpush1.msra.mxu0 0.0
    %834 = vmatprep.subr.mxu0 0.0
    %835 = vmatpush1.msra.mxu0 0.0
    %836 = vmatprep.subr.mxu0 0.0
    %837 = vmatpush1.msra.mxu0 0.0
    %838 = vmatprep.subr.mxu0 0.0
    %839 = vmatpush1.msra.mxu0 0.0
    %840 = vmatprep.subr.mxu0 0.0
    %841 = vmatpush1.msra.mxu0 0.0
    %842 = vmatprep.subr.mxu0 0.0
    %843 = vmatpush1.msra.mxu0 0.0
    %844 = vmatprep.mubr.f32.mxu0 0.0
    %845 = vmatmul.mubr.f32.gmra.mrb[0].mxu0 %v778
    %v846 = vpop.f32.mrb[0].mxu0
    %v847 = vadd.f32 0.0, %v846
    %v848 = vpop.f32.mrb[0].mxu0
    %849 = vdwg.mxu0
    %v851 = vsel %vm206, %v847, 0
    %853 = vmatprep.subr.mxu0 0.0
    %854 = vmatpush1.msra.mxu0 %v200
    %855 = vmatprep.subr.mxu0 0.0
    %856 = vmatpush1.msra.mxu0 0.0
    %857 = vmatprep.subr.mxu0 0.0
    %858 = vmatpush1.msra.mxu0 0.0
    %859 = vmatprep.subr.mxu0 0.0
    %860 = vmatpush1.msra.mxu0 0.0
    %861 = vmatprep.subr.mxu0 0.0
    %862 = vmatpush1.msra.mxu0 0.0
    %863 = vmatprep.subr.mxu0 0.0
    %864 = vmatpush1.msra.mxu0 0.0
    %865 = vmatprep.subr.mxu0 0.0
    %866 = vmatpush1.msra.mxu0 0.0
    %867 = vmatprep.subr.mxu0 0.0
    %868 = vmatpush1.msra.mxu0 0.0
    %869 = vmatprep.subr.mxu0 0.0
    %870 = vmatpush1.msra.mxu0 0.0
    %871 = vmatprep.subr.mxu0 0.0
    %872 = vmatpush1.msra.mxu0 0.0
    %873 = vmatprep.subr.mxu0 0.0
    %874 = vmatpush1.msra.mxu0 0.0
    %875 = vmatprep.subr.mxu0 0.0
    %876 = vmatpush1.msra.mxu0 0.0
    %877 = vmatprep.subr.mxu0 0.0
    %878 = vmatpush1.msra.mxu0 0.0
    %879 = vmatprep.subr.mxu0 0.0
    %880 = vmatpush1.msra.mxu0 0.0
    %881 = vmatprep.subr.mxu0 0.0
    %882 = vmatpush1.msra.mxu0 0.0
    %883 = vmatprep.subr.mxu0 0.0
    %884 = vmatpush1.msra.mxu0 0.0
    %885 = vmatprep.subr.mxu0 0.0
    %886 = vmatpush1.msra.mxu0 0.0
    %887 = vmatprep.subr.mxu0 0.0
    %888 = vmatpush1.msra.mxu0 0.0
    %889 = vmatprep.subr.mxu0 0.0
    %890 = vmatpush1.msra.mxu0 0.0
    %891 = vmatprep.subr.mxu0 0.0
    %892 = vmatpush1.msra.mxu0 0.0
    %893 = vmatprep.subr.mxu0 0.0
    %894 = vmatpush1.msra.mxu0 0.0
    %895 = vmatprep.subr.mxu0 0.0
    %896 = vmatpush1.msra.mxu0 0.0
    %897 = vmatprep.subr.mxu0 0.0
    %898 = vmatpush1.msra.mxu0 0.0
    %899 = vmatprep.subr.mxu0 0.0
    %900 = vmatpush1.msra.mxu0 0.0
    %901 = vmatprep.subr.mxu0 0.0
    %902 = vmatpush1.msra.mxu0 0.0
    %903 = vmatprep.subr.mxu0 0.0
    %904 = vmatpush1.msra.mxu0 0.0
    %905 = vmatprep.subr.mxu0 0.0
    %906 = vmatpush1.msra.mxu0 0.0
    %907 = vmatprep.subr.mxu0 0.0
    %908 = vmatpush1.msra.mxu0 0.0
    %909 = vmatprep.subr.mxu0 0.0
    %910 = vmatpush1.msra.mxu0 0.0
    %911 = vmatprep.subr.mxu0 0.0
    %912 = vmatpush1.msra.mxu0 0.0
    %913 = vmatprep.subr.mxu0 0.0
    %914 = vmatpush1.msra.mxu0 0.0
    %915 = vmatprep.subr.mxu0 0.0
    %916 = vmatpush1.msra.mxu0 0.0
    %917 = vmatprep.mubr.f32.mxu0 0.0
    %918 = vmatmul.mubr.f32.gmra.mrb[0].mxu0 %v851
    %v919 = vpop.f32.mrb[0].mxu0
    %v920 = vadd.f32 0.0, %v919
    %v921 = vpop.f32.mrb[0].mxu0
    %922 = vdwg.mxu0
    %v923 = vadd.f32 %v680, %v920
    %924 = vrot.lane.b32.xlu0 %v190, 104
    %v925 = vpop.permute.xlu0 %924
    %926 = vrot.lane.b32.xlu0 %v190, 72
    %v927 = vpop.permute.xlu0 %926
    %v928 = vsel %vm206, %v925, 0
    %v930 = vsel %vm206, %v927, 0
    %932 = vmatprep.subr.mxu0 0.0
    %933 = vmatpush1.xpose.msra.mxu0 %v930
    %934 = vmatprep.subr.mxu0 0.0
    %935 = vmatpush1.xpose.msra.mxu0 0.0
    %936 = vmatprep.subr.mxu0 0.0
    %937 = vmatpush1.xpose.msra.mxu0 0.0
    %938 = vmatprep.subr.mxu0 0.0
    %939 = vmatpush1.xpose.msra.mxu0 0.0
    %940 = vmatprep.subr.mxu0 0.0
    %941 = vmatpush1.xpose.msra.mxu0 0.0
    %942 = vmatprep.subr.mxu0 0.0
    %943 = vmatpush1.xpose.msra.mxu0 0.0
    %944 = vmatprep.subr.mxu0 0.0
    %945 = vmatpush1.xpose.msra.mxu0 0.0
    %946 = vmatprep.subr.mxu0 0.0
    %947 = vmatpush1.xpose.msra.mxu0 0.0
    %948 = vmatprep.subr.mxu0 0.0
    %949 = vmatpush1.xpose.msra.mxu0 0.0
    %950 = vmatprep.subr.mxu0 0.0
    %951 = vmatpush1.xpose.msra.mxu0 0.0
    %952 = vmatprep.subr.mxu0 0.0
    %953 = vmatpush1.xpose.msra.mxu0 0.0
    %954 = vmatprep.subr.mxu0 0.0
    %955 = vmatpush1.xpose.msra.mxu0 0.0
    %956 = vmatprep.subr.mxu0 0.0
    %957 = vmatpush1.xpose.msra.mxu0 0.0
    %958 = vmatprep.subr.mxu0 0.0
    %959 = vmatpush1.xpose.msra.mxu0 0.0
    %960 = vmatprep.subr.mxu0 0.0
    %961 = vmatpush1.xpose.msra.mxu0 0.0
    %962 = vmatprep.subr.mxu0 0.0
    %963 = vmatpush1.xpose.msra.mxu0 0.0
    %964 = vmatprep.subr.mxu0 0.0
    %965 = vmatpush1.xpose.msra.mxu0 0.0
    %966 = vmatprep.subr.mxu0 0.0
    %967 = vmatpush1.xpose.msra.mxu0 0.0
    %968 = vmatprep.subr.mxu0 0.0
    %969 = vmatpush1.xpose.msra.mxu0 0.0
    %970 = vmatprep.subr.mxu0 0.0
    %971 = vmatpush1.xpose.msra.mxu0 0.0
    %972 = vmatprep.subr.mxu0 0.0
    %973 = vmatpush1.xpose.msra.mxu0 0.0
    %974 = vmatprep.subr.mxu0 0.0
    %975 = vmatpush1.xpose.msra.mxu0 0.0
    %976 = vmatprep.subr.mxu0 0.0
    %977 = vmatpush1.xpose.msra.mxu0 0.0
    %978 = vmatprep.subr.mxu0 0.0
    %979 = vmatpush1.xpose.msra.mxu0 0.0
    %980 = vmatprep.subr.mxu0 0.0
    %981 = vmatpush1.xpose.msra.mxu0 0.0
    %982 = vmatprep.subr.mxu0 0.0
    %983 = vmatpush1.xpose.msra.mxu0 0.0
    %984 = vmatprep.subr.mxu0 0.0
    %985 = vmatpush1.xpose.msra.mxu0 0.0
    %986 = vmatprep.subr.mxu0 0.0
    %987 = vmatpush1.xpose.msra.mxu0 0.0
    %988 = vmatprep.subr.mxu0 0.0
    %989 = vmatpush1.xpose.msra.mxu0 0.0
    %990 = vmatprep.subr.mxu0 0.0
    %991 = vmatpush1.xpose.msra.mxu0 0.0
    %992 = vmatprep.subr.mxu0 0.0
    %993 = vmatpush1.xpose.msra.mxu0 0.0
    %994 = vmatprep.subr.mxu0 0.0
    %995 = vmatpush1.xpose.msra.mxu0 0.0
    %996 = vmatprep.mubr.f32.mxu0 0.0
    %997 = vmatmul.mubr.f32.gmra.mrb[0].mxu0 %v928
    %v998 = vpop.f32.mrb[0].mxu0
    %v999 = vadd.f32 0.0, %v998
    %v1000 = vpop.f32.mrb[0].mxu0
    %1001 = vdwg.mxu0
    %v1002 = vmul.f32 %v999, 0.35355338
    %v1003 = vadd.f32 %v1002, %v104
    %v1004 = vsel %vm206, %v1003, -inf
    %1005 = vmax.xlane.f32.xlu0 %v1004
    %v1006 = vpop.xlane.xlu0 %1005
    %v1007 = vsub.f32 %v1003, %v1006
    %v1008 = vmul.f32 %v1007, 1.442695
    %v1009 = vpow.pop %v1008
    %v1010 = vsel %vm206, %v1009, 0.0
    %1011 = vadd.xlane.f32.xlu0 %v1010
    %v1012 = vpop.xlane.xlu0 %1011
    %v1013 = vrcp.pop %v1012
    %v1014 = vmul.f32 %v1009, %v1013
    %1015 = vrot.lane.b32.xlu0 %v190, 40
    %v1016 = vpop.permute.xlu0 %1015
    %v1019 = vsel %vm206, %v1014, 0
    %1021 = vmatprep.subr.mxu0 0.0
    %1022 = vmatpush1.msra.mxu0 %v1016
    %1023 = vmatprep.subr.mxu0 0.0
    %1024 = vmatpush1.msra.mxu0 0.0
    %1025 = vmatprep.subr.mxu0 0.0
    %1026 = vmatpush1.msra.mxu0 0.0
    %1027 = vmatprep.subr.mxu0 0.0
    %1028 = vmatpush1.msra.mxu0 0.0
    %1029 = vmatprep.subr.mxu0 0.0
    %1030 = vmatpush1.msra.mxu0 0.0
    %1031 = vmatprep.subr.mxu0 0.0
    %1032 = vmatpush1.msra.mxu0 0.0
    %1033 = vmatprep.subr.mxu0 0.0
    %1034 = vmatpush1.msra.mxu0 0.0
    %1035 = vmatprep.subr.mxu0 0.0
    %1036 = vmatpush1.msra.mxu0 0.0
    %1037 = vmatprep.subr.mxu0 0.0
    %1038 = vmatpush1.msra.mxu0 0.0
    %1039 = vmatprep.subr.mxu0 0.0
    %1040 = vmatpush1.msra.mxu0 0.0
    %1041 = vmatprep.subr.mxu0 0.0
    %1042 = vmatpush1.msra.mxu0 0.0
    %1043 = vmatprep.subr.mxu0 0.0
    %1044 = vmatpush1.msra.mxu0 0.0
    %1045 = vmatprep.subr.mxu0 0.0
    %1046 = vmatpush1.msra.mxu0 0.0
    %1047 = vmatprep.subr.mxu0 0.0
    %1048 = vmatpush1.msra.mxu0 0.0
    %1049 = vmatprep.subr.mxu0 0.0
    %1050 = vmatpush1.msra.mxu0 0.0
    %1051 = vmatprep.subr.mxu0 0.0
    %1052 = vmatpush1.msra.mxu0 0.0
    %1053 = vmatprep.subr.mxu0 0.0
    %1054 = vmatpush1.msra.mxu0 0.0
    %1055 = vmatprep.subr.mxu0 0.0
    %1056 = vmatpush1.msra.mxu0 0.0
    %1057 = vmatprep.subr.mxu0 0.0
    %1058 = vmatpush1.msra.mxu0 0.0
    %1059 = vmatprep.subr.mxu0 0.0
    %1060 = vmatpush1.msra.mxu0 0.0
    %1061 = vmatprep.subr.mxu0 0.0
    %1062 = vmatpush1.msra.mxu0 0.0
    %1063 = vmatprep.subr.mxu0 0.0
    %1064 = vmatpush1.msra.mxu0 0.0
    %1065 = vmatprep.subr.mxu0 0.0
    %1066 = vmatpush1.msra.mxu0 0.0
    %1067 = vmatprep.subr.mxu0 0.0
    %1068 = vmatpush1.msra.mxu0 0.0
    %1069 = vmatprep.subr.mxu0 0.0
    %1070 = vmatpush1.msra.mxu0 0.0
    %1071 = vmatprep.subr.mxu0 0.0
    %1072 = vmatpush1.msra.mxu0 0.0
    %1073 = vmatprep.subr.mxu0 0.0
    %1074 = vmatpush1.msra.mxu0 0.0
    %1075 = vmatprep.subr.mxu0 0.0
    %1076 = vmatpush1.msra.mxu0 0.0
    %1077 = vmatprep.subr.mxu0 0.0
    %1078 = vmatpush1.msra.mxu0 0.0
    %1079 = vmatprep.subr.mxu0 0.0
    %1080 = vmatpush1.msra.mxu0 0.0
    %1081 = vmatprep.subr.mxu0 0.0
    %1082 = vmatpush1.msra.mxu0 0.0
    %1083 = vmatprep.subr.mxu0 0.0
    %1084 = vmatpush1.msra.mxu0 0.0
    %1085 = vmatprep.mubr.f32.mxu0 0.0
    %1086 = vmatmul.mubr.f32.gmra.mrb[0].mxu0 %v1019
    %v1087 = vpop.f32.mrb[0].mxu0
    %v1088 = vadd.f32 0.0, %v1087
    %v1089 = vpop.f32.mrb[0].mxu0
    %1090 = vdwg.mxu0
    %v1092 = vsel %vm206, %v1088, 0
    %1094 = vmatprep.subr.mxu0 0.0
    %1095 = vmatpush1.msra.mxu0 %v201
    %1096 = vmatprep.subr.mxu0 0.0
    %1097 = vmatpush1.msra.mxu0 0.0
    %1098 = vmatprep.subr.mxu0 0.0
    %1099 = vmatpush1.msra.mxu0 0.0
    %1100 = vmatprep.subr.mxu0 0.0
    %1101 = vmatpush1.msra.mxu0 0.0
    %1102 = vmatprep.subr.mxu0 0.0
    %1103 = vmatpush1.msra.mxu0 0.0
    %1104 = vmatprep.subr.mxu0 0.0
    %1105 = vmatpush1.msra.mxu0 0.0
    %1106 = vmatprep.subr.mxu0 0.0
    %1107 = vmatpush1.msra.mxu0 0.0
    %1108 = vmatprep.subr.mxu0 0.0
    %1109 = vmatpush1.msra.mxu0 0.0
    %1110 = vmatprep.subr.mxu0 0.0
    %1111 = vmatpush1.msra.mxu0 0.0
    %1112 = vmatprep.subr.mxu0 0.0
    %1113 = vmatpush1.msra.mxu0 0.0
    %1114 = vmatprep.subr.mxu0 0.0
    %1115 = vmatpush1.msra.mxu0 0.0
    %1116 = vmatprep.subr.mxu0 0.0
    %1117 = vmatpush1.msra.mxu0 0.0
    %1118 = vmatprep.subr.mxu0 0.0
    %1119 = vmatpush1.msra.mxu0 0.0
    %1120 = vmatprep.subr.mxu0 0.0
    %1121 = vmatpush1.msra.mxu0 0.0
    %1122 = vmatprep.subr.mxu0 0.0
    %1123 = vmatpush1.msra.mxu0 0.0
    %1124 = vmatprep.subr.mxu0 0.0
    %1125 = vmatpush1.msra.mxu0 0.0
    %1126 = vmatprep.subr.mxu0 0.0
    %1127 = vmatpush1.msra.mxu0 0.0
    %1128 = vmatprep.subr.mxu0 0.0
    %1129 = vmatpush1.msra.mxu0 0.0
    %1130 = vmatprep.subr.mxu0 0.0
    %1131 = vmatpush1.msra.mxu0 0.0
    %1132 = vmatprep.subr.mxu0 0.0
    %1133 = vmatpush1.msra.mxu0 0.0
    %1134 = vmatprep.subr.mxu0 0.0
    %1135 = vmatpush1.msra.mxu0 0.0
    %1136 = vmatprep.subr.mxu0 0.0
    %1137 = vmatpush1.msra.mxu0 0.0
    %1138 = vmatprep.subr.mxu0 0.0
    %1139 = vmatpush1.msra.mxu0 0.0
    %1140 = vmatprep.subr.mxu0 0.0
    %1141 = vmatpush1.msra.mxu0 0.0
    %1142 = vmatprep.subr.mxu0 0.0
    %1143 = vmatpush1.msra.mxu0 0.0
    %1144 = vmatprep.subr.mxu0 0.0
    %1145 = vmatpush1.msra.mxu0 0.0
    %1146 = vmatprep.subr.mxu0 0.0
    %1147 = vmatpush1.msra.mxu0 0.0
    %1148 = vmatprep.subr.mxu0 0.0
    %1149 = vmatpush1.msra.mxu0 0.0
    %1150 = vmatprep.subr.mxu0 0.0
    %1151 = vmatpush1.msra.mxu0 0.0
    %1152 = vmatprep.subr.mxu0 0.0
    %1153 = vmatpush1.msra.mxu0 0.0
    %1154 = vmatprep.subr.mxu0 0.0
    %1155 = vmatpush1.msra.mxu0 0.0
    %1156 = vmatprep.subr.mxu0 0.0
    %1157 = vmatpush1.msra.mxu0 0.0
    %1158 = vmatprep.mubr.f32.mxu0 0.0
    %1159 = vmatmul.mubr.f32.gmra.mrb[0].mxu0 %v1092
    %v1160 = vpop.f32.mrb[0].mxu0
    %v1161 = vadd.f32 0.0, %v1160
    %v1162 = vpop.f32.mrb[0].mxu0
    %1163 = vdwg.mxu0
    %v1164 = vadd.f32 %v923, %v1161
    %1166 = vrot.lane.b32.xlu0 %v195, 96
    %v1167 = vpop.permute.xlu0 %1166
    %v1168 = vsel %vm206, %v195, 0
    %v1170 = vsel %vm206, %v1167, 0
    %1172 = vmatprep.subr.mxu0 0.0
    %1173 = vmatpush1.xpose.msra.mxu0 %v1170
    %1174 = vmatprep.subr.mxu0 0.0
    %1175 = vmatpush1.xpose.msra.mxu0 0.0
    %1176 = vmatprep.subr.mxu0 0.0
    %1177 = vmatpush1.xpose.msra.mxu0 0.0
    %1178 = vmatprep.subr.mxu0 0.0
    %1179 = vmatpush1.xpose.msra.mxu0 0.0
    %1180 = vmatprep.subr.mxu0 0.0
    %1181 = vmatpush1.xpose.msra.mxu0 0.0
    %1182 = vmatprep.subr.mxu0 0.0
    %1183 = vmatpush1.xpose.msra.mxu0 0.0
    %1184 = vmatprep.subr.mxu0 0.0
    %1185 = vmatpush1.xpose.msra.mxu0 0.0
    %1186 = vmatprep.subr.mxu0 0.0
    %1187 = vmatpush1.xpose.msra.mxu0 0.0
    %1188 = vmatprep.subr.mxu0 0.0
    %1189 = vmatpush1.xpose.msra.mxu0 0.0
    %1190 = vmatprep.subr.mxu0 0.0
    %1191 = vmatpush1.xpose.msra.mxu0 0.0
    %1192 = vmatprep.subr.mxu0 0.0
    %1193 = vmatpush1.xpose.msra.mxu0 0.0
    %1194 = vmatprep.subr.mxu0 0.0
    %1195 = vmatpush1.xpose.msra.mxu0 0.0
    %1196 = vmatprep.subr.mxu0 0.0
    %1197 = vmatpush1.xpose.msra.mxu0 0.0
    %1198 = vmatprep.subr.mxu0 0.0
    %1199 = vmatpush1.xpose.msra.mxu0 0.0
    %1200 = vmatprep.subr.mxu0 0.0
    %1201 = vmatpush1.xpose.msra.mxu0 0.0
    %1202 = vmatprep.subr.mxu0 0.0
    %1203 = vmatpush1.xpose.msra.mxu0 0.0
    %1204 = vmatprep.subr.mxu0 0.0
    %1205 = vmatpush1.xpose.msra.mxu0 0.0
    %1206 = vmatprep.subr.mxu0 0.0
    %1207 = vmatpush1.xpose.msra.mxu0 0.0
    %1208 = vmatprep.subr.mxu0 0.0
    %1209 = vmatpush1.xpose.msra.mxu0 0.0
    %1210 = vmatprep.subr.mxu0 0.0
    %1211 = vmatpush1.xpose.msra.mxu0 0.0
    %1212 = vmatprep.subr.mxu0 0.0
    %1213 = vmatpush1.xpose.msra.mxu0 0.0
    %1214 = vmatprep.subr.mxu0 0.0
    %1215 = vmatpush1.xpose.msra.mxu0 0.0
    %1216 = vmatprep.subr.mxu0 0.0
    %1217 = vmatpush1.xpose.msra.mxu0 0.0
    %1218 = vmatprep.subr.mxu0 0.0
    %1219 = vmatpush1.xpose.msra.mxu0 0.0
    %1220 = vmatprep.subr.mxu0 0.0
    %1221 = vmatpush1.xpose.msra.mxu0 0.0
    %1222 = vmatprep.subr.mxu0 0.0
    %1223 = vmatpush1.xpose.msra.mxu0 0.0
    %1224 = vmatprep.subr.mxu0 0.0
    %1225 = vmatpush1.xpose.msra.mxu0 0.0
    %1226 = vmatprep.subr.mxu0 0.0
    %1227 = vmatpush1.xpose.msra.mxu0 0.0
    %1228 = vmatprep.subr.mxu0 0.0
    %1229 = vmatpush1.xpose.msra.mxu0 0.0
    %1230 = vmatprep.subr.mxu0 0.0
    %1231 = vmatpush1.xpose.msra.mxu0 0.0
    %1232 = vmatprep.subr.mxu0 0.0
    %1233 = vmatpush1.xpose.msra.mxu0 0.0
    %1234 = vmatprep.subr.mxu0 0.0
    %1235 = vmatpush1.xpose.msra.mxu0 0.0
    %1236 = vmatprep.mubr.f32.mxu0 0.0
    %1237 = vmatmul.mubr.f32.gmra.mrb[0].mxu0 %v1168
    %v1238 = vpop.f32.mrb[0].mxu0
    %v1239 = vadd.f32 0.0, %v1238
    %v1240 = vpop.f32.mrb[0].mxu0
    %1241 = vdwg.mxu0
    %v1242 = vmul.f32 %v1239, 0.35355338
    %v1243 = vadd.f32 %v1242, %v104
    %v1244 = vsel %vm206, %v1243, -inf
    %1245 = vmax.xlane.f32.xlu0 %v1244
    %v1246 = vpop.xlane.xlu0 %1245
    %v1247 = vsub.f32 %v1243, %v1246
    %v1248 = vmul.f32 %v1247, 1.442695
    %v1249 = vpow.pop %v1248
    %v1250 = vsel %vm206, %v1249, 0.0
    %1251 = vadd.xlane.f32.xlu0 %v1250
    %v1252 = vpop.xlane.xlu0 %1251
    %v1253 = vrcp.pop %v1252
    %v1254 = vmul.f32 %v1249, %v1253
    %1255 = vrot.lane.b32.xlu0 %v195, 64
    %v1256 = vpop.permute.xlu0 %1255
    %v1259 = vsel %vm206, %v1254, 0
    %1261 = vmatprep.subr.mxu0 0.0
    %1262 = vmatpush1.msra.mxu0 %v1256
    %1263 = vmatprep.subr.mxu0 0.0
    %1264 = vmatpush1.msra.mxu0 0.0
    %1265 = vmatprep.subr.mxu0 0.0
    %1266 = vmatpush1.msra.mxu0 0.0
    %1267 = vmatprep.subr.mxu0 0.0
    %1268 = vmatpush1.msra.mxu0 0.0
    %1269 = vmatprep.subr.mxu0 0.0
    %1270 = vmatpush1.msra.mxu0 0.0
    %1271 = vmatprep.subr.mxu0 0.0
    %1272 = vmatpush1.msra.mxu0 0.0
    %1273 = vmatprep.subr.mxu0 0.0
    %1274 = vmatpush1.msra.mxu0 0.0
    %1275 = vmatprep.subr.mxu0 0.0
    %1276 = vmatpush1.msra.mxu0 0.0
    %1277 = vmatprep.subr.mxu0 0.0
    %1278 = vmatpush1.msra.mxu0 0.0
    %1279 = vmatprep.subr.mxu0 0.0
    %1280 = vmatpush1.msra.mxu0 0.0
    %1281 = vmatprep.subr.mxu0 0.0
    %1282 = vmatpush1.msra.mxu0 0.0
    %1283 = vmatprep.subr.mxu0 0.0
    %1284 = vmatpush1.msra.mxu0 0.0
    %1285 = vmatprep.subr.mxu0 0.0
    %1286 = vmatpush1.msra.mxu0 0.0
    %1287 = vmatprep.subr.mxu0 0.0
    %1288 = vmatpush1.msra.mxu0 0.0
    %1289 = vmatprep.subr.mxu0 0.0
    %1290 = vmatpush1.msra.mxu0 0.0
    %1291 = vmatprep.subr.mxu0 0.0
    %1292 = vmatpush1.msra.mxu0 0.0
    %1293 = vmatprep.subr.mxu0 0.0
    %1294 = vmatpush1.msra.mxu0 0.0
    %1295 = vmatprep.subr.mxu0 0.0
    %1296 = vmatpush1.msra.mxu0 0.0
    %1297 = vmatprep.subr.mxu0 0.0
    %1298 = vmatpush1.msra.mxu0 0.0
    %1299 = vmatprep.subr.mxu0 0.0
    %1300 = vmatpush1.msra.mxu0 0.0
    %1301 = vmatprep.subr.mxu0 0.0
    %1302 = vmatpush1.msra.mxu0 0.0
    %1303 = vmatprep.subr.mxu0 0.0
    %1304 = vmatpush1.msra.mxu0 0.0
    %1305 = vmatprep.subr.mxu0 0.0
    %1306 = vmatpush1.msra.mxu0 0.0
    %1307 = vmatprep.subr.mxu0 0.0
    %1308 = vmatpush1.msra.mxu0 0.0
    %1309 = vmatprep.subr.mxu0 0.0
    %1310 = vmatpush1.msra.mxu0 0.0
    %1311 = vmatprep.subr.mxu0 0.0
    %1312 = vmatpush1.msra.mxu0 0.0
    %1313 = vmatprep.subr.mxu0 0.0
    %1314 = vmatpush1.msra.mxu0 0.0
    %1315 = vmatprep.subr.mxu0 0.0
    %1316 = vmatpush1.msra.mxu0 0.0
    %1317 = vmatprep.subr.mxu0 0.0
    %1318 = vmatpush1.msra.mxu0 0.0
    %1319 = vmatprep.subr.mxu0 0.0
    %1320 = vmatpush1.msra.mxu0 0.0
    %1321 = vmatprep.subr.mxu0 0.0
    %1322 = vmatpush1.msra.mxu0 0.0
    %1323 = vmatprep.subr.mxu0 0.0
    %1324 = vmatpush1.msra.mxu0 0.0
    %1325 = vmatprep.mubr.f32.mxu0 0.0
    %1326 = vmatmul.mubr.f32.gmra.mrb[0].mxu0 %v1259
    %v1327 = vpop.f32.mrb[0].mxu0
    %v1328 = vadd.f32 0.0, %v1327
    %v1329 = vpop.f32.mrb[0].mxu0
    %1330 = vdwg.mxu0
    %1331 = vrot.lane.b32.xlu0 %v195, 120
    %v1332 = vpop.permute.xlu0 %1331
    %1333 = vrot.lane.b32.xlu0 %v195, 88
    %v1334 = vpop.permute.xlu0 %1333
    %v1335 = vsel %vm206, %v1332, 0
    %v1337 = vsel %vm206, %v1334, 0
    %1339 = vmatprep.subr.mxu0 0.0
    %1340 = vmatpush1.xpose.msra.mxu0 %v1337
    %1341 = vmatprep.subr.mxu0 0.0
    %1342 = vmatpush1.xpose.msra.mxu0 0.0
    %1343 = vmatprep.subr.mxu0 0.0
    %1344 = vmatpush1.xpose.msra.mxu0 0.0
    %1345 = vmatprep.subr.mxu0 0.0
    %1346 = vmatpush1.xpose.msra.mxu0 0.0
    %1347 = vmatprep.subr.mxu0 0.0
    %1348 = vmatpush1.xpose.msra.mxu0 0.0
    %1349 = vmatprep.subr.mxu0 0.0
    %1350 = vmatpush1.xpose.msra.mxu0 0.0
    %1351 = vmatprep.subr.mxu0 0.0
    %1352 = vmatpush1.xpose.msra.mxu0 0.0
    %1353 = vmatprep.subr.mxu0 0.0
    %1354 = vmatpush1.xpose.msra.mxu0 0.0
    %1355 = vmatprep.subr.mxu0 0.0
    %1356 = vmatpush1.xpose.msra.mxu0 0.0
    %1357 = vmatprep.subr.mxu0 0.0
    %1358 = vmatpush1.xpose.msra.mxu0 0.0
    %1359 = vmatprep.subr.mxu0 0.0
    %1360 = vmatpush1.xpose.msra.mxu0 0.0
    %1361 = vmatprep.subr.mxu0 0.0
    %1362 = vmatpush1.xpose.msra.mxu0 0.0
    %1363 = vmatprep.subr.mxu0 0.0
    %1364 = vmatpush1.xpose.msra.mxu0 0.0
    %1365 = vmatprep.subr.mxu0 0.0
    %1366 = vmatpush1.xpose.msra.mxu0 0.0
    %1367 = vmatprep.subr.mxu0 0.0
    %1368 = vmatpush1.xpose.msra.mxu0 0.0
    %1369 = vmatprep.subr.mxu0 0.0
    %1370 = vmatpush1.xpose.msra.mxu0 0.0
    %1371 = vmatprep.subr.mxu0 0.0
    %1372 = vmatpush1.xpose.msra.mxu0 0.0
    %1373 = vmatprep.subr.mxu0 0.0
    %1374 = vmatpush1.xpose.msra.mxu0 0.0
    %1375 = vmatprep.subr.mxu0 0.0
    %1376 = vmatpush1.xpose.msra.mxu0 0.0
    %1377 = vmatprep.subr.mxu0 0.0
    %1378 = vmatpush1.xpose.msra.mxu0 0.0
    %1379 = vmatprep.subr.mxu0 0.0
    %1380 = vmatpush1.xpose.msra.mxu0 0.0
    %1381 = vmatprep.subr.mxu0 0.0
    %1382 = vmatpush1.xpose.msra.mxu0 0.0
    %1383 = vmatprep.subr.mxu0 0.0
    %1384 = vmatpush1.xpose.msra.mxu0 0.0
    %1385 = vmatprep.subr.mxu0 0.0
    %1386 = vmatpush1.xpose.msra.mxu0 0.0
    %1387 = vmatprep.subr.mxu0 0.0
    %1388 = vmatpush1.xpose.msra.mxu0 0.0
    %1389 = vmatprep.subr.mxu0 0.0
    %1390 = vmatpush1.xpose.msra.mxu0 0.0
    %1391 = vmatprep.subr.mxu0 0.0
    %1392 = vmatpush1.xpose.msra.mxu0 0.0
    %1393 = vmatprep.subr.mxu0 0.0
    %1394 = vmatpush1.xpose.msra.mxu0 0.0
    %1395 = vmatprep.subr.mxu0 0.0
    %1396 = vmatpush1.xpose.msra.mxu0 0.0
    %1397 = vmatprep.subr.mxu0 0.0
    %1398 = vmatpush1.xpose.msra.mxu0 0.0
    %1399 = vmatprep.subr.mxu0 0.0
    %1400 = vmatpush1.xpose.msra.mxu0 0.0
    %1401 = vmatprep.subr.mxu0 0.0
    %1402 = vmatpush1.xpose.msra.mxu0 0.0
    %1403 = vmatprep.mubr.f32.mxu0 0.0
    %1404 = vmatmul.mubr.f32.gmra.mrb[0].mxu0 %v1335
    %v1405 = vpop.f32.mrb[0].mxu0
    %v1406 = vadd.f32 0.0, %v1405
    %v1407 = vpop.f32.mrb[0].mxu0
    %1408 = vdwg.mxu0
    %v1409 = vmul.f32 %v1406, 0.35355338
    %v1410 = vadd.f32 %v1409, %v104
    %v1411 = vsel %vm206, %v1410, -inf
    %1412 = vmax.xlane.f32.xlu0 %v1411
    %v1413 = vpop.xlane.xlu0 %1412
    %v1414 = vsub.f32 %v1410, %v1413
    %v1415 = vmul.f32 %v1414, 1.442695
    %v1416 = vpow.pop %v1415
    %v1417 = vsel %vm206, %v1416, 0.0
    %1418 = vadd.xlane.f32.xlu0 %v1417
    %v1419 = vpop.xlane.xlu0 %1418
    %v1420 = vrcp.pop %v1419
    %v1421 = vmul.f32 %v1416, %v1420
    %1422 = vrot.lane.b32.xlu0 %v195, 56
    %v1423 = vpop.permute.xlu0 %1422
    %v1426 = vsel %vm206, %v1421, 0
    %1428 = vmatprep.subr.mxu0 0.0
    %1429 = vmatpush1.msra.mxu0 %v1423
    %1430 = vmatprep.subr.mxu0 0.0
    %1431 = vmatpush1.msra.mxu0 0.0
    %1432 = vmatprep.subr.mxu0 0.0
    %1433 = vmatpush1.msra.mxu0 0.0
    %1434 = vmatprep.subr.mxu0 0.0
    %1435 = vmatpush1.msra.mxu0 0.0
    %1436 = vmatprep.subr.mxu0 0.0
    %1437 = vmatpush1.msra.mxu0 0.0
    %1438 = vmatprep.subr.mxu0 0.0
    %1439 = vmatpush1.msra.mxu0 0.0
    %1440 = vmatprep.subr.mxu0 0.0
    %1441 = vmatpush1.msra.mxu0 0.0
    %1442 = vmatprep.subr.mxu0 0.0
    %1443 = vmatpush1.msra.mxu0 0.0
    %1444 = vmatprep.subr.mxu0 0.0
    %1445 = vmatpush1.msra.mxu0 0.0
    %1446 = vmatprep.subr.mxu0 0.0
    %1447 = vmatpush1.msra.mxu0 0.0
    %1448 = vmatprep.subr.mxu0 0.0
    %1449 = vmatpush1.msra.mxu0 0.0
    %1450 = vmatprep.subr.mxu0 0.0
    %1451 = vmatpush1.msra.mxu0 0.0
    %1452 = vmatprep.subr.mxu0 0.0
    %1453 = vmatpush1.msra.mxu0 0.0
    %1454 = vmatprep.subr.mxu0 0.0
    %1455 = vmatpush1.msra.mxu0 0.0
    %1456 = vmatprep.subr.mxu0 0.0
    %1457 = vmatpush1.msra.mxu0 0.0
    %1458 = vmatprep.subr.mxu0 0.0
    %1459 = vmatpush1.msra.mxu0 0.0
    %1460 = vmatprep.subr.mxu0 0.0
    %1461 = vmatpush1.msra.mxu0 0.0
    %1462 = vmatprep.subr.mxu0 0.0
    %1463 = vmatpush1.msra.mxu0 0.0
    %1464 = vmatprep.subr.mxu0 0.0
    %1465 = vmatpush1.msra.mxu0 0.0
    %1466 = vmatprep.subr.mxu0 0.0
    %1467 = vmatpush1.msra.mxu0 0.0
    %1468 = vmatprep.subr.mxu0 0.0
    %1469 = vmatpush1.msra.mxu0 0.0
    %1470 = vmatprep.subr.mxu0 0.0
    %1471 = vmatpush1.msra.mxu0 0.0
    %1472 = vmatprep.subr.mxu0 0.0
    %1473 = vmatpush1.msra.mxu0 0.0
    %1474 = vmatprep.subr.mxu0 0.0
    %1475 = vmatpush1.msra.mxu0 0.0
    %1476 = vmatprep.subr.mxu0 0.0
    %1477 = vmatpush1.msra.mxu0 0.0
    %1478 = vmatprep.subr.mxu0 0.0
    %1479 = vmatpush1.msra.mxu0 0.0
    %1480 = vmatprep.subr.mxu0 0.0
    %1481 = vmatpush1.msra.mxu0 0.0
    %1482 = vmatprep.subr.mxu0 0.0
    %1483 = vmatpush1.msra.mxu0 0.0
    %1484 = vmatprep.subr.mxu0 0.0
    %1485 = vmatpush1.msra.mxu0 0.0
    %1486 = vmatprep.subr.mxu0 0.0
    %1487 = vmatpush1.msra.mxu0 0.0
    %1488 = vmatprep.subr.mxu0 0.0
    %1489 = vmatpush1.msra.mxu0 0.0
    %1490 = vmatprep.subr.mxu0 0.0
    %1491 = vmatpush1.msra.mxu0 0.0
    %1492 = vmatprep.mubr.f32.mxu0 0.0
    %1493 = vmatmul.mubr.f32.gmra.mrb[0].mxu0 %v1426
    %v1494 = vpop.f32.mrb[0].mxu0
    %v1495 = vadd.f32 0.0, %v1494
    %v1496 = vpop.f32.mrb[0].mxu0
    %1497 = vdwg.mxu0
    %v1499 = vsel %vm206, %v1495, 0
    %1501 = vmatprep.subr.mxu0 0.0
    %1502 = vmatpush1.msra.mxu0 %v199
    %1503 = vmatprep.subr.mxu0 0.0
    %1504 = vmatpush1.msra.mxu0 0.0
    %1505 = vmatprep.subr.mxu0 0.0
    %1506 = vmatpush1.msra.mxu0 0.0
    %1507 = vmatprep.subr.mxu0 0.0
    %1508 = vmatpush1.msra.mxu0 0.0
    %1509 = vmatprep.subr.mxu0 0.0
    %1510 = vmatpush1.msra.mxu0 0.0
    %1511 = vmatprep.subr.mxu0 0.0
    %1512 = vmatpush1.msra.mxu0 0.0
    %1513 = vmatprep.subr.mxu0 0.0
    %1514 = vmatpush1.msra.mxu0 0.0
    %1515 = vmatprep.subr.mxu0 0.0
    %1516 = vmatpush1.msra.mxu0 0.0
    %1517 = vmatprep.subr.mxu0 0.0
    %1518 = vmatpush1.msra.mxu0 0.0
    %1519 = vmatprep.subr.mxu0 0.0
    %1520 = vmatpush1.msra.mxu0 0.0
    %1521 = vmatprep.subr.mxu0 0.0
    %1522 = vmatpush1.msra.mxu0 0.0
    %1523 = vmatprep.subr.mxu0 0.0
    %1524 = vmatpush1.msra.mxu0 0.0
    %1525 = vmatprep.subr.mxu0 0.0
    %1526 = vmatpush1.msra.mxu0 0.0
    %1527 = vmatprep.subr.mxu0 0.0
    %1528 = vmatpush1.msra.mxu0 0.0
    %1529 = vmatprep.subr.mxu0 0.0
    %1530 = vmatpush1.msra.mxu0 0.0
    %1531 = vmatprep.subr.mxu0 0.0
    %1532 = vmatpush1.msra.mxu0 0.0
    %1533 = vmatprep.subr.mxu0 0.0
    %1534 = vmatpush1.msra.mxu0 0.0
    %1535 = vmatprep.subr.mxu0 0.0
    %1536 = vmatpush1.msra.mxu0 0.0
    %1537 = vmatprep.subr.mxu0 0.0
    %1538 = vmatpush1.msra.mxu0 0.0
    %1539 = vmatprep.subr.mxu0 0.0
    %1540 = vmatpush1.msra.mxu0 0.0
    %1541 = vmatprep.subr.mxu0 0.0
    %1542 = vmatpush1.msra.mxu0 0.0
    %1543 = vmatprep.subr.mxu0 0.0
    %1544 = vmatpush1.msra.mxu0 0.0
    %1545 = vmatprep.subr.mxu0 0.0
    %1546 = vmatpush1.msra.mxu0 0.0
    %1547 = vmatprep.subr.mxu0 0.0
    %1548 = vmatpush1.msra.mxu0 0.0
    %1549 = vmatprep.subr.mxu0 0.0
    %1550 = vmatpush1.msra.mxu0 0.0
    %1551 = vmatprep.subr.mxu0 0.0
    %1552 = vmatpush1.msra.mxu0 0.0
    %1553 = vmatprep.subr.mxu0 0.0
    %1554 = vmatpush1.msra.mxu0 0.0
    %1555 = vmatprep.subr.mxu0 0.0
    %1556 = vmatpush1.msra.mxu0 0.0
    %1557 = vmatprep.subr.mxu0 0.0
    %1558 = vmatpush1.msra.mxu0 0.0
    %1559 = vmatprep.subr.mxu0 0.0
    %1560 = vmatpush1.msra.mxu0 0.0
    %1561 = vmatprep.subr.mxu0 0.0
    %1562 = vmatpush1.msra.mxu0 0.0
    %1563 = vmatprep.subr.mxu0 0.0
    %1564 = vmatpush1.msra.mxu0 0.0
    %1565 = vmatprep.mubr.f32.mxu0 0.0
    %1566 = vmatmul.mubr.f32.gmra.mrb[0].mxu0 %v1499
    %v1567 = vpop.f32.mrb[0].mxu0
    %v1568 = vadd.f32 0.0, %v1567
    %v1569 = vpop.f32.mrb[0].mxu0
    %1570 = vdwg.mxu0
    %v1572 = vsel %vm206, %v1328, 0
    %1574 = vmatprep.subr.mxu0 0.0
    %1575 = vmatpush1.msra.mxu0 %v198
    %1576 = vmatprep.subr.mxu0 0.0
    %1577 = vmatpush1.msra.mxu0 0.0
    %1578 = vmatprep.subr.mxu0 0.0
    %1579 = vmatpush1.msra.mxu0 0.0
    %1580 = vmatprep.subr.mxu0 0.0
    %1581 = vmatpush1.msra.mxu0 0.0
    %1582 = vmatprep.subr.mxu0 0.0
    %1583 = vmatpush1.msra.mxu0 0.0
    %1584 = vmatprep.subr.mxu0 0.0
    %1585 = vmatpush1.msra.mxu0 0.0
    %1586 = vmatprep.subr.mxu0 0.0
    %1587 = vmatpush1.msra.mxu0 0.0
    %1588 = vmatprep.subr.mxu0 0.0
    %1589 = vmatpush1.msra.mxu0 0.0
    %1590 = vmatprep.subr.mxu0 0.0
    %1591 = vmatpush1.msra.mxu0 0.0
    %1592 = vmatprep.subr.mxu0 0.0
    %1593 = vmatpush1.msra.mxu0 0.0
    %1594 = vmatprep.subr.mxu0 0.0
    %1595 = vmatpush1.msra.mxu0 0.0
    %1596 = vmatprep.subr.mxu0 0.0
    %1597 = vmatpush1.msra.mxu0 0.0
    %1598 = vmatprep.subr.mxu0 0.0
    %1599 = vmatpush1.msra.mxu0 0.0
    %1600 = vmatprep.subr.mxu0 0.0
    %1601 = vmatpush1.msra.mxu0 0.0
    %1602 = vmatprep.subr.mxu0 0.0
    %1603 = vmatpush1.msra.mxu0 0.0
    %1604 = vmatprep.subr.mxu0 0.0
    %1605 = vmatpush1.msra.mxu0 0.0
    %1606 = vmatprep.subr.mxu0 0.0
    %1607 = vmatpush1.msra.mxu0 0.0
    %1608 = vmatprep.subr.mxu0 0.0
    %1609 = vmatpush1.msra.mxu0 0.0
    %1610 = vmatprep.subr.mxu0 0.0
    %1611 = vmatpush1.msra.mxu0 0.0
    %1612 = vmatprep.subr.mxu0 0.0
    %1613 = vmatpush1.msra.mxu0 0.0
    %1614 = vmatprep.subr.mxu0 0.0
    %1615 = vmatpush1.msra.mxu0 0.0
    %1616 = vmatprep.subr.mxu0 0.0
    %1617 = vmatpush1.msra.mxu0 0.0
    %1618 = vmatprep.subr.mxu0 0.0
    %1619 = vmatpush1.msra.mxu0 0.0
    %1620 = vmatprep.subr.mxu0 0.0
    %1621 = vmatpush1.msra.mxu0 0.0
    %1622 = vmatprep.subr.mxu0 0.0
    %1623 = vmatpush1.msra.mxu0 0.0
    %1624 = vmatprep.subr.mxu0 0.0
    %1625 = vmatpush1.msra.mxu0 0.0
    %1626 = vmatprep.subr.mxu0 0.0
    %1627 = vmatpush1.msra.mxu0 0.0
    %1628 = vmatprep.subr.mxu0 0.0
    %1629 = vmatpush1.msra.mxu0 0.0
    %1630 = vmatprep.subr.mxu0 0.0
    %1631 = vmatpush1.msra.mxu0 0.0
    %1632 = vmatprep.subr.mxu0 0.0
    %1633 = vmatpush1.msra.mxu0 0.0
    %1634 = vmatprep.subr.mxu0 0.0
    %1635 = vmatpush1.msra.mxu0 0.0
    %1636 = vmatprep.subr.mxu0 0.0
    %1637 = vmatpush1.msra.mxu0 0.0
    %1638 = vmatprep.mubr.f32.mxu0 0.0
    %1639 = vmatmul.mubr.f32.gmra.mrb[0].mxu0 %v1572
    %v1640 = vpop.f32.mrb[0].mxu0
    %v1641 = vadd.f32 %v1568, %v1640
    %v1642 = vpop.f32.mrb[0].mxu0
    %1643 = vdwg.mxu0
    %1644 = vrot.lane.b32.xlu0 %v195, 112
    %v1645 = vpop.permute.xlu0 %1644
    %1646 = vrot.lane.b32.xlu0 %v195, 80
    %v1647 = vpop.permute.xlu0 %1646
    %v1648 = vsel %vm206, %v1645, 0
    %v1650 = vsel %vm206, %v1647, 0
    %1652 = vmatprep.subr.mxu0 0.0
    %1653 = vmatpush1.xpose.msra.mxu0 %v1650
    %1654 = vmatprep.subr.mxu0 0.0
    %1655 = vmatpush1.xpose.msra.mxu0 0.0
    %1656 = vmatprep.subr.mxu0 0.0
    %1657 = vmatpush1.xpose.msra.mxu0 0.0
    %1658 = vmatprep.subr.mxu0 0.0
    %1659 = vmatpush1.xpose.msra.mxu0 0.0
    %1660 = vmatprep.subr.mxu0 0.0
    %1661 = vmatpush1.xpose.msra.mxu0 0.0
    %1662 = vmatprep.subr.mxu0 0.0
    %1663 = vmatpush1.xpose.msra.mxu0 0.0
    %1664 = vmatprep.subr.mxu0 0.0
    %1665 = vmatpush1.xpose.msra.mxu0 0.0
    %1666 = vmatprep.subr.mxu0 0.0
    %1667 = vmatpush1.xpose.msra.mxu0 0.0
    %1668 = vmatprep.subr.mxu0 0.0
    %1669 = vmatpush1.xpose.msra.mxu0 0.0
    %1670 = vmatprep.subr.mxu0 0.0
    %1671 = vmatpush1.xpose.msra.mxu0 0.0
    %1672 = vmatprep.subr.mxu0 0.0
    %1673 = vmatpush1.xpose.msra.mxu0 0.0
    %1674 = vmatprep.subr.mxu0 0.0
    %1675 = vmatpush1.xpose.msra.mxu0 0.0
    %1676 = vmatprep.subr.mxu0 0.0
    %1677 = vmatpush1.xpose.msra.mxu0 0.0
    %1678 = vmatprep.subr.mxu0 0.0
    %1679 = vmatpush1.xpose.msra.mxu0 0.0
    %1680 = vmatprep.subr.mxu0 0.0
    %1681 = vmatpush1.xpose.msra.mxu0 0.0
    %1682 = vmatprep.subr.mxu0 0.0
    %1683 = vmatpush1.xpose.msra.mxu0 0.0
    %1684 = vmatprep.subr.mxu0 0.0
    %1685 = vmatpush1.xpose.msra.mxu0 0.0
    %1686 = vmatprep.subr.mxu0 0.0
    %1687 = vmatpush1.xpose.msra.mxu0 0.0
    %1688 = vmatprep.subr.mxu0 0.0
    %1689 = vmatpush1.xpose.msra.mxu0 0.0
    %1690 = vmatprep.subr.mxu0 0.0
    %1691 = vmatpush1.xpose.msra.mxu0 0.0
    %1692 = vmatprep.subr.mxu0 0.0
    %1693 = vmatpush1.xpose.msra.mxu0 0.0
    %1694 = vmatprep.subr.mxu0 0.0
    %1695 = vmatpush1.xpose.msra.mxu0 0.0
    %1696 = vmatprep.subr.mxu0 0.0
    %1697 = vmatpush1.xpose.msra.mxu0 0.0
    %1698 = vmatprep.subr.mxu0 0.0
    %1699 = vmatpush1.xpose.msra.mxu0 0.0
    %1700 = vmatprep.subr.mxu0 0.0
    %1701 = vmatpush1.xpose.msra.mxu0 0.0
    %1702 = vmatprep.subr.mxu0 0.0
    %1703 = vmatpush1.xpose.msra.mxu0 0.0
    %1704 = vmatprep.subr.mxu0 0.0
    %1705 = vmatpush1.xpose.msra.mxu0 0.0
    %1706 = vmatprep.subr.mxu0 0.0
    %1707 = vmatpush1.xpose.msra.mxu0 0.0
    %1708 = vmatprep.subr.mxu0 0.0
    %1709 = vmatpush1.xpose.msra.mxu0 0.0
    %1710 = vmatprep.subr.mxu0 0.0
    %1711 = vmatpush1.xpose.msra.mxu0 0.0
    %1712 = vmatprep.subr.mxu0 0.0
    %1713 = vmatpush1.xpose.msra.mxu0 0.0
    %1714 = vmatprep.subr.mxu0 0.0
    %1715 = vmatpush1.xpose.msra.mxu0 0.0
    %1716 = vmatprep.mubr.f32.mxu0 0.0
    %1717 = vmatmul.mubr.f32.gmra.mrb[0].mxu0 %v1648
    %v1718 = vpop.f32.mrb[0].mxu0
    %v1719 = vadd.f32 0.0, %v1718
    %v1720 = vpop.f32.mrb[0].mxu0
    %1721 = vdwg.mxu0
    %v1722 = vmul.f32 %v1719, 0.35355338
    %v1723 = vadd.f32 %v1722, %v104
    %v1724 = vsel %vm206, %v1723, -inf
    %1725 = vmax.xlane.f32.xlu0 %v1724
    %v1726 = vpop.xlane.xlu0 %1725
    %v1727 = vsub.f32 %v1723, %v1726
    %v1728 = vmul.f32 %v1727, 1.442695
    %v1729 = vpow.pop %v1728
    %v1730 = vsel %vm206, %v1729, 0.0
    %1731 = vadd.xlane.f32.xlu0 %v1730
    %v1732 = vpop.xlane.xlu0 %1731
    %v1733 = vrcp.pop %v1732
    %v1734 = vmul.f32 %v1729, %v1733
    %1735 = vrot.lane.b32.xlu0 %v195, 48
    %v1736 = vpop.permute.xlu0 %1735
    %v1739 = vsel %vm206, %v1734, 0
    %1741 = vmatprep.subr.mxu0 0.0
    %1742 = vmatpush1.msra.mxu0 %v1736
    %1743 = vmatprep.subr.mxu0 0.0
    %1744 = vmatpush1.msra.mxu0 0.0
    %1745 = vmatprep.subr.mxu0 0.0
    %1746 = vmatpush1.msra.mxu0 0.0
    %1747 = vmatprep.subr.mxu0 0.0
    %1748 = vmatpush1.msra.mxu0 0.0
    %1749 = vmatprep.subr.mxu0 0.0
    %1750 = vmatpush1.msra.mxu0 0.0
    %1751 = vmatprep.subr.mxu0 0.0
    %1752 = vmatpush1.msra.mxu0 0.0
    %1753 = vmatprep.subr.mxu0 0.0
    %1754 = vmatpush1.msra.mxu0 0.0
    %1755 = vmatprep.subr.mxu0 0.0
    %1756 = vmatpush1.msra.mxu0 0.0
    %1757 = vmatprep.subr.mxu0 0.0
    %1758 = vmatpush1.msra.mxu0 0.0
    %1759 = vmatprep.subr.mxu0 0.0
    %1760 = vmatpush1.msra.mxu0 0.0
    %1761 = vmatprep.subr.mxu0 0.0
    %1762 = vmatpush1.msra.mxu0 0.0
    %1763 = vmatprep.subr.mxu0 0.0
    %1764 = vmatpush1.msra.mxu0 0.0
    %1765 = vmatprep.subr.mxu0 0.0
    %1766 = vmatpush1.msra.mxu0 0.0
    %1767 = vmatprep.subr.mxu0 0.0
    %1768 = vmatpush1.msra.mxu0 0.0
    %1769 = vmatprep.subr.mxu0 0.0
    %1770 = vmatpush1.msra.mxu0 0.0
    %1771 = vmatprep.subr.mxu0 0.0
    %1772 = vmatpush1.msra.mxu0 0.0
    %1773 = vmatprep.subr.mxu0 0.0
    %1774 = vmatpush1.msra.mxu0 0.0
    %1775 = vmatprep.subr.mxu0 0.0
    %1776 = vmatpush1.msra.mxu0 0.0
    %1777 = vmatprep.subr.mxu0 0.0
    %1778 = vmatpush1.msra.mxu0 0.0
    %1779 = vmatprep.subr.mxu0 0.0
    %1780 = vmatpush1.msra.mxu0 0.0
    %1781 = vmatprep.subr.mxu0 0.0
    %1782 = vmatpush1.msra.mxu0 0.0
    %1783 = vmatprep.subr.mxu0 0.0
    %1784 = vmatpush1.msra.mxu0 0.0
    %1785 = vmatprep.subr.mxu0 0.0
    %1786 = vmatpush1.msra.mxu0 0.0
    %1787 = vmatprep.subr.mxu0 0.0
    %1788 = vmatpush1.msra.mxu0 0.0
    %1789 = vmatprep.subr.mxu0 0.0
    %1790 = vmatpush1.msra.mxu0 0.0
    %1791 = vmatprep.subr.mxu0 0.0
    %1792 = vmatpush1.msra.mxu0 0.0
    %1793 = vmatprep.subr.mxu0 0.0
    %1794 = vmatpush1.msra.mxu0 0.0
    %1795 = vmatprep.subr.mxu0 0.0
    %1796 = vmatpush1.msra.mxu0 0.0
    %1797 = vmatprep.subr.mxu0 0.0
    %1798 = vmatpush1.msra.mxu0 0.0
    %1799 = vmatprep.subr.mxu0 0.0
    %1800 = vmatpush1.msra.mxu0 0.0
    %1801 = vmatprep.subr.mxu0 0.0
    %1802 = vmatpush1.msra.mxu0 0.0
    %1803 = vmatprep.subr.mxu0 0.0
    %1804 = vmatpush1.msra.mxu0 0.0
    %1805 = vmatprep.mubr.f32.mxu0 0.0
    %1806 = vmatmul.mubr.f32.gmra.mrb[0].mxu0 %v1739
    %v1807 = vpop.f32.mrb[0].mxu0
    %v1808 = vadd.f32 0.0, %v1807
    %v1809 = vpop.f32.mrb[0].mxu0
    %1810 = vdwg.mxu0
    %v1812 = vsel %vm206, %v1808, 0
    %1814 = vmatprep.subr.mxu0 0.0
    %1815 = vmatpush1.msra.mxu0 %v200
    %1816 = vmatprep.subr.mxu0 0.0
    %1817 = vmatpush1.msra.mxu0 0.0
    %1818 = vmatprep.subr.mxu0 0.0
    %1819 = vmatpush1.msra.mxu0 0.0
    %1820 = vmatprep.subr.mxu0 0.0
    %1821 = vmatpush1.msra.mxu0 0.0
    %1822 = vmatprep.subr.mxu0 0.0
    %1823 = vmatpush1.msra.mxu0 0.0
    %1824 = vmatprep.subr.mxu0 0.0
    %1825 = vmatpush1.msra.mxu0 0.0
    %1826 = vmatprep.subr.mxu0 0.0
    %1827 = vmatpush1.msra.mxu0 0.0
    %1828 = vmatprep.subr.mxu0 0.0
    %1829 = vmatpush1.msra.mxu0 0.0
    %1830 = vmatprep.subr.mxu0 0.0
    %1831 = vmatpush1.msra.mxu0 0.0
    %1832 = vmatprep.subr.mxu0 0.0
    %1833 = vmatpush1.msra.mxu0 0.0
    %1834 = vmatprep.subr.mxu0 0.0
    %1835 = vmatpush1.msra.mxu0 0.0
    %1836 = vmatprep.subr.mxu0 0.0
    %1837 = vmatpush1.msra.mxu0 0.0
    %1838 = vmatprep.subr.mxu0 0.0
    %1839 = vmatpush1.msra.mxu0 0.0
    %1840 = vmatprep.subr.mxu0 0.0
    %1841 = vmatpush1.msra.mxu0 0.0
    %1842 = vmatprep.subr.mxu0 0.0
    %1843 = vmatpush1.msra.mxu0 0.0
    %1844 = vmatprep.subr.mxu0 0.0
    %1845 = vmatpush1.msra.mxu0 0.0
    %1846 = vmatprep.subr.mxu0 0.0
    %1847 = vmatpush1.msra.mxu0 0.0
    %1848 = vmatprep.subr.mxu0 0.0
    %1849 = vmatpush1.msra.mxu0 0.0
    %1850 = vmatprep.subr.mxu0 0.0
    %1851 = vmatpush1.msra.mxu0 0.0
    %1852 = vmatprep.subr.mxu0 0.0
    %1853 = vmatpush1.msra.mxu0 0.0
    %1854 = vmatprep.subr.mxu0 0.0
    %1855 = vmatpush1.msra.mxu0 0.0
    %1856 = vmatprep.subr.mxu0 0.0
    %1857 = vmatpush1.msra.mxu0 0.0
    %1858 = vmatprep.subr.mxu0 0.0
    %1859 = vmatpush1.msra.mxu0 0.0
    %1860 = vmatprep.subr.mxu0 0.0
    %1861 = vmatpush1.msra.mxu0 0.0
    %1862 = vmatprep.subr.mxu0 0.0
    %1863 = vmatpush1.msra.mxu0 0.0
    %1864 = vmatprep.subr.mxu0 0.0
    %1865 = vmatpush1.msra.mxu0 0.0
    %1866 = vmatprep.subr.mxu0 0.0
    %1867 = vmatpush1.msra.mxu0 0.0
    %1868 = vmatprep.subr.mxu0 0.0
    %1869 = vmatpush1.msra.mxu0 0.0
    %1870 = vmatprep.subr.mxu0 0.0
    %1871 = vmatpush1.msra.mxu0 0.0
    %1872 = vmatprep.subr.mxu0 0.0
    %1873 = vmatpush1.msra.mxu0 0.0
    %1874 = vmatprep.subr.mxu0 0.0
    %1875 = vmatpush1.msra.mxu0 0.0
    %1876 = vmatprep.subr.mxu0 0.0
    %1877 = vmatpush1.msra.mxu0 0.0
    %1878 = vmatprep.mubr.f32.mxu0 0.0
    %1879 = vmatmul.mubr.f32.gmra.mrb[0].mxu0 %v1812
    %v1880 = vpop.f32.mrb[0].mxu0
    %v1881 = vadd.f32 0.0, %v1880
    %v1882 = vpop.f32.mrb[0].mxu0
    %1883 = vdwg.mxu0
    %v1884 = vadd.f32 %v1641, %v1881
    %1885 = vrot.lane.b32.xlu0 %v195, 104
    %v1886 = vpop.permute.xlu0 %1885
    %1887 = vrot.lane.b32.xlu0 %v195, 72
    %v1888 = vpop.permute.xlu0 %1887
    %v1889 = vsel %vm206, %v1886, 0
    %v1891 = vsel %vm206, %v1888, 0
    %1893 = vmatprep.subr.mxu0 0.0
    %1894 = vmatpush1.xpose.msra.mxu0 %v1891
    %1895 = vmatprep.subr.mxu0 0.0
    %1896 = vmatpush1.xpose.msra.mxu0 0.0
    %1897 = vmatprep.subr.mxu0 0.0
    %1898 = vmatpush1.xpose.msra.mxu0 0.0
    %1899 = vmatprep.subr.mxu0 0.0
    %1900 = vmatpush1.xpose.msra.mxu0 0.0
    %1901 = vmatprep.subr.mxu0 0.0
    %1902 = vmatpush1.xpose.msra.mxu0 0.0
    %1903 = vmatprep.subr.mxu0 0.0
    %1904 = vmatpush1.xpose.msra.mxu0 0.0
    %1905 = vmatprep.subr.mxu0 0.0
    %1906 = vmatpush1.xpose.msra.mxu0 0.0
    %1907 = vmatprep.subr.mxu0 0.0
    %1908 = vmatpush1.xpose.msra.mxu0 0.0
    %1909 = vmatprep.subr.mxu0 0.0
    %1910 = vmatpush1.xpose.msra.mxu0 0.0
    %1911 = vmatprep.subr.mxu0 0.0
    %1912 = vmatpush1.xpose.msra.mxu0 0.0
    %1913 = vmatprep.subr.mxu0 0.0
    %1914 = vmatpush1.xpose.msra.mxu0 0.0
    %1915 = vmatprep.subr.mxu0 0.0
    %1916 = vmatpush1.xpose.msra.mxu0 0.0
    %1917 = vmatprep.subr.mxu0 0.0
    %1918 = vmatpush1.xpose.msra.mxu0 0.0
    %1919 = vmatprep.subr.mxu0 0.0
    %1920 = vmatpush1.xpose.msra.mxu0 0.0
    %1921 = vmatprep.subr.mxu0 0.0
    %1922 = vmatpush1.xpose.msra.mxu0 0.0
    %1923 = vmatprep.subr.mxu0 0.0
    %1924 = vmatpush1.xpose.msra.mxu0 0.0
    %1925 = vmatprep.subr.mxu0 0.0
    %1926 = vmatpush1.xpose.msra.mxu0 0.0
    %1927 = vmatprep.subr.mxu0 0.0
    %1928 = vmatpush1.xpose.msra.mxu0 0.0
    %1929 = vmatprep.subr.mxu0 0.0
    %1930 = vmatpush1.xpose.msra.mxu0 0.0
    %1931 = vmatprep.subr.mxu0 0.0
    %1932 = vmatpush1.xpose.msra.mxu0 0.0
    %1933 = vmatprep.subr.mxu0 0.0
    %1934 = vmatpush1.xpose.msra.mxu0 0.0
    %1935 = vmatprep.subr.mxu0 0.0
    %1936 = vmatpush1.xpose.msra.mxu0 0.0
    %1937 = vmatprep.subr.mxu0 0.0
    %1938 = vmatpush1.xpose.msra.mxu0 0.0
    %1939 = vmatprep.subr.mxu0 0.0
    %1940 = vmatpush1.xpose.msra.mxu0 0.0
    %1941 = vmatprep.subr.mxu0 0.0
    %1942 = vmatpush1.xpose.msra.mxu0 0.0
    %1943 = vmatprep.subr.mxu0 0.0
    %1944 = vmatpush1.xpose.msra.mxu0 0.0
    %1945 = vmatprep.subr.mxu0 0.0
    %1946 = vmatpush1.xpose.msra.mxu0 0.0
    %1947 = vmatprep.subr.mxu0 0.0
    %1948 = vmatpush1.xpose.msra.mxu0 0.0
    %1949 = vmatprep.subr.mxu0 0.0
    %1950 = vmatpush1.xpose.msra.mxu0 0.0
    %1951 = vmatprep.subr.mxu0 0.0
    %1952 = vmatpush1.xpose.msra.mxu0 0.0
    %1953 = vmatprep.subr.mxu0 0.0
    %1954 = vmatpush1.xpose.msra.mxu0 0.0
    %1955 = vmatprep.subr.mxu0 0.0
    %1956 = vmatpush1.xpose.msra.mxu0 0.0
    %1957 = vmatprep.mubr.f32.mxu0 0.0
    %1958 = vmatmul.mubr.f32.gmra.mrb[0].mxu0 %v1889
    %v1959 = vpop.f32.mrb[0].mxu0
    %v1960 = vadd.f32 0.0, %v1959
    %v1961 = vpop.f32.mrb[0].mxu0
    %1962 = vdwg.mxu0
    %v1963 = vmul.f32 %v1960, 0.35355338
    %v1964 = vadd.f32 %v1963, %v104
    %v1965 = vsel %vm206, %v1964, -inf
    %1966 = vmax.xlane.f32.xlu0 %v1965
    %v1967 = vpop.xlane.xlu0 %1966
    %v1968 = vsub.f32 %v1964, %v1967
    %v1969 = vmul.f32 %v1968, 1.442695
    %v1970 = vpow.pop %v1969
    %v1971 = vsel %vm206, %v1970, 0.0
    %1972 = vadd.xlane.f32.xlu0 %v1971
    %v1973 = vpop.xlane.xlu0 %1972
    %v1974 = vrcp.pop %v1973
    %v1975 = vmul.f32 %v1970, %v1974
    %1976 = vrot.lane.b32.xlu0 %v195, 40
    %v1977 = vpop.permute.xlu0 %1976
    %v1980 = vsel %vm206, %v1975, 0
    %1982 = vmatprep.subr.mxu0 0.0
    %1983 = vmatpush1.msra.mxu0 %v1977
    %1984 = vmatprep.subr.mxu0 0.0
    %1985 = vmatpush1.msra.mxu0 0.0
    %1986 = vmatprep.subr.mxu0 0.0
    %1987 = vmatpush1.msra.mxu0 0.0
    %1988 = vmatprep.subr.mxu0 0.0
    %1989 = vmatpush1.msra.mxu0 0.0
    %1990 = vmatprep.subr.mxu0 0.0
    %1991 = vmatpush1.msra.mxu0 0.0
    %1992 = vmatprep.subr.mxu0 0.0
    %1993 = vmatpush1.msra.mxu0 0.0
    %1994 = vmatprep.subr.mxu0 0.0
    %1995 = vmatpush1.msra.mxu0 0.0
    %1996 = vmatprep.subr.mxu0 0.0
    %1997 = vmatpush1.msra.mxu0 0.0
    %1998 = vmatprep.subr.mxu0 0.0
    %1999 = vmatpush1.msra.mxu0 0.0
    %2000 = vmatprep.subr.mxu0 0.0
    %2001 = vmatpush1.msra.mxu0 0.0
    %2002 = vmatprep.subr.mxu0 0.0
    %2003 = vmatpush1.msra.mxu0 0.0
    %2004 = vmatprep.subr.mxu0 0.0
    %2005 = vmatpush1.msra.mxu0 0.0
    %2006 = vmatprep.subr.mxu0 0.0
    %2007 = vmatpush1.msra.mxu0 0.0
    %2008 = vmatprep.subr.mxu0 0.0
    %2009 = vmatpush1.msra.mxu0 0.0
    %2010 = vmatprep.subr.mxu0 0.0
    %2011 = vmatpush1.msra.mxu0 0.0
    %2012 = vmatprep.subr.mxu0 0.0
    %2013 = vmatpush1.msra.mxu0 0.0
    %2014 = vmatprep.subr.mxu0 0.0
    %2015 = vmatpush1.msra.mxu0 0.0
    %2016 = vmatprep.subr.mxu0 0.0
    %2017 = vmatpush1.msra.mxu0 0.0
    %2018 = vmatprep.subr.mxu0 0.0
    %2019 = vmatpush1.msra.mxu0 0.0
    %2020 = vmatprep.subr.mxu0 0.0
    %2021 = vmatpush1.msra.mxu0 0.0
    %2022 = vmatprep.subr.mxu0 0.0
    %2023 = vmatpush1.msra.mxu0 0.0
    %2024 = vmatprep.subr.mxu0 0.0
    %2025 = vmatpush1.msra.mxu0 0.0
    %2026 = vmatprep.subr.mxu0 0.0
    %2027 = vmatpush1.msra.mxu0 0.0
    %2028 = vmatprep.subr.mxu0 0.0
    %2029 = vmatpush1.msra.mxu0 0.0
    %2030 = vmatprep.subr.mxu0 0.0
    %2031 = vmatpush1.msra.mxu0 0.0
    %2032 = vmatprep.subr.mxu0 0.0
    %2033 = vmatpush1.msra.mxu0 0.0
    %2034 = vmatprep.subr.mxu0 0.0
    %2035 = vmatpush1.msra.mxu0 0.0
    %2036 = vmatprep.subr.mxu0 0.0
    %2037 = vmatpush1.msra.mxu0 0.0
    %2038 = vmatprep.subr.mxu0 0.0
    %2039 = vmatpush1.msra.mxu0 0.0
    %2040 = vmatprep.subr.mxu0 0.0
    %2041 = vmatpush1.msra.mxu0 0.0
    %2042 = vmatprep.subr.mxu0 0.0
    %2043 = vmatpush1.msra.mxu0 0.0
    %2044 = vmatprep.subr.mxu0 0.0
    %2045 = vmatpush1.msra.mxu0 0.0
    %2046 = vmatprep.mubr.f32.mxu0 0.0
    %2047 = vmatmul.mubr.f32.gmra.mrb[0].mxu0 %v1980
    %v2048 = vpop.f32.mrb[0].mxu0
    %v2049 = vadd.f32 0.0, %v2048
    %v2050 = vpop.f32.mrb[0].mxu0
    %2051 = vdwg.mxu0
    %v2053 = vsel %vm206, %v2049, 0
    %2055 = vmatprep.subr.mxu0 0.0
    %2056 = vmatpush1.msra.mxu0 %v201
    %2057 = vmatprep.subr.mxu0 0.0
    %2058 = vmatpush1.msra.mxu0 0.0
    %2059 = vmatprep.subr.mxu0 0.0
    %2060 = vmatpush1.msra.mxu0 0.0
    %2061 = vmatprep.subr.mxu0 0.0
    %2062 = vmatpush1.msra.mxu0 0.0
    %2063 = vmatprep.subr.mxu0 0.0
    %2064 = vmatpush1.msra.mxu0 0.0
    %2065 = vmatprep.subr.mxu0 0.0
    %2066 = vmatpush1.msra.mxu0 0.0
    %2067 = vmatprep.subr.mxu0 0.0
    %2068 = vmatpush1.msra.mxu0 0.0
    %2069 = vmatprep.subr.mxu0 0.0
    %2070 = vmatpush1.msra.mxu0 0.0
    %2071 = vmatprep.subr.mxu0 0.0
    %2072 = vmatpush1.msra.mxu0 0.0
    %2073 = vmatprep.subr.mxu0 0.0
    %2074 = vmatpush1.msra.mxu0 0.0
    %2075 = vmatprep.subr.mxu0 0.0
    %2076 = vmatpush1.msra.mxu0 0.0
    %2077 = vmatprep.subr.mxu0 0.0
    %2078 = vmatpush1.msra.mxu0 0.0
    %2079 = vmatprep.subr.mxu0 0.0
    %2080 = vmatpush1.msra.mxu0 0.0
    %2081 = vmatprep.subr.mxu0 0.0
    %2082 = vmatpush1.msra.mxu0 0.0
    %2083 = vmatprep.subr.mxu0 0.0
    %2084 = vmatpush1.msra.mxu0 0.0
    %2085 = vmatprep.subr.mxu0 0.0
    %2086 = vmatpush1.msra.mxu0 0.0
    %2087 = vmatprep.subr.mxu0 0.0
    %2088 = vmatpush1.msra.mxu0 0.0
    %2089 = vmatprep.subr.mxu0 0.0
    %2090 = vmatpush1.msra.mxu0 0.0
    %2091 = vmatprep.subr.mxu0 0.0
    %2092 = vmatpush1.msra.mxu0 0.0
    %2093 = vmatprep.subr.mxu0 0.0
    %2094 = vmatpush1.msra.mxu0 0.0
    %2095 = vmatprep.subr.mxu0 0.0
    %2096 = vmatpush1.msra.mxu0 0.0
    %2097 = vmatprep.subr.mxu0 0.0
    %2098 = vmatpush1.msra.mxu0 0.0
    %2099 = vmatprep.subr.mxu0 0.0
    %2100 = vmatpush1.msra.mxu0 0.0
    %2101 = vmatprep.subr.mxu0 0.0
    %2102 = vmatpush1.msra.mxu0 0.0
    %2103 = vmatprep.subr.mxu0 0.0
    %2104 = vmatpush1.msra.mxu0 0.0
    %2105 = vmatprep.subr.mxu0 0.0
    %2106 = vmatpush1.msra.mxu0 0.0
    %2107 = vmatprep.subr.mxu0 0.0
    %2108 = vmatpush1.msra.mxu0 0.0
    %2109 = vmatprep.subr.mxu0 0.0
    %2110 = vmatpush1.msra.mxu0 0.0
    %2111 = vmatprep.subr.mxu0 0.0
    %2112 = vmatpush1.msra.mxu0 0.0
    %2113 = vmatprep.subr.mxu0 0.0
    %2114 = vmatpush1.msra.mxu0 0.0
    %2115 = vmatprep.subr.mxu0 0.0
    %2116 = vmatpush1.msra.mxu0 0.0
    %2117 = vmatprep.subr.mxu0 0.0
    %2118 = vmatpush1.msra.mxu0 0.0
    %2119 = vmatprep.mubr.f32.mxu0 0.0
    %2120 = vmatmul.mubr.f32.gmra.mrb[0].mxu0 %v2053
    %v2121 = vpop.f32.mrb[0].mxu0
    %v2122 = vadd.f32 0.0, %v2121
    %v2123 = vpop.f32.mrb[0].mxu0
    %2124 = vdwg.mxu0
    %v2125 = vadd.f32 %v1884, %v2122
    %v2127 = vlaneseq
    %v2128 = vshrl.u32 %v2127, 7
    %v2129 = vsub.s32 0, %v2128
    %v2130 = vrot.slane %v202, %v2129
    %v2132 = vadd.f32 %v1164, %v2130
    %v2133 = vadd.f32 %v2125, %v2130
    %v2134 = vadd.f32 %v98, %v2132
    %v2135 = vadd.f32 %v99, %v2133
    %v2136 = vld [vmem:[%s17] sm:$0x1]
    %v2137 = vld [vmem:[%s18] sm:$0x1]
    %v2138 = vsel %vm116, %v2134, 0.0
    %2139 = vadd.xlane.f32.xlu0 %v2138
    %v2140 = vpop.xlane.xlu0 %2139
    %v2141 = vsel %vm116, %v2135, 0.0
    %2142 = vadd.xlane.f32.xlu0 %v2141
    %v2143 = vpop.xlane.xlu0 %2142
    %v2144 = vrcp.pop 32.0
    %v2145 = vmul.f32 %v2140, %v2144
    %v2146 = vmul.f32 %v2143, %v2144
    %v2147 = vsub.f32 %v2134, %v2145
    %v2148 = vsub.f32 %v2135, %v2146
    %v2149 = vmul.f32 %v2147, %v2147
    %v2150 = vmul.f32 %v2148, %v2148
    %v2151 = vsel %vm116, %v2149, 0.0
    %2152 = vadd.xlane.f32.xlu0 %v2151
    %v2153 = vpop.xlane.xlu0 %2152
    %v2154 = vsel %vm116, %v2150, 0.0
    %2155 = vadd.xlane.f32.xlu0 %v2154
    %v2156 = vpop.xlane.xlu0 %2155
    %v2157 = vmul.f32 %v2153, %v2144
    %v2158 = vmul.f32 %v2156, %v2144
    %v2159 = vadd.f32 %v2157, 1e-05
    %v2160 = vadd.f32 %v2158, 1e-05
    %v2161 = vrsqrt.pop %v2159
    %v2162 = vrsqrt.pop %v2160
    %v2163 = vmul.f32 %v2147, %v2161
    %v2164 = vmul.f32 %v2148, %v2162
    %v2166 = vlaneseq
    %v2167 = vshrl.u32 %v2166, 7
    %v2168 = vsub.s32 0, %v2167
    %v2169 = vrot.slane %v2136, %v2168
    %v2171 = vmul.f32 %v2163, %v2169
    %v2172 = vmul.f32 %v2164, %v2169
    %v2174 = vlaneseq
    %v2175 = vshrl.u32 %v2174, 7
    %v2176 = vsub.s32 0, %v2175
    %v2177 = vrot.slane %v2137, %v2176
    %v2179 = vadd.f32 %v2171, %v2177
    %v2180 = vadd.f32 %v2172, %v2177
    %v2181 = vld [vmem:[%s7] sm:$0xff]
    %v2182 = vld [vmem:[%s7 + $0x8] sm:$0xff]
    %v2183 = vld [vmem:[%s7 + $0x10] sm:$0xff]
    %v2184 = vld [vmem:[%s7 + $0x18] sm:$0xff]
    %v2185 = vld [vmem:[%s8] sm:$0x1]
    %v2187 = vlaneseq
    %v2188 = vshrl.u32 %v2187, 7
    %v2189 = vsub.s32 0, %v2188
    %v2190 = vrot.slane %v2185, %v2189
    %v2193 = vsel %vm116, %v2179, 0
    %v2196 = vsel %vm116, %v2180, 0
    %2198 = vmatprep.subr.mxu0 0.0
    %2199 = vmatpush1.msra.mxu0 %v2181
    %2200 = vmatprep.subr.mxu0 0.0
    %2201 = vmatpush1.msra.mxu0 %v2182
    %2202 = vmatprep.subr.mxu0 0.0
    %2203 = vmatpush1.msra.mxu0 %v2183
    %2204 = vmatprep.subr.mxu0 0.0
    %2205 = vmatpush1.msra.mxu0 %v2184
    %2206 = vmatprep.subr.mxu0 0.0
    %2207 = vmatpush1.msra.mxu0 0.0
    %2208 = vmatprep.subr.mxu0 0.0
    %2209 = vmatpush1.msra.mxu0 0.0
    %2210 = vmatprep.subr.mxu0 0.0
    %2211 = vmatpush1.msra.mxu0 0.0
    %2212 = vmatprep.subr.mxu0 0.0
    %2213 = vmatpush1.msra.mxu0 0.0
    %2214 = vmatprep.subr.mxu0 0.0
    %2215 = vmatpush1.msra.mxu0 0.0
    %2216 = vmatprep.subr.mxu0 0.0
    %2217 = vmatpush1.msra.mxu0 0.0
    %2218 = vmatprep.subr.mxu0 0.0
    %2219 = vmatpush1.msra.mxu0 0.0
    %2220 = vmatprep.subr.mxu0 0.0
    %2221 = vmatpush1.msra.mxu0 0.0
    %2222 = vmatprep.subr.mxu0 0.0
    %2223 = vmatpush1.msra.mxu0 0.0
    %2224 = vmatprep.subr.mxu0 0.0
    %2225 = vmatpush1.msra.mxu0 0.0
    %2226 = vmatprep.subr.mxu0 0.0
    %2227 = vmatpush1.msra.mxu0 0.0
    %2228 = vmatprep.subr.mxu0 0.0
    %2229 = vmatpush1.msra.mxu0 0.0
    %2230 = vmatprep.subr.mxu0 0.0
    %2231 = vmatpush1.msra.mxu0 0.0
    %2232 = vmatprep.subr.mxu0 0.0
    %2233 = vmatpush1.msra.mxu0 0.0
    %2234 = vmatprep.subr.mxu0 0.0
    %2235 = vmatpush1.msra.mxu0 0.0
    %2236 = vmatprep.subr.mxu0 0.0
    %2237 = vmatpush1.msra.mxu0 0.0
    %2238 = vmatprep.subr.mxu0 0.0
    %2239 = vmatpush1.msra.mxu0 0.0
    %2240 = vmatprep.subr.mxu0 0.0
    %2241 = vmatpush1.msra.mxu0 0.0
    %2242 = vmatprep.subr.mxu0 0.0
    %2243 = vmatpush1.msra.mxu0 0.0
    %2244 = vmatprep.subr.mxu0 0.0
    %2245 = vmatpush1.msra.mxu0 0.0
    %2246 = vmatprep.subr.mxu0 0.0
    %2247 = vmatpush1.msra.mxu0 0.0
    %2248 = vmatprep.subr.mxu0 0.0
    %2249 = vmatpush1.msra.mxu0 0.0
    %2250 = vmatprep.subr.mxu0 0.0
    %2251 = vmatpush1.msra.mxu0 0.0
    %2252 = vmatprep.subr.mxu0 0.0
    %2253 = vmatpush1.msra.mxu0 0.0
    %2254 = vmatprep.subr.mxu0 0.0
    %2255 = vmatpush1.msra.mxu0 0.0
    %2256 = vmatprep.subr.mxu0 0.0
    %2257 = vmatpush1.msra.mxu0 0.0
    %2258 = vmatprep.subr.mxu0 0.0
    %2259 = vmatpush1.msra.mxu0 0.0
    %2260 = vmatprep.subr.mxu0 0.0
    %2261 = vmatpush1.msra.mxu0 0.0
    %2262 = vmatprep.mubr.f32.mxu0 0.0
    %2263 = vmatmul.mubr.f32.gmra.mrb[0].mxu0 %v2193
    %v2264 = vpop.f32.mrb[0].mxu0
    %v2265 = vadd.f32 %v2190, %v2264
    %v2266 = vpop.f32.mrb[0].mxu0
    %2267 = vmatprep.mubr.f32.mxu0 0.0
    %2268 = vmatmul.mubr.f32.gmra.mrb[0].mxu0 %v2196
    %v2269 = vpop.f32.mrb[0].mxu0
    %v2270 = vadd.f32 %v2190, %v2269
    %v2271 = vpop.f32.mrb[0].mxu0
    %2272 = vdwg.mxu0
    %v2273 = vld [vmem:[%s9] sm:$0xff]
    %v2274 = vld [vmem:[%s9 + $0x8] sm:$0xff]
    %v2275 = vld [vmem:[%s9 + $0x10] sm:$0xff]
    %v2276 = vld [vmem:[%s9 + $0x18] sm:$0xff]
    %v2277 = vld [vmem:[%s10] sm:$0x1]
    %v2279 = vlaneseq
    %v2280 = vshrl.u32 %v2279, 7
    %v2281 = vsub.s32 0, %v2280
    %v2282 = vrot.slane %v2277, %v2281
    %v2285 = vsel %vm116, %v100, 0
    %v2288 = vsel %vm116, %v101, 0
    %v2291 = vsel %vm116, %v102, 0
    %v2294 = vsel %vm116, %v103, 0
    %2296 = vmatprep.subr.mxu0 0.0
    %2297 = vmatpush1.msra.mxu0 %v2273
    %2298 = vmatprep.subr.mxu0 0.0
    %2299 = vmatpush1.msra.mxu0 %v2274
    %2300 = vmatprep.subr.mxu0 0.0
    %2301 = vmatpush1.msra.mxu0 %v2275
    %2302 = vmatprep.subr.mxu0 0.0
    %2303 = vmatpush1.msra.mxu0 %v2276
    %2304 = vmatprep.subr.mxu0 0.0
    %2305 = vmatpush1.msra.mxu0 0.0
    %2306 = vmatprep.subr.mxu0 0.0
    %2307 = vmatpush1.msra.mxu0 0.0
    %2308 = vmatprep.subr.mxu0 0.0
    %2309 = vmatpush1.msra.mxu0 0.0
    %2310 = vmatprep.subr.mxu0 0.0
    %2311 = vmatpush1.msra.mxu0 0.0
    %2312 = vmatprep.subr.mxu0 0.0
    %2313 = vmatpush1.msra.mxu0 0.0
    %2314 = vmatprep.subr.mxu0 0.0
    %2315 = vmatpush1.msra.mxu0 0.0
    %2316 = vmatprep.subr.mxu0 0.0
    %2317 = vmatpush1.msra.mxu0 0.0
    %2318 = vmatprep.subr.mxu0 0.0
    %2319 = vmatpush1.msra.mxu0 0.0
    %2320 = vmatprep.subr.mxu0 0.0
    %2321 = vmatpush1.msra.mxu0 0.0
    %2322 = vmatprep.subr.mxu0 0.0
    %2323 = vmatpush1.msra.mxu0 0.0
    %2324 = vmatprep.subr.mxu0 0.0
    %2325 = vmatpush1.msra.mxu0 0.0
    %2326 = vmatprep.subr.mxu0 0.0
    %2327 = vmatpush1.msra.mxu0 0.0
    %2328 = vmatprep.subr.mxu0 0.0
    %2329 = vmatpush1.msra.mxu0 0.0
    %2330 = vmatprep.subr.mxu0 0.0
    %2331 = vmatpush1.msra.mxu0 0.0
    %2332 = vmatprep.subr.mxu0 0.0
    %2333 = vmatpush1.msra.mxu0 0.0
    %2334 = vmatprep.subr.mxu0 0.0
    %2335 = vmatpush1.msra.mxu0 0.0
    %2336 = vmatprep.subr.mxu0 0.0
    %2337 = vmatpush1.msra.mxu0 0.0
    %2338 = vmatprep.subr.mxu0 0.0
    %2339 = vmatpush1.msra.mxu0 0.0
    %2340 = vmatprep.subr.mxu0 0.0
    %2341 = vmatpush1.msra.mxu0 0.0
    %2342 = vmatprep.subr.mxu0 0.0
    %2343 = vmatpush1.msra.mxu0 0.0
    %2344 = vmatprep.subr.mxu0 0.0
    %2345 = vmatpush1.msra.mxu0 0.0
    %2346 = vmatprep.subr.mxu0 0.0
    %2347 = vmatpush1.msra.mxu0 0.0
    %2348 = vmatprep.subr.mxu0 0.0
    %2349 = vmatpush1.msra.mxu0 0.0
    %2350 = vmatprep.subr.mxu0 0.0
    %2351 = vmatpush1.msra.mxu0 0.0
    %2352 = vmatprep.subr.mxu0 0.0
    %2353 = vmatpush1.msra.mxu0 0.0
    %2354 = vmatprep.subr.mxu0 0.0
    %2355 = vmatpush1.msra.mxu0 0.0
    %2356 = vmatprep.subr.mxu0 0.0
    %2357 = vmatpush1.msra.mxu0 0.0
    %2358 = vmatprep.subr.mxu0 0.0
    %2359 = vmatpush1.msra.mxu0 0.0
    %2360 = vmatprep.mubr.f32.mxu0 0.0
    %2361 = vmatmul.mubr.f32.gmra.mrb[0].mxu0 %v2285
    %v2362 = vpop.f32.mrb[0].mxu0
    %v2363 = vadd.f32 %v2282, %v2362
    %v2364 = vpop.f32.mrb[0].mxu0
    %2365 = vmatprep.mubr.f32.mxu0 0.0
    %2366 = vmatmul.mubr.f32.gmra.mrb[0].mxu0 %v2288
    %v2367 = vpop.f32.mrb[0].mxu0
    %v2368 = vadd.f32 %v2282, %v2367
    %v2369 = vpop.f32.mrb[0].mxu0
    %2370 = vmatprep.mubr.f32.mxu0 0.0
    %2371 = vmatmul.mubr.f32.gmra.mrb[0].mxu0 %v2291
    %v2372 = vpop.f32.mrb[0].mxu0
    %v2373 = vadd.f32 %v2282, %v2372
    %v2374 = vpop.f32.mrb[0].mxu0
    %2375 = vmatprep.mubr.f32.mxu0 0.0
    %2376 = vmatmul.mubr.f32.gmra.mrb[0].mxu0 %v2294
    %v2377 = vpop.f32.mrb[0].mxu0
    %v2378 = vadd.f32 %v2282, %v2377
    %v2379 = vpop.f32.mrb[0].mxu0
    %2380 = vdwg.mxu0
    %v2381 = vld [vmem:[%s11] sm:$0xff]
    %v2382 = vld [vmem:[%s11 + $0x8] sm:$0xff]
    %v2383 = vld [vmem:[%s11 + $0x10] sm:$0xff]
    %v2384 = vld [vmem:[%s11 + $0x18] sm:$0xff]
    %v2385 = vld [vmem:[%s12] sm:$0x1]
    %v2387 = vsel %vm206, %v2265, 0
    %v2390 = vsel %vm206, %v2363, 0
    %v2393 = vsel %vm206, %v2368, 0
    %2395 = vmatprep.subr.mxu0 0.0
    %2396 = vmatpush1.xpose.msra.mxu0 %v2390
    %2397 = vmatprep.subr.mxu0 0.0
    %2398 = vmatpush1.xpose.msra.mxu0 %v2393
    %2399 = vmatprep.subr.mxu0 0.0
    %2400 = vmatpush1.xpose.msra.mxu0 0.0
    %2401 = vmatprep.subr.mxu0 0.0
    %2402 = vmatpush1.xpose.msra.mxu0 0.0
    %2403 = vmatprep.subr.mxu0 0.0
    %2404 = vmatpush1.xpose.msra.mxu0 0.0
    %2405 = vmatprep.subr.mxu0 0.0
    %2406 = vmatpush1.xpose.msra.mxu0 0.0
    %2407 = vmatprep.subr.mxu0 0.0
    %2408 = vmatpush1.xpose.msra.mxu0 0.0
    %2409 = vmatprep.subr.mxu0 0.0
    %2410 = vmatpush1.xpose.msra.mxu0 0.0
    %2411 = vmatprep.subr.mxu0 0.0
    %2412 = vmatpush1.xpose.msra.mxu0 0.0
    %2413 = vmatprep.subr.mxu0 0.0
    %2414 = vmatpush1.xpose.msra.mxu0 0.0
    %2415 = vmatprep.subr.mxu0 0.0
    %2416 = vmatpush1.xpose.msra.mxu0 0.0
    %2417 = vmatprep.subr.mxu0 0.0
    %2418 = vmatpush1.xpose.msra.mxu0 0.0
    %2419 = vmatprep.subr.mxu0 0.0
    %2420 = vmatpush1.xpose.msra.mxu0 0.0
    %2421 = vmatprep.subr.mxu0 0.0
    %2422 = vmatpush1.xpose.msra.mxu0 0.0
    %2423 = vmatprep.subr.mxu0 0.0
    %2424 = vmatpush1.xpose.msra.mxu0 0.0
    %2425 = vmatprep.subr.mxu0 0.0
    %2426 = vmatpush1.xpose.msra.mxu0 0.0
    %2427 = vmatprep.subr.mxu0 0.0
    %2428 = vmatpush1.xpose.msra.mxu0 0.0
    %2429 = vmatprep.subr.mxu0 0.0
    %2430 = vmatpush1.xpose.msra.mxu0 0.0
    %2431 = vmatprep.subr.mxu0 0.0
    %2432 = vmatpush1.xpose.msra.mxu0 0.0
    %2433 = vmatprep.subr.mxu0 0.0
    %2434 = vmatpush1.xpose.msra.mxu0 0.0
    %2435 = vmatprep.subr.mxu0 0.0
    %2436 = vmatpush1.xpose.msra.mxu0 0.0
    %2437 = vmatprep.subr.mxu0 0.0
    %2438 = vmatpush1.xpose.msra.mxu0 0.0
    %2439 = vmatprep.subr.mxu0 0.0
    %2440 = vmatpush1.xpose.msra.mxu0 0.0
    %2441 = vmatprep.subr.mxu0 0.0
    %2442 = vmatpush1.xpose.msra.mxu0 0.0
    %2443 = vmatprep.subr.mxu0 0.0
    %2444 = vmatpush1.xpose.msra.mxu0 0.0
    %2445 = vmatprep.subr.mxu0 0.0
    %2446 = vmatpush1.xpose.msra.mxu0 0.0
    %2447 = vmatprep.subr.mxu0 0.0
    %2448 = vmatpush1.xpose.msra.mxu0 0.0
    %2449 = vmatprep.subr.mxu0 0.0
    %2450 = vmatpush1.xpose.msra.mxu0 0.0
    %2451 = vmatprep.subr.mxu0 0.0
    %2452 = vmatpush1.xpose.msra.mxu0 0.0
    %2453 = vmatprep.subr.mxu0 0.0
    %2454 = vmatpush1.xpose.msra.mxu0 0.0
    %2455 = vmatprep.subr.mxu0 0.0
    %2456 = vmatpush1.xpose.msra.mxu0 0.0
    %2457 = vmatprep.subr.mxu0 0.0
    %2458 = vmatpush1.xpose.msra.mxu0 0.0
    %2459 = vmatprep.mubr.f32.mxu0 0.0
    %2460 = vmatmul.mubr.f32.gmra.mrb[0].mxu0 %v2387
    %v2461 = vpop.f32.mrb[0].mxu0
    %v2462 = vadd.f32 0.0, %v2461
    %v2463 = vpop.f32.mrb[0].mxu0
    %2464 = vdwg.mxu0
    %v2465 = vmul.f32 %v2462, 0.35355338
    %vm2466 = vcmask 130048
    %v2467 = vsel %vm2466, %v2465, -inf
    %2468 = vmax.xlane.f32.xlu0 %v2467
    %v2469 = vpop.xlane.xlu0 %2468
    %v2470 = vsub.f32 %v2465, %v2469
    %v2471 = vmul.f32 %v2470, 1.442695
    %v2472 = vpow.pop %v2471
    %v2473 = vsel %vm2466, %v2472, 0.0
    %2474 = vadd.xlane.f32.xlu0 %v2473
    %v2475 = vpop.xlane.xlu0 %2474
    %v2476 = vrcp.pop %v2475
    %v2477 = vmul.f32 %v2472, %v2476
    %2478 = vrot.lane.b32.xlu0 %v2363, 96
    %v2479 = vpop.permute.xlu0 %2478
    %2480 = vrot.lane.b32.xlu0 %v2368, 96
    %v2481 = vpop.permute.xlu0 %2480
    %v2485 = vsel %vm2466, %v2477, 0
    %2487 = vmatprep.subr.mxu0 0.0
    %2488 = vmatpush1.msra.mxu0 %v2479
    %2489 = vmatprep.subr.mxu0 0.0
    %2490 = vmatpush1.msra.mxu0 %v2481
    %2491 = vmatprep.subr.mxu0 0.0
    %2492 = vmatpush1.msra.mxu0 0.0
    %2493 = vmatprep.subr.mxu0 0.0
    %2494 = vmatpush1.msra.mxu0 0.0
    %2495 = vmatprep.subr.mxu0 0.0
    %2496 = vmatpush1.msra.mxu0 0.0
    %2497 = vmatprep.subr.mxu0 0.0
    %2498 = vmatpush1.msra.mxu0 0.0
    %2499 = vmatprep.subr.mxu0 0.0
    %2500 = vmatpush1.msra.mxu0 0.0
    %2501 = vmatprep.subr.mxu0 0.0
    %2502 = vmatpush1.msra.mxu0 0.0
    %2503 = vmatprep.subr.mxu0 0.0
    %2504 = vmatpush1.msra.mxu0 0.0
    %2505 = vmatprep.subr.mxu0 0.0
    %2506 = vmatpush1.msra.mxu0 0.0
    %2507 = vmatprep.subr.mxu0 0.0
    %2508 = vmatpush1.msra.mxu0 0.0
    %2509 = vmatprep.subr.mxu0 0.0
    %2510 = vmatpush1.msra.mxu0 0.0
    %2511 = vmatprep.subr.mxu0 0.0
    %2512 = vmatpush1.msra.mxu0 0.0
    %2513 = vmatprep.subr.mxu0 0.0
    %2514 = vmatpush1.msra.mxu0 0.0
    %2515 = vmatprep.subr.mxu0 0.0
    %2516 = vmatpush1.msra.mxu0 0.0
    %2517 = vmatprep.subr.mxu0 0.0
    %2518 = vmatpush1.msra.mxu0 0.0
    %2519 = vmatprep.subr.mxu0 0.0
    %2520 = vmatpush1.msra.mxu0 0.0
    %2521 = vmatprep.subr.mxu0 0.0
    %2522 = vmatpush1.msra.mxu0 0.0
    %2523 = vmatprep.subr.mxu0 0.0
    %2524 = vmatpush1.msra.mxu0 0.0
    %2525 = vmatprep.subr.mxu0 0.0
    %2526 = vmatpush1.msra.mxu0 0.0
    %2527 = vmatprep.subr.mxu0 0.0
    %2528 = vmatpush1.msra.mxu0 0.0
    %2529 = vmatprep.subr.mxu0 0.0
    %2530 = vmatpush1.msra.mxu0 0.0
    %2531 = vmatprep.subr.mxu0 0.0
    %2532 = vmatpush1.msra.mxu0 0.0
    %2533 = vmatprep.subr.mxu0 0.0
    %2534 = vmatpush1.msra.mxu0 0.0
    %2535 = vmatprep.subr.mxu0 0.0
    %2536 = vmatpush1.msra.mxu0 0.0
    %2537 = vmatprep.subr.mxu0 0.0
    %2538 = vmatpush1.msra.mxu0 0.0
    %2539 = vmatprep.subr.mxu0 0.0
    %2540 = vmatpush1.msra.mxu0 0.0
    %2541 = vmatprep.subr.mxu0 0.0
    %2542 = vmatpush1.msra.mxu0 0.0
    %2543 = vmatprep.subr.mxu0 0.0
    %2544 = vmatpush1.msra.mxu0 0.0
    %2545 = vmatprep.subr.mxu0 0.0
    %2546 = vmatpush1.msra.mxu0 0.0
    %2547 = vmatprep.subr.mxu0 0.0
    %2548 = vmatpush1.msra.mxu0 0.0
    %2549 = vmatprep.subr.mxu0 0.0
    %2550 = vmatpush1.msra.mxu0 0.0
    %2551 = vmatprep.mubr.f32.mxu0 0.0
    %2552 = vmatmul.mubr.f32.gmra.mrb[0].mxu0 %v2485
    %v2553 = vpop.f32.mrb[0].mxu0
    %v2554 = vadd.f32 0.0, %v2553
    %v2555 = vpop.f32.mrb[0].mxu0
    %2556 = vdwg.mxu0
    %2557 = vrot.lane.b32.xlu0 %v2265, 120
    %v2558 = vpop.permute.xlu0 %2557
    %2559 = vrot.lane.b32.xlu0 %v2363, 120
    %v2560 = vpop.permute.xlu0 %2559
    %2561 = vrot.lane.b32.xlu0 %v2368, 120
    %v2562 = vpop.permute.xlu0 %2561
    %v2563 = vsel %vm206, %v2558, 0
    %v2565 = vsel %vm206, %v2560, 0
    %v2567 = vsel %vm206, %v2562, 0
    %2569 = vmatprep.subr.mxu0 0.0
    %2570 = vmatpush1.xpose.msra.mxu0 %v2565
    %2571 = vmatprep.subr.mxu0 0.0
    %2572 = vmatpush1.xpose.msra.mxu0 %v2567
    %2573 = vmatprep.subr.mxu0 0.0
    %2574 = vmatpush1.xpose.msra.mxu0 0.0
    %2575 = vmatprep.subr.mxu0 0.0
    %2576 = vmatpush1.xpose.msra.mxu0 0.0
    %2577 = vmatprep.subr.mxu0 0.0
    %2578 = vmatpush1.xpose.msra.mxu0 0.0
    %2579 = vmatprep.subr.mxu0 0.0
    %2580 = vmatpush1.xpose.msra.mxu0 0.0
    %2581 = vmatprep.subr.mxu0 0.0
    %2582 = vmatpush1.xpose.msra.mxu0 0.0
    %2583 = vmatprep.subr.mxu0 0.0
    %2584 = vmatpush1.xpose.msra.mxu0 0.0
    %2585 = vmatprep.subr.mxu0 0.0
    %2586 = vmatpush1.xpose.msra.mxu0 0.0
    %2587 = vmatprep.subr.mxu0 0.0
    %2588 = vmatpush1.xpose.msra.mxu0 0.0
    %2589 = vmatprep.subr.mxu0 0.0
    %2590 = vmatpush1.xpose.msra.mxu0 0.0
    %2591 = vmatprep.subr.mxu0 0.0
    %2592 = vmatpush1.xpose.msra.mxu0 0.0
    %2593 = vmatprep.subr.mxu0 0.0
    %2594 = vmatpush1.xpose.msra.mxu0 0.0
    %2595 = vmatprep.subr.mxu0 0.0
    %2596 = vmatpush1.xpose.msra.mxu0 0.0
    %2597 = vmatprep.subr.mxu0 0.0
    %2598 = vmatpush1.xpose.msra.mxu0 0.0
    %2599 = vmatprep.subr.mxu0 0.0
    %2600 = vmatpush1.xpose.msra.mxu0 0.0
    %2601 = vmatprep.subr.mxu0 0.0
    %2602 = vmatpush1.xpose.msra.mxu0 0.0
    %2603 = vmatprep.subr.mxu0 0.0
    %2604 = vmatpush1.xpose.msra.mxu0 0.0
    %2605 = vmatprep.subr.mxu0 0.0
    %2606 = vmatpush1.xpose.msra.mxu0 0.0
    %2607 = vmatprep.subr.mxu0 0.0
    %2608 = vmatpush1.xpose.msra.mxu0 0.0
    %2609 = vmatprep.subr.mxu0 0.0
    %2610 = vmatpush1.xpose.msra.mxu0 0.0
    %2611 = vmatprep.subr.mxu0 0.0
    %2612 = vmatpush1.xpose.msra.mxu0 0.0
    %2613 = vmatprep.subr.mxu0 0.0
    %2614 = vmatpush1.xpose.msra.mxu0 0.0
    %2615 = vmatprep.subr.mxu0 0.0
    %2616 = vmatpush1.xpose.msra.mxu0 0.0
    %2617 = vmatprep.subr.mxu0 0.0
    %2618 = vmatpush1.xpose.msra.mxu0 0.0
    %2619 = vmatprep.subr.mxu0 0.0
    %2620 = vmatpush1.xpose.msra.mxu0 0.0
    %2621 = vmatprep.subr.mxu0 0.0
    %2622 = vmatpush1.xpose.msra.mxu0 0.0
    %2623 = vmatprep.subr.mxu0 0.0
    %2624 = vmatpush1.xpose.msra.mxu0 0.0
    %2625 = vmatprep.subr.mxu0 0.0
    %2626 = vmatpush1.xpose.msra.mxu0 0.0
    %2627 = vmatprep.subr.mxu0 0.0
    %2628 = vmatpush1.xpose.msra.mxu0 0.0
    %2629 = vmatprep.subr.mxu0 0.0
    %2630 = vmatpush1.xpose.msra.mxu0 0.0
    %2631 = vmatprep.subr.mxu0 0.0
    %2632 = vmatpush1.xpose.msra.mxu0 0.0
    %2633 = vmatprep.mubr.f32.mxu0 0.0
    %2634 = vmatmul.mubr.f32.gmra.mrb[0].mxu0 %v2563
    %v2635 = vpop.f32.mrb[0].mxu0
    %v2636 = vadd.f32 0.0, %v2635
    %v2637 = vpop.f32.mrb[0].mxu0
    %2638 = vdwg.mxu0
    %v2639 = vmul.f32 %v2636, 0.35355338
    %v2640 = vsel %vm2466, %v2639, -inf
    %2641 = vmax.xlane.f32.xlu0 %v2640
    %v2642 = vpop.xlane.xlu0 %2641
    %v2643 = vsub.f32 %v2639, %v2642
    %v2644 = vmul.f32 %v2643, 1.442695
    %v2645 = vpow.pop %v2644
    %v2646 = vsel %vm2466, %v2645, 0.0
    %2647 = vadd.xlane.f32.xlu0 %v2646
    %v2648 = vpop.xlane.xlu0 %2647
    %v2649 = vrcp.pop %v2648
    %v2650 = vmul.f32 %v2645, %v2649
    %2651 = vrot.lane.b32.xlu0 %v2363, 88
    %v2652 = vpop.permute.xlu0 %2651
    %2653 = vrot.lane.b32.xlu0 %v2368, 88
    %v2654 = vpop.permute.xlu0 %2653
    %v2658 = vsel %vm2466, %v2650, 0
    %2660 = vmatprep.subr.mxu0 0.0
    %2661 = vmatpush1.msra.mxu0 %v2652
    %2662 = vmatprep.subr.mxu0 0.0
    %2663 = vmatpush1.msra.mxu0 %v2654
    %2664 = vmatprep.subr.mxu0 0.0
    %2665 = vmatpush1.msra.mxu0 0.0
    %2666 = vmatprep.subr.mxu0 0.0
    %2667 = vmatpush1.msra.mxu0 0.0
    %2668 = vmatprep.subr.mxu0 0.0
    %2669 = vmatpush1.msra.mxu0 0.0
    %2670 = vmatprep.subr.mxu0 0.0
    %2671 = vmatpush1.msra.mxu0 0.0
    %2672 = vmatprep.subr.mxu0 0.0
    %2673 = vmatpush1.msra.mxu0 0.0
    %2674 = vmatprep.subr.mxu0 0.0
    %2675 = vmatpush1.msra.mxu0 0.0
    %2676 = vmatprep.subr.mxu0 0.0
    %2677 = vmatpush1.msra.mxu0 0.0
    %2678 = vmatprep.subr.mxu0 0.0
    %2679 = vmatpush1.msra.mxu0 0.0
    %2680 = vmatprep.subr.mxu0 0.0
    %2681 = vmatpush1.msra.mxu0 0.0
    %2682 = vmatprep.subr.mxu0 0.0
    %2683 = vmatpush1.msra.mxu0 0.0
    %2684 = vmatprep.subr.mxu0 0.0
    %2685 = vmatpush1.msra.mxu0 0.0
    %2686 = vmatprep.subr.mxu0 0.0
    %2687 = vmatpush1.msra.mxu0 0.0
    %2688 = vmatprep.subr.mxu0 0.0
    %2689 = vmatpush1.msra.mxu0 0.0
    %2690 = vmatprep.subr.mxu0 0.0
    %2691 = vmatpush1.msra.mxu0 0.0
    %2692 = vmatprep.subr.mxu0 0.0
    %2693 = vmatpush1.msra.mxu0 0.0
    %2694 = vmatprep.subr.mxu0 0.0
    %2695 = vmatpush1.msra.mxu0 0.0
    %2696 = vmatprep.subr.mxu0 0.0
    %2697 = vmatpush1.msra.mxu0 0.0
    %2698 = vmatprep.subr.mxu0 0.0
    %2699 = vmatpush1.msra.mxu0 0.0
    %2700 = vmatprep.subr.mxu0 0.0
    %2701 = vmatpush1.msra.mxu0 0.0
    %2702 = vmatprep.subr.mxu0 0.0
    %2703 = vmatpush1.msra.mxu0 0.0
    %2704 = vmatprep.subr.mxu0 0.0
    %2705 = vmatpush1.msra.mxu0 0.0
    %2706 = vmatprep.subr.mxu0 0.0
    %2707 = vmatpush1.msra.mxu0 0.0
    %2708 = vmatprep.subr.mxu0 0.0
    %2709 = vmatpush1.msra.mxu0 0.0
    %2710 = vmatprep.subr.mxu0 0.0
    %2711 = vmatpush1.msra.mxu0 0.0
    %2712 = vmatprep.subr.mxu0 0.0
    %2713 = vmatpush1.msra.mxu0 0.0
    %2714 = vmatprep.subr.mxu0 0.0
    %2715 = vmatpush1.msra.mxu0 0.0
    %2716 = vmatprep.subr.mxu0 0.0
    %2717 = vmatpush1.msra.mxu0 0.0
    %2718 = vmatprep.subr.mxu0 0.0
    %2719 = vmatpush1.msra.mxu0 0.0
    %2720 = vmatprep.subr.mxu0 0.0
    %2721 = vmatpush1.msra.mxu0 0.0
    %2722 = vmatprep.subr.mxu0 0.0
    %2723 = vmatpush1.msra.mxu0 0.0
    %2724 = vmatprep.mubr.f32.mxu0 0.0
    %2725 = vmatmul.mubr.f32.gmra.mrb[0].mxu0 %v2658
    %v2726 = vpop.f32.mrb[0].mxu0
    %v2727 = vadd.f32 0.0, %v2726
    %v2728 = vpop.f32.mrb[0].mxu0
    %2729 = vdwg.mxu0
    %v2731 = vsel %vm206, %v2727, 0
    %2733 = vmatprep.subr.mxu0 0.0
    %2734 = vmatpush1.msra.mxu0 %v2382
    %2735 = vmatprep.subr.mxu0 0.0
    %2736 = vmatpush1.msra.mxu0 0.0
    %2737 = vmatprep.subr.mxu0 0.0
    %2738 = vmatpush1.msra.mxu0 0.0
    %2739 = vmatprep.subr.mxu0 0.0
    %2740 = vmatpush1.msra.mxu0 0.0
    %2741 = vmatprep.subr.mxu0 0.0
    %2742 = vmatpush1.msra.mxu0 0.0
    %2743 = vmatprep.subr.mxu0 0.0
    %2744 = vmatpush1.msra.mxu0 0.0
    %2745 = vmatprep.subr.mxu0 0.0
    %2746 = vmatpush1.msra.mxu0 0.0
    %2747 = vmatprep.subr.mxu0 0.0
    %2748 = vmatpush1.msra.mxu0 0.0
    %2749 = vmatprep.subr.mxu0 0.0
    %2750 = vmatpush1.msra.mxu0 0.0
    %2751 = vmatprep.subr.mxu0 0.0
    %2752 = vmatpush1.msra.mxu0 0.0
    %2753 = vmatprep.subr.mxu0 0.0
    %2754 = vmatpush1.msra.mxu0 0.0
    %2755 = vmatprep.subr.mxu0 0.0
    %2756 = vmatpush1.msra.mxu0 0.0
    %2757 = vmatprep.subr.mxu0 0.0
    %2758 = vmatpush1.msra.mxu0 0.0
    %2759 = vmatprep.subr.mxu0 0.0
    %2760 = vmatpush1.msra.mxu0 0.0
    %2761 = vmatprep.subr.mxu0 0.0
    %2762 = vmatpush1.msra.mxu0 0.0
    %2763 = vmatprep.subr.mxu0 0.0
    %2764 = vmatpush1.msra.mxu0 0.0
    %2765 = vmatprep.subr.mxu0 0.0
    %2766 = vmatpush1.msra.mxu0 0.0
    %2767 = vmatprep.subr.mxu0 0.0
    %2768 = vmatpush1.msra.mxu0 0.0
    %2769 = vmatprep.subr.mxu0 0.0
    %2770 = vmatpush1.msra.mxu0 0.0
    %2771 = vmatprep.subr.mxu0 0.0
    %2772 = vmatpush1.msra.mxu0 0.0
    %2773 = vmatprep.subr.mxu0 0.0
    %2774 = vmatpush1.msra.mxu0 0.0
    %2775 = vmatprep.subr.mxu0 0.0
    %2776 = vmatpush1.msra.mxu0 0.0
    %2777 = vmatprep.subr.mxu0 0.0
    %2778 = vmatpush1.msra.mxu0 0.0
    %2779 = vmatprep.subr.mxu0 0.0
    %2780 = vmatpush1.msra.mxu0 0.0
    %2781 = vmatprep.subr.mxu0 0.0
    %2782 = vmatpush1.msra.mxu0 0.0
    %2783 = vmatprep.subr.mxu0 0.0
    %2784 = vmatpush1.msra.mxu0 0.0
    %2785 = vmatprep.subr.mxu0 0.0
    %2786 = vmatpush1.msra.mxu0 0.0
    %2787 = vmatprep.subr.mxu0 0.0
    %2788 = vmatpush1.msra.mxu0 0.0
    %2789 = vmatprep.subr.mxu0 0.0
    %2790 = vmatpush1.msra.mxu0 0.0
    %2791 = vmatprep.subr.mxu0 0.0
    %2792 = vmatpush1.msra.mxu0 0.0
    %2793 = vmatprep.subr.mxu0 0.0
    %2794 = vmatpush1.msra.mxu0 0.0
    %2795 = vmatprep.subr.mxu0 0.0
    %2796 = vmatpush1.msra.mxu0 0.0
    %2797 = vmatprep.mubr.f32.mxu0 0.0
    %2798 = vmatmul.mubr.f32.gmra.mrb[0].mxu0 %v2731
    %v2799 = vpop.f32.mrb[0].mxu0
    %v2800 = vadd.f32 0.0, %v2799
    %v2801 = vpop.f32.mrb[0].mxu0
    %2802 = vdwg.mxu0
    %v2804 = vsel %vm206, %v2554, 0
    %2806 = vmatprep.subr.mxu0 0.0
    %2807 = vmatpush1.msra.mxu0 %v2381
    %2808 = vmatprep.subr.mxu0 0.0
    %2809 = vmatpush1.msra.mxu0 0.0
    %2810 = vmatprep.subr.mxu0 0.0
    %2811 = vmatpush1.msra.mxu0 0.0
    %2812 = vmatprep.subr.mxu0 0.0
    %2813 = vmatpush1.msra.mxu0 0.0
    %2814 = vmatprep.subr.mxu0 0.0
    %2815 = vmatpush1.msra.mxu0 0.0
    %2816 = vmatprep.subr.mxu0 0.0
    %2817 = vmatpush1.msra.mxu0 0.0
    %2818 = vmatprep.subr.mxu0 0.0
    %2819 = vmatpush1.msra.mxu0 0.0
    %2820 = vmatprep.subr.mxu0 0.0
    %2821 = vmatpush1.msra.mxu0 0.0
    %2822 = vmatprep.subr.mxu0 0.0
    %2823 = vmatpush1.msra.mxu0 0.0
    %2824 = vmatprep.subr.mxu0 0.0
    %2825 = vmatpush1.msra.mxu0 0.0
    %2826 = vmatprep.subr.mxu0 0.0
    %2827 = vmatpush1.msra.mxu0 0.0
    %2828 = vmatprep.subr.mxu0 0.0
    %2829 = vmatpush1.msra.mxu0 0.0
    %2830 = vmatprep.subr.mxu0 0.0
    %2831 = vmatpush1.msra.mxu0 0.0
    %2832 = vmatprep.subr.mxu0 0.0
    %2833 = vmatpush1.msra.mxu0 0.0
    %2834 = vmatprep.subr.mxu0 0.0
    %2835 = vmatpush1.msra.mxu0 0.0
    %2836 = vmatprep.subr.mxu0 0.0
    %2837 = vmatpush1.msra.mxu0 0.0
    %2838 = vmatprep.subr.mxu0 0.0
    %2839 = vmatpush1.msra.mxu0 0.0
    %2840 = vmatprep.subr.mxu0 0.0
    %2841 = vmatpush1.msra.mxu0 0.0
    %2842 = vmatprep.subr.mxu0 0.0
    %2843 = vmatpush1.msra.mxu0 0.0
    %2844 = vmatprep.subr.mxu0 0.0
    %2845 = vmatpush1.msra.mxu0 0.0
    %2846 = vmatprep.subr.mxu0 0.0
    %2847 = vmatpush1.msra.mxu0 0.0
    %2848 = vmatprep.subr.mxu0 0.0
    %2849 = vmatpush1.msra.mxu0 0.0
    %2850 = vmatprep.subr.mxu0 0.0
    %2851 = vmatpush1.msra.mxu0 0.0
    %2852 = vmatprep.subr.mxu0 0.0
    %2853 = vmatpush1.msra.mxu0 0.0
    %2854 = vmatprep.subr.mxu0 0.0
    %2855 = vmatpush1.msra.mxu0 0.0
    %2856 = vmatprep.subr.mxu0 0.0
    %2857 = vmatpush1.msra.mxu0 0.0
    %2858 = vmatprep.subr.mxu0 0.0
    %2859 = vmatpush1.msra.mxu0 0.0
    %2860 = vmatprep.subr.mxu0 0.0
    %2861 = vmatpush1.msra.mxu0 0.0
    %2862 = vmatprep.subr.mxu0 0.0
    %2863 = vmatpush1.msra.mxu0 0.0
    %2864 = vmatprep.subr.mxu0 0.0
    %2865 = vmatpush1.msra.mxu0 0.0
    %2866 = vmatprep.subr.mxu0 0.0
    %2867 = vmatpush1.msra.mxu0 0.0
    %2868 = vmatprep.subr.mxu0 0.0
    %2869 = vmatpush1.msra.mxu0 0.0
    %2870 = vmatprep.mubr.f32.mxu0 0.0
    %2871 = vmatmul.mubr.f32.gmra.mrb[0].mxu0 %v2804
    %v2872 = vpop.f32.mrb[0].mxu0
    %v2873 = vadd.f32 %v2800, %v2872
    %v2874 = vpop.f32.mrb[0].mxu0
    %2875 = vdwg.mxu0
    %2876 = vrot.lane.b32.xlu0 %v2265, 112
    %v2877 = vpop.permute.xlu0 %2876
    %2878 = vrot.lane.b32.xlu0 %v2363, 112
    %v2879 = vpop.permute.xlu0 %2878
    %2880 = vrot.lane.b32.xlu0 %v2368, 112
    %v2881 = vpop.permute.xlu0 %2880
    %v2882 = vsel %vm206, %v2877, 0
    %v2884 = vsel %vm206, %v2879, 0
    %v2886 = vsel %vm206, %v2881, 0
    %2888 = vmatprep.subr.mxu0 0.0
    %2889 = vmatpush1.xpose.msra.mxu0 %v2884
    %2890 = vmatprep.subr.mxu0 0.0
    %2891 = vmatpush1.xpose.msra.mxu0 %v2886
    %2892 = vmatprep.subr.mxu0 0.0
    %2893 = vmatpush1.xpose.msra.mxu0 0.0
    %2894 = vmatprep.subr.mxu0 0.0
    %2895 = vmatpush1.xpose.msra.mxu0 0.0
    %2896 = vmatprep.subr.mxu0 0.0
    %2897 = vmatpush1.xpose.msra.mxu0 0.0
    %2898 = vmatprep.subr.mxu0 0.0
    %2899 = vmatpush1.xpose.msra.mxu0 0.0
    %2900 = vmatprep.subr.mxu0 0.0
    %2901 = vmatpush1.xpose.msra.mxu0 0.0
    %2902 = vmatprep.subr.mxu0 0.0
    %2903 = vmatpush1.xpose.msra.mxu0 0.0
    %2904 = vmatprep.subr.mxu0 0.0
    %2905 = vmatpush1.xpose.msra.mxu0 0.0
    %2906 = vmatprep.subr.mxu0 0.0
    %2907 = vmatpush1.xpose.msra.mxu0 0.0
    %2908 = vmatprep.subr.mxu0 0.0
    %2909 = vmatpush1.xpose.msra.mxu0 0.0
    %2910 = vmatprep.subr.mxu0 0.0
    %2911 = vmatpush1.xpose.msra.mxu0 0.0
    %2912 = vmatprep.subr.mxu0 0.0
    %2913 = vmatpush1.xpose.msra.mxu0 0.0
    %2914 = vmatprep.subr.mxu0 0.0
    %2915 = vmatpush1.xpose.msra.mxu0 0.0
    %2916 = vmatprep.subr.mxu0 0.0
    %2917 = vmatpush1.xpose.msra.mxu0 0.0
    %2918 = vmatprep.subr.mxu0 0.0
    %2919 = vmatpush1.xpose.msra.mxu0 0.0
    %2920 = vmatprep.subr.mxu0 0.0
    %2921 = vmatpush1.xpose.msra.mxu0 0.0
    %2922 = vmatprep.subr.mxu0 0.0
    %2923 = vmatpush1.xpose.msra.mxu0 0.0
    %2924 = vmatprep.subr.mxu0 0.0
    %2925 = vmatpush1.xpose.msra.mxu0 0.0
    %2926 = vmatprep.subr.mxu0 0.0
    %2927 = vmatpush1.xpose.msra.mxu0 0.0
    %2928 = vmatprep.subr.mxu0 0.0
    %2929 = vmatpush1.xpose.msra.mxu0 0.0
    %2930 = vmatprep.subr.mxu0 0.0
    %2931 = vmatpush1.xpose.msra.mxu0 0.0
    %2932 = vmatprep.subr.mxu0 0.0
    %2933 = vmatpush1.xpose.msra.mxu0 0.0
    %2934 = vmatprep.subr.mxu0 0.0
    %2935 = vmatpush1.xpose.msra.mxu0 0.0
    %2936 = vmatprep.subr.mxu0 0.0
    %2937 = vmatpush1.xpose.msra.mxu0 0.0
    %2938 = vmatprep.subr.mxu0 0.0
    %2939 = vmatpush1.xpose.msra.mxu0 0.0
    %2940 = vmatprep.subr.mxu0 0.0
    %2941 = vmatpush1.xpose.msra.mxu0 0.0
    %2942 = vmatprep.subr.mxu0 0.0
    %2943 = vmatpush1.xpose.msra.mxu0 0.0
    %2944 = vmatprep.subr.mxu0 0.0
    %2945 = vmatpush1.xpose.msra.mxu0 0.0
    %2946 = vmatprep.subr.mxu0 0.0
    %2947 = vmatpush1.xpose.msra.mxu0 0.0
    %2948 = vmatprep.subr.mxu0 0.0
    %2949 = vmatpush1.xpose.msra.mxu0 0.0
    %2950 = vmatprep.subr.mxu0 0.0
    %2951 = vmatpush1.xpose.msra.mxu0 0.0
    %2952 = vmatprep.mubr.f32.mxu0 0.0
    %2953 = vmatmul.mubr.f32.gmra.mrb[0].mxu0 %v2882
    %v2954 = vpop.f32.mrb[0].mxu0
    %v2955 = vadd.f32 0.0, %v2954
    %v2956 = vpop.f32.mrb[0].mxu0
    %2957 = vdwg.mxu0
    %v2958 = vmul.f32 %v2955, 0.35355338
    %v2959 = vsel %vm2466, %v2958, -inf
    %2960 = vmax.xlane.f32.xlu0 %v2959
    %v2961 = vpop.xlane.xlu0 %2960
    %v2962 = vsub.f32 %v2958, %v2961
    %v2963 = vmul.f32 %v2962, 1.442695
    %v2964 = vpow.pop %v2963
    %v2965 = vsel %vm2466, %v2964, 0.0
    %2966 = vadd.xlane.f32.xlu0 %v2965
    %v2967 = vpop.xlane.xlu0 %2966
    %v2968 = vrcp.pop %v2967
    %v2969 = vmul.f32 %v2964, %v2968
    %2970 = vrot.lane.b32.xlu0 %v2363, 80
    %v2971 = vpop.permute.xlu0 %2970
    %2972 = vrot.lane.b32.xlu0 %v2368, 80
    %v2973 = vpop.permute.xlu0 %2972
    %v2977 = vsel %vm2466, %v2969, 0
    %2979 = vmatprep.subr.mxu0 0.0
    %2980 = vmatpush1.msra.mxu0 %v2971
    %2981 = vmatprep.subr.mxu0 0.0
    %2982 = vmatpush1.msra.mxu0 %v2973
    %2983 = vmatprep.subr.mxu0 0.0
    %2984 = vmatpush1.msra.mxu0 0.0
    %2985 = vmatprep.subr.mxu0 0.0
    %2986 = vmatpush1.msra.mxu0 0.0
    %2987 = vmatprep.subr.mxu0 0.0
    %2988 = vmatpush1.msra.mxu0 0.0
    %2989 = vmatprep.subr.mxu0 0.0
    %2990 = vmatpush1.msra.mxu0 0.0
    %2991 = vmatprep.subr.mxu0 0.0
    %2992 = vmatpush1.msra.mxu0 0.0
    %2993 = vmatprep.subr.mxu0 0.0
    %2994 = vmatpush1.msra.mxu0 0.0
    %2995 = vmatprep.subr.mxu0 0.0
    %2996 = vmatpush1.msra.mxu0 0.0
    %2997 = vmatprep.subr.mxu0 0.0
    %2998 = vmatpush1.msra.mxu0 0.0
    %2999 = vmatprep.subr.mxu0 0.0
    %3000 = vmatpush1.msra.mxu0 0.0
    %3001 = vmatprep.subr.mxu0 0.0
    %3002 = vmatpush1.msra.mxu0 0.0
    %3003 = vmatprep.subr.mxu0 0.0
    %3004 = vmatpush1.msra.mxu0 0.0
    %3005 = vmatprep.subr.mxu0 0.0
    %3006 = vmatpush1.msra.mxu0 0.0
    %3007 = vmatprep.subr.mxu0 0.0
    %3008 = vmatpush1.msra.mxu0 0.0
    %3009 = vmatprep.subr.mxu0 0.0
    %3010 = vmatpush1.msra.mxu0 0.0
    %3011 = vmatprep.subr.mxu0 0.0
    %3012 = vmatpush1.msra.mxu0 0.0
    %3013 = vmatprep.subr.mxu0 0.0
    %3014 = vmatpush1.msra.mxu0 0.0
    %3015 = vmatprep.subr.mxu0 0.0
    %3016 = vmatpush1.msra.mxu0 0.0
    %3017 = vmatprep.subr.mxu0 0.0
    %3018 = vmatpush1.msra.mxu0 0.0
    %3019 = vmatprep.subr.mxu0 0.0
    %3020 = vmatpush1.msra.mxu0 0.0
    %3021 = vmatprep.subr.mxu0 0.0
    %3022 = vmatpush1.msra.mxu0 0.0
    %3023 = vmatprep.subr.mxu0 0.0
    %3024 = vmatpush1.msra.mxu0 0.0
    %3025 = vmatprep.subr.mxu0 0.0
    %3026 = vmatpush1.msra.mxu0 0.0
    %3027 = vmatprep.subr.mxu0 0.0
    %3028 = vmatpush1.msra.mxu0 0.0
    %3029 = vmatprep.subr.mxu0 0.0
    %3030 = vmatpush1.msra.mxu0 0.0
    %3031 = vmatprep.subr.mxu0 0.0
    %3032 = vmatpush1.msra.mxu0 0.0
    %3033 = vmatprep.subr.mxu0 0.0
    %3034 = vmatpush1.msra.mxu0 0.0
    %3035 = vmatprep.subr.mxu0 0.0
    %3036 = vmatpush1.msra.mxu0 0.0
    %3037 = vmatprep.subr.mxu0 0.0
    %3038 = vmatpush1.msra.mxu0 0.0
    %3039 = vmatprep.subr.mxu0 0.0
    %3040 = vmatpush1.msra.mxu0 0.0
    %3041 = vmatprep.subr.mxu0 0.0
    %3042 = vmatpush1.msra.mxu0 0.0
    %3043 = vmatprep.mubr.f32.mxu0 0.0
    %3044 = vmatmul.mubr.f32.gmra.mrb[0].mxu0 %v2977
    %v3045 = vpop.f32.mrb[0].mxu0
    %v3046 = vadd.f32 0.0, %v3045
    %v3047 = vpop.f32.mrb[0].mxu0
    %3048 = vdwg.mxu0
    %v3050 = vsel %vm206, %v3046, 0
    %3052 = vmatprep.subr.mxu0 0.0
    %3053 = vmatpush1.msra.mxu0 %v2383
    %3054 = vmatprep.subr.mxu0 0.0
    %3055 = vmatpush1.msra.mxu0 0.0
    %3056 = vmatprep.subr.mxu0 0.0
    %3057 = vmatpush1.msra.mxu0 0.0
    %3058 = vmatprep.subr.mxu0 0.0
    %3059 = vmatpush1.msra.mxu0 0.0
    %3060 = vmatprep.subr.mxu0 0.0
    %3061 = vmatpush1.msra.mxu0 0.0
    %3062 = vmatprep.subr.mxu0 0.0
    %3063 = vmatpush1.msra.mxu0 0.0
    %3064 = vmatprep.subr.mxu0 0.0
    %3065 = vmatpush1.msra.mxu0 0.0
    %3066 = vmatprep.subr.mxu0 0.0
    %3067 = vmatpush1.msra.mxu0 0.0
    %3068 = vmatprep.subr.mxu0 0.0
    %3069 = vmatpush1.msra.mxu0 0.0
    %3070 = vmatprep.subr.mxu0 0.0
    %3071 = vmatpush1.msra.mxu0 0.0
    %3072 = vmatprep.subr.mxu0 0.0
    %3073 = vmatpush1.msra.mxu0 0.0
    %3074 = vmatprep.subr.mxu0 0.0
    %3075 = vmatpush1.msra.mxu0 0.0
    %3076 = vmatprep.subr.mxu0 0.0
    %3077 = vmatpush1.msra.mxu0 0.0
    %3078 = vmatprep.subr.mxu0 0.0
    %3079 = vmatpush1.msra.mxu0 0.0
    %3080 = vmatprep.subr.mxu0 0.0
    %3081 = vmatpush1.msra.mxu0 0.0
    %3082 = vmatprep.subr.mxu0 0.0
    %3083 = vmatpush1.msra.mxu0 0.0
    %3084 = vmatprep.subr.mxu0 0.0
    %3085 = vmatpush1.msra.mxu0 0.0
    %3086 = vmatprep.subr.mxu0 0.0
    %3087 = vmatpush1.msra.mxu0 0.0
    %3088 = vmatprep.subr.mxu0 0.0
    %3089 = vmatpush1.msra.mxu0 0.0
    %3090 = vmatprep.subr.mxu0 0.0
    %3091 = vmatpush1.msra.mxu0 0.0
    %3092 = vmatprep.subr.mxu0 0.0
    %3093 = vmatpush1.msra.mxu0 0.0
    %3094 = vmatprep.subr.mxu0 0.0
    %3095 = vmatpush1.msra.mxu0 0.0
    %3096 = vmatprep.subr.mxu0 0.0
    %3097 = vmatpush1.msra.mxu0 0.0
    %3098 = vmatprep.subr.mxu0 0.0
    %3099 = vmatpush1.msra.mxu0 0.0
    %3100 = vmatprep.subr.mxu0 0.0
    %3101 = vmatpush1.msra.mxu0 0.0
    %3102 = vmatprep.subr.mxu0 0.0
    %3103 = vmatpush1.msra.mxu0 0.0
    %3104 = vmatprep.subr.mxu0 0.0
    %3105 = vmatpush1.msra.mxu0 0.0
    %3106 = vmatprep.subr.mxu0 0.0
    %3107 = vmatpush1.msra.mxu0 0.0
    %3108 = vmatprep.subr.mxu0 0.0
    %3109 = vmatpush1.msra.mxu0 0.0
    %3110 = vmatprep.subr.mxu0 0.0
    %3111 = vmatpush1.msra.mxu0 0.0
    %3112 = vmatprep.subr.mxu0 0.0
    %3113 = vmatpush1.msra.mxu0 0.0
    %3114 = vmatprep.subr.mxu0 0.0
    %3115 = vmatpush1.msra.mxu0 0.0
    %3116 = vmatprep.mubr.f32.mxu0 0.0
    %3117 = vmatmul.mubr.f32.gmra.mrb[0].mxu0 %v3050
    %v3118 = vpop.f32.mrb[0].mxu0
    %v3119 = vadd.f32 0.0, %v3118
    %v3120 = vpop.f32.mrb[0].mxu0
    %3121 = vdwg.mxu0
    %v3122 = vadd.f32 %v2873, %v3119
    %3123 = vrot.lane.b32.xlu0 %v2265, 104
    %v3124 = vpop.permute.xlu0 %3123
    %3125 = vrot.lane.b32.xlu0 %v2363, 104
    %v3126 = vpop.permute.xlu0 %3125
    %3127 = vrot.lane.b32.xlu0 %v2368, 104
    %v3128 = vpop.permute.xlu0 %3127
    %v3129 = vsel %vm206, %v3124, 0
    %v3131 = vsel %vm206, %v3126, 0
    %v3133 = vsel %vm206, %v3128, 0
    %3135 = vmatprep.subr.mxu0 0.0
    %3136 = vmatpush1.xpose.msra.mxu0 %v3131
    %3137 = vmatprep.subr.mxu0 0.0
    %3138 = vmatpush1.xpose.msra.mxu0 %v3133
    %3139 = vmatprep.subr.mxu0 0.0
    %3140 = vmatpush1.xpose.msra.mxu0 0.0
    %3141 = vmatprep.subr.mxu0 0.0
    %3142 = vmatpush1.xpose.msra.mxu0 0.0
    %3143 = vmatprep.subr.mxu0 0.0
    %3144 = vmatpush1.xpose.msra.mxu0 0.0
    %3145 = vmatprep.subr.mxu0 0.0
    %3146 = vmatpush1.xpose.msra.mxu0 0.0
    %3147 = vmatprep.subr.mxu0 0.0
    %3148 = vmatpush1.xpose.msra.mxu0 0.0
    %3149 = vmatprep.subr.mxu0 0.0
    %3150 = vmatpush1.xpose.msra.mxu0 0.0
    %3151 = vmatprep.subr.mxu0 0.0
    %3152 = vmatpush1.xpose.msra.mxu0 0.0
    %3153 = vmatprep.subr.mxu0 0.0
    %3154 = vmatpush1.xpose.msra.mxu0 0.0
    %3155 = vmatprep.subr.mxu0 0.0
    %3156 = vmatpush1.xpose.msra.mxu0 0.0
    %3157 = vmatprep.subr.mxu0 0.0
    %3158 = vmatpush1.xpose.msra.mxu0 0.0
    %3159 = vmatprep.subr.mxu0 0.0
    %3160 = vmatpush1.xpose.msra.mxu0 0.0
    %3161 = vmatprep.subr.mxu0 0.0
    %3162 = vmatpush1.xpose.msra.mxu0 0.0
    %3163 = vmatprep.subr.mxu0 0.0
    %3164 = vmatpush1.xpose.msra.mxu0 0.0
    %3165 = vmatprep.subr.mxu0 0.0
    %3166 = vmatpush1.xpose.msra.mxu0 0.0
    %3167 = vmatprep.subr.mxu0 0.0
    %3168 = vmatpush1.xpose.msra.mxu0 0.0
    %3169 = vmatprep.subr.mxu0 0.0
    %3170 = vmatpush1.xpose.msra.mxu0 0.0
    %3171 = vmatprep.subr.mxu0 0.0
    %3172 = vmatpush1.xpose.msra.mxu0 0.0
    %3173 = vmatprep.subr.mxu0 0.0
    %3174 = vmatpush1.xpose.msra.mxu0 0.0
    %3175 = vmatprep.subr.mxu0 0.0
    %3176 = vmatpush1.xpose.msra.mxu0 0.0
    %3177 = vmatprep.subr.mxu0 0.0
    %3178 = vmatpush1.xpose.msra.mxu0 0.0
    %3179 = vmatprep.subr.mxu0 0.0
    %3180 = vmatpush1.xpose.msra.mxu0 0.0
    %3181 = vmatprep.subr.mxu0 0.0
    %3182 = vmatpush1.xpose.msra.mxu0 0.0
    %3183 = vmatprep.subr.mxu0 0.0
    %3184 = vmatpush1.xpose.msra.mxu0 0.0
    %3185 = vmatprep.subr.mxu0 0.0
    %3186 = vmatpush1.xpose.msra.mxu0 0.0
    %3187 = vmatprep.subr.mxu0 0.0
    %3188 = vmatpush1.xpose.msra.mxu0 0.0
    %3189 = vmatprep.subr.mxu0 0.0
    %3190 = vmatpush1.xpose.msra.mxu0 0.0
    %3191 = vmatprep.subr.mxu0 0.0
    %3192 = vmatpush1.xpose.msra.mxu0 0.0
    %3193 = vmatprep.subr.mxu0 0.0
    %3194 = vmatpush1.xpose.msra.mxu0 0.0
    %3195 = vmatprep.subr.mxu0 0.0
    %3196 = vmatpush1.xpose.msra.mxu0 0.0
    %3197 = vmatprep.subr.mxu0 0.0
    %3198 = vmatpush1.xpose.msra.mxu0 0.0
    %3199 = vmatprep.mubr.f32.mxu0 0.0
    %3200 = vmatmul.mubr.f32.gmra.mrb[0].mxu0 %v3129
    %v3201 = vpop.f32.mrb[0].mxu0
    %v3202 = vadd.f32 0.0, %v3201
    %v3203 = vpop.f32.mrb[0].mxu0
    %3204 = vdwg.mxu0
    %v3205 = vmul.f32 %v3202, 0.35355338
    %v3206 = vsel %vm2466, %v3205, -inf
    %3207 = vmax.xlane.f32.xlu0 %v3206
    %v3208 = vpop.xlane.xlu0 %3207
    %v3209 = vsub.f32 %v3205, %v3208
    %v3210 = vmul.f32 %v3209, 1.442695
    %v3211 = vpow.pop %v3210
    %v3212 = vsel %vm2466, %v3211, 0.0
    %3213 = vadd.xlane.f32.xlu0 %v3212
    %v3214 = vpop.xlane.xlu0 %3213
    %v3215 = vrcp.pop %v3214
    %v3216 = vmul.f32 %v3211, %v3215
    %3217 = vrot.lane.b32.xlu0 %v2363, 72
    %v3218 = vpop.permute.xlu0 %3217
    %3219 = vrot.lane.b32.xlu0 %v2368, 72
    %v3220 = vpop.permute.xlu0 %3219
    %v3224 = vsel %vm2466, %v3216, 0
    %3226 = vmatprep.subr.mxu0 0.0
    %3227 = vmatpush1.msra.mxu0 %v3218
    %3228 = vmatprep.subr.mxu0 0.0
    %3229 = vmatpush1.msra.mxu0 %v3220
    %3230 = vmatprep.subr.mxu0 0.0
    %3231 = vmatpush1.msra.mxu0 0.0
    %3232 = vmatprep.subr.mxu0 0.0
    %3233 = vmatpush1.msra.mxu0 0.0
    %3234 = vmatprep.subr.mxu0 0.0
    %3235 = vmatpush1.msra.mxu0 0.0
    %3236 = vmatprep.subr.mxu0 0.0
    %3237 = vmatpush1.msra.mxu0 0.0
    %3238 = vmatprep.subr.mxu0 0.0
    %3239 = vmatpush1.msra.mxu0 0.0
    %3240 = vmatprep.subr.mxu0 0.0
    %3241 = vmatpush1.msra.mxu0 0.0
    %3242 = vmatprep.subr.mxu0 0.0
    %3243 = vmatpush1.msra.mxu0 0.0
    %3244 = vmatprep.subr.mxu0 0.0
    %3245 = vmatpush1.msra.mxu0 0.0
    %3246 = vmatprep.subr.mxu0 0.0
    %3247 = vmatpush1.msra.mxu0 0.0
    %3248 = vmatprep.subr.mxu0 0.0
    %3249 = vmatpush1.msra.mxu0 0.0
    %3250 = vmatprep.subr.mxu0 0.0
    %3251 = vmatpush1.msra.mxu0 0.0
    %3252 = vmatprep.subr.mxu0 0.0
    %3253 = vmatpush1.msra.mxu0 0.0
    %3254 = vmatprep.subr.mxu0 0.0
    %3255 = vmatpush1.msra.mxu0 0.0
    %3256 = vmatprep.subr.mxu0 0.0
    %3257 = vmatpush1.msra.mxu0 0.0
    %3258 = vmatprep.subr.mxu0 0.0
    %3259 = vmatpush1.msra.mxu0 0.0
    %3260 = vmatprep.subr.mxu0 0.0
    %3261 = vmatpush1.msra.mxu0 0.0
    %3262 = vmatprep.subr.mxu0 0.0
    %3263 = vmatpush1.msra.mxu0 0.0
    %3264 = vmatprep.subr.mxu0 0.0
    %3265 = vmatpush1.msra.mxu0 0.0
    %3266 = vmatprep.subr.mxu0 0.0
    %3267 = vmatpush1.msra.mxu0 0.0
    %3268 = vmatprep.subr.mxu0 0.0
    %3269 = vmatpush1.msra.mxu0 0.0
    %3270 = vmatprep.subr.mxu0 0.0
    %3271 = vmatpush1.msra.mxu0 0.0
    %3272 = vmatprep.subr.mxu0 0.0
    %3273 = vmatpush1.msra.mxu0 0.0
    %3274 = vmatprep.subr.mxu0 0.0
    %3275 = vmatpush1.msra.mxu0 0.0
    %3276 = vmatprep.subr.mxu0 0.0
    %3277 = vmatpush1.msra.mxu0 0.0
    %3278 = vmatprep.subr.mxu0 0.0
    %3279 = vmatpush1.msra.mxu0 0.0
    %3280 = vmatprep.subr.mxu0 0.0
    %3281 = vmatpush1.msra.mxu0 0.0
    %3282 = vmatprep.subr.mxu0 0.0
    %3283 = vmatpush1.msra.mxu0 0.0
    %3284 = vmatprep.subr.mxu0 0.0
    %3285 = vmatpush1.msra.mxu0 0.0
    %3286 = vmatprep.subr.mxu0 0.0
    %3287 = vmatpush1.msra.mxu0 0.0
    %3288 = vmatprep.subr.mxu0 0.0
    %3289 = vmatpush1.msra.mxu0 0.0
    %3290 = vmatprep.mubr.f32.mxu0 0.0
    %3291 = vmatmul.mubr.f32.gmra.mrb[0].mxu0 %v3224
    %v3292 = vpop.f32.mrb[0].mxu0
    %v3293 = vadd.f32 0.0, %v3292
    %v3294 = vpop.f32.mrb[0].mxu0
    %3295 = vdwg.mxu0
    %v3297 = vsel %vm206, %v3293, 0
    %3299 = vmatprep.subr.mxu0 0.0
    %3300 = vmatpush1.msra.mxu0 %v2384
    %3301 = vmatprep.subr.mxu0 0.0
    %3302 = vmatpush1.msra.mxu0 0.0
    %3303 = vmatprep.subr.mxu0 0.0
    %3304 = vmatpush1.msra.mxu0 0.0
    %3305 = vmatprep.subr.mxu0 0.0
    %3306 = vmatpush1.msra.mxu0 0.0
    %3307 = vmatprep.subr.mxu0 0.0
    %3308 = vmatpush1.msra.mxu0 0.0
    %3309 = vmatprep.subr.mxu0 0.0
    %3310 = vmatpush1.msra.mxu0 0.0
    %3311 = vmatprep.subr.mxu0 0.0
    %3312 = vmatpush1.msra.mxu0 0.0
    %3313 = vmatprep.subr.mxu0 0.0
    %3314 = vmatpush1.msra.mxu0 0.0
    %3315 = vmatprep.subr.mxu0 0.0
    %3316 = vmatpush1.msra.mxu0 0.0
    %3317 = vmatprep.subr.mxu0 0.0
    %3318 = vmatpush1.msra.mxu0 0.0
    %3319 = vmatprep.subr.mxu0 0.0
    %3320 = vmatpush1.msra.mxu0 0.0
    %3321 = vmatprep.subr.mxu0 0.0
    %3322 = vmatpush1.msra.mxu0 0.0
    %3323 = vmatprep.subr.mxu0 0.0
    %3324 = vmatpush1.msra.mxu0 0.0
    %3325 = vmatprep.subr.mxu0 0.0
    %3326 = vmatpush1.msra.mxu0 0.0
    %3327 = vmatprep.subr.mxu0 0.0
    %3328 = vmatpush1.msra.mxu0 0.0
    %3329 = vmatprep.subr.mxu0 0.0
    %3330 = vmatpush1.msra.mxu0 0.0
    %3331 = vmatprep.subr.mxu0 0.0
    %3332 = vmatpush1.msra.mxu0 0.0
    %3333 = vmatprep.subr.mxu0 0.0
    %3334 = vmatpush1.msra.mxu0 0.0
    %3335 = vmatprep.subr.mxu0 0.0
    %3336 = vmatpush1.msra.mxu0 0.0
    %3337 = vmatprep.subr.mxu0 0.0
    %3338 = vmatpush1.msra.mxu0 0.0
    %3339 = vmatprep.subr.mxu0 0.0
    %3340 = vmatpush1.msra.mxu0 0.0
    %3341 = vmatprep.subr.mxu0 0.0
    %3342 = vmatpush1.msra.mxu0 0.0
    %3343 = vmatprep.subr.mxu0 0.0
    %3344 = vmatpush1.msra.mxu0 0.0
    %3345 = vmatprep.subr.mxu0 0.0
    %3346 = vmatpush1.msra.mxu0 0.0
    %3347 = vmatprep.subr.mxu0 0.0
    %3348 = vmatpush1.msra.mxu0 0.0
    %3349 = vmatprep.subr.mxu0 0.0
    %3350 = vmatpush1.msra.mxu0 0.0
    %3351 = vmatprep.subr.mxu0 0.0
    %3352 = vmatpush1.msra.mxu0 0.0
    %3353 = vmatprep.subr.mxu0 0.0
    %3354 = vmatpush1.msra.mxu0 0.0
    %3355 = vmatprep.subr.mxu0 0.0
    %3356 = vmatpush1.msra.mxu0 0.0
    %3357 = vmatprep.subr.mxu0 0.0
    %3358 = vmatpush1.msra.mxu0 0.0
    %3359 = vmatprep.subr.mxu0 0.0
    %3360 = vmatpush1.msra.mxu0 0.0
    %3361 = vmatprep.subr.mxu0 0.0
    %3362 = vmatpush1.msra.mxu0 0.0
    %3363 = vmatprep.mubr.f32.mxu0 0.0
    %3364 = vmatmul.mubr.f32.gmra.mrb[0].mxu0 %v3297
    %v3365 = vpop.f32.mrb[0].mxu0
    %v3366 = vadd.f32 0.0, %v3365
    %v3367 = vpop.f32.mrb[0].mxu0
    %3368 = vdwg.mxu0
    %v3369 = vadd.f32 %v3122, %v3366
    %v3371 = vsel %vm206, %v2270, 0
    %v3374 = vsel %vm206, %v2373, 0
    %v3377 = vsel %vm206, %v2378, 0
    %3379 = vmatprep.subr.mxu0 0.0
    %3380 = vmatpush1.xpose.msra.mxu0 %v3374
    %3381 = vmatprep.subr.mxu0 0.0
    %3382 = vmatpush1.xpose.msra.mxu0 %v3377
    %3383 = vmatprep.subr.mxu0 0.0
    %3384 = vmatpush1.xpose.msra.mxu0 0.0
    %3385 = vmatprep.subr.mxu0 0.0
    %3386 = vmatpush1.xpose.msra.mxu0 0.0
    %3387 = vmatprep.subr.mxu0 0.0
    %3388 = vmatpush1.xpose.msra.mxu0 0.0
    %3389 = vmatprep.subr.mxu0 0.0
    %3390 = vmatpush1.xpose.msra.mxu0 0.0
    %3391 = vmatprep.subr.mxu0 0.0
    %3392 = vmatpush1.xpose.msra.mxu0 0.0
    %3393 = vmatprep.subr.mxu0 0.0
    %3394 = vmatpush1.xpose.msra.mxu0 0.0
    %3395 = vmatprep.subr.mxu0 0.0
    %3396 = vmatpush1.xpose.msra.mxu0 0.0
    %3397 = vmatprep.subr.mxu0 0.0
    %3398 = vmatpush1.xpose.msra.mxu0 0.0
    %3399 = vmatprep.subr.mxu0 0.0
    %3400 = vmatpush1.xpose.msra.mxu0 0.0
    %3401 = vmatprep.subr.mxu0 0.0
    %3402 = vmatpush1.xpose.msra.mxu0 0.0
    %3403 = vmatprep.subr.mxu0 0.0
    %3404 = vmatpush1.xpose.msra.mxu0 0.0
    %3405 = vmatprep.subr.mxu0 0.0
    %3406 = vmatpush1.xpose.msra.mxu0 0.0
    %3407 = vmatprep.subr.mxu0 0.0
    %3408 = vmatpush1.xpose.msra.mxu0 0.0
    %3409 = vmatprep.subr.mxu0 0.0
    %3410 = vmatpush1.xpose.msra.mxu0 0.0
    %3411 = vmatprep.subr.mxu0 0.0
    %3412 = vmatpush1.xpose.msra.mxu0 0.0
    %3413 = vmatprep.subr.mxu0 0.0
    %3414 = vmatpush1.xpose.msra.mxu0 0.0
    %3415 = vmatprep.subr.mxu0 0.0
    %3416 = vmatpush1.xpose.msra.mxu0 0.0
    %3417 = vmatprep.subr.mxu0 0.0
    %3418 = vmatpush1.xpose.msra.mxu0 0.0
    %3419 = vmatprep.subr.mxu0 0.0
    %3420 = vmatpush1.xpose.msra.mxu0 0.0
    %3421 = vmatprep.subr.mxu0 0.0
    %3422 = vmatpush1.xpose.msra.mxu0 0.0
    %3423 = vmatprep.subr.mxu0 0.0
    %3424 = vmatpush1.xpose.msra.mxu0 0.0
    %3425 = vmatprep.subr.mxu0 0.0
    %3426 = vmatpush1.xpose.msra.mxu0 0.0
    %3427 = vmatprep.subr.mxu0 0.0
    %3428 = vmatpush1.xpose.msra.mxu0 0.0
    %3429 = vmatprep.subr.mxu0 0.0
    %3430 = vmatpush1.xpose.msra.mxu0 0.0
    %3431 = vmatprep.subr.mxu0 0.0
    %3432 = vmatpush1.xpose.msra.mxu0 0.0
    %3433 = vmatprep.subr.mxu0 0.0
    %3434 = vmatpush1.xpose.msra.mxu0 0.0
    %3435 = vmatprep.subr.mxu0 0.0
    %3436 = vmatpush1.xpose.msra.mxu0 0.0
    %3437 = vmatprep.subr.mxu0 0.0
    %3438 = vmatpush1.xpose.msra.mxu0 0.0
    %3439 = vmatprep.subr.mxu0 0.0
    %3440 = vmatpush1.xpose.msra.mxu0 0.0
    %3441 = vmatprep.subr.mxu0 0.0
    %3442 = vmatpush1.xpose.msra.mxu0 0.0
    %3443 = vmatprep.mubr.f32.mxu0 0.0
    %3444 = vmatmul.mubr.f32.gmra.mrb[0].mxu0 %v3371
    %v3445 = vpop.f32.mrb[0].mxu0
    %v3446 = vadd.f32 0.0, %v3445
    %v3447 = vpop.f32.mrb[0].mxu0
    %3448 = vdwg.mxu0
    %v3449 = vmul.f32 %v3446, 0.35355338
    %v3450 = vsel %vm2466, %v3449, -inf
    %3451 = vmax.xlane.f32.xlu0 %v3450
    %v3452 = vpop.xlane.xlu0 %3451
    %v3453 = vsub.f32 %v3449, %v3452
    %v3454 = vmul.f32 %v3453, 1.442695
    %v3455 = vpow.pop %v3454
    %v3456 = vsel %vm2466, %v3455, 0.0
    %3457 = vadd.xlane.f32.xlu0 %v3456
    %v3458 = vpop.xlane.xlu0 %3457
    %v3459 = vrcp.pop %v3458
    %v3460 = vmul.f32 %v3455, %v3459
    %3461 = vrot.lane.b32.xlu0 %v2373, 96
    %v3462 = vpop.permute.xlu0 %3461
    %3463 = vrot.lane.b32.xlu0 %v2378, 96
    %v3464 = vpop.permute.xlu0 %3463
    %v3468 = vsel %vm2466, %v3460, 0
    %3470 = vmatprep.subr.mxu0 0.0
    %3471 = vmatpush1.msra.mxu0 %v3462
    %3472 = vmatprep.subr.mxu0 0.0
    %3473 = vmatpush1.msra.mxu0 %v3464
    %3474 = vmatprep.subr.mxu0 0.0
    %3475 = vmatpush1.msra.mxu0 0.0
    %3476 = vmatprep.subr.mxu0 0.0
    %3477 = vmatpush1.msra.mxu0 0.0
    %3478 = vmatprep.subr.mxu0 0.0
    %3479 = vmatpush1.msra.mxu0 0.0
    %3480 = vmatprep.subr.mxu0 0.0
    %3481 = vmatpush1.msra.mxu0 0.0
    %3482 = vmatprep.subr.mxu0 0.0
    %3483 = vmatpush1.msra.mxu0 0.0
    %3484 = vmatprep.subr.mxu0 0.0
    %3485 = vmatpush1.msra.mxu0 0.0
    %3486 = vmatprep.subr.mxu0 0.0
    %3487 = vmatpush1.msra.mxu0 0.0
    %3488 = vmatprep.subr.mxu0 0.0
    %3489 = vmatpush1.msra.mxu0 0.0
    %3490 = vmatprep.subr.mxu0 0.0
    %3491 = vmatpush1.msra.mxu0 0.0
    %3492 = vmatprep.subr.mxu0 0.0
    %3493 = vmatpush1.msra.mxu0 0.0
    %3494 = vmatprep.subr.mxu0 0.0
    %3495 = vmatpush1.msra.mxu0 0.0
    %3496 = vmatprep.subr.mxu0 0.0
    %3497 = vmatpush1.msra.mxu0 0.0
    %3498 = vmatprep.subr.mxu0 0.0
    %3499 = vmatpush1.msra.mxu0 0.0
    %3500 = vmatprep.subr.mxu0 0.0
    %3501 = vmatpush1.msra.mxu0 0.0
    %3502 = vmatprep.subr.mxu0 0.0
    %3503 = vmatpush1.msra.mxu0 0.0
    %3504 = vmatprep.subr.mxu0 0.0
    %3505 = vmatpush1.msra.mxu0 0.0
    %3506 = vmatprep.subr.mxu0 0.0
    %3507 = vmatpush1.msra.mxu0 0.0
    %3508 = vmatprep.subr.mxu0 0.0
    %3509 = vmatpush1.msra.mxu0 0.0
    %3510 = vmatprep.subr.mxu0 0.0
    %3511 = vmatpush1.msra.mxu0 0.0
    %3512 = vmatprep.subr.mxu0 0.0
    %3513 = vmatpush1.msra.mxu0 0.0
    %3514 = vmatprep.subr.mxu0 0.0
    %3515 = vmatpush1.msra.mxu0 0.0
    %3516 = vmatprep.subr.mxu0 0.0
    %3517 = vmatpush1.msra.mxu0 0.0
    %3518 = vmatprep.subr.mxu0 0.0
    %3519 = vmatpush1.msra.mxu0 0.0
    %3520 = vmatprep.subr.mxu0 0.0
    %3521 = vmatpush1.msra.mxu0 0.0
    %3522 = vmatprep.subr.mxu0 0.0
    %3523 = vmatpush1.msra.mxu0 0.0
    %3524 = vmatprep.subr.mxu0 0.0
    %3525 = vmatpush1.msra.mxu0 0.0
    %3526 = vmatprep.subr.mxu0 0.0
    %3527 = vmatpush1.msra.mxu0 0.0
    %3528 = vmatprep.subr.mxu0 0.0
    %3529 = vmatpush1.msra.mxu0 0.0
    %3530 = vmatprep.subr.mxu0 0.0
    %3531 = vmatpush1.msra.mxu0 0.0
    %3532 = vmatprep.subr.mxu0 0.0
    %3533 = vmatpush1.msra.mxu0 0.0
    %3534 = vmatprep.mubr.f32.mxu0 0.0
    %3535 = vmatmul.mubr.f32.gmra.mrb[0].mxu0 %v3468
    %v3536 = vpop.f32.mrb[0].mxu0
    %v3537 = vadd.f32 0.0, %v3536
    %v3538 = vpop.f32.mrb[0].mxu0
    %3539 = vdwg.mxu0
    %3540 = vrot.lane.b32.xlu0 %v2270, 120
    %v3541 = vpop.permute.xlu0 %3540
    %3542 = vrot.lane.b32.xlu0 %v2373, 120
    %v3543 = vpop.permute.xlu0 %3542
    %3544 = vrot.lane.b32.xlu0 %v2378, 120
    %v3545 = vpop.permute.xlu0 %3544
    %v3546 = vsel %vm206, %v3541, 0
    %v3548 = vsel %vm206, %v3543, 0
    %v3550 = vsel %vm206, %v3545, 0
    %3552 = vmatprep.subr.mxu0 0.0
    %3553 = vmatpush1.xpose.msra.mxu0 %v3548
    %3554 = vmatprep.subr.mxu0 0.0
    %3555 = vmatpush1.xpose.msra.mxu0 %v3550
    %3556 = vmatprep.subr.mxu0 0.0
    %3557 = vmatpush1.xpose.msra.mxu0 0.0
    %3558 = vmatprep.subr.mxu0 0.0
    %3559 = vmatpush1.xpose.msra.mxu0 0.0
    %3560 = vmatprep.subr.mxu0 0.0
    %3561 = vmatpush1.xpose.msra.mxu0 0.0
    %3562 = vmatprep.subr.mxu0 0.0
    %3563 = vmatpush1.xpose.msra.mxu0 0.0
    %3564 = vmatprep.subr.mxu0 0.0
    %3565 = vmatpush1.xpose.msra.mxu0 0.0
    %3566 = vmatprep.subr.mxu0 0.0
    %3567 = vmatpush1.xpose.msra.mxu0 0.0
    %3568 = vmatprep.subr.mxu0 0.0
    %3569 = vmatpush1.xpose.msra.mxu0 0.0
    %3570 = vmatprep.subr.mxu0 0.0
    %3571 = vmatpush1.xpose.msra.mxu0 0.0
    %3572 = vmatprep.subr.mxu0 0.0
    %3573 = vmatpush1.xpose.msra.mxu0 0.0
    %3574 = vmatprep.subr.mxu0 0.0
    %3575 = vmatpush1.xpose.msra.mxu0 0.0
    %3576 = vmatprep.subr.mxu0 0.0
    %3577 = vmatpush1.xpose.msra.mxu0 0.0
    %3578 = vmatprep.subr.mxu0 0.0
    %3579 = vmatpush1.xpose.msra.mxu0 0.0
    %3580 = vmatprep.subr.mxu0 0.0
    %3581 = vmatpush1.xpose.msra.mxu0 0.0
    %3582 = vmatprep.subr.mxu0 0.0
    %3583 = vmatpush1.xpose.msra.mxu0 0.0
    %3584 = vmatprep.subr.mxu0 0.0
    %3585 = vmatpush1.xpose.msra.mxu0 0.0
    %3586 = vmatprep.subr.mxu0 0.0
    %3587 = vmatpush1.xpose.msra.mxu0 0.0
    %3588 = vmatprep.subr.mxu0 0.0
    %3589 = vmatpush1.xpose.msra.mxu0 0.0
    %3590 = vmatprep.subr.mxu0 0.0
    %3591 = vmatpush1.xpose.msra.mxu0 0.0
    %3592 = vmatprep.subr.mxu0 0.0
    %3593 = vmatpush1.xpose.msra.mxu0 0.0
    %3594 = vmatprep.subr.mxu0 0.0
    %3595 = vmatpush1.xpose.msra.mxu0 0.0
    %3596 = vmatprep.subr.mxu0 0.0
    %3597 = vmatpush1.xpose.msra.mxu0 0.0
    %3598 = vmatprep.subr.mxu0 0.0
    %3599 = vmatpush1.xpose.msra.mxu0 0.0
    %3600 = vmatprep.subr.mxu0 0.0
    %3601 = vmatpush1.xpose.msra.mxu0 0.0
    %3602 = vmatprep.subr.mxu0 0.0
    %3603 = vmatpush1.xpose.msra.mxu0 0.0
    %3604 = vmatprep.subr.mxu0 0.0
    %3605 = vmatpush1.xpose.msra.mxu0 0.0
    %3606 = vmatprep.subr.mxu0 0.0
    %3607 = vmatpush1.xpose.msra.mxu0 0.0
    %3608 = vmatprep.subr.mxu0 0.0
    %3609 = vmatpush1.xpose.msra.mxu0 0.0
    %3610 = vmatprep.subr.mxu0 0.0
    %3611 = vmatpush1.xpose.msra.mxu0 0.0
    %3612 = vmatprep.subr.mxu0 0.0
    %3613 = vmatpush1.xpose.msra.mxu0 0.0
    %3614 = vmatprep.subr.mxu0 0.0
    %3615 = vmatpush1.xpose.msra.mxu0 0.0
    %3616 = vmatprep.mubr.f32.mxu0 0.0
    %3617 = vmatmul.mubr.f32.gmra.mrb[0].mxu0 %v3546
    %v3618 = vpop.f32.mrb[0].mxu0
    %v3619 = vadd.f32 0.0, %v3618
    %v3620 = vpop.f32.mrb[0].mxu0
    %3621 = vdwg.mxu0
    %v3622 = vmul.f32 %v3619, 0.35355338
    %v3623 = vsel %vm2466, %v3622, -inf
    %3624 = vmax.xlane.f32.xlu0 %v3623
    %v3625 = vpop.xlane.xlu0 %3624
    %v3626 = vsub.f32 %v3622, %v3625
    %v3627 = vmul.f32 %v3626, 1.442695
    %v3628 = vpow.pop %v3627
    %v3629 = vsel %vm2466, %v3628, 0.0
    %3630 = vadd.xlane.f32.xlu0 %v3629
    %v3631 = vpop.xlane.xlu0 %3630
    %v3632 = vrcp.pop %v3631
    %v3633 = vmul.f32 %v3628, %v3632
    %3634 = vrot.lane.b32.xlu0 %v2373, 88
    %v3635 = vpop.permute.xlu0 %3634
    %3636 = vrot.lane.b32.xlu0 %v2378, 88
    %v3637 = vpop.permute.xlu0 %3636
    %v3641 = vsel %vm2466, %v3633, 0
    %3643 = vmatprep.subr.mxu0 0.0
    %3644 = vmatpush1.msra.mxu0 %v3635
    %3645 = vmatprep.subr.mxu0 0.0
    %3646 = vmatpush1.msra.mxu0 %v3637
    %3647 = vmatprep.subr.mxu0 0.0
    %3648 = vmatpush1.msra.mxu0 0.0
    %3649 = vmatprep.subr.mxu0 0.0
    %3650 = vmatpush1.msra.mxu0 0.0
    %3651 = vmatprep.subr.mxu0 0.0
    %3652 = vmatpush1.msra.mxu0 0.0
    %3653 = vmatprep.subr.mxu0 0.0
    %3654 = vmatpush1.msra.mxu0 0.0
    %3655 = vmatprep.subr.mxu0 0.0
    %3656 = vmatpush1.msra.mxu0 0.0
    %3657 = vmatprep.subr.mxu0 0.0
    %3658 = vmatpush1.msra.mxu0 0.0
    %3659 = vmatprep.subr.mxu0 0.0
    %3660 = vmatpush1.msra.mxu0 0.0
    %3661 = vmatprep.subr.mxu0 0.0
    %3662 = vmatpush1.msra.mxu0 0.0
    %3663 = vmatprep.subr.mxu0 0.0
    %3664 = vmatpush1.msra.mxu0 0.0
    %3665 = vmatprep.subr.mxu0 0.0
    %3666 = vmatpush1.msra.mxu0 0.0
    %3667 = vmatprep.subr.mxu0 0.0
    %3668 = vmatpush1.msra.mxu0 0.0
    %3669 = vmatprep.subr.mxu0 0.0
    %3670 = vmatpush1.msra.mxu0 0.0
    %3671 = vmatprep.subr.mxu0 0.0
    %3672 = vmatpush1.msra.mxu0 0.0
    %3673 = vmatprep.subr.mxu0 0.0
    %3674 = vmatpush1.msra.mxu0 0.0
    %3675 = vmatprep.subr.mxu0 0.0
    %3676 = vmatpush1.msra.mxu0 0.0
    %3677 = vmatprep.subr.mxu0 0.0
    %3678 = vmatpush1.msra.mxu0 0.0
    %3679 = vmatprep.subr.mxu0 0.0
    %3680 = vmatpush1.msra.mxu0 0.0
    %3681 = vmatprep.subr.mxu0 0.0
    %3682 = vmatpush1.msra.mxu0 0.0
    %3683 = vmatprep.subr.mxu0 0.0
    %3684 = vmatpush1.msra.mxu0 0.0
    %3685 = vmatprep.subr.mxu0 0.0
    %3686 = vmatpush1.msra.mxu0 0.0
    %3687 = vmatprep.subr.mxu0 0.0
    %3688 = vmatpush1.msra.mxu0 0.0
    %3689 = vmatprep.subr.mxu0 0.0
    %3690 = vmatpush1.msra.mxu0 0.0
    %3691 = vmatprep.subr.mxu0 0.0
    %3692 = vmatpush1.msra.mxu0 0.0
    %3693 = vmatprep.subr.mxu0 0.0
    %3694 = vmatpush1.msra.mxu0 0.0
    %3695 = vmatprep.subr.mxu0 0.0
    %3696 = vmatpush1.msra.mxu0 0.0
    %3697 = vmatprep.subr.mxu0 0.0
    %3698 = vmatpush1.msra.mxu0 0.0
    %3699 = vmatprep.subr.mxu0 0.0
    %3700 = vmatpush1.msra.mxu0 0.0
    %3701 = vmatprep.subr.mxu0 0.0
    %3702 = vmatpush1.msra.mxu0 0.0
    %3703 = vmatprep.subr.mxu0 0.0
    %3704 = vmatpush1.msra.mxu0 0.0
    %3705 = vmatprep.subr.mxu0 0.0
    %3706 = vmatpush1.msra.mxu0 0.0
    %3707 = vmatprep.mubr.f32.mxu0 0.0
    %3708 = vmatmul.mubr.f32.gmra.mrb[0].mxu0 %v3641
    %v3709 = vpop.f32.mrb[0].mxu0
    %v3710 = vadd.f32 0.0, %v3709
    %v3711 = vpop.f32.mrb[0].mxu0
    %3712 = vdwg.mxu0
    %v3714 = vsel %vm206, %v3710, 0
    %3716 = vmatprep.subr.mxu0 0.0
    %3717 = vmatpush1.msra.mxu0 %v2382
    %3718 = vmatprep.subr.mxu0 0.0
    %3719 = vmatpush1.msra.mxu0 0.0
    %3720 = vmatprep.subr.mxu0 0.0
    %3721 = vmatpush1.msra.mxu0 0.0
    %3722 = vmatprep.subr.mxu0 0.0
    %3723 = vmatpush1.msra.mxu0 0.0
    %3724 = vmatprep.subr.mxu0 0.0
    %3725 = vmatpush1.msra.mxu0 0.0
    %3726 = vmatprep.subr.mxu0 0.0
    %3727 = vmatpush1.msra.mxu0 0.0
    %3728 = vmatprep.subr.mxu0 0.0
    %3729 = vmatpush1.msra.mxu0 0.0
    %3730 = vmatprep.subr.mxu0 0.0
    %3731 = vmatpush1.msra.mxu0 0.0
    %3732 = vmatprep.subr.mxu0 0.0
    %3733 = vmatpush1.msra.mxu0 0.0
    %3734 = vmatprep.subr.mxu0 0.0
    %3735 = vmatpush1.msra.mxu0 0.0
    %3736 = vmatprep.subr.mxu0 0.0
    %3737 = vmatpush1.msra.mxu0 0.0
    %3738 = vmatprep.subr.mxu0 0.0
    %3739 = vmatpush1.msra.mxu0 0.0
    %3740 = vmatprep.subr.mxu0 0.0
    %3741 = vmatpush1.msra.mxu0 0.0
    %3742 = vmatprep.subr.mxu0 0.0
    %3743 = vmatpush1.msra.mxu0 0.0
    %3744 = vmatprep.subr.mxu0 0.0
    %3745 = vmatpush1.msra.mxu0 0.0
    %3746 = vmatprep.subr.mxu0 0.0
    %3747 = vmatpush1.msra.mxu0 0.0
    %3748 = vmatprep.subr.mxu0 0.0
    %3749 = vmatpush1.msra.mxu0 0.0
    %3750 = vmatprep.subr.mxu0 0.0
    %3751 = vmatpush1.msra.mxu0 0.0
    %3752 = vmatprep.subr.mxu0 0.0
    %3753 = vmatpush1.msra.mxu0 0.0
    %3754 = vmatprep.subr.mxu0 0.0
    %3755 = vmatpush1.msra.mxu0 0.0
    %3756 = vmatprep.subr.mxu0 0.0
    %3757 = vmatpush1.msra.mxu0 0.0
    %3758 = vmatprep.subr.mxu0 0.0
    %3759 = vmatpush1.msra.mxu0 0.0
    %3760 = vmatprep.subr.mxu0 0.0
    %3761 = vmatpush1.msra.mxu0 0.0
    %3762 = vmatprep.subr.mxu0 0.0
    %3763 = vmatpush1.msra.mxu0 0.0
    %3764 = vmatprep.subr.mxu0 0.0
    %3765 = vmatpush1.msra.mxu0 0.0
    %3766 = vmatprep.subr.mxu0 0.0
    %3767 = vmatpush1.msra.mxu0 0.0
    %3768 = vmatprep.subr.mxu0 0.0
    %3769 = vmatpush1.msra.mxu0 0.0
    %3770 = vmatprep.subr.mxu0 0.0
    %3771 = vmatpush1.msra.mxu0 0.0
    %3772 = vmatprep.subr.mxu0 0.0
    %3773 = vmatpush1.msra.mxu0 0.0
    %3774 = vmatprep.subr.mxu0 0.0
    %3775 = vmatpush1.msra.mxu0 0.0
    %3776 = vmatprep.subr.mxu0 0.0
    %3777 = vmatpush1.msra.mxu0 0.0
    %3778 = vmatprep.subr.mxu0 0.0
    %3779 = vmatpush1.msra.mxu0 0.0
    %3780 = vmatprep.mubr.f32.mxu0 0.0
    %3781 = vmatmul.mubr.f32.gmra.mrb[0].mxu0 %v3714
    %v3782 = vpop.f32.mrb[0].mxu0
    %v3783 = vadd.f32 0.0, %v3782
    %v3784 = vpop.f32.mrb[0].mxu0
    %3785 = vdwg.mxu0
    %v3787 = vsel %vm206, %v3537, 0
    %3789 = vmatprep.subr.mxu0 0.0
    %3790 = vmatpush1.msra.mxu0 %v2381
    %3791 = vmatprep.subr.mxu0 0.0
    %3792 = vmatpush1.msra.mxu0 0.0
    %3793 = vmatprep.subr.mxu0 0.0
    %3794 = vmatpush1.msra.mxu0 0.0
    %3795 = vmatprep.subr.mxu0 0.0
    %3796 = vmatpush1.msra.mxu0 0.0
    %3797 = vmatprep.subr.mxu0 0.0
    %3798 = vmatpush1.msra.mxu0 0.0
    %3799 = vmatprep.subr.mxu0 0.0
    %3800 = vmatpush1.msra.mxu0 0.0
    %3801 = vmatprep.subr.mxu0 0.0
    %3802 = vmatpush1.msra.mxu0 0.0
    %3803 = vmatprep.subr.mxu0 0.0
    %3804 = vmatpush1.msra.mxu0 0.0
    %3805 = vmatprep.subr.mxu0 0.0
    %3806 = vmatpush1.msra.mxu0 0.0
    %3807 = vmatprep.subr.mxu0 0.0
    %3808 = vmatpush1.msra.mxu0 0.0
    %3809 = vmatprep.subr.mxu0 0.0
    %3810 = vmatpush1.msra.mxu0 0.0
    %3811 = vmatprep.subr.mxu0 0.0
    %3812 = vmatpush1.msra.mxu0 0.0
    %3813 = vmatprep.subr.mxu0 0.0
    %3814 = vmatpush1.msra.mxu0 0.0
    %3815 = vmatprep.subr.mxu0 0.0
    %3816 = vmatpush1.msra.mxu0 0.0
    %3817 = vmatprep.subr.mxu0 0.0
    %3818 = vmatpush1.msra.mxu0 0.0
    %3819 = vmatprep.subr.mxu0 0.0
    %3820 = vmatpush1.msra.mxu0 0.0
    %3821 = vmatprep.subr.mxu0 0.0
    %3822 = vmatpush1.msra.mxu0 0.0
    %3823 = vmatprep.subr.mxu0 0.0
    %3824 = vmatpush1.msra.mxu0 0.0
    %3825 = vmatprep.subr.mxu0 0.0
    %3826 = vmatpush1.msra.mxu0 0.0
    %3827 = vmatprep.subr.mxu0 0.0
    %3828 = vmatpush1.msra.mxu0 0.0
    %3829 = vmatprep.subr.mxu0 0.0
    %3830 = vmatpush1.msra.mxu0 0.0
    %3831 = vmatprep.subr.mxu0 0.0
    %3832 = vmatpush1.msra.mxu0 0.0
    %3833 = vmatprep.subr.mxu0 0.0
    %3834 = vmatpush1.msra.mxu0 0.0
    %3835 = vmatprep.subr.mxu0 0.0
    %3836 = vmatpush1.msra.mxu0 0.0
    %3837 = vmatprep.subr.mxu0 0.0
    %3838 = vmatpush1.msra.mxu0 0.0
    %3839 = vmatprep.subr.mxu0 0.0
    %3840 = vmatpush1.msra.mxu0 0.0
    %3841 = vmatprep.subr.mxu0 0.0
    %3842 = vmatpush1.msra.mxu0 0.0
    %3843 = vmatprep.subr.mxu0 0.0
    %3844 = vmatpush1.msra.mxu0 0.0
    %3845 = vmatprep.subr.mxu0 0.0
    %3846 = vmatpush1.msra.mxu0 0.0
    %3847 = vmatprep.subr.mxu0 0.0
    %3848 = vmatpush1.msra.mxu0 0.0
    %3849 = vmatprep.subr.mxu0 0.0
    %3850 = vmatpush1.msra.mxu0 0.0
    %3851 = vmatprep.subr.mxu0 0.0
    %3852 = vmatpush1.msra.mxu0 0.0
    %3853 = vmatprep.mubr.f32.mxu0 0.0
    %3854 = vmatmul.mubr.f32.gmra.mrb[0].mxu0 %v3787
    %v3855 = vpop.f32.mrb[0].mxu0
    %v3856 = vadd.f32 %v3783, %v3855
    %v3857 = vpop.f32.mrb[0].mxu0
    %3858 = vdwg.mxu0
    %3859 = vrot.lane.b32.xlu0 %v2270, 112
    %v3860 = vpop.permute.xlu0 %3859
    %3861 = vrot.lane.b32.xlu0 %v2373, 112
    %v3862 = vpop.permute.xlu0 %3861
    %3863 = vrot.lane.b32.xlu0 %v2378, 112
    %v3864 = vpop.permute.xlu0 %3863
    %v3865 = vsel %vm206, %v3860, 0
    %v3867 = vsel %vm206, %v3862, 0
    %v3869 = vsel %vm206, %v3864, 0
    %3871 = vmatprep.subr.mxu0 0.0
    %3872 = vmatpush1.xpose.msra.mxu0 %v3867
    %3873 = vmatprep.subr.mxu0 0.0
    %3874 = vmatpush1.xpose.msra.mxu0 %v3869
    %3875 = vmatprep.subr.mxu0 0.0
    %3876 = vmatpush1.xpose.msra.mxu0 0.0
    %3877 = vmatprep.subr.mxu0 0.0
    %3878 = vmatpush1.xpose.msra.mxu0 0.0
    %3879 = vmatprep.subr.mxu0 0.0
    %3880 = vmatpush1.xpose.msra.mxu0 0.0
    %3881 = vmatprep.subr.mxu0 0.0
    %3882 = vmatpush1.xpose.msra.mxu0 0.0
    %3883 = vmatprep.subr.mxu0 0.0
    %3884 = vmatpush1.xpose.msra.mxu0 0.0
    %3885 = vmatprep.subr.mxu0 0.0
    %3886 = vmatpush1.xpose.msra.mxu0 0.0
    %3887 = vmatprep.subr.mxu0 0.0
    %3888 = vmatpush1.xpose.msra.mxu0 0.0
    %3889 = vmatprep.subr.mxu0 0.0
    %3890 = vmatpush1.xpose.msra.mxu0 0.0
    %3891 = vmatprep.subr.mxu0 0.0
    %3892 = vmatpush1.xpose.msra.mxu0 0.0
    %3893 = vmatprep.subr.mxu0 0.0
    %3894 = vmatpush1.xpose.msra.mxu0 0.0
    %3895 = vmatprep.subr.mxu0 0.0
    %3896 = vmatpush1.xpose.msra.mxu0 0.0
    %3897 = vmatprep.subr.mxu0 0.0
    %3898 = vmatpush1.xpose.msra.mxu0 0.0
    %3899 = vmatprep.subr.mxu0 0.0
    %3900 = vmatpush1.xpose.msra.mxu0 0.0
    %3901 = vmatprep.subr.mxu0 0.0
    %3902 = vmatpush1.xpose.msra.mxu0 0.0
    %3903 = vmatprep.subr.mxu0 0.0
    %3904 = vmatpush1.xpose.msra.mxu0 0.0
    %3905 = vmatprep.subr.mxu0 0.0
    %3906 = vmatpush1.xpose.msra.mxu0 0.0
    %3907 = vmatprep.subr.mxu0 0.0
    %3908 = vmatpush1.xpose.msra.mxu0 0.0
    %3909 = vmatprep.subr.mxu0 0.0
    %3910 = vmatpush1.xpose.msra.mxu0 0.0
    %3911 = vmatprep.subr.mxu0 0.0
    %3912 = vmatpush1.xpose.msra.mxu0 0.0
    %3913 = vmatprep.subr.mxu0 0.0
    %3914 = vmatpush1.xpose.msra.mxu0 0.0
    %3915 = vmatprep.subr.mxu0 0.0
    %3916 = vmatpush1.xpose.msra.mxu0 0.0
    %3917 = vmatprep.subr.mxu0 0.0
    %3918 = vmatpush1.xpose.msra.mxu0 0.0
    %3919 = vmatprep.subr.mxu0 0.0
    %3920 = vmatpush1.xpose.msra.mxu0 0.0
    %3921 = vmatprep.subr.mxu0 0.0
    %3922 = vmatpush1.xpose.msra.mxu0 0.0
    %3923 = vmatprep.subr.mxu0 0.0
    %3924 = vmatpush1.xpose.msra.mxu0 0.0
    %3925 = vmatprep.subr.mxu0 0.0
    %3926 = vmatpush1.xpose.msra.mxu0 0.0
    %3927 = vmatprep.subr.mxu0 0.0
    %3928 = vmatpush1.xpose.msra.mxu0 0.0
    %3929 = vmatprep.subr.mxu0 0.0
    %3930 = vmatpush1.xpose.msra.mxu0 0.0
    %3931 = vmatprep.subr.mxu0 0.0
    %3932 = vmatpush1.xpose.msra.mxu0 0.0
    %3933 = vmatprep.subr.mxu0 0.0
    %3934 = vmatpush1.xpose.msra.mxu0 0.0
    %3935 = vmatprep.mubr.f32.mxu0 0.0
    %3936 = vmatmul.mubr.f32.gmra.mrb[0].mxu0 %v3865
    %v3937 = vpop.f32.mrb[0].mxu0
    %v3938 = vadd.f32 0.0, %v3937
    %v3939 = vpop.f32.mrb[0].mxu0
    %3940 = vdwg.mxu0
    %v3941 = vmul.f32 %v3938, 0.35355338
    %v3942 = vsel %vm2466, %v3941, -inf
    %3943 = vmax.xlane.f32.xlu0 %v3942
    %v3944 = vpop.xlane.xlu0 %3943
    %v3945 = vsub.f32 %v3941, %v3944
    %v3946 = vmul.f32 %v3945, 1.442695
    %v3947 = vpow.pop %v3946
    %v3948 = vsel %vm2466, %v3947, 0.0
    %3949 = vadd.xlane.f32.xlu0 %v3948
    %v3950 = vpop.xlane.xlu0 %3949
    %v3951 = vrcp.pop %v3950
    %v3952 = vmul.f32 %v3947, %v3951
    %3953 = vrot.lane.b32.xlu0 %v2373, 80
    %v3954 = vpop.permute.xlu0 %3953
    %3955 = vrot.lane.b32.xlu0 %v2378, 80
    %v3956 = vpop.permute.xlu0 %3955
    %v3960 = vsel %vm2466, %v3952, 0
    %3962 = vmatprep.subr.mxu0 0.0
    %3963 = vmatpush1.msra.mxu0 %v3954
    %3964 = vmatprep.subr.mxu0 0.0
    %3965 = vmatpush1.msra.mxu0 %v3956
    %3966 = vmatprep.subr.mxu0 0.0
    %3967 = vmatpush1.msra.mxu0 0.0
    %3968 = vmatprep.subr.mxu0 0.0
    %3969 = vmatpush1.msra.mxu0 0.0
    %3970 = vmatprep.subr.mxu0 0.0
    %3971 = vmatpush1.msra.mxu0 0.0
    %3972 = vmatprep.subr.mxu0 0.0
    %3973 = vmatpush1.msra.mxu0 0.0
    %3974 = vmatprep.subr.mxu0 0.0
    %3975 = vmatpush1.msra.mxu0 0.0
    %3976 = vmatprep.subr.mxu0 0.0
    %3977 = vmatpush1.msra.mxu0 0.0
    %3978 = vmatprep.subr.mxu0 0.0
    %3979 = vmatpush1.msra.mxu0 0.0
    %3980 = vmatprep.subr.mxu0 0.0
    %3981 = vmatpush1.msra.mxu0 0.0
    %3982 = vmatprep.subr.mxu0 0.0
    %3983 = vmatpush1.msra.mxu0 0.0
    %3984 = vmatprep.subr.mxu0 0.0
    %3985 = vmatpush1.msra.mxu0 0.0
    %3986 = vmatprep.subr.mxu0 0.0
    %3987 = vmatpush1.msra.mxu0 0.0
    %3988 = vmatprep.subr.mxu0 0.0
    %3989 = vmatpush1.msra.mxu0 0.0
    %3990 = vmatprep.subr.mxu0 0.0
    %3991 = vmatpush1.msra.mxu0 0.0
    %3992 = vmatprep.subr.mxu0 0.0
    %3993 = vmatpush1.msra.mxu0 0.0
    %3994 = vmatprep.subr.mxu0 0.0
    %3995 = vmatpush1.msra.mxu0 0.0
    %3996 = vmatprep.subr.mxu0 0.0
    %3997 = vmatpush1.msra.mxu0 0.0
    %3998 = vmatprep.subr.mxu0 0.0
    %3999 = vmatpush1.msra.mxu0 0.0
    %4000 = vmatprep.subr.mxu0 0.0
    %4001 = vmatpush1.msra.mxu0 0.0
    %4002 = vmatprep.subr.mxu0 0.0
    %4003 = vmatpush1.msra.mxu0 0.0
    %4004 = vmatprep.subr.mxu0 0.0
    %4005 = vmatpush1.msra.mxu0 0.0
    %4006 = vmatprep.subr.mxu0 0.0
    %4007 = vmatpush1.msra.mxu0 0.0
    %4008 = vmatprep.subr.mxu0 0.0
    %4009 = vmatpush1.msra.mxu0 0.0
    %4010 = vmatprep.subr.mxu0 0.0
    %4011 = vmatpush1.msra.mxu0 0.0
    %4012 = vmatprep.subr.mxu0 0.0
    %4013 = vmatpush1.msra.mxu0 0.0
    %4014 = vmatprep.subr.mxu0 0.0
    %4015 = vmatpush1.msra.mxu0 0.0
    %4016 = vmatprep.subr.mxu0 0.0
    %4017 = vmatpush1.msra.mxu0 0.0
    %4018 = vmatprep.subr.mxu0 0.0
    %4019 = vmatpush1.msra.mxu0 0.0
    %4020 = vmatprep.subr.mxu0 0.0
    %4021 = vmatpush1.msra.mxu0 0.0
    %4022 = vmatprep.subr.mxu0 0.0
    %4023 = vmatpush1.msra.mxu0 0.0
    %4024 = vmatprep.subr.mxu0 0.0
    %4025 = vmatpush1.msra.mxu0 0.0
    %4026 = vmatprep.mubr.f32.mxu0 0.0
    %4027 = vmatmul.mubr.f32.gmra.mrb[0].mxu0 %v3960
    %v4028 = vpop.f32.mrb[0].mxu0
    %v4029 = vadd.f32 0.0, %v4028
    %v4030 = vpop.f32.mrb[0].mxu0
    %4031 = vdwg.mxu0
    %v4033 = vsel %vm206, %v4029, 0
    %4035 = vmatprep.subr.mxu0 0.0
    %4036 = vmatpush1.msra.mxu0 %v2383
    %4037 = vmatprep.subr.mxu0 0.0
    %4038 = vmatpush1.msra.mxu0 0.0
    %4039 = vmatprep.subr.mxu0 0.0
    %4040 = vmatpush1.msra.mxu0 0.0
    %4041 = vmatprep.subr.mxu0 0.0
    %4042 = vmatpush1.msra.mxu0 0.0
    %4043 = vmatprep.subr.mxu0 0.0
    %4044 = vmatpush1.msra.mxu0 0.0
    %4045 = vmatprep.subr.mxu0 0.0
    %4046 = vmatpush1.msra.mxu0 0.0
    %4047 = vmatprep.subr.mxu0 0.0
    %4048 = vmatpush1.msra.mxu0 0.0
    %4049 = vmatprep.subr.mxu0 0.0
    %4050 = vmatpush1.msra.mxu0 0.0
    %4051 = vmatprep.subr.mxu0 0.0
    %4052 = vmatpush1.msra.mxu0 0.0
    %4053 = vmatprep.subr.mxu0 0.0
    %4054 = vmatpush1.msra.mxu0 0.0
    %4055 = vmatprep.subr.mxu0 0.0
    %4056 = vmatpush1.msra.mxu0 0.0
    %4057 = vmatprep.subr.mxu0 0.0
    %4058 = vmatpush1.msra.mxu0 0.0
    %4059 = vmatprep.subr.mxu0 0.0
    %4060 = vmatpush1.msra.mxu0 0.0
    %4061 = vmatprep.subr.mxu0 0.0
    %4062 = vmatpush1.msra.mxu0 0.0
    %4063 = vmatprep.subr.mxu0 0.0
    %4064 = vmatpush1.msra.mxu0 0.0
    %4065 = vmatprep.subr.mxu0 0.0
    %4066 = vmatpush1.msra.mxu0 0.0
    %4067 = vmatprep.subr.mxu0 0.0
    %4068 = vmatpush1.msra.mxu0 0.0
    %4069 = vmatprep.subr.mxu0 0.0
    %4070 = vmatpush1.msra.mxu0 0.0
    %4071 = vmatprep.subr.mxu0 0.0
    %4072 = vmatpush1.msra.mxu0 0.0
    %4073 = vmatprep.subr.mxu0 0.0
    %4074 = vmatpush1.msra.mxu0 0.0
    %4075 = vmatprep.subr.mxu0 0.0
    %4076 = vmatpush1.msra.mxu0 0.0
    %4077 = vmatprep.subr.mxu0 0.0
    %4078 = vmatpush1.msra.mxu0 0.0
    %4079 = vmatprep.subr.mxu0 0.0
    %4080 = vmatpush1.msra.mxu0 0.0
    %4081 = vmatprep.subr.mxu0 0.0
    %4082 = vmatpush1.msra.mxu0 0.0
    %4083 = vmatprep.subr.mxu0 0.0
    %4084 = vmatpush1.msra.mxu0 0.0
    %4085 = vmatprep.subr.mxu0 0.0
    %4086 = vmatpush1.msra.mxu0 0.0
    %4087 = vmatprep.subr.mxu0 0.0
    %4088 = vmatpush1.msra.mxu0 0.0
    %4089 = vmatprep.subr.mxu0 0.0
    %4090 = vmatpush1.msra.mxu0 0.0
    %4091 = vmatprep.subr.mxu0 0.0
    %4092 = vmatpush1.msra.mxu0 0.0
    %4093 = vmatprep.subr.mxu0 0.0
    %4094 = vmatpush1.msra.mxu0 0.0
    %4095 = vmatprep.subr.mxu0 0.0
    %4096 = vmatpush1.msra.mxu0 0.0
    %4097 = vmatprep.subr.mxu0 0.0
    %4098 = vmatpush1.msra.mxu0 0.0
    %4099 = vmatprep.mubr.f32.mxu0 0.0
    %4100 = vmatmul.mubr.f32.gmra.mrb[0].mxu0 %v4033
    %v4101 = vpop.f32.mrb[0].mxu0
    %v4102 = vadd.f32 0.0, %v4101
    %v4103 = vpop.f32.mrb[0].mxu0
    %4104 = vdwg.mxu0
    %v4105 = vadd.f32 %v3856, %v4102
    %4106 = vrot.lane.b32.xlu0 %v2270, 104
    %v4107 = vpop.permute.xlu0 %4106
    %4108 = vrot.lane.b32.xlu0 %v2373, 104
    %v4109 = vpop.permute.xlu0 %4108
    %4110 = vrot.lane.b32.xlu0 %v2378, 104
    %v4111 = vpop.permute.xlu0 %4110
    %v4112 = vsel %vm206, %v4107, 0
    %v4114 = vsel %vm206, %v4109, 0
    %v4116 = vsel %vm206, %v4111, 0
    %4118 = vmatprep.subr.mxu0 0.0
    %4119 = vmatpush1.xpose.msra.mxu0 %v4114
    %4120 = vmatprep.subr.mxu0 0.0
    %4121 = vmatpush1.xpose.msra.mxu0 %v4116
    %4122 = vmatprep.subr.mxu0 0.0
    %4123 = vmatpush1.xpose.msra.mxu0 0.0
    %4124 = vmatprep.subr.mxu0 0.0
    %4125 = vmatpush1.xpose.msra.mxu0 0.0
    %4126 = vmatprep.subr.mxu0 0.0
    %4127 = vmatpush1.xpose.msra.mxu0 0.0
    %4128 = vmatprep.subr.mxu0 0.0
    %4129 = vmatpush1.xpose.msra.mxu0 0.0
    %4130 = vmatprep.subr.mxu0 0.0
    %4131 = vmatpush1.xpose.msra.mxu0 0.0
    %4132 = vmatprep.subr.mxu0 0.0
    %4133 = vmatpush1.xpose.msra.mxu0 0.0
    %4134 = vmatprep.subr.mxu0 0.0
    %4135 = vmatpush1.xpose.msra.mxu0 0.0
    %4136 = vmatprep.subr.mxu0 0.0
    %4137 = vmatpush1.xpose.msra.mxu0 0.0
    %4138 = vmatprep.subr.mxu0 0.0
    %4139 = vmatpush1.xpose.msra.mxu0 0.0
    %4140 = vmatprep.subr.mxu0 0.0
    %4141 = vmatpush1.xpose.msra.mxu0 0.0
    %4142 = vmatprep.subr.mxu0 0.0
    %4143 = vmatpush1.xpose.msra.mxu0 0.0
    %4144 = vmatprep.subr.mxu0 0.0
    %4145 = vmatpush1.xpose.msra.mxu0 0.0
    %4146 = vmatprep.subr.mxu0 0.0
    %4147 = vmatpush1.xpose.msra.mxu0 0.0
    %4148 = vmatprep.subr.mxu0 0.0
    %4149 = vmatpush1.xpose.msra.mxu0 0.0
    %4150 = vmatprep.subr.mxu0 0.0
    %4151 = vmatpush1.xpose.msra.mxu0 0.0
    %4152 = vmatprep.subr.mxu0 0.0
    %4153 = vmatpush1.xpose.msra.mxu0 0.0
    %4154 = vmatprep.subr.mxu0 0.0
    %4155 = vmatpush1.xpose.msra.mxu0 0.0
    %4156 = vmatprep.subr.mxu0 0.0
    %4157 = vmatpush1.xpose.msra.mxu0 0.0
    %4158 = vmatprep.subr.mxu0 0.0
    %4159 = vmatpush1.xpose.msra.mxu0 0.0
    %4160 = vmatprep.subr.mxu0 0.0
    %4161 = vmatpush1.xpose.msra.mxu0 0.0
    %4162 = vmatprep.subr.mxu0 0.0
    %4163 = vmatpush1.xpose.msra.mxu0 0.0
    %4164 = vmatprep.subr.mxu0 0.0
    %4165 = vmatpush1.xpose.msra.mxu0 0.0
    %4166 = vmatprep.subr.mxu0 0.0
    %4167 = vmatpush1.xpose.msra.mxu0 0.0
    %4168 = vmatprep.subr.mxu0 0.0
    %4169 = vmatpush1.xpose.msra.mxu0 0.0
    %4170 = vmatprep.subr.mxu0 0.0
    %4171 = vmatpush1.xpose.msra.mxu0 0.0
    %4172 = vmatprep.subr.mxu0 0.0
    %4173 = vmatpush1.xpose.msra.mxu0 0.0
    %4174 = vmatprep.subr.mxu0 0.0
    %4175 = vmatpush1.xpose.msra.mxu0 0.0
    %4176 = vmatprep.subr.mxu0 0.0
    %4177 = vmatpush1.xpose.msra.mxu0 0.0
    %4178 = vmatprep.subr.mxu0 0.0
    %4179 = vmatpush1.xpose.msra.mxu0 0.0
    %4180 = vmatprep.subr.mxu0 0.0
    %4181 = vmatpush1.xpose.msra.mxu0 0.0
    %4182 = vmatprep.mubr.f32.mxu0 0.0
    %4183 = vmatmul.mubr.f32.gmra.mrb[0].mxu0 %v4112
    %v4184 = vpop.f32.mrb[0].mxu0
    %v4185 = vadd.f32 0.0, %v4184
    %v4186 = vpop.f32.mrb[0].mxu0
    %4187 = vdwg.mxu0
    %v4188 = vmul.f32 %v4185, 0.35355338
    %v4189 = vsel %vm2466, %v4188, -inf
    %4190 = vmax.xlane.f32.xlu0 %v4189
    %v4191 = vpop.xlane.xlu0 %4190
    %v4192 = vsub.f32 %v4188, %v4191
    %v4193 = vmul.f32 %v4192, 1.442695
    %v4194 = vpow.pop %v4193
    %v4195 = vsel %vm2466, %v4194, 0.0
    %4196 = vadd.xlane.f32.xlu0 %v4195
    %v4197 = vpop.xlane.xlu0 %4196
    %v4198 = vrcp.pop %v4197
    %v4199 = vmul.f32 %v4194, %v4198
    %4200 = vrot.lane.b32.xlu0 %v2373, 72
    %v4201 = vpop.permute.xlu0 %4200
    %4202 = vrot.lane.b32.xlu0 %v2378, 72
    %v4203 = vpop.permute.xlu0 %4202
    %v4207 = vsel %vm2466, %v4199, 0
    %4209 = vmatprep.subr.mxu0 0.0
    %4210 = vmatpush1.msra.mxu0 %v4201
    %4211 = vmatprep.subr.mxu0 0.0
    %4212 = vmatpush1.msra.mxu0 %v4203
    %4213 = vmatprep.subr.mxu0 0.0
    %4214 = vmatpush1.msra.mxu0 0.0
    %4215 = vmatprep.subr.mxu0 0.0
    %4216 = vmatpush1.msra.mxu0 0.0
    %4217 = vmatprep.subr.mxu0 0.0
    %4218 = vmatpush1.msra.mxu0 0.0
    %4219 = vmatprep.subr.mxu0 0.0
    %4220 = vmatpush1.msra.mxu0 0.0
    %4221 = vmatprep.subr.mxu0 0.0
    %4222 = vmatpush1.msra.mxu0 0.0
    %4223 = vmatprep.subr.mxu0 0.0
    %4224 = vmatpush1.msra.mxu0 0.0
    %4225 = vmatprep.subr.mxu0 0.0
    %4226 = vmatpush1.msra.mxu0 0.0
    %4227 = vmatprep.subr.mxu0 0.0
    %4228 = vmatpush1.msra.mxu0 0.0
    %4229 = vmatprep.subr.mxu0 0.0
    %4230 = vmatpush1.msra.mxu0 0.0
    %4231 = vmatprep.subr.mxu0 0.0
    %4232 = vmatpush1.msra.mxu0 0.0
    %4233 = vmatprep.subr.mxu0 0.0
    %4234 = vmatpush1.msra.mxu0 0.0
    %4235 = vmatprep.subr.mxu0 0.0
    %4236 = vmatpush1.msra.mxu0 0.0
    %4237 = vmatprep.subr.mxu0 0.0
    %4238 = vmatpush1.msra.mxu0 0.0
    %4239 = vmatprep.subr.mxu0 0.0
    %4240 = vmatpush1.msra.mxu0 0.0
    %4241 = vmatprep.subr.mxu0 0.0
    %4242 = vmatpush1.msra.mxu0 0.0
    %4243 = vmatprep.subr.mxu0 0.0
    %4244 = vmatpush1.msra.mxu0 0.0
    %4245 = vmatprep.subr.mxu0 0.0
    %4246 = vmatpush1.msra.mxu0 0.0
    %4247 = vmatprep.subr.mxu0 0.0
    %4248 = vmatpush1.msra.mxu0 0.0
    %4249 = vmatprep.subr.mxu0 0.0
    %4250 = vmatpush1.msra.mxu0 0.0
    %4251 = vmatprep.subr.mxu0 0.0
    %4252 = vmatpush1.msra.mxu0 0.0
    %4253 = vmatprep.subr.mxu0 0.0
    %4254 = vmatpush1.msra.mxu0 0.0
    %4255 = vmatprep.subr.mxu0 0.0
    %4256 = vmatpush1.msra.mxu0 0.0
    %4257 = vmatprep.subr.mxu0 0.0
    %4258 = vmatpush1.msra.mxu0 0.0
    %4259 = vmatprep.subr.mxu0 0.0
    %4260 = vmatpush1.msra.mxu0 0.0
    %4261 = vmatprep.subr.mxu0 0.0
    %4262 = vmatpush1.msra.mxu0 0.0
    %4263 = vmatprep.subr.mxu0 0.0
    %4264 = vmatpush1.msra.mxu0 0.0
    %4265 = vmatprep.subr.mxu0 0.0
    %4266 = vmatpush1.msra.mxu0 0.0
    %4267 = vmatprep.subr.mxu0 0.0
    %4268 = vmatpush1.msra.mxu0 0.0
    %4269 = vmatprep.subr.mxu0 0.0
    %4270 = vmatpush1.msra.mxu0 0.0
    %4271 = vmatprep.subr.mxu0 0.0
    %4272 = vmatpush1.msra.mxu0 0.0
    %4273 = vmatprep.mubr.f32.mxu0 0.0
    %4274 = vmatmul.mubr.f32.gmra.mrb[0].mxu0 %v4207
    %v4275 = vpop.f32.mrb[0].mxu0
    %v4276 = vadd.f32 0.0, %v4275
    %v4277 = vpop.f32.mrb[0].mxu0
    %4278 = vdwg.mxu0
    %v4280 = vsel %vm206, %v4276, 0
    %4282 = vmatprep.subr.mxu0 0.0
    %4283 = vmatpush1.msra.mxu0 %v2384
    %4284 = vmatprep.subr.mxu0 0.0
    %4285 = vmatpush1.msra.mxu0 0.0
    %4286 = vmatprep.subr.mxu0 0.0
    %4287 = vmatpush1.msra.mxu0 0.0
    %4288 = vmatprep.subr.mxu0 0.0
    %4289 = vmatpush1.msra.mxu0 0.0
    %4290 = vmatprep.subr.mxu0 0.0
    %4291 = vmatpush1.msra.mxu0 0.0
    %4292 = vmatprep.subr.mxu0 0.0
    %4293 = vmatpush1.msra.mxu0 0.0
    %4294 = vmatprep.subr.mxu0 0.0
    %4295 = vmatpush1.msra.mxu0 0.0
    %4296 = vmatprep.subr.mxu0 0.0
    %4297 = vmatpush1.msra.mxu0 0.0
    %4298 = vmatprep.subr.mxu0 0.0
    %4299 = vmatpush1.msra.mxu0 0.0
    %4300 = vmatprep.subr.mxu0 0.0
    %4301 = vmatpush1.msra.mxu0 0.0
    %4302 = vmatprep.subr.mxu0 0.0
    %4303 = vmatpush1.msra.mxu0 0.0
    %4304 = vmatprep.subr.mxu0 0.0
    %4305 = vmatpush1.msra.mxu0 0.0
    %4306 = vmatprep.subr.mxu0 0.0
    %4307 = vmatpush1.msra.mxu0 0.0
    %4308 = vmatprep.subr.mxu0 0.0
    %4309 = vmatpush1.msra.mxu0 0.0
    %4310 = vmatprep.subr.mxu0 0.0
    %4311 = vmatpush1.msra.mxu0 0.0
    %4312 = vmatprep.subr.mxu0 0.0
    %4313 = vmatpush1.msra.mxu0 0.0
    %4314 = vmatprep.subr.mxu0 0.0
    %4315 = vmatpush1.msra.mxu0 0.0
    %4316 = vmatprep.subr.mxu0 0.0
    %4317 = vmatpush1.msra.mxu0 0.0
    %4318 = vmatprep.subr.mxu0 0.0
    %4319 = vmatpush1.msra.mxu0 0.0
    %4320 = vmatprep.subr.mxu0 0.0
    %4321 = vmatpush1.msra.mxu0 0.0
    %4322 = vmatprep.subr.mxu0 0.0
    %4323 = vmatpush1.msra.mxu0 0.0
    %4324 = vmatprep.subr.mxu0 0.0
    %4325 = vmatpush1.msra.mxu0 0.0
    %4326 = vmatprep.subr.mxu0 0.0
    %4327 = vmatpush1.msra.mxu0 0.0
    %4328 = vmatprep.subr.mxu0 0.0
    %4329 = vmatpush1.msra.mxu0 0.0
    %4330 = vmatprep.subr.mxu0 0.0
    %4331 = vmatpush1.msra.mxu0 0.0
    %4332 = vmatprep.subr.mxu0 0.0
    %4333 = vmatpush1.msra.mxu0 0.0
    %4334 = vmatprep.subr.mxu0 0.0
    %4335 = vmatpush1.msra.mxu0 0.0
    %4336 = vmatprep.subr.mxu0 0.0
    %4337 = vmatpush1.msra.mxu0 0.0
    %4338 = vmatprep.subr.mxu0 0.0
    %4339 = vmatpush1.msra.mxu0 0.0
    %4340 = vmatprep.subr.mxu0 0.0
    %4341 = vmatpush1.msra.mxu0 0.0
    %4342 = vmatprep.subr.mxu0 0.0
    %4343 = vmatpush1.msra.mxu0 0.0
    %4344 = vmatprep.subr.mxu0 0.0
    %4345 = vmatpush1.msra.mxu0 0.0
    %4346 = vmatprep.mubr.f32.mxu0 0.0
    %4347 = vmatmul.mubr.f32.gmra.mrb[0].mxu0 %v4280
    %v4348 = vpop.f32.mrb[0].mxu0
    %v4349 = vadd.f32 0.0, %v4348
    %v4350 = vpop.f32.mrb[0].mxu0
    %4351 = vdwg.mxu0
    %v4352 = vadd.f32 %v4105, %v4349
    %v4354 = vlaneseq
    %v4355 = vshrl.u32 %v4354, 7
    %v4356 = vsub.s32 0, %v4355
    %v4357 = vrot.slane %v2385, %v4356
    %v4359 = vadd.f32 %v3369, %v4357
    %v4360 = vadd.f32 %v4352, %v4357
    %v4361 = vadd.f32 %v2179, %v4359
    %v4362 = vadd.f32 %v2180, %v4360
    %v4363 = vld [vmem:[%s19] sm:$0x1]
    %v4364 = vld [vmem:[%s20] sm:$0x1]
    %v4365 = vsel %vm116, %v4361, 0.0
    %4366 = vadd.xlane.f32.xlu0 %v4365
    %v4367 = vpop.xlane.xlu0 %4366
    %v4368 = vsel %vm116, %v4362, 0.0
    %4369 = vadd.xlane.f32.xlu0 %v4368
    %v4370 = vpop.xlane.xlu0 %4369
    %v4371 = vmul.f32 %v4367, %v2144
    %v4372 = vmul.f32 %v4370, %v2144
    %v4373 = vsub.f32 %v4361, %v4371
    %v4374 = vsub.f32 %v4362, %v4372
    %v4375 = vmul.f32 %v4373, %v4373
    %v4376 = vmul.f32 %v4374, %v4374
    %v4377 = vsel %vm116, %v4375, 0.0
    %4378 = vadd.xlane.f32.xlu0 %v4377
    %v4379 = vpop.xlane.xlu0 %4378
    %v4380 = vsel %vm116, %v4376, 0.0
    %4381 = vadd.xlane.f32.xlu0 %v4380
    %v4382 = vpop.xlane.xlu0 %4381
    %v4383 = vmul.f32 %v4379, %v2144
    %v4384 = vmul.f32 %v4382, %v2144
    %v4385 = vadd.f32 %v4383, 1e-05
    %v4386 = vadd.f32 %v4384, 1e-05
    %v4387 = vrsqrt.pop %v4385
    %v4388 = vrsqrt.pop %v4386
    %v4389 = vmul.f32 %v4373, %v4387
    %v4390 = vmul.f32 %v4374, %v4388
    %v4392 = vlaneseq
    %v4393 = vshrl.u32 %v4392, 7
    %v4394 = vsub.s32 0, %v4393
    %v4395 = vrot.slane %v4363, %v4394
    %v4397 = vmul.f32 %v4389, %v4395
    %v4398 = vmul.f32 %v4390, %v4395
    %v4400 = vlaneseq
    %v4401 = vshrl.u32 %v4400, 7
    %v4402 = vsub.s32 0, %v4401
    %v4403 = vrot.slane %v4364, %v4402
    %v4405 = vadd.f32 %v4397, %v4403
    %v4406 = vadd.f32 %v4398, %v4403
    %v4407 = vld [vmem:[%s13] sm:$0xff]
    %v4408 = vld [vmem:[%s13 + $0x8] sm:$0xff]
    %v4409 = vld [vmem:[%s13 + $0x10] sm:$0xff]
    %v4410 = vld [vmem:[%s13 + $0x18] sm:$0xff]
    %v4411 = vld [vmem:[%s14] sm:$0x1]
    %v4413 = vlaneseq
    %v4414 = vshrl.u32 %v4413, 7
    %v4415 = vsub.s32 0, %v4414
    %v4416 = vrot.slane %v4411, %v4415
    %v4419 = vsel %vm116, %v4405, 0
    %v4422 = vsel %vm116, %v4406, 0
    %4424 = vmatprep.subr.mxu0 0.0
    %4425 = vmatpush1.msra.mxu0 %v4407
    %4426 = vmatprep.subr.mxu0 0.0
    %4427 = vmatpush1.msra.mxu0 %v4408
    %4428 = vmatprep.subr.mxu0 0.0
    %4429 = vmatpush1.msra.mxu0 %v4409
    %4430 = vmatprep.subr.mxu0 0.0
    %4431 = vmatpush1.msra.mxu0 %v4410
    %4432 = vmatprep.subr.mxu0 0.0
    %4433 = vmatpush1.msra.mxu0 0.0
    %4434 = vmatprep.subr.mxu0 0.0
    %4435 = vmatpush1.msra.mxu0 0.0
    %4436 = vmatprep.subr.mxu0 0.0
    %4437 = vmatpush1.msra.mxu0 0.0
    %4438 = vmatprep.subr.mxu0 0.0
    %4439 = vmatpush1.msra.mxu0 0.0
    %4440 = vmatprep.subr.mxu0 0.0
    %4441 = vmatpush1.msra.mxu0 0.0
    %4442 = vmatprep.subr.mxu0 0.0
    %4443 = vmatpush1.msra.mxu0 0.0
    %4444 = vmatprep.subr.mxu0 0.0
    %4445 = vmatpush1.msra.mxu0 0.0
    %4446 = vmatprep.subr.mxu0 0.0
    %4447 = vmatpush1.msra.mxu0 0.0
    %4448 = vmatprep.subr.mxu0 0.0
    %4449 = vmatpush1.msra.mxu0 0.0
    %4450 = vmatprep.subr.mxu0 0.0
    %4451 = vmatpush1.msra.mxu0 0.0
    %4452 = vmatprep.subr.mxu0 0.0
    %4453 = vmatpush1.msra.mxu0 0.0
    %4454 = vmatprep.subr.mxu0 0.0
    %4455 = vmatpush1.msra.mxu0 0.0
    %4456 = vmatprep.subr.mxu0 0.0
    %4457 = vmatpush1.msra.mxu0 0.0
    %4458 = vmatprep.subr.mxu0 0.0
    %4459 = vmatpush1.msra.mxu0 0.0
    %4460 = vmatprep.subr.mxu0 0.0
    %4461 = vmatpush1.msra.mxu0 0.0
    %4462 = vmatprep.subr.mxu0 0.0
    %4463 = vmatpush1.msra.mxu0 0.0
    %4464 = vmatprep.subr.mxu0 0.0
    %4465 = vmatpush1.msra.mxu0 0.0
    %4466 = vmatprep.subr.mxu0 0.0
    %4467 = vmatpush1.msra.mxu0 0.0
    %4468 = vmatprep.subr.mxu0 0.0
    %4469 = vmatpush1.msra.mxu0 0.0
    %4470 = vmatprep.subr.mxu0 0.0
    %4471 = vmatpush1.msra.mxu0 0.0
    %4472 = vmatprep.subr.mxu0 0.0
    %4473 = vmatpush1.msra.mxu0 0.0
    %4474 = vmatprep.subr.mxu0 0.0
    %4475 = vmatpush1.msra.mxu0 0.0
    %4476 = vmatprep.subr.mxu0 0.0
    %4477 = vmatpush1.msra.mxu0 0.0
    %4478 = vmatprep.subr.mxu0 0.0
    %4479 = vmatpush1.msra.mxu0 0.0
    %4480 = vmatprep.subr.mxu0 0.0
    %4481 = vmatpush1.msra.mxu0 0.0
    %4482 = vmatprep.subr.mxu0 0.0
    %4483 = vmatpush1.msra.mxu0 0.0
    %4484 = vmatprep.subr.mxu0 0.0
    %4485 = vmatpush1.msra.mxu0 0.0
    %4486 = vmatprep.subr.mxu0 0.0
    %4487 = vmatpush1.msra.mxu0 0.0
    %4488 = vmatprep.mubr.f32.mxu0 0.0
    %4489 = vmatmul.mubr.f32.gmra.mrb[0].mxu0 %v4419
    %v4490 = vpop.f32.mrb[0].mxu0
    %v4491 = vadd.f32 %v4416, %v4490
    %v4492 = vpop.f32.mrb[0].mxu0
    %4493 = vmatprep.mubr.f32.mxu0 0.0
    %4494 = vmatmul.mubr.f32.gmra.mrb[0].mxu0 %v4422
    %v4495 = vpop.f32.mrb[0].mxu0
    %v4496 = vadd.f32 %v4416, %v4495
    %v4497 = vpop.f32.mrb[0].mxu0
    %4498 = vdwg.mxu0
    %v4499 = vmul.f32 %v4491, 0.5
    %v4500 = vmul.f32 %v4496, 0.5
    %v4501 = vmul.f32 %v4491, 0.70710677
    %v4502 = vmul.f32 %v4496, 0.70710677
    %v4503 = verf.f32.pop %v4501
    %v4504 = verf.f32.pop %v4502
    %v4505 = vadd.f32 %v4503, 1.0
    %v4506 = vadd.f32 %v4504, 1.0
    %v4507 = vmul.f32 %v4499, %v4505
    %v4508 = vmul.f32 %v4500, %v4506
    %v4509 = vld [vmem:[%s15] sm:$0xff]
    %v4510 = vld [vmem:[%s15 + $0x8] sm:$0xff]
    %v4511 = vld [vmem:[%s15 + $0x10] sm:$0xff]
    %v4512 = vld [vmem:[%s15 + $0x18] sm:$0xff]
    %v4513 = vld [vmem:[%s15 + $0x20] sm:$0xff]
    %v4514 = vld [vmem:[%s15 + $0x28] sm:$0xff]
    %v4515 = vld [vmem:[%s15 + $0x30] sm:$0xff]
    %v4516 = vld [vmem:[%s15 + $0x38] sm:$0xff]
    %v4517 = vld [vmem:[%s16] sm:$0x1]
    %v4519 = vlaneseq
    %v4520 = vshrl.u32 %v4519, 7
    %v4521 = vsub.s32 0, %v4520
    %v4522 = vrot.slane %v4517, %v4521
    %vm4524 = vcmask 523264
    %v4526 = vsel %vm4524, %v4507, 0
    %v4529 = vsel %vm4524, %v4508, 0
    %4531 = vmatprep.subr.mxu0 0.0
    %4532 = vmatpush1.msra.mxu0 %v4509
    %4533 = vmatprep.subr.mxu0 0.0
    %4534 = vmatpush1.msra.mxu0 %v4510
    %4535 = vmatprep.subr.mxu0 0.0
    %4536 = vmatpush1.msra.mxu0 %v4511
    %4537 = vmatprep.subr.mxu0 0.0
    %4538 = vmatpush1.msra.mxu0 %v4512
    %4539 = vmatprep.subr.mxu0 0.0
    %4540 = vmatpush1.msra.mxu0 %v4513
    %4541 = vmatprep.subr.mxu0 0.0
    %4542 = vmatpush1.msra.mxu0 %v4514
    %4543 = vmatprep.subr.mxu0 0.0
    %4544 = vmatpush1.msra.mxu0 %v4515
    %4545 = vmatprep.subr.mxu0 0.0
    %4546 = vmatpush1.msra.mxu0 %v4516
    %4547 = vmatprep.subr.mxu0 0.0
    %4548 = vmatpush1.msra.mxu0 0.0
    %4549 = vmatprep.subr.mxu0 0.0
    %4550 = vmatpush1.msra.mxu0 0.0
    %4551 = vmatprep.subr.mxu0 0.0
    %4552 = vmatpush1.msra.mxu0 0.0
    %4553 = vmatprep.subr.mxu0 0.0
    %4554 = vmatpush1.msra.mxu0 0.0
    %4555 = vmatprep.subr.mxu0 0.0
    %4556 = vmatpush1.msra.mxu0 0.0
    %4557 = vmatprep.subr.mxu0 0.0
    %4558 = vmatpush1.msra.mxu0 0.0
    %4559 = vmatprep.subr.mxu0 0.0
    %4560 = vmatpush1.msra.mxu0 0.0
    %4561 = vmatprep.subr.mxu0 0.0
    %4562 = vmatpush1.msra.mxu0 0.0
    %4563 = vmatprep.subr.mxu0 0.0
    %4564 = vmatpush1.msra.mxu0 0.0
    %4565 = vmatprep.subr.mxu0 0.0
    %4566 = vmatpush1.msra.mxu0 0.0
    %4567 = vmatprep.subr.mxu0 0.0
    %4568 = vmatpush1.msra.mxu0 0.0
    %4569 = vmatprep.subr.mxu0 0.0
    %4570 = vmatpush1.msra.mxu0 0.0
    %4571 = vmatprep.subr.mxu0 0.0
    %4572 = vmatpush1.msra.mxu0 0.0
    %4573 = vmatprep.subr.mxu0 0.0
    %4574 = vmatpush1.msra.mxu0 0.0
    %4575 = vmatprep.subr.mxu0 0.0
    %4576 = vmatpush1.msra.mxu0 0.0
    %4577 = vmatprep.subr.mxu0 0.0
    %4578 = vmatpush1.msra.mxu0 0.0
    %4579 = vmatprep.subr.mxu0 0.0
    %4580 = vmatpush1.msra.mxu0 0.0
    %4581 = vmatprep.subr.mxu0 0.0
    %4582 = vmatpush1.msra.mxu0 0.0
    %4583 = vmatprep.subr.mxu0 0.0
    %4584 = vmatpush1.msra.mxu0 0.0
    %4585 = vmatprep.subr.mxu0 0.0
    %4586 = vmatpush1.msra.mxu0 0.0
    %4587 = vmatprep.subr.mxu0 0.0
    %4588 = vmatpush1.msra.mxu0 0.0
    %4589 = vmatprep.subr.mxu0 0.0
    %4590 = vmatpush1.msra.mxu0 0.0
    %4591 = vmatprep.subr.mxu0 0.0
    %4592 = vmatpush1.msra.mxu0 0.0
    %4593 = vmatprep.subr.mxu0 0.0
    %4594 = vmatpush1.msra.mxu0 0.0
    %4595 = vmatprep.mubr.f32.mxu0 0.0
    %4596 = vmatmul.mubr.f32.gmra.mrb[0].mxu0 %v4526
    %v4597 = vpop.f32.mrb[0].mxu0
    %v4598 = vadd.f32 %v4522, %v4597
    %v4599 = vpop.f32.mrb[0].mxu0
    %4600 = vmatprep.mubr.f32.mxu0 0.0
    %4601 = vmatmul.mubr.f32.gmra.mrb[0].mxu0 %v4529
    %v4602 = vpop.f32.mrb[0].mxu0
    %v4603 = vadd.f32 %v4522, %v4602
    %v4604 = vpop.f32.mrb[0].mxu0
    %4605 = vdwg.mxu0
    %v4606 = vadd.f32 %v4405, %v4598
    %v4607 = vadd.f32 %v4406, %v4603
    %v4608 = vld [vmem:[%s21] sm:$0x1]
    %v4609 = vld [vmem:[%s22] sm:$0x1]
    %v4610 = vsel %vm116, %v4606, 0.0
    %4611 = vadd.xlane.f32.xlu0 %v4610
    %v4612 = vpop.xlane.xlu0 %4611
    %v4613 = vsel %vm116, %v4607, 0.0
    %4614 = vadd.xlane.f32.xlu0 %v4613
    %v4615 = vpop.xlane.xlu0 %4614
    %v4616 = vmul.f32 %v4612, %v2144
    %v4617 = vmul.f32 %v4615, %v2144
    %v4618 = vsub.f32 %v4606, %v4616
    %v4619 = vsub.f32 %v4607, %v4617
    %v4620 = vmul.f32 %v4618, %v4618
    %v4621 = vmul.f32 %v4619, %v4619
    %v4622 = vsel %vm116, %v4620, 0.0
    %4623 = vadd.xlane.f32.xlu0 %v4622
    %v4624 = vpop.xlane.xlu0 %4623
    %v4625 = vsel %vm116, %v4621, 0.0
    %4626 = vadd.xlane.f32.xlu0 %v4625
    %v4627 = vpop.xlane.xlu0 %4626
    %v4628 = vmul.f32 %v4624, %v2144
    %v4629 = vmul.f32 %v4627, %v2144
    %v4630 = vadd.f32 %v4628, 1e-05
    %v4631 = vadd.f32 %v4629, 1e-05
    %v4632 = vrsqrt.pop %v4630
    %v4633 = vrsqrt.pop %v4631
    %v4634 = vmul.f32 %v4618, %v4632
    %v4635 = vmul.f32 %v4619, %v4633
    %v4637 = vlaneseq
    %v4638 = vshrl.u32 %v4637, 7
    %v4639 = vsub.s32 0, %v4638
    %v4640 = vrot.slane %v4608, %v4639
    %v4642 = vmul.f32 %v4634, %v4640
    %v4643 = vmul.f32 %v4635, %v4640
    %v4645 = vlaneseq
    %v4646 = vshrl.u32 %v4645, 7
    %v4647 = vsub.s32 0, %v4646
    %v4648 = vrot.slane %v4609, %v4647
    %v4650 = vadd.f32 %v4642, %v4648
    %v4651 = vadd.f32 %v4643, %v4648
    %s4652 = scalar_lea.vmem %s3, 32
    %v4653 = vld [vmem:[%s4652] sm:$0xff]
    %v4654 = vld [vmem:[%s4652 + $0x8] sm:$0xff]
    %v4655 = vld [vmem:[%s4652 + $0x10] sm:$0xff]
    %v4656 = vld [vmem:[%s4652 + $0x18] sm:$0xff]
    %s4657 = scalar_lea.vmem %s4, 1
    %v4658 = vld [vmem:[%s4657] sm:$0x1]
    %v4660 = vlaneseq
    %v4661 = vshrl.u32 %v4660, 7
    %v4662 = vsub.s32 0, %v4661
    %v4663 = vrot.slane %v4658, %v4662
    %v4666 = vsel %vm116, %v4650, 0
    %v4669 = vsel %vm116, %v4651, 0
    %4671 = vmatprep.subr.mxu0 0.0
    %4672 = vmatpush1.msra.mxu0 %v4653
    %4673 = vmatprep.subr.mxu0 0.0
    %4674 = vmatpush1.msra.mxu0 %v4654
    %4675 = vmatprep.subr.mxu0 0.0
    %4676 = vmatpush1.msra.mxu0 %v4655
    %4677 = vmatprep.subr.mxu0 0.0
    %4678 = vmatpush1.msra.mxu0 %v4656
    %4679 = vmatprep.subr.mxu0 0.0
    %4680 = vmatpush1.msra.mxu0 0.0
    %4681 = vmatprep.subr.mxu0 0.0
    %4682 = vmatpush1.msra.mxu0 0.0
    %4683 = vmatprep.subr.mxu0 0.0
    %4684 = vmatpush1.msra.mxu0 0.0
    %4685 = vmatprep.subr.mxu0 0.0
    %4686 = vmatpush1.msra.mxu0 0.0
    %4687 = vmatprep.subr.mxu0 0.0
    %4688 = vmatpush1.msra.mxu0 0.0
    %4689 = vmatprep.subr.mxu0 0.0
    %4690 = vmatpush1.msra.mxu0 0.0
    %4691 = vmatprep.subr.mxu0 0.0
    %4692 = vmatpush1.msra.mxu0 0.0
    %4693 = vmatprep.subr.mxu0 0.0
    %4694 = vmatpush1.msra.mxu0 0.0
    %4695 = vmatprep.subr.mxu0 0.0
    %4696 = vmatpush1.msra.mxu0 0.0
    %4697 = vmatprep.subr.mxu0 0.0
    %4698 = vmatpush1.msra.mxu0 0.0
    %4699 = vmatprep.subr.mxu0 0.0
    %4700 = vmatpush1.msra.mxu0 0.0
    %4701 = vmatprep.subr.mxu0 0.0
    %4702 = vmatpush1.msra.mxu0 0.0
    %4703 = vmatprep.subr.mxu0 0.0
    %4704 = vmatpush1.msra.mxu0 0.0
    %4705 = vmatprep.subr.mxu0 0.0
    %4706 = vmatpush1.msra.mxu0 0.0
    %4707 = vmatprep.subr.mxu0 0.0
    %4708 = vmatpush1.msra.mxu0 0.0
    %4709 = vmatprep.subr.mxu0 0.0
    %4710 = vmatpush1.msra.mxu0 0.0
    %4711 = vmatprep.subr.mxu0 0.0
    %4712 = vmatpush1.msra.mxu0 0.0
    %4713 = vmatprep.subr.mxu0 0.0
    %4714 = vmatpush1.msra.mxu0 0.0
    %4715 = vmatprep.subr.mxu0 0.0
    %4716 = vmatpush1.msra.mxu0 0.0
    %4717 = vmatprep.subr.mxu0 0.0
    %4718 = vmatpush1.msra.mxu0 0.0
    %4719 = vmatprep.subr.mxu0 0.0
    %4720 = vmatpush1.msra.mxu0 0.0
    %4721 = vmatprep.subr.mxu0 0.0
    %4722 = vmatpush1.msra.mxu0 0.0
    %4723 = vmatprep.subr.mxu0 0.0
    %4724 = vmatpush1.msra.mxu0 0.0
    %4725 = vmatprep.subr.mxu0 0.0
    %4726 = vmatpush1.msra.mxu0 0.0
    %4727 = vmatprep.subr.mxu0 0.0
    %4728 = vmatpush1.msra.mxu0 0.0
    %4729 = vmatprep.subr.mxu0 0.0
    %4730 = vmatpush1.msra.mxu0 0.0
    %4731 = vmatprep.subr.mxu0 0.0
    %4732 = vmatpush1.msra.mxu0 0.0
    %4733 = vmatprep.subr.mxu0 0.0
    %4734 = vmatpush1.msra.mxu0 0.0
    %4735 = vmatprep.mubr.f32.mxu0 0.0
    %4736 = vmatmul.mubr.f32.gmra.mrb[0].mxu0 %v4666
    %v4737 = vpop.f32.mrb[0].mxu0
    %v4738 = vadd.f32 %v4663, %v4737
    %v4739 = vpop.f32.mrb[0].mxu0
    %4740 = vmatprep.mubr.f32.mxu0 0.0
    %4741 = vmatmul.mubr.f32.gmra.mrb[0].mxu0 %v4669
    %v4742 = vpop.f32.mrb[0].mxu0
    %v4743 = vadd.f32 %v4663, %v4742
    %v4744 = vpop.f32.mrb[0].mxu0
    %4745 = vdwg.mxu0
    %s4746 = scalar_lea.vmem %s5, 32
    %v4747 = vld [vmem:[%s4746] sm:$0xff]
    %v4748 = vld [vmem:[%s4746 + $0x8] sm:$0xff]
    %v4749 = vld [vmem:[%s4746 + $0x10] sm:$0xff]
    %v4750 = vld [vmem:[%s4746 + $0x18] sm:$0xff]
    %s4751 = scalar_lea.vmem %s6, 1
    %v4752 = vld [vmem:[%s4751] sm:$0x1]
    %4754 = vrot.lane.b32.xlu0 %v4738, 96
    %v4755 = vpop.permute.xlu0 %4754
    %v4756 = vsel %vm206, %v4738, 0
    %v4758 = vsel %vm206, %v4755, 0
    %4760 = vmatprep.subr.mxu0 0.0
    %4761 = vmatpush1.xpose.msra.mxu0 %v4758
    %4762 = vmatprep.subr.mxu0 0.0
    %4763 = vmatpush1.xpose.msra.mxu0 0.0
    %4764 = vmatprep.subr.mxu0 0.0
    %4765 = vmatpush1.xpose.msra.mxu0 0.0
    %4766 = vmatprep.subr.mxu0 0.0
    %4767 = vmatpush1.xpose.msra.mxu0 0.0
    %4768 = vmatprep.subr.mxu0 0.0
    %4769 = vmatpush1.xpose.msra.mxu0 0.0
    %4770 = vmatprep.subr.mxu0 0.0
    %4771 = vmatpush1.xpose.msra.mxu0 0.0
    %4772 = vmatprep.subr.mxu0 0.0
    %4773 = vmatpush1.xpose.msra.mxu0 0.0
    %4774 = vmatprep.subr.mxu0 0.0
    %4775 = vmatpush1.xpose.msra.mxu0 0.0
    %4776 = vmatprep.subr.mxu0 0.0
    %4777 = vmatpush1.xpose.msra.mxu0 0.0
    %4778 = vmatprep.subr.mxu0 0.0
    %4779 = vmatpush1.xpose.msra.mxu0 0.0
    %4780 = vmatprep.subr.mxu0 0.0
    %4781 = vmatpush1.xpose.msra.mxu0 0.0
    %4782 = vmatprep.subr.mxu0 0.0
    %4783 = vmatpush1.xpose.msra.mxu0 0.0
    %4784 = vmatprep.subr.mxu0 0.0
    %4785 = vmatpush1.xpose.msra.mxu0 0.0
    %4786 = vmatprep.subr.mxu0 0.0
    %4787 = vmatpush1.xpose.msra.mxu0 0.0
    %4788 = vmatprep.subr.mxu0 0.0
    %4789 = vmatpush1.xpose.msra.mxu0 0.0
    %4790 = vmatprep.subr.mxu0 0.0
    %4791 = vmatpush1.xpose.msra.mxu0 0.0
    %4792 = vmatprep.subr.mxu0 0.0
    %4793 = vmatpush1.xpose.msra.mxu0 0.0
    %4794 = vmatprep.subr.mxu0 0.0
    %4795 = vmatpush1.xpose.msra.mxu0 0.0
    %4796 = vmatprep.subr.mxu0 0.0
    %4797 = vmatpush1.xpose.msra.mxu0 0.0
    %4798 = vmatprep.subr.mxu0 0.0
    %4799 = vmatpush1.xpose.msra.mxu0 0.0
    %4800 = vmatprep.subr.mxu0 0.0
    %4801 = vmatpush1.xpose.msra.mxu0 0.0
    %4802 = vmatprep.subr.mxu0 0.0
    %4803 = vmatpush1.xpose.msra.mxu0 0.0
    %4804 = vmatprep.subr.mxu0 0.0
    %4805 = vmatpush1.xpose.msra.mxu0 0.0
    %4806 = vmatprep.subr.mxu0 0.0
    %4807 = vmatpush1.xpose.msra.mxu0 0.0
    %4808 = vmatprep.subr.mxu0 0.0
    %4809 = vmatpush1.xpose.msra.mxu0 0.0
    %4810 = vmatprep.subr.mxu0 0.0
    %4811 = vmatpush1.xpose.msra.mxu0 0.0
    %4812 = vmatprep.subr.mxu0 0.0
    %4813 = vmatpush1.xpose.msra.mxu0 0.0
    %4814 = vmatprep.subr.mxu0 0.0
    %4815 = vmatpush1.xpose.msra.mxu0 0.0
    %4816 = vmatprep.subr.mxu0 0.0
    %4817 = vmatpush1.xpose.msra.mxu0 0.0
    %4818 = vmatprep.subr.mxu0 0.0
    %4819 = vmatpush1.xpose.msra.mxu0 0.0
    %4820 = vmatprep.subr.mxu0 0.0
    %4821 = vmatpush1.xpose.msra.mxu0 0.0
    %4822 = vmatprep.subr.mxu0 0.0
    %4823 = vmatpush1.xpose.msra.mxu0 0.0
    %4824 = vmatprep.mubr.f32.mxu0 0.0
    %4825 = vmatmul.mubr.f32.gmra.mrb[0].mxu0 %v4756
    %v4826 = vpop.f32.mrb[0].mxu0
    %v4827 = vadd.f32 0.0, %v4826
    %v4828 = vpop.f32.mrb[0].mxu0
    %4829 = vdwg.mxu0
    %v4830 = vmul.f32 %v4827, 0.35355338
    %v4831 = vadd.f32 %v4830, %v104
    %v4832 = vsel %vm206, %v4831, -inf
    %4833 = vmax.xlane.f32.xlu0 %v4832
    %v4834 = vpop.xlane.xlu0 %4833
    %v4835 = vsub.f32 %v4831, %v4834
    %v4836 = vmul.f32 %v4835, 1.442695
    %v4837 = vpow.pop %v4836
    %v4838 = vsel %vm206, %v4837, 0.0
    %4839 = vadd.xlane.f32.xlu0 %v4838
    %v4840 = vpop.xlane.xlu0 %4839
    %v4841 = vrcp.pop %v4840
    %v4842 = vmul.f32 %v4837, %v4841
    %4843 = vrot.lane.b32.xlu0 %v4738, 64
    %v4844 = vpop.permute.xlu0 %4843
    %v4847 = vsel %vm206, %v4842, 0
    %4849 = vmatprep.subr.mxu0 0.0
    %4850 = vmatpush1.msra.mxu0 %v4844
    %4851 = vmatprep.subr.mxu0 0.0
    %4852 = vmatpush1.msra.mxu0 0.0
    %4853 = vmatprep.subr.mxu0 0.0
    %4854 = vmatpush1.msra.mxu0 0.0
    %4855 = vmatprep.subr.mxu0 0.0
    %4856 = vmatpush1.msra.mxu0 0.0
    %4857 = vmatprep.subr.mxu0 0.0
    %4858 = vmatpush1.msra.mxu0 0.0
    %4859 = vmatprep.subr.mxu0 0.0
    %4860 = vmatpush1.msra.mxu0 0.0
    %4861 = vmatprep.subr.mxu0 0.0
    %4862 = vmatpush1.msra.mxu0 0.0
    %4863 = vmatprep.subr.mxu0 0.0
    %4864 = vmatpush1.msra.mxu0 0.0
    %4865 = vmatprep.subr.mxu0 0.0
    %4866 = vmatpush1.msra.mxu0 0.0
    %4867 = vmatprep.subr.mxu0 0.0
    %4868 = vmatpush1.msra.mxu0 0.0
    %4869 = vmatprep.subr.mxu0 0.0
    %4870 = vmatpush1.msra.mxu0 0.0
    %4871 = vmatprep.subr.mxu0 0.0
    %4872 = vmatpush1.msra.mxu0 0.0
    %4873 = vmatprep.subr.mxu0 0.0
    %4874 = vmatpush1.msra.mxu0 0.0
    %4875 = vmatprep.subr.mxu0 0.0
    %4876 = vmatpush1.msra.mxu0 0.0
    %4877 = vmatprep.subr.mxu0 0.0
    %4878 = vmatpush1.msra.mxu0 0.0
    %4879 = vmatprep.subr.mxu0 0.0
    %4880 = vmatpush1.msra.mxu0 0.0
    %4881 = vmatprep.subr.mxu0 0.0
    %4882 = vmatpush1.msra.mxu0 0.0
    %4883 = vmatprep.subr.mxu0 0.0
    %4884 = vmatpush1.msra.mxu0 0.0
    %4885 = vmatprep.subr.mxu0 0.0
    %4886 = vmatpush1.msra.mxu0 0.0
    %4887 = vmatprep.subr.mxu0 0.0
    %4888 = vmatpush1.msra.mxu0 0.0
    %4889 = vmatprep.subr.mxu0 0.0
    %4890 = vmatpush1.msra.mxu0 0.0
    %4891 = vmatprep.subr.mxu0 0.0
    %4892 = vmatpush1.msra.mxu0 0.0
    %4893 = vmatprep.subr.mxu0 0.0
    %4894 = vmatpush1.msra.mxu0 0.0
    %4895 = vmatprep.subr.mxu0 0.0
    %4896 = vmatpush1.msra.mxu0 0.0
    %4897 = vmatprep.subr.mxu0 0.0
    %4898 = vmatpush1.msra.mxu0 0.0
    %4899 = vmatprep.subr.mxu0 0.0
    %4900 = vmatpush1.msra.mxu0 0.0
    %4901 = vmatprep.subr.mxu0 0.0
    %4902 = vmatpush1.msra.mxu0 0.0
    %4903 = vmatprep.subr.mxu0 0.0
    %4904 = vmatpush1.msra.mxu0 0.0
    %4905 = vmatprep.subr.mxu0 0.0
    %4906 = vmatpush1.msra.mxu0 0.0
    %4907 = vmatprep.subr.mxu0 0.0
    %4908 = vmatpush1.msra.mxu0 0.0
    %4909 = vmatprep.subr.mxu0 0.0
    %4910 = vmatpush1.msra.mxu0 0.0
    %4911 = vmatprep.subr.mxu0 0.0
    %4912 = vmatpush1.msra.mxu0 0.0
    %4913 = vmatprep.mubr.f32.mxu0 0.0
    %4914 = vmatmul.mubr.f32.gmra.mrb[0].mxu0 %v4847
    %v4915 = vpop.f32.mrb[0].mxu0
    %v4916 = vadd.f32 0.0, %v4915
    %v4917 = vpop.f32.mrb[0].mxu0
    %4918 = vdwg.mxu0
    %4919 = vrot.lane.b32.xlu0 %v4738, 120
    %v4920 = vpop.permute.xlu0 %4919
    %4921 = vrot.lane.b32.xlu0 %v4738, 88
    %v4922 = vpop.permute.xlu0 %4921
    %v4923 = vsel %vm206, %v4920, 0
    %v4925 = vsel %vm206, %v4922, 0
    %4927 = vmatprep.subr.mxu0 0.0
    %4928 = vmatpush1.xpose.msra.mxu0 %v4925
    %4929 = vmatprep.subr.mxu0 0.0
    %4930 = vmatpush1.xpose.msra.mxu0 0.0
    %4931 = vmatprep.subr.mxu0 0.0
    %4932 = vmatpush1.xpose.msra.mxu0 0.0
    %4933 = vmatprep.subr.mxu0 0.0
    %4934 = vmatpush1.xpose.msra.mxu0 0.0
    %4935 = vmatprep.subr.mxu0 0.0
    %4936 = vmatpush1.xpose.msra.mxu0 0.0
    %4937 = vmatprep.subr.mxu0 0.0
    %4938 = vmatpush1.xpose.msra.mxu0 0.0
    %4939 = vmatprep.subr.mxu0 0.0
    %4940 = vmatpush1.xpose.msra.mxu0 0.0
    %4941 = vmatprep.subr.mxu0 0.0
    %4942 = vmatpush1.xpose.msra.mxu0 0.0
    %4943 = vmatprep.subr.mxu0 0.0
    %4944 = vmatpush1.xpose.msra.mxu0 0.0
    %4945 = vmatprep.subr.mxu0 0.0
    %4946 = vmatpush1.xpose.msra.mxu0 0.0
    %4947 = vmatprep.subr.mxu0 0.0
    %4948 = vmatpush1.xpose.msra.mxu0 0.0
    %4949 = vmatprep.subr.mxu0 0.0
    %4950 = vmatpush1.xpose.msra.mxu0 0.0
    %4951 = vmatprep.subr.mxu0 0.0
    %4952 = vmatpush1.xpose.msra.mxu0 0.0
    %4953 = vmatprep.subr.mxu0 0.0
    %4954 = vmatpush1.xpose.msra.mxu0 0.0
    %4955 = vmatprep.subr.mxu0 0.0
    %4956 = vmatpush1.xpose.msra.mxu0 0.0
    %4957 = vmatprep.subr.mxu0 0.0
    %4958 = vmatpush1.xpose.msra.mxu0 0.0
    %4959 = vmatprep.subr.mxu0 0.0
    %4960 = vmatpush1.xpose.msra.mxu0 0.0
    %4961 = vmatprep.subr.mxu0 0.0
    %4962 = vmatpush1.xpose.msra.mxu0 0.0
    %4963 = vmatprep.subr.mxu0 0.0
    %4964 = vmatpush1.xpose.msra.mxu0 0.0
    %4965 = vmatprep.subr.mxu0 0.0
    %4966 = vmatpush1.xpose.msra.mxu0 0.0
    %4967 = vmatprep.subr.mxu0 0.0
    %4968 = vmatpush1.xpose.msra.mxu0 0.0
    %4969 = vmatprep.subr.mxu0 0.0
    %4970 = vmatpush1.xpose.msra.mxu0 0.0
    %4971 = vmatprep.subr.mxu0 0.0
    %4972 = vmatpush1.xpose.msra.mxu0 0.0
    %4973 = vmatprep.subr.mxu0 0.0
    %4974 = vmatpush1.xpose.msra.mxu0 0.0
    %4975 = vmatprep.subr.mxu0 0.0
    %4976 = vmatpush1.xpose.msra.mxu0 0.0
    %4977 = vmatprep.subr.mxu0 0.0
    %4978 = vmatpush1.xpose.msra.mxu0 0.0
    %4979 = vmatprep.subr.mxu0 0.0
    %4980 = vmatpush1.xpose.msra.mxu0 0.0
    %4981 = vmatprep.subr.mxu0 0.0
    %4982 = vmatpush1.xpose.msra.mxu0 0.0
    %4983 = vmatprep.subr.mxu0 0.0
    %4984 = vmatpush1.xpose.msra.mxu0 0.0
    %4985 = vmatprep.subr.mxu0 0.0
    %4986 = vmatpush1.xpose.msra.mxu0 0.0
    %4987 = vmatprep.subr.mxu0 0.0
    %4988 = vmatpush1.xpose.msra.mxu0 0.0
    %4989 = vmatprep.subr.mxu0 0.0
    %4990 = vmatpush1.xpose.msra.mxu0 0.0
    %4991 = vmatprep.mubr.f32.mxu0 0.0
    %4992 = vmatmul.mubr.f32.gmra.mrb[0].mxu0 %v4923
    %v4993 = vpop.f32.mrb[0].mxu0
    %v4994 = vadd.f32 0.0, %v4993
    %v4995 = vpop.f32.mrb[0].mxu0
    %4996 = vdwg.mxu0
    %v4997 = vmul.f32 %v4994, 0.35355338
    %v4998 = vadd.f32 %v4997, %v104
    %v4999 = vsel %vm206, %v4998, -inf
    %5000 = vmax.xlane.f32.xlu0 %v4999
    %v5001 = vpop.xlane.xlu0 %5000
    %v5002 = vsub.f32 %v4998, %v5001
    %v5003 = vmul.f32 %v5002, 1.442695
    %v5004 = vpow.pop %v5003
    %v5005 = vsel %vm206, %v5004, 0.0
    %5006 = vadd.xlane.f32.xlu0 %v5005
    %v5007 = vpop.xlane.xlu0 %5006
    %v5008 = vrcp.pop %v5007
    %v5009 = vmul.f32 %v5004, %v5008
    %5010 = vrot.lane.b32.xlu0 %v4738, 56
    %v5011 = vpop.permute.xlu0 %5010
    %v5014 = vsel %vm206, %v5009, 0
    %5016 = vmatprep.subr.mxu0 0.0
    %5017 = vmatpush1.msra.mxu0 %v5011
    %5018 = vmatprep.subr.mxu0 0.0
    %5019 = vmatpush1.msra.mxu0 0.0
    %5020 = vmatprep.subr.mxu0 0.0
    %5021 = vmatpush1.msra.mxu0 0.0
    %5022 = vmatprep.subr.mxu0 0.0
    %5023 = vmatpush1.msra.mxu0 0.0
    %5024 = vmatprep.subr.mxu0 0.0
    %5025 = vmatpush1.msra.mxu0 0.0
    %5026 = vmatprep.subr.mxu0 0.0
    %5027 = vmatpush1.msra.mxu0 0.0
    %5028 = vmatprep.subr.mxu0 0.0
    %5029 = vmatpush1.msra.mxu0 0.0
    %5030 = vmatprep.subr.mxu0 0.0
    %5031 = vmatpush1.msra.mxu0 0.0
    %5032 = vmatprep.subr.mxu0 0.0
    %5033 = vmatpush1.msra.mxu0 0.0
    %5034 = vmatprep.subr.mxu0 0.0
    %5035 = vmatpush1.msra.mxu0 0.0
    %5036 = vmatprep.subr.mxu0 0.0
    %5037 = vmatpush1.msra.mxu0 0.0
    %5038 = vmatprep.subr.mxu0 0.0
    %5039 = vmatpush1.msra.mxu0 0.0
    %5040 = vmatprep.subr.mxu0 0.0
    %5041 = vmatpush1.msra.mxu0 0.0
    %5042 = vmatprep.subr.mxu0 0.0
    %5043 = vmatpush1.msra.mxu0 0.0
    %5044 = vmatprep.subr.mxu0 0.0
    %5045 = vmatpush1.msra.mxu0 0.0
    %5046 = vmatprep.subr.mxu0 0.0
    %5047 = vmatpush1.msra.mxu0 0.0
    %5048 = vmatprep.subr.mxu0 0.0
    %5049 = vmatpush1.msra.mxu0 0.0
    %5050 = vmatprep.subr.mxu0 0.0
    %5051 = vmatpush1.msra.mxu0 0.0
    %5052 = vmatprep.subr.mxu0 0.0
    %5053 = vmatpush1.msra.mxu0 0.0
    %5054 = vmatprep.subr.mxu0 0.0
    %5055 = vmatpush1.msra.mxu0 0.0
    %5056 = vmatprep.subr.mxu0 0.0
    %5057 = vmatpush1.msra.mxu0 0.0
    %5058 = vmatprep.subr.mxu0 0.0
    %5059 = vmatpush1.msra.mxu0 0.0
    %5060 = vmatprep.subr.mxu0 0.0
    %5061 = vmatpush1.msra.mxu0 0.0
    %5062 = vmatprep.subr.mxu0 0.0
    %5063 = vmatpush1.msra.mxu0 0.0
    %5064 = vmatprep.subr.mxu0 0.0
    %5065 = vmatpush1.msra.mxu0 0.0
    %5066 = vmatprep.subr.mxu0 0.0
    %5067 = vmatpush1.msra.mxu0 0.0
    %5068 = vmatprep.subr.mxu0 0.0
    %5069 = vmatpush1.msra.mxu0 0.0
    %5070 = vmatprep.subr.mxu0 0.0
    %5071 = vmatpush1.msra.mxu0 0.0
    %5072 = vmatprep.subr.mxu0 0.0
    %5073 = vmatpush1.msra.mxu0 0.0
    %5074 = vmatprep.subr.mxu0 0.0
    %5075 = vmatpush1.msra.mxu0 0.0
    %5076 = vmatprep.subr.mxu0 0.0
    %5077 = vmatpush1.msra.mxu0 0.0
    %5078 = vmatprep.subr.mxu0 0.0
    %5079 = vmatpush1.msra.mxu0 0.0
    %5080 = vmatprep.mubr.f32.mxu0 0.0
    %5081 = vmatmul.mubr.f32.gmra.mrb[0].mxu0 %v5014
    %v5082 = vpop.f32.mrb[0].mxu0
    %v5083 = vadd.f32 0.0, %v5082
    %v5084 = vpop.f32.mrb[0].mxu0
    %5085 = vdwg.mxu0
    %v5087 = vsel %vm206, %v5083, 0
    %5089 = vmatprep.subr.mxu0 0.0
    %5090 = vmatpush1.msra.mxu0 %v4748
    %5091 = vmatprep.subr.mxu0 0.0
    %5092 = vmatpush1.msra.mxu0 0.0
    %5093 = vmatprep.subr.mxu0 0.0
    %5094 = vmatpush1.msra.mxu0 0.0
    %5095 = vmatprep.subr.mxu0 0.0
    %5096 = vmatpush1.msra.mxu0 0.0
    %5097 = vmatprep.subr.mxu0 0.0
    %5098 = vmatpush1.msra.mxu0 0.0
    %5099 = vmatprep.subr.mxu0 0.0
    %5100 = vmatpush1.msra.mxu0 0.0
    %5101 = vmatprep.subr.mxu0 0.0
    %5102 = vmatpush1.msra.mxu0 0.0
    %5103 = vmatprep.subr.mxu0 0.0
    %5104 = vmatpush1.msra.mxu0 0.0
    %5105 = vmatprep.subr.mxu0 0.0
    %5106 = vmatpush1.msra.mxu0 0.0
    %5107 = vmatprep.subr.mxu0 0.0
    %5108 = vmatpush1.msra.mxu0 0.0
    %5109 = vmatprep.subr.mxu0 0.0
    %5110 = vmatpush1.msra.mxu0 0.0
    %5111 = vmatprep.subr.mxu0 0.0
    %5112 = vmatpush1.msra.mxu0 0.0
    %5113 = vmatprep.subr.mxu0 0.0
    %5114 = vmatpush1.msra.mxu0 0.0
    %5115 = vmatprep.subr.mxu0 0.0
    %5116 = vmatpush1.msra.mxu0 0.0
    %5117 = vmatprep.subr.mxu0 0.0
    %5118 = vmatpush1.msra.mxu0 0.0
    %5119 = vmatprep.subr.mxu0 0.0
    %5120 = vmatpush1.msra.mxu0 0.0
    %5121 = vmatprep.subr.mxu0 0.0
    %5122 = vmatpush1.msra.mxu0 0.0
    %5123 = vmatprep.subr.mxu0 0.0
    %5124 = vmatpush1.msra.mxu0 0.0
    %5125 = vmatprep.subr.mxu0 0.0
    %5126 = vmatpush1.msra.mxu0 0.0
    %5127 = vmatprep.subr.mxu0 0.0
    %5128 = vmatpush1.msra.mxu0 0.0
    %5129 = vmatprep.subr.mxu0 0.0
    %5130 = vmatpush1.msra.mxu0 0.0
    %5131 = vmatprep.subr.mxu0 0.0
    %5132 = vmatpush1.msra.mxu0 0.0
    %5133 = vmatprep.subr.mxu0 0.0
    %5134 = vmatpush1.msra.mxu0 0.0
    %5135 = vmatprep.subr.mxu0 0.0
    %5136 = vmatpush1.msra.mxu0 0.0
    %5137 = vmatprep.subr.mxu0 0.0
    %5138 = vmatpush1.msra.mxu0 0.0
    %5139 = vmatprep.subr.mxu0 0.0
    %5140 = vmatpush1.msra.mxu0 0.0
    %5141 = vmatprep.subr.mxu0 0.0
    %5142 = vmatpush1.msra.mxu0 0.0
    %5143 = vmatprep.subr.mxu0 0.0
    %5144 = vmatpush1.msra.mxu0 0.0
    %5145 = vmatprep.subr.mxu0 0.0
    %5146 = vmatpush1.msra.mxu0 0.0
    %5147 = vmatprep.subr.mxu0 0.0
    %5148 = vmatpush1.msra.mxu0 0.0
    %5149 = vmatprep.subr.mxu0 0.0
    %5150 = vmatpush1.msra.mxu0 0.0
    %5151 = vmatprep.subr.mxu0 0.0
    %5152 = vmatpush1.msra.mxu0 0.0
    %5153 = vmatprep.mubr.f32.mxu0 0.0
    %5154 = vmatmul.mubr.f32.gmra.mrb[0].mxu0 %v5087
    %v5155 = vpop.f32.mrb[0].mxu0
    %v5156 = vadd.f32 0.0, %v5155
    %v5157 = vpop.f32.mrb[0].mxu0
    %5158 = vdwg.mxu0
    %v5160 = vsel %vm206, %v4916, 0
    %5162 = vmatprep.subr.mxu0 0.0
    %5163 = vmatpush1.msra.mxu0 %v4747
    %5164 = vmatprep.subr.mxu0 0.0
    %5165 = vmatpush1.msra.mxu0 0.0
    %5166 = vmatprep.subr.mxu0 0.0
    %5167 = vmatpush1.msra.mxu0 0.0
    %5168 = vmatprep.subr.mxu0 0.0
    %5169 = vmatpush1.msra.mxu0 0.0
    %5170 = vmatprep.subr.mxu0 0.0
    %5171 = vmatpush1.msra.mxu0 0.0
    %5172 = vmatprep.subr.mxu0 0.0
    %5173 = vmatpush1.msra.mxu0 0.0
    %5174 = vmatprep.subr.mxu0 0.0
    %5175 = vmatpush1.msra.mxu0 0.0
    %5176 = vmatprep.subr.mxu0 0.0
    %5177 = vmatpush1.msra.mxu0 0.0
    %5178 = vmatprep.subr.mxu0 0.0
    %5179 = vmatpush1.msra.mxu0 0.0
    %5180 = vmatprep.subr.mxu0 0.0
    %5181 = vmatpush1.msra.mxu0 0.0
    %5182 = vmatprep.subr.mxu0 0.0
    %5183 = vmatpush1.msra.mxu0 0.0
    %5184 = vmatprep.subr.mxu0 0.0
    %5185 = vmatpush1.msra.mxu0 0.0
    %5186 = vmatprep.subr.mxu0 0.0
    %5187 = vmatpush1.msra.mxu0 0.0
    %5188 = vmatprep.subr.mxu0 0.0
    %5189 = vmatpush1.msra.mxu0 0.0
    %5190 = vmatprep.subr.mxu0 0.0
    %5191 = vmatpush1.msra.mxu0 0.0
    %5192 = vmatprep.subr.mxu0 0.0
    %5193 = vmatpush1.msra.mxu0 0.0
    %5194 = vmatprep.subr.mxu0 0.0
    %5195 = vmatpush1.msra.mxu0 0.0
    %5196 = vmatprep.subr.mxu0 0.0
    %5197 = vmatpush1.msra.mxu0 0.0
    %5198 = vmatprep.subr.mxu0 0.0
    %5199 = vmatpush1.msra.mxu0 0.0
    %5200 = vmatprep.subr.mxu0 0.0
    %5201 = vmatpush1.msra.mxu0 0.0
    %5202 = vmatprep.subr.mxu0 0.0
    %5203 = vmatpush1.msra.mxu0 0.0
    %5204 = vmatprep.subr.mxu0 0.0
    %5205 = vmatpush1.msra.mxu0 0.0
    %5206 = vmatprep.subr.mxu0 0.0
    %5207 = vmatpush1.msra.mxu0 0.0
    %5208 = vmatprep.subr.mxu0 0.0
    %5209 = vmatpush1.msra.mxu0 0.0
    %5210 = vmatprep.subr.mxu0 0.0
    %5211 = vmatpush1.msra.mxu0 0.0
    %5212 = vmatprep.subr.mxu0 0.0
    %5213 = vmatpush1.msra.mxu0 0.0
    %5214 = vmatprep.subr.mxu0 0.0
    %5215 = vmatpush1.msra.mxu0 0.0
    %5216 = vmatprep.subr.mxu0 0.0
    %5217 = vmatpush1.msra.mxu0 0.0
    %5218 = vmatprep.subr.mxu0 0.0
    %5219 = vmatpush1.msra.mxu0 0.0
    %5220 = vmatprep.subr.mxu0 0.0
    %5221 = vmatpush1.msra.mxu0 0.0
    %5222 = vmatprep.subr.mxu0 0.0
    %5223 = vmatpush1.msra.mxu0 0.0
    %5224 = vmatprep.subr.mxu0 0.0
    %5225 = vmatpush1.msra.mxu0 0.0
    %5226 = vmatprep.mubr.f32.mxu0 0.0
    %5227 = vmatmul.mubr.f32.gmra.mrb[0].mxu0 %v5160
    %v5228 = vpop.f32.mrb[0].mxu0
    %v5229 = vadd.f32 %v5156, %v5228
    %v5230 = vpop.f32.mrb[0].mxu0
    %5231 = vdwg.mxu0
    %5232 = vrot.lane.b32.xlu0 %v4738, 112
    %v5233 = vpop.permute.xlu0 %5232
    %5234 = vrot.lane.b32.xlu0 %v4738, 80
    %v5235 = vpop.permute.xlu0 %5234
    %v5236 = vsel %vm206, %v5233, 0
    %v5238 = vsel %vm206, %v5235, 0
    %5240 = vmatprep.subr.mxu0 0.0
    %5241 = vmatpush1.xpose.msra.mxu0 %v5238
    %5242 = vmatprep.subr.mxu0 0.0
    %5243 = vmatpush1.xpose.msra.mxu0 0.0
    %5244 = vmatprep.subr.mxu0 0.0
    %5245 = vmatpush1.xpose.msra.mxu0 0.0
    %5246 = vmatprep.subr.mxu0 0.0
    %5247 = vmatpush1.xpose.msra.mxu0 0.0
    %5248 = vmatprep.subr.mxu0 0.0
    %5249 = vmatpush1.xpose.msra.mxu0 0.0
    %5250 = vmatprep.subr.mxu0 0.0
    %5251 = vmatpush1.xpose.msra.mxu0 0.0
    %5252 = vmatprep.subr.mxu0 0.0
    %5253 = vmatpush1.xpose.msra.mxu0 0.0
    %5254 = vmatprep.subr.mxu0 0.0
    %5255 = vmatpush1.xpose.msra.mxu0 0.0
    %5256 = vmatprep.subr.mxu0 0.0
    %5257 = vmatpush1.xpose.msra.mxu0 0.0
    %5258 = vmatprep.subr.mxu0 0.0
    %5259 = vmatpush1.xpose.msra.mxu0 0.0
    %5260 = vmatprep.subr.mxu0 0.0
    %5261 = vmatpush1.xpose.msra.mxu0 0.0
    %5262 = vmatprep.subr.mxu0 0.0
    %5263 = vmatpush1.xpose.msra.mxu0 0.0
    %5264 = vmatprep.subr.mxu0 0.0
    %5265 = vmatpush1.xpose.msra.mxu0 0.0
    %5266 = vmatprep.subr.mxu0 0.0
    %5267 = vmatpush1.xpose.msra.mxu0 0.0
    %5268 = vmatprep.subr.mxu0 0.0
    %5269 = vmatpush1.xpose.msra.mxu0 0.0
    %5270 = vmatprep.subr.mxu0 0.0
    %5271 = vmatpush1.xpose.msra.mxu0 0.0
    %5272 = vmatprep.subr.mxu0 0.0
    %5273 = vmatpush1.xpose.msra.mxu0 0.0
    %5274 = vmatprep.subr.mxu0 0.0
    %5275 = vmatpush1.xpose.msra.mxu0 0.0
    %5276 = vmatprep.subr.mxu0 0.0
    %5277 = vmatpush1.xpose.msra.mxu0 0.0
    %5278 = vmatprep.subr.mxu0 0.0
    %5279 = vmatpush1.xpose.msra.mxu0 0.0
    %5280 = vmatprep.subr.mxu0 0.0
    %5281 = vmatpush1.xpose.msra.mxu0 0.0
    %5282 = vmatprep.subr.mxu0 0.0
    %5283 = vmatpush1.xpose.msra.mxu0 0.0
    %5284 = vmatprep.subr.mxu0 0.0
    %5285 = vmatpush1.xpose.msra.mxu0 0.0
    %5286 = vmatprep.subr.mxu0 0.0
    %5287 = vmatpush1.xpose.msra.mxu0 0.0
    %5288 = vmatprep.subr.mxu0 0.0
    %5289 = vmatpush1.xpose.msra.mxu0 0.0
    %5290 = vmatprep.subr.mxu0 0.0
    %5291 = vmatpush1.xpose.msra.mxu0 0.0
    %5292 = vmatprep.subr.mxu0 0.0
    %5293 = vmatpush1.xpose.msra.mxu0 0.0
    %5294 = vmatprep.subr.mxu0 0.0
    %5295 = vmatpush1.xpose.msra.mxu0 0.0
    %5296 = vmatprep.subr.mxu0 0.0
    %5297 = vmatpush1.xpose.msra.mxu0 0.0
    %5298 = vmatprep.subr.mxu0 0.0
    %5299 = vmatpush1.xpose.msra.mxu0 0.0
    %5300 = vmatprep.subr.mxu0 0.0
    %5301 = vmatpush1.xpose.msra.mxu0 0.0
    %5302 = vmatprep.subr.mxu0 0.0
    %5303 = vmatpush1.xpose.msra.mxu0 0.0
    %5304 = vmatprep.mubr.f32.mxu0 0.0
    %5305 = vmatmul.mubr.f32.gmra.mrb[0].mxu0 %v5236
    %v5306 = vpop.f32.mrb[0].mxu0
    %v5307 = vadd.f32 0.0, %v5306
    %v5308 = vpop.f32.mrb[0].mxu0
    %5309 = vdwg.mxu0
    %v5310 = vmul.f32 %v5307, 0.35355338
    %v5311 = vadd.f32 %v5310, %v104
    %v5312 = vsel %vm206, %v5311, -inf
    %5313 = vmax.xlane.f32.xlu0 %v5312
    %v5314 = vpop.xlane.xlu0 %5313
    %v5315 = vsub.f32 %v5311, %v5314
    %v5316 = vmul.f32 %v5315, 1.442695
    %v5317 = vpow.pop %v5316
    %v5318 = vsel %vm206, %v5317, 0.0
    %5319 = vadd.xlane.f32.xlu0 %v5318
    %v5320 = vpop.xlane.xlu0 %5319
    %v5321 = vrcp.pop %v5320
    %v5322 = vmul.f32 %v5317, %v5321
    %5323 = vrot.lane.b32.xlu0 %v4738, 48
    %v5324 = vpop.permute.xlu0 %5323
    %v5327 = vsel %vm206, %v5322, 0
    %5329 = vmatprep.subr.mxu0 0.0
    %5330 = vmatpush1.msra.mxu0 %v5324
    %5331 = vmatprep.subr.mxu0 0.0
    %5332 = vmatpush1.msra.mxu0 0.0
    %5333 = vmatprep.subr.mxu0 0.0
    %5334 = vmatpush1.msra.mxu0 0.0
    %5335 = vmatprep.subr.mxu0 0.0
    %5336 = vmatpush1.msra.mxu0 0.0
    %5337 = vmatprep.subr.mxu0 0.0
    %5338 = vmatpush1.msra.mxu0 0.0
    %5339 = vmatprep.subr.mxu0 0.0
    %5340 = vmatpush1.msra.mxu0 0.0
    %5341 = vmatprep.subr.mxu0 0.0
    %5342 = vmatpush1.msra.mxu0 0.0
    %5343 = vmatprep.subr.mxu0 0.0
    %5344 = vmatpush1.msra.mxu0 0.0
    %5345 = vmatprep.subr.mxu0 0.0
    %5346 = vmatpush1.msra.mxu0 0.0
    %5347 = vmatprep.subr.mxu0 0.0
    %5348 = vmatpush1.msra.mxu0 0.0
    %5349 = vmatprep.subr.mxu0 0.0
    %5350 = vmatpush1.msra.mxu0 0.0
    %5351 = vmatprep.subr.mxu0 0.0
    %5352 = vmatpush1.msra.mxu0 0.0
    %5353 = vmatprep.subr.mxu0 0.0
    %5354 = vmatpush1.msra.mxu0 0.0
    %5355 = vmatprep.subr.mxu0 0.0
    %5356 = vmatpush1.msra.mxu0 0.0
    %5357 = vmatprep.subr.mxu0 0.0
    %5358 = vmatpush1.msra.mxu0 0.0
    %5359 = vmatprep.subr.mxu0 0.0
    %5360 = vmatpush1.msra.mxu0 0.0
    %5361 = vmatprep.subr.mxu0 0.0
    %5362 = vmatpush1.msra.mxu0 0.0
    %5363 = vmatprep.subr.mxu0 0.0
    %5364 = vmatpush1.msra.mxu0 0.0
    %5365 = vmatprep.subr.mxu0 0.0
    %5366 = vmatpush1.msra.mxu0 0.0
    %5367 = vmatprep.subr.mxu0 0.0
    %5368 = vmatpush1.msra.mxu0 0.0
    %5369 = vmatprep.subr.mxu0 0.0
    %5370 = vmatpush1.msra.mxu0 0.0
    %5371 = vmatprep.subr.mxu0 0.0
    %5372 = vmatpush1.msra.mxu0 0.0
    %5373 = vmatprep.subr.mxu0 0.0
    %5374 = vmatpush1.msra.mxu0 0.0
    %5375 = vmatprep.subr.mxu0 0.0
    %5376 = vmatpush1.msra.mxu0 0.0
    %5377 = vmatprep.subr.mxu0 0.0
    %5378 = vmatpush1.msra.mxu0 0.0
    %5379 = vmatprep.subr.mxu0 0.0
    %5380 = vmatpush1.msra.mxu0 0.0
    %5381 = vmatprep.subr.mxu0 0.0
    %5382 = vmatpush1.msra.mxu0 0.0
    %5383 = vmatprep.subr.mxu0 0.0
    %5384 = vmatpush1.msra.mxu0 0.0
    %5385 = vmatprep.subr.mxu0 0.0
    %5386 = vmatpush1.msra.mxu0 0.0
    %5387 = vmatprep.subr.mxu0 0.0
    %5388 = vmatpush1.msra.mxu0 0.0
    %5389 = vmatprep.subr.mxu0 0.0
    %5390 = vmatpush1.msra.mxu0 0.0
    %5391 = vmatprep.subr.mxu0 0.0
    %5392 = vmatpush1.msra.mxu0 0.0
    %5393 = vmatprep.mubr.f32.mxu0 0.0
    %5394 = vmatmul.mubr.f32.gmra.mrb[0].mxu0 %v5327
    %v5395 = vpop.f32.mrb[0].mxu0
    %v5396 = vadd.f32 0.0, %v5395
    %v5397 = vpop.f32.mrb[0].mxu0
    %5398 = vdwg.mxu0
    %v5400 = vsel %vm206, %v5396, 0
    %5402 = vmatprep.subr.mxu0 0.0
    %5403 = vmatpush1.msra.mxu0 %v4749
    %5404 = vmatprep.subr.mxu0 0.0
    %5405 = vmatpush1.msra.mxu0 0.0
    %5406 = vmatprep.subr.mxu0 0.0
    %5407 = vmatpush1.msra.mxu0 0.0
    %5408 = vmatprep.subr.mxu0 0.0
    %5409 = vmatpush1.msra.mxu0 0.0
    %5410 = vmatprep.subr.mxu0 0.0
    %5411 = vmatpush1.msra.mxu0 0.0
    %5412 = vmatprep.subr.mxu0 0.0
    %5413 = vmatpush1.msra.mxu0 0.0
    %5414 = vmatprep.subr.mxu0 0.0
    %5415 = vmatpush1.msra.mxu0 0.0
    %5416 = vmatprep.subr.mxu0 0.0
    %5417 = vmatpush1.msra.mxu0 0.0
    %5418 = vmatprep.subr.mxu0 0.0
    %5419 = vmatpush1.msra.mxu0 0.0
    %5420 = vmatprep.subr.mxu0 0.0
    %5421 = vmatpush1.msra.mxu0 0.0
    %5422 = vmatprep.subr.mxu0 0.0
    %5423 = vmatpush1.msra.mxu0 0.0
    %5424 = vmatprep.subr.mxu0 0.0
    %5425 = vmatpush1.msra.mxu0 0.0
    %5426 = vmatprep.subr.mxu0 0.0
    %5427 = vmatpush1.msra.mxu0 0.0
    %5428 = vmatprep.subr.mxu0 0.0
    %5429 = vmatpush1.msra.mxu0 0.0
    %5430 = vmatprep.subr.mxu0 0.0
    %5431 = vmatpush1.msra.mxu0 0.0
    %5432 = vmatprep.subr.mxu0 0.0
    %5433 = vmatpush1.msra.mxu0 0.0
    %5434 = vmatprep.subr.mxu0 0.0
    %5435 = vmatpush1.msra.mxu0 0.0
    %5436 = vmatprep.subr.mxu0 0.0
    %5437 = vmatpush1.msra.mxu0 0.0
    %5438 = vmatprep.subr.mxu0 0.0
    %5439 = vmatpush1.msra.mxu0 0.0
    %5440 = vmatprep.subr.mxu0 0.0
    %5441 = vmatpush1.msra.mxu0 0.0
    %5442 = vmatprep.subr.mxu0 0.0
    %5443 = vmatpush1.msra.mxu0 0.0
    %5444 = vmatprep.subr.mxu0 0.0
    %5445 = vmatpush1.msra.mxu0 0.0
    %5446 = vmatprep.subr.mxu0 0.0
    %5447 = vmatpush1.msra.mxu0 0.0
    %5448 = vmatprep.subr.mxu0 0.0
    %5449 = vmatpush1.msra.mxu0 0.0
    %5450 = vmatprep.subr.mxu0 0.0
    %5451 = vmatpush1.msra.mxu0 0.0
    %5452 = vmatprep.subr.mxu0 0.0
    %5453 = vmatpush1.msra.mxu0 0.0
    %5454 = vmatprep.subr.mxu0 0.0
    %5455 = vmatpush1.msra.mxu0 0.0
    %5456 = vmatprep.subr.mxu0 0.0
    %5457 = vmatpush1.msra.mxu0 0.0
    %5458 = vmatprep.subr.mxu0 0.0
    %5459 = vmatpush1.msra.mxu0 0.0
    %5460 = vmatprep.subr.mxu0 0.0
    %5461 = vmatpush1.msra.mxu0 0.0
    %5462 = vmatprep.subr.mxu0 0.0
    %5463 = vmatpush1.msra.mxu0 0.0
    %5464 = vmatprep.subr.mxu0 0.0
    %5465 = vmatpush1.msra.mxu0 0.0
    %5466 = vmatprep.mubr.f32.mxu0 0.0
    %5467 = vmatmul.mubr.f32.gmra.mrb[0].mxu0 %v5400
    %v5468 = vpop.f32.mrb[0].mxu0
    %v5469 = vadd.f32 0.0, %v5468
    %v5470 = vpop.f32.mrb[0].mxu0
    %5471 = vdwg.mxu0
    %v5472 = vadd.f32 %v5229, %v5469
    %5473 = vrot.lane.b32.xlu0 %v4738, 104
    %v5474 = vpop.permute.xlu0 %5473
    %5475 = vrot.lane.b32.xlu0 %v4738, 72
    %v5476 = vpop.permute.xlu0 %5475
    %v5477 = vsel %vm206, %v5474, 0
    %v5479 = vsel %vm206, %v5476, 0
    %5481 = vmatprep.subr.mxu0 0.0
    %5482 = vmatpush1.xpose.msra.mxu0 %v5479
    %5483 = vmatprep.subr.mxu0 0.0
    %5484 = vmatpush1.xpose.msra.mxu0 0.0
    %5485 = vmatprep.subr.mxu0 0.0
    %5486 = vmatpush1.xpose.msra.mxu0 0.0
    %5487 = vmatprep.subr.mxu0 0.0
    %5488 = vmatpush1.xpose.msra.mxu0 0.0
    %5489 = vmatprep.subr.mxu0 0.0
    %5490 = vmatpush1.xpose.msra.mxu0 0.0
    %5491 = vmatprep.subr.mxu0 0.0
    %5492 = vmatpush1.xpose.msra.mxu0 0.0
    %5493 = vmatprep.subr.mxu0 0.0
    %5494 = vmatpush1.xpose.msra.mxu0 0.0
    %5495 = vmatprep.subr.mxu0 0.0
    %5496 = vmatpush1.xpose.msra.mxu0 0.0
    %5497 = vmatprep.subr.mxu0 0.0
    %5498 = vmatpush1.xpose.msra.mxu0 0.0
    %5499 = vmatprep.subr.mxu0 0.0
    %5500 = vmatpush1.xpose.msra.mxu0 0.0
    %5501 = vmatprep.subr.mxu0 0.0
    %5502 = vmatpush1.xpose.msra.mxu0 0.0
    %5503 = vmatprep.subr.mxu0 0.0
    %5504 = vmatpush1.xpose.msra.mxu0 0.0
    %5505 = vmatprep.subr.mxu0 0.0
    %5506 = vmatpush1.xpose.msra.mxu0 0.0
    %5507 = vmatprep.subr.mxu0 0.0
    %5508 = vmatpush1.xpose.msra.mxu0 0.0
    %5509 = vmatprep.subr.mxu0 0.0
    %5510 = vmatpush1.xpose.msra.mxu0 0.0
    %5511 = vmatprep.subr.mxu0 0.0
    %5512 = vmatpush1.xpose.msra.mxu0 0.0
    %5513 = vmatprep.subr.mxu0 0.0
    %5514 = vmatpush1.xpose.msra.mxu0 0.0
    %5515 = vmatprep.subr.mxu0 0.0
    %5516 = vmatpush1.xpose.msra.mxu0 0.0
    %5517 = vmatprep.subr.mxu0 0.0
    %5518 = vmatpush1.xpose.msra.mxu0 0.0
    %5519 = vmatprep.subr.mxu0 0.0
    %5520 = vmatpush1.xpose.msra.mxu0 0.0
    %5521 = vmatprep.subr.mxu0 0.0
    %5522 = vmatpush1.xpose.msra.mxu0 0.0
    %5523 = vmatprep.subr.mxu0 0.0
    %5524 = vmatpush1.xpose.msra.mxu0 0.0
    %5525 = vmatprep.subr.mxu0 0.0
    %5526 = vmatpush1.xpose.msra.mxu0 0.0
    %5527 = vmatprep.subr.mxu0 0.0
    %5528 = vmatpush1.xpose.msra.mxu0 0.0
    %5529 = vmatprep.subr.mxu0 0.0
    %5530 = vmatpush1.xpose.msra.mxu0 0.0
    %5531 = vmatprep.subr.mxu0 0.0
    %5532 = vmatpush1.xpose.msra.mxu0 0.0
    %5533 = vmatprep.subr.mxu0 0.0
    %5534 = vmatpush1.xpose.msra.mxu0 0.0
    %5535 = vmatprep.subr.mxu0 0.0
    %5536 = vmatpush1.xpose.msra.mxu0 0.0
    %5537 = vmatprep.subr.mxu0 0.0
    %5538 = vmatpush1.xpose.msra.mxu0 0.0
    %5539 = vmatprep.subr.mxu0 0.0
    %5540 = vmatpush1.xpose.msra.mxu0 0.0
    %5541 = vmatprep.subr.mxu0 0.0
    %5542 = vmatpush1.xpose.msra.mxu0 0.0
    %5543 = vmatprep.subr.mxu0 0.0
    %5544 = vmatpush1.xpose.msra.mxu0 0.0
    %5545 = vmatprep.mubr.f32.mxu0 0.0
    %5546 = vmatmul.mubr.f32.gmra.mrb[0].mxu0 %v5477
    %v5547 = vpop.f32.mrb[0].mxu0
    %v5548 = vadd.f32 0.0, %v5547
    %v5549 = vpop.f32.mrb[0].mxu0
    %5550 = vdwg.mxu0
    %v5551 = vmul.f32 %v5548, 0.35355338
    %v5552 = vadd.f32 %v5551, %v104
    %v5553 = vsel %vm206, %v5552, -inf
    %5554 = vmax.xlane.f32.xlu0 %v5553
    %v5555 = vpop.xlane.xlu0 %5554
    %v5556 = vsub.f32 %v5552, %v5555
    %v5557 = vmul.f32 %v5556, 1.442695
    %v5558 = vpow.pop %v5557
    %v5559 = vsel %vm206, %v5558, 0.0
    %5560 = vadd.xlane.f32.xlu0 %v5559
    %v5561 = vpop.xlane.xlu0 %5560
    %v5562 = vrcp.pop %v5561
    %v5563 = vmul.f32 %v5558, %v5562
    %5564 = vrot.lane.b32.xlu0 %v4738, 40
    %v5565 = vpop.permute.xlu0 %5564
    %v5568 = vsel %vm206, %v5563, 0
    %5570 = vmatprep.subr.mxu0 0.0
    %5571 = vmatpush1.msra.mxu0 %v5565
    %5572 = vmatprep.subr.mxu0 0.0
    %5573 = vmatpush1.msra.mxu0 0.0
    %5574 = vmatprep.subr.mxu0 0.0
    %5575 = vmatpush1.msra.mxu0 0.0
    %5576 = vmatprep.subr.mxu0 0.0
    %5577 = vmatpush1.msra.mxu0 0.0
    %5578 = vmatprep.subr.mxu0 0.0
    %5579 = vmatpush1.msra.mxu0 0.0
    %5580 = vmatprep.subr.mxu0 0.0
    %5581 = vmatpush1.msra.mxu0 0.0
    %5582 = vmatprep.subr.mxu0 0.0
    %5583 = vmatpush1.msra.mxu0 0.0
    %5584 = vmatprep.subr.mxu0 0.0
    %5585 = vmatpush1.msra.mxu0 0.0
    %5586 = vmatprep.subr.mxu0 0.0
    %5587 = vmatpush1.msra.mxu0 0.0
    %5588 = vmatprep.subr.mxu0 0.0
    %5589 = vmatpush1.msra.mxu0 0.0
    %5590 = vmatprep.subr.mxu0 0.0
    %5591 = vmatpush1.msra.mxu0 0.0
    %5592 = vmatprep.subr.mxu0 0.0
    %5593 = vmatpush1.msra.mxu0 0.0
    %5594 = vmatprep.subr.mxu0 0.0
    %5595 = vmatpush1.msra.mxu0 0.0
    %5596 = vmatprep.subr.mxu0 0.0
    %5597 = vmatpush1.msra.mxu0 0.0
    %5598 = vmatprep.subr.mxu0 0.0
    %5599 = vmatpush1.msra.mxu0 0.0
    %5600 = vmatprep.subr.mxu0 0.0
    %5601 = vmatpush1.msra.mxu0 0.0
    %5602 = vmatprep.subr.mxu0 0.0
    %5603 = vmatpush1.msra.mxu0 0.0
    %5604 = vmatprep.subr.mxu0 0.0
    %5605 = vmatpush1.msra.mxu0 0.0
    %5606 = vmatprep.subr.mxu0 0.0
    %5607 = vmatpush1.msra.mxu0 0.0
    %5608 = vmatprep.subr.mxu0 0.0
    %5609 = vmatpush1.msra.mxu0 0.0
    %5610 = vmatprep.subr.mxu0 0.0
    %5611 = vmatpush1.msra.mxu0 0.0
    %5612 = vmatprep.subr.mxu0 0.0
    %5613 = vmatpush1.msra.mxu0 0.0
    %5614 = vmatprep.subr.mxu0 0.0
    %5615 = vmatpush1.msra.mxu0 0.0
    %5616 = vmatprep.subr.mxu0 0.0
    %5617 = vmatpush1.msra.mxu0 0.0
    %5618 = vmatprep.subr.mxu0 0.0
    %5619 = vmatpush1.msra.mxu0 0.0
    %5620 = vmatprep.subr.mxu0 0.0
    %5621 = vmatpush1.msra.mxu0 0.0
    %5622 = vmatprep.subr.mxu0 0.0
    %5623 = vmatpush1.msra.mxu0 0.0
    %5624 = vmatprep.subr.mxu0 0.0
    %5625 = vmatpush1.msra.mxu0 0.0
    %5626 = vmatprep.subr.mxu0 0.0
    %5627 = vmatpush1.msra.mxu0 0.0
    %5628 = vmatprep.subr.mxu0 0.0
    %5629 = vmatpush1.msra.mxu0 0.0
    %5630 = vmatprep.subr.mxu0 0.0
    %5631 = vmatpush1.msra.mxu0 0.0
    %5632 = vmatprep.subr.mxu0 0.0
    %5633 = vmatpush1.msra.mxu0 0.0
    %5634 = vmatprep.mubr.f32.mxu0 0.0
    %5635 = vmatmul.mubr.f32.gmra.mrb[0].mxu0 %v5568
    %v5636 = vpop.f32.mrb[0].mxu0
    %v5637 = vadd.f32 0.0, %v5636
    %v5638 = vpop.f32.mrb[0].mxu0
    %5639 = vdwg.mxu0
    %v5641 = vsel %vm206, %v5637, 0
    %5643 = vmatprep.subr.mxu0 0.0
    %5644 = vmatpush1.msra.mxu0 %v4750
    %5645 = vmatprep.subr.mxu0 0.0
    %5646 = vmatpush1.msra.mxu0 0.0
    %5647 = vmatprep.subr.mxu0 0.0
    %5648 = vmatpush1.msra.mxu0 0.0
    %5649 = vmatprep.subr.mxu0 0.0
    %5650 = vmatpush1.msra.mxu0 0.0
    %5651 = vmatprep.subr.mxu0 0.0
    %5652 = vmatpush1.msra.mxu0 0.0
    %5653 = vmatprep.subr.mxu0 0.0
    %5654 = vmatpush1.msra.mxu0 0.0
    %5655 = vmatprep.subr.mxu0 0.0
    %5656 = vmatpush1.msra.mxu0 0.0
    %5657 = vmatprep.subr.mxu0 0.0
    %5658 = vmatpush1.msra.mxu0 0.0
    %5659 = vmatprep.subr.mxu0 0.0
    %5660 = vmatpush1.msra.mxu0 0.0
    %5661 = vmatprep.subr.mxu0 0.0
    %5662 = vmatpush1.msra.mxu0 0.0
    %5663 = vmatprep.subr.mxu0 0.0
    %5664 = vmatpush1.msra.mxu0 0.0
    %5665 = vmatprep.subr.mxu0 0.0
    %5666 = vmatpush1.msra.mxu0 0.0
    %5667 = vmatprep.subr.mxu0 0.0
    %5668 = vmatpush1.msra.mxu0 0.0
    %5669 = vmatprep.subr.mxu0 0.0
    %5670 = vmatpush1.msra.mxu0 0.0
    %5671 = vmatprep.subr.mxu0 0.0
    %5672 = vmatpush1.msra.mxu0 0.0
    %5673 = vmatprep.subr.mxu0 0.0
    %5674 = vmatpush1.msra.mxu0 0.0
    %5675 = vmatprep.subr.mxu0 0.0
    %5676 = vmatpush1.msra.mxu0 0.0
    %5677 = vmatprep.subr.mxu0 0.0
    %5678 = vmatpush1.msra.mxu0 0.0
    %5679 = vmatprep.subr.mxu0 0.0
    %5680 = vmatpush1.msra.mxu0 0.0
    %5681 = vmatprep.subr.mxu0 0.0
    %5682 = vmatpush1.msra.mxu0 0.0
    %5683 = vmatprep.subr.mxu0 0.0
    %5684 = vmatpush1.msra.mxu0 0.0
    %5685 = vmatprep.subr.mxu0 0.0
    %5686 = vmatpush1.msra.mxu0 0.0
    %5687 = vmatprep.subr.mxu0 0.0
    %5688 = vmatpush1.msra.mxu0 0.0
    %5689 = vmatprep.subr.mxu0 0.0
    %5690 = vmatpush1.msra.mxu0 0.0
    %5691 = vmatprep.subr.mxu0 0.0
    %5692 = vmatpush1.msra.mxu0 0.0
    %5693 = vmatprep.subr.mxu0 0.0
    %5694 = vmatpush1.msra.mxu0 0.0
    %5695 = vmatprep.subr.mxu0 0.0
    %5696 = vmatpush1.msra.mxu0 0.0
    %5697 = vmatprep.subr.mxu0 0.0
    %5698 = vmatpush1.msra.mxu0 0.0
    %5699 = vmatprep.subr.mxu0 0.0
    %5700 = vmatpush1.msra.mxu0 0.0
    %5701 = vmatprep.subr.mxu0 0.0
    %5702 = vmatpush1.msra.mxu0 0.0
    %5703 = vmatprep.subr.mxu0 0.0
    %5704 = vmatpush1.msra.mxu0 0.0
    %5705 = vmatprep.subr.mxu0 0.0
    %5706 = vmatpush1.msra.mxu0 0.0
    %5707 = vmatprep.mubr.f32.mxu0 0.0
    %5708 = vmatmul.mubr.f32.gmra.mrb[0].mxu0 %v5641
    %v5709 = vpop.f32.mrb[0].mxu0
    %v5710 = vadd.f32 0.0, %v5709
    %v5711 = vpop.f32.mrb[0].mxu0
    %5712 = vdwg.mxu0
    %v5713 = vadd.f32 %v5472, %v5710
    %5715 = vrot.lane.b32.xlu0 %v4743, 96
    %v5716 = vpop.permute.xlu0 %5715
    %v5717 = vsel %vm206, %v4743, 0
    %v5719 = vsel %vm206, %v5716, 0
    %5721 = vmatprep.subr.mxu0 0.0
    %5722 = vmatpush1.xpose.msra.mxu0 %v5719
    %5723 = vmatprep.subr.mxu0 0.0
    %5724 = vmatpush1.xpose.msra.mxu0 0.0
    %5725 = vmatprep.subr.mxu0 0.0
    %5726 = vmatpush1.xpose.msra.mxu0 0.0
    %5727 = vmatprep.subr.mxu0 0.0
    %5728 = vmatpush1.xpose.msra.mxu0 0.0
    %5729 = vmatprep.subr.mxu0 0.0
    %5730 = vmatpush1.xpose.msra.mxu0 0.0
    %5731 = vmatprep.subr.mxu0 0.0
    %5732 = vmatpush1.xpose.msra.mxu0 0.0
    %5733 = vmatprep.subr.mxu0 0.0
    %5734 = vmatpush1.xpose.msra.mxu0 0.0
    %5735 = vmatprep.subr.mxu0 0.0
    %5736 = vmatpush1.xpose.msra.mxu0 0.0
    %5737 = vmatprep.subr.mxu0 0.0
    %5738 = vmatpush1.xpose.msra.mxu0 0.0
    %5739 = vmatprep.subr.mxu0 0.0
    %5740 = vmatpush1.xpose.msra.mxu0 0.0
    %5741 = vmatprep.subr.mxu0 0.0
    %5742 = vmatpush1.xpose.msra.mxu0 0.0
    %5743 = vmatprep.subr.mxu0 0.0
    %5744 = vmatpush1.xpose.msra.mxu0 0.0
    %5745 = vmatprep.subr.mxu0 0.0
    %5746 = vmatpush1.xpose.msra.mxu0 0.0
    %5747 = vmatprep.subr.mxu0 0.0
    %5748 = vmatpush1.xpose.msra.mxu0 0.0
    %5749 = vmatprep.subr.mxu0 0.0
    %5750 = vmatpush1.xpose.msra.mxu0 0.0
    %5751 = vmatprep.subr.mxu0 0.0
    %5752 = vmatpush1.xpose.msra.mxu0 0.0
    %5753 = vmatprep.subr.mxu0 0.0
    %5754 = vmatpush1.xpose.msra.mxu0 0.0
    %5755 = vmatprep.subr.mxu0 0.0
    %5756 = vmatpush1.xpose.msra.mxu0 0.0
    %5757 = vmatprep.subr.mxu0 0.0
    %5758 = vmatpush1.xpose.msra.mxu0 0.0
    %5759 = vmatprep.subr.mxu0 0.0
    %5760 = vmatpush1.xpose.msra.mxu0 0.0
    %5761 = vmatprep.subr.mxu0 0.0
    %5762 = vmatpush1.xpose.msra.mxu0 0.0
    %5763 = vmatprep.subr.mxu0 0.0
    %5764 = vmatpush1.xpose.msra.mxu0 0.0
    %5765 = vmatprep.subr.mxu0 0.0
    %5766 = vmatpush1.xpose.msra.mxu0 0.0
    %5767 = vmatprep.subr.mxu0 0.0
    %5768 = vmatpush1.xpose.msra.mxu0 0.0
    %5769 = vmatprep.subr.mxu0 0.0
    %5770 = vmatpush1.xpose.msra.mxu0 0.0
    %5771 = vmatprep.subr.mxu0 0.0
    %5772 = vmatpush1.xpose.msra.mxu0 0.0
    %5773 = vmatprep.subr.mxu0 0.0
    %5774 = vmatpush1.xpose.msra.mxu0 0.0
    %5775 = vmatprep.subr.mxu0 0.0
    %5776 = vmatpush1.xpose.msra.mxu0 0.0
    %5777 = vmatprep.subr.mxu0 0.0
    %5778 = vmatpush1.xpose.msra.mxu0 0.0
    %5779 = vmatprep.subr.mxu0 0.0
    %5780 = vmatpush1.xpose.msra.mxu0 0.0
    %5781 = vmatprep.subr.mxu0 0.0
    %5782 = vmatpush1.xpose.msra.mxu0 0.0
    %5783 = vmatprep.subr.mxu0 0.0
    %5784 = vmatpush1.xpose.msra.mxu0 0.0
    %5785 = vmatprep.mubr.f32.mxu0 0.0
    %5786 = vmatmul.mubr.f32.gmra.mrb[0].mxu0 %v5717
    %v5787 = vpop.f32.mrb[0].mxu0
    %v5788 = vadd.f32 0.0, %v5787
    %v5789 = vpop.f32.mrb[0].mxu0
    %5790 = vdwg.mxu0
    %v5791 = vmul.f32 %v5788, 0.35355338
    %v5792 = vadd.f32 %v5791, %v104
    %v5793 = vsel %vm206, %v5792, -inf
    %5794 = vmax.xlane.f32.xlu0 %v5793
    %v5795 = vpop.xlane.xlu0 %5794
    %v5796 = vsub.f32 %v5792, %v5795
    %v5797 = vmul.f32 %v5796, 1.442695
    %v5798 = vpow.pop %v5797
    %v5799 = vsel %vm206, %v5798, 0.0
    %5800 = vadd.xlane.f32.xlu0 %v5799
    %v5801 = vpop.xlane.xlu0 %5800
    %v5802 = vrcp.pop %v5801
    %v5803 = vmul.f32 %v5798, %v5802
    %5804 = vrot.lane.b32.xlu0 %v4743, 64
    %v5805 = vpop.permute.xlu0 %5804
    %v5808 = vsel %vm206, %v5803, 0
    %5810 = vmatprep.subr.mxu0 0.0
    %5811 = vmatpush1.msra.mxu0 %v5805
    %5812 = vmatprep.subr.mxu0 0.0
    %5813 = vmatpush1.msra.mxu0 0.0
    %5814 = vmatprep.subr.mxu0 0.0
    %5815 = vmatpush1.msra.mxu0 0.0
    %5816 = vmatprep.subr.mxu0 0.0
    %5817 = vmatpush1.msra.mxu0 0.0
    %5818 = vmatprep.subr.mxu0 0.0
    %5819 = vmatpush1.msra.mxu0 0.0
    %5820 = vmatprep.subr.mxu0 0.0
    %5821 = vmatpush1.msra.mxu0 0.0
    %5822 = vmatprep.subr.mxu0 0.0
    %5823 = vmatpush1.msra.mxu0 0.0
    %5824 = vmatprep.subr.mxu0 0.0
    %5825 = vmatpush1.msra.mxu0 0.0
    %5826 = vmatprep.subr.mxu0 0.0
    %5827 = vmatpush1.msra.mxu0 0.0
    %5828 = vmatprep.subr.mxu0 0.0
    %5829 = vmatpush1.msra.mxu0 0.0
    %5830 = vmatprep.subr.mxu0 0.0
    %5831 = vmatpush1.msra.mxu0 0.0
    %5832 = vmatprep.subr.mxu0 0.0
    %5833 = vmatpush1.msra.mxu0 0.0
    %5834 = vmatprep.subr.mxu0 0.0
    %5835 = vmatpush1.msra.mxu0 0.0
    %5836 = vmatprep.subr.mxu0 0.0
    %5837 = vmatpush1.msra.mxu0 0.0
    %5838 = vmatprep.subr.mxu0 0.0
    %5839 = vmatpush1.msra.mxu0 0.0
    %5840 = vmatprep.subr.mxu0 0.0
    %5841 = vmatpush1.msra.mxu0 0.0
    %5842 = vmatprep.subr.mxu0 0.0
    %5843 = vmatpush1.msra.mxu0 0.0
    %5844 = vmatprep.subr.mxu0 0.0
    %5845 = vmatpush1.msra.mxu0 0.0
    %5846 = vmatprep.subr.mxu0 0.0
    %5847 = vmatpush1.msra.mxu0 0.0
    %5848 = vmatprep.subr.mxu0 0.0
    %5849 = vmatpush1.msra.mxu0 0.0
    %5850 = vmatprep.subr.mxu0 0.0
    %5851 = vmatpush1.msra.mxu0 0.0
    %5852 = vmatprep.subr.mxu0 0.0
    %5853 = vmatpush1.msra.mxu0 0.0
    %5854 = vmatprep.subr.mxu0 0.0
    %5855 = vmatpush1.msra.mxu0 0.0
    %5856 = vmatprep.subr.mxu0 0.0
    %5857 = vmatpush1.msra.mxu0 0.0
    %5858 = vmatprep.subr.mxu0 0.0
    %5859 = vmatpush1.msra.mxu0 0.0
    %5860 = vmatprep.subr.mxu0 0.0
    %5861 = vmatpush1.msra.mxu0 0.0
    %5862 = vmatprep.subr.mxu0 0.0
    %5863 = vmatpush1.msra.mxu0 0.0
    %5864 = vmatprep.subr.mxu0 0.0
    %5865 = vmatpush1.msra.mxu0 0.0
    %5866 = vmatprep.subr.mxu0 0.0
    %5867 = vmatpush1.msra.mxu0 0.0
    %5868 = vmatprep.subr.mxu0 0.0
    %5869 = vmatpush1.msra.mxu0 0.0
    %5870 = vmatprep.subr.mxu0 0.0
    %5871 = vmatpush1.msra.mxu0 0.0
    %5872 = vmatprep.subr.mxu0 0.0
    %5873 = vmatpush1.msra.mxu0 0.0
    %5874 = vmatprep.mubr.f32.mxu0 0.0
    %5875 = vmatmul.mubr.f32.gmra.mrb[0].mxu0 %v5808
    %v5876 = vpop.f32.mrb[0].mxu0
    %v5877 = vadd.f32 0.0, %v5876
    %v5878 = vpop.f32.mrb[0].mxu0
    %5879 = vdwg.mxu0
    %5880 = vrot.lane.b32.xlu0 %v4743, 120
    %v5881 = vpop.permute.xlu0 %5880
    %5882 = vrot.lane.b32.xlu0 %v4743, 88
    %v5883 = vpop.permute.xlu0 %5882
    %v5884 = vsel %vm206, %v5881, 0
    %v5886 = vsel %vm206, %v5883, 0
    %5888 = vmatprep.subr.mxu0 0.0
    %5889 = vmatpush1.xpose.msra.mxu0 %v5886
    %5890 = vmatprep.subr.mxu0 0.0
    %5891 = vmatpush1.xpose.msra.mxu0 0.0
    %5892 = vmatprep.subr.mxu0 0.0
    %5893 = vmatpush1.xpose.msra.mxu0 0.0
    %5894 = vmatprep.subr.mxu0 0.0
    %5895 = vmatpush1.xpose.msra.mxu0 0.0
    %5896 = vmatprep.subr.mxu0 0.0
    %5897 = vmatpush1.xpose.msra.mxu0 0.0
    %5898 = vmatprep.subr.mxu0 0.0
    %5899 = vmatpush1.xpose.msra.mxu0 0.0
    %5900 = vmatprep.subr.mxu0 0.0
    %5901 = vmatpush1.xpose.msra.mxu0 0.0
    %5902 = vmatprep.subr.mxu0 0.0
    %5903 = vmatpush1.xpose.msra.mxu0 0.0
    %5904 = vmatprep.subr.mxu0 0.0
    %5905 = vmatpush1.xpose.msra.mxu0 0.0
    %5906 = vmatprep.subr.mxu0 0.0
    %5907 = vmatpush1.xpose.msra.mxu0 0.0
    %5908 = vmatprep.subr.mxu0 0.0
    %5909 = vmatpush1.xpose.msra.mxu0 0.0
    %5910 = vmatprep.subr.mxu0 0.0
    %5911 = vmatpush1.xpose.msra.mxu0 0.0
    %5912 = vmatprep.subr.mxu0 0.0
    %5913 = vmatpush1.xpose.msra.mxu0 0.0
    %5914 = vmatprep.subr.mxu0 0.0
    %5915 = vmatpush1.xpose.msra.mxu0 0.0
    %5916 = vmatprep.subr.mxu0 0.0
    %5917 = vmatpush1.xpose.msra.mxu0 0.0
    %5918 = vmatprep.subr.mxu0 0.0
    %5919 = vmatpush1.xpose.msra.mxu0 0.0
    %5920 = vmatprep.subr.mxu0 0.0
    %5921 = vmatpush1.xpose.msra.mxu0 0.0
    %5922 = vmatprep.subr.mxu0 0.0
    %5923 = vmatpush1.xpose.msra.mxu0 0.0
    %5924 = vmatprep.subr.mxu0 0.0
    %5925 = vmatpush1.xpose.msra.mxu0 0.0
    %5926 = vmatprep.subr.mxu0 0.0
    %5927 = vmatpush1.xpose.msra.mxu0 0.0
    %5928 = vmatprep.subr.mxu0 0.0
    %5929 = vmatpush1.xpose.msra.mxu0 0.0
    %5930 = vmatprep.subr.mxu0 0.0
    %5931 = vmatpush1.xpose.msra.mxu0 0.0
    %5932 = vmatprep.subr.mxu0 0.0
    %5933 = vmatpush1.xpose.msra.mxu0 0.0
    %5934 = vmatprep.subr.mxu0 0.0
    %5935 = vmatpush1.xpose.msra.mxu0 0.0
    %5936 = vmatprep.subr.mxu0 0.0
    %5937 = vmatpush1.xpose.msra.mxu0 0.0
    %5938 = vmatprep.subr.mxu0 0.0
    %5939 = vmatpush1.xpose.msra.mxu0 0.0
    %5940 = vmatprep.subr.mxu0 0.0
    %5941 = vmatpush1.xpose.msra.mxu0 0.0
    %5942 = vmatprep.subr.mxu0 0.0
    %5943 = vmatpush1.xpose.msra.mxu0 0.0
    %5944 = vmatprep.subr.mxu0 0.0
    %5945 = vmatpush1.xpose.msra.mxu0 0.0
    %5946 = vmatprep.subr.mxu0 0.0
    %5947 = vmatpush1.xpose.msra.mxu0 0.0
    %5948 = vmatprep.subr.mxu0 0.0
    %5949 = vmatpush1.xpose.msra.mxu0 0.0
    %5950 = vmatprep.subr.mxu0 0.0
    %5951 = vmatpush1.xpose.msra.mxu0 0.0
    %5952 = vmatprep.mubr.f32.mxu0 0.0
    %5953 = vmatmul.mubr.f32.gmra.mrb[0].mxu0 %v5884
    %v5954 = vpop.f32.mrb[0].mxu0
    %v5955 = vadd.f32 0.0, %v5954
    %v5956 = vpop.f32.mrb[0].mxu0
    %5957 = vdwg.mxu0
    %v5958 = vmul.f32 %v5955, 0.35355338
    %v5959 = vadd.f32 %v5958, %v104
    %v5960 = vsel %vm206, %v5959, -inf
    %5961 = vmax.xlane.f32.xlu0 %v5960
    %v5962 = vpop.xlane.xlu0 %5961
    %v5963 = vsub.f32 %v5959, %v5962
    %v5964 = vmul.f32 %v5963, 1.442695
    %v5965 = vpow.pop %v5964
    %v5966 = vsel %vm206, %v5965, 0.0
    %5967 = vadd.xlane.f32.xlu0 %v5966
    %v5968 = vpop.xlane.xlu0 %5967
    %v5969 = vrcp.pop %v5968
    %v5970 = vmul.f32 %v5965, %v5969
    %5971 = vrot.lane.b32.xlu0 %v4743, 56
    %v5972 = vpop.permute.xlu0 %5971
    %v5975 = vsel %vm206, %v5970, 0
    %5977 = vmatprep.subr.mxu0 0.0
    %5978 = vmatpush1.msra.mxu0 %v5972
    %5979 = vmatprep.subr.mxu0 0.0
    %5980 = vmatpush1.msra.mxu0 0.0
    %5981 = vmatprep.subr.mxu0 0.0
    %5982 = vmatpush1.msra.mxu0 0.0
    %5983 = vmatprep.subr.mxu0 0.0
    %5984 = vmatpush1.msra.mxu0 0.0
    %5985 = vmatprep.subr.mxu0 0.0
    %5986 = vmatpush1.msra.mxu0 0.0
    %5987 = vmatprep.subr.mxu0 0.0
    %5988 = vmatpush1.msra.mxu0 0.0
    %5989 = vmatprep.subr.mxu0 0.0
    %5990 = vmatpush1.msra.mxu0 0.0
    %5991 = vmatprep.subr.mxu0 0.0
    %5992 = vmatpush1.msra.mxu0 0.0
    %5993 = vmatprep.subr.mxu0 0.0
    %5994 = vmatpush1.msra.mxu0 0.0
    %5995 = vmatprep.subr.mxu0 0.0
    %5996 = vmatpush1.msra.mxu0 0.0
    %5997 = vmatprep.subr.mxu0 0.0
    %5998 = vmatpush1.msra.mxu0 0.0
    %5999 = vmatprep.subr.mxu0 0.0
    %6000 = vmatpush1.msra.mxu0 0.0
    %6001 = vmatprep.subr.mxu0 0.0
    %6002 = vmatpush1.msra.mxu0 0.0
    %6003 = vmatprep.subr.mxu0 0.0
    %6004 = vmatpush1.msra.mxu0 0.0
    %6005 = vmatprep.subr.mxu0 0.0
    %6006 = vmatpush1.msra.mxu0 0.0
    %6007 = vmatprep.subr.mxu0 0.0
    %6008 = vmatpush1.msra.mxu0 0.0
    %6009 = vmatprep.subr.mxu0 0.0
    %6010 = vmatpush1.msra.mxu0 0.0
    %6011 = vmatprep.subr.mxu0 0.0
    %6012 = vmatpush1.msra.mxu0 0.0
    %6013 = vmatprep.subr.mxu0 0.0
    %6014 = vmatpush1.msra.mxu0 0.0
    %6015 = vmatprep.subr.mxu0 0.0
    %6016 = vmatpush1.msra.mxu0 0.0
    %6017 = vmatprep.subr.mxu0 0.0
    %6018 = vmatpush1.msra.mxu0 0.0
    %6019 = vmatprep.subr.mxu0 0.0
    %6020 = vmatpush1.msra.mxu0 0.0
    %6021 = vmatprep.subr.mxu0 0.0
    %6022 = vmatpush1.msra.mxu0 0.0
    %6023 = vmatprep.subr.mxu0 0.0
    %6024 = vmatpush1.msra.mxu0 0.0
    %6025 = vmatprep.subr.mxu0 0.0
    %6026 = vmatpush1.msra.mxu0 0.0
    %6027 = vmatprep.subr.mxu0 0.0
    %6028 = vmatpush1.msra.mxu0 0.0
    %6029 = vmatprep.subr.mxu0 0.0
    %6030 = vmatpush1.msra.mxu0 0.0
    %6031 = vmatprep.subr.mxu0 0.0
    %6032 = vmatpush1.msra.mxu0 0.0
    %6033 = vmatprep.subr.mxu0 0.0
    %6034 = vmatpush1.msra.mxu0 0.0
    %6035 = vmatprep.subr.mxu0 0.0
    %6036 = vmatpush1.msra.mxu0 0.0
    %6037 = vmatprep.subr.mxu0 0.0
    %6038 = vmatpush1.msra.mxu0 0.0
    %6039 = vmatprep.subr.mxu0 0.0
    %6040 = vmatpush1.msra.mxu0 0.0
    %6041 = vmatprep.mubr.f32.mxu0 0.0
    %6042 = vmatmul.mubr.f32.gmra.mrb[0].mxu0 %v5975
    %v6043 = vpop.f32.mrb[0].mxu0
    %v6044 = vadd.f32 0.0, %v6043
    %v6045 = vpop.f32.mrb[0].mxu0
    %6046 = vdwg.mxu0
    %v6048 = vsel %vm206, %v6044, 0
    %6050 = vmatprep.subr.mxu0 0.0
    %6051 = vmatpush1.msra.mxu0 %v4748
    %6052 = vmatprep.subr.mxu0 0.0
    %6053 = vmatpush1.msra.mxu0 0.0
    %6054 = vmatprep.subr.mxu0 0.0
    %6055 = vmatpush1.msra.mxu0 0.0
    %6056 = vmatprep.subr.mxu0 0.0
    %6057 = vmatpush1.msra.mxu0 0.0
    %6058 = vmatprep.subr.mxu0 0.0
    %6059 = vmatpush1.msra.mxu0 0.0
    %6060 = vmatprep.subr.mxu0 0.0
    %6061 = vmatpush1.msra.mxu0 0.0
    %6062 = vmatprep.subr.mxu0 0.0
    %6063 = vmatpush1.msra.mxu0 0.0
    %6064 = vmatprep.subr.mxu0 0.0
    %6065 = vmatpush1.msra.mxu0 0.0
    %6066 = vmatprep.subr.mxu0 0.0
    %6067 = vmatpush1.msra.mxu0 0.0
    %6068 = vmatprep.subr.mxu0 0.0
    %6069 = vmatpush1.msra.mxu0 0.0
    %6070 = vmatprep.subr.mxu0 0.0
    %6071 = vmatpush1.msra.mxu0 0.0
    %6072 = vmatprep.subr.mxu0 0.0
    %6073 = vmatpush1.msra.mxu0 0.0
    %6074 = vmatprep.subr.mxu0 0.0
    %6075 = vmatpush1.msra.mxu0 0.0
    %6076 = vmatprep.subr.mxu0 0.0
    %6077 = vmatpush1.msra.mxu0 0.0
    %6078 = vmatprep.subr.mxu0 0.0
    %6079 = vmatpush1.msra.mxu0 0.0
    %6080 = vmatprep.subr.mxu0 0.0
    %6081 = vmatpush1.msra.mxu0 0.0
    %6082 = vmatprep.subr.mxu0 0.0
    %6083 = vmatpush1.msra.mxu0 0.0
    %6084 = vmatprep.subr.mxu0 0.0
    %6085 = vmatpush1.msra.mxu0 0.0
    %6086 = vmatprep.subr.mxu0 0.0
    %6087 = vmatpush1.msra.mxu0 0.0
    %6088 = vmatprep.subr.mxu0 0.0
    %6089 = vmatpush1.msra.mxu0 0.0
    %6090 = vmatprep.subr.mxu0 0.0
    %6091 = vmatpush1.msra.mxu0 0.0
    %6092 = vmatprep.subr.mxu0 0.0
    %6093 = vmatpush1.msra.mxu0 0.0
    %6094 = vmatprep.subr.mxu0 0.0
    %6095 = vmatpush1.msra.mxu0 0.0
    %6096 = vmatprep.subr.mxu0 0.0
    %6097 = vmatpush1.msra.mxu0 0.0
    %6098 = vmatprep.subr.mxu0 0.0
    %6099 = vmatpush1.msra.mxu0 0.0
    %6100 = vmatprep.subr.mxu0 0.0
    %6101 = vmatpush1.msra.mxu0 0.0
    %6102 = vmatprep.subr.mxu0 0.0
    %6103 = vmatpush1.msra.mxu0 0.0
    %6104 = vmatprep.subr.mxu0 0.0
    %6105 = vmatpush1.msra.mxu0 0.0
    %6106 = vmatprep.subr.mxu0 0.0
    %6107 = vmatpush1.msra.mxu0 0.0
    %6108 = vmatprep.subr.mxu0 0.0
    %6109 = vmatpush1.msra.mxu0 0.0
    %6110 = vmatprep.subr.mxu0 0.0
    %6111 = vmatpush1.msra.mxu0 0.0
    %6112 = vmatprep.subr.mxu0 0.0
    %6113 = vmatpush1.msra.mxu0 0.0
    %6114 = vmatprep.mubr.f32.mxu0 0.0
    %6115 = vmatmul.mubr.f32.gmra.mrb[0].mxu0 %v6048
    %v6116 = vpop.f32.mrb[0].mxu0
    %v6117 = vadd.f32 0.0, %v6116
    %v6118 = vpop.f32.mrb[0].mxu0
    %6119 = vdwg.mxu0
    %v6121 = vsel %vm206, %v5877, 0
    %6123 = vmatprep.subr.mxu0 0.0
    %6124 = vmatpush1.msra.mxu0 %v4747
    %6125 = vmatprep.subr.mxu0 0.0
    %6126 = vmatpush1.msra.mxu0 0.0
    %6127 = vmatprep.subr.mxu0 0.0
    %6128 = vmatpush1.msra.mxu0 0.0
    %6129 = vmatprep.subr.mxu0 0.0
    %6130 = vmatpush1.msra.mxu0 0.0
    %6131 = vmatprep.subr.mxu0 0.0
    %6132 = vmatpush1.msra.mxu0 0.0
    %6133 = vmatprep.subr.mxu0 0.0
    %6134 = vmatpush1.msra.mxu0 0.0
    %6135 = vmatprep.subr.mxu0 0.0
    %6136 = vmatpush1.msra.mxu0 0.0
    %6137 = vmatprep.subr.mxu0 0.0
    %6138 = vmatpush1.msra.mxu0 0.0
    %6139 = vmatprep.subr.mxu0 0.0
    %6140 = vmatpush1.msra.mxu0 0.0
    %6141 = vmatprep.subr.mxu0 0.0
    %6142 = vmatpush1.msra.mxu0 0.0
    %6143 = vmatprep.subr.mxu0 0.0
    %6144 = vmatpush1.msra.mxu0 0.0
    %6145 = vmatprep.subr.mxu0 0.0
    %6146 = vmatpush1.msra.mxu0 0.0
    %6147 = vmatprep.subr.mxu0 0.0
    %6148 = vmatpush1.msra.mxu0 0.0
    %6149 = vmatprep.subr.mxu0 0.0
    %6150 = vmatpush1.msra.mxu0 0.0
    %6151 = vmatprep.subr.mxu0 0.0
    %6152 = vmatpush1.msra.mxu0 0.0
    %6153 = vmatprep.subr.mxu0 0.0
    %6154 = vmatpush1.msra.mxu0 0.0
    %6155 = vmatprep.subr.mxu0 0.0
    %6156 = vmatpush1.msra.mxu0 0.0
    %6157 = vmatprep.subr.mxu0 0.0
    %6158 = vmatpush1.msra.mxu0 0.0
    %6159 = vmatprep.subr.mxu0 0.0
    %6160 = vmatpush1.msra.mxu0 0.0
    %6161 = vmatprep.subr.mxu0 0.0
    %6162 = vmatpush1.msra.mxu0 0.0
    %6163 = vmatprep.subr.mxu0 0.0
    %6164 = vmatpush1.msra.mxu0 0.0
    %6165 = vmatprep.subr.mxu0 0.0
    %6166 = vmatpush1.msra.mxu0 0.0
    %6167 = vmatprep.subr.mxu0 0.0
    %6168 = vmatpush1.msra.mxu0 0.0
    %6169 = vmatprep.subr.mxu0 0.0
    %6170 = vmatpush1.msra.mxu0 0.0
    %6171 = vmatprep.subr.mxu0 0.0
    %6172 = vmatpush1.msra.mxu0 0.0
    %6173 = vmatprep.subr.mxu0 0.0
    %6174 = vmatpush1.msra.mxu0 0.0
    %6175 = vmatprep.subr.mxu0 0.0
    %6176 = vmatpush1.msra.mxu0 0.0
    %6177 = vmatprep.subr.mxu0 0.0
    %6178 = vmatpush1.msra.mxu0 0.0
    %6179 = vmatprep.subr.mxu0 0.0
    %6180 = vmatpush1.msra.mxu0 0.0
    %6181 = vmatprep.subr.mxu0 0.0
    %6182 = vmatpush1.msra.mxu0 0.0
    %6183 = vmatprep.subr.mxu0 0.0
    %6184 = vmatpush1.msra.mxu0 0.0
    %6185 = vmatprep.subr.mxu0 0.0
    %6186 = vmatpush1.msra.mxu0 0.0
    %6187 = vmatprep.mubr.f32.mxu0 0.0
    %6188 = vmatmul.mubr.f32.gmra.mrb[0].mxu0 %v6121
    %v6189 = vpop.f32.mrb[0].mxu0
    %v6190 = vadd.f32 %v6117, %v6189
    %v6191 = vpop.f32.mrb[0].mxu0
    %6192 = vdwg.mxu0
    %6193 = vrot.lane.b32.xlu0 %v4743, 112
    %v6194 = vpop.permute.xlu0 %6193
    %6195 = vrot.lane.b32.xlu0 %v4743, 80
    %v6196 = vpop.permute.xlu0 %6195
    %v6197 = vsel %vm206, %v6194, 0
    %v6199 = vsel %vm206, %v6196, 0
    %6201 = vmatprep.subr.mxu0 0.0
    %6202 = vmatpush1.xpose.msra.mxu0 %v6199
    %6203 = vmatprep.subr.mxu0 0.0
    %6204 = vmatpush1.xpose.msra.mxu0 0.0
    %6205 = vmatprep.subr.mxu0 0.0
    %6206 = vmatpush1.xpose.msra.mxu0 0.0
    %6207 = vmatprep.subr.mxu0 0.0
    %6208 = vmatpush1.xpose.msra.mxu0 0.0
    %6209 = vmatprep.subr.mxu0 0.0
    %6210 = vmatpush1.xpose.msra.mxu0 0.0
    %6211 = vmatprep.subr.mxu0 0.0
    %6212 = vmatpush1.xpose.msra.mxu0 0.0
    %6213 = vmatprep.subr.mxu0 0.0
    %6214 = vmatpush1.xpose.msra.mxu0 0.0
    %6215 = vmatprep.subr.mxu0 0.0
    %6216 = vmatpush1.xpose.msra.mxu0 0.0
    %6217 = vmatprep.subr.mxu0 0.0
    %6218 = vmatpush1.xpose.msra.mxu0 0.0
    %6219 = vmatprep.subr.mxu0 0.0
    %6220 = vmatpush1.xpose.msra.mxu0 0.0
    %6221 = vmatprep.subr.mxu0 0.0
    %6222 = vmatpush1.xpose.msra.mxu0 0.0
    %6223 = vmatprep.subr.mxu0 0.0
    %6224 = vmatpush1.xpose.msra.mxu0 0.0
    %6225 = vmatprep.subr.mxu0 0.0
    %6226 = vmatpush1.xpose.msra.mxu0 0.0
    %6227 = vmatprep.subr.mxu0 0.0
    %6228 = vmatpush1.xpose.msra.mxu0 0.0
    %6229 = vmatprep.subr.mxu0 0.0
    %6230 = vmatpush1.xpose.msra.mxu0 0.0
    %6231 = vmatprep.subr.mxu0 0.0
    %6232 = vmatpush1.xpose.msra.mxu0 0.0
    %6233 = vmatprep.subr.mxu0 0.0
    %6234 = vmatpush1.xpose.msra.mxu0 0.0
    %6235 = vmatprep.subr.mxu0 0.0
    %6236 = vmatpush1.xpose.msra.mxu0 0.0
    %6237 = vmatprep.subr.mxu0 0.0
    %6238 = vmatpush1.xpose.msra.mxu0 0.0
    %6239 = vmatprep.subr.mxu0 0.0
    %6240 = vmatpush1.xpose.msra.mxu0 0.0
    %6241 = vmatprep.subr.mxu0 0.0
    %6242 = vmatpush1.xpose.msra.mxu0 0.0
    %6243 = vmatprep.subr.mxu0 0.0
    %6244 = vmatpush1.xpose.msra.mxu0 0.0
    %6245 = vmatprep.subr.mxu0 0.0
    %6246 = vmatpush1.xpose.msra.mxu0 0.0
    %6247 = vmatprep.subr.mxu0 0.0
    %6248 = vmatpush1.xpose.msra.mxu0 0.0
    %6249 = vmatprep.subr.mxu0 0.0
    %6250 = vmatpush1.xpose.msra.mxu0 0.0
    %6251 = vmatprep.subr.mxu0 0.0
    %6252 = vmatpush1.xpose.msra.mxu0 0.0
    %6253 = vmatprep.subr.mxu0 0.0
    %6254 = vmatpush1.xpose.msra.mxu0 0.0
    %6255 = vmatprep.subr.mxu0 0.0
    %6256 = vmatpush1.xpose.msra.mxu0 0.0
    %6257 = vmatprep.subr.mxu0 0.0
    %6258 = vmatpush1.xpose.msra.mxu0 0.0
    %6259 = vmatprep.subr.mxu0 0.0
    %6260 = vmatpush1.xpose.msra.mxu0 0.0
    %6261 = vmatprep.subr.mxu0 0.0
    %6262 = vmatpush1.xpose.msra.mxu0 0.0
    %6263 = vmatprep.subr.mxu0 0.0
    %6264 = vmatpush1.xpose.msra.mxu0 0.0
    %6265 = vmatprep.mubr.f32.mxu0 0.0
    %6266 = vmatmul.mubr.f32.gmra.mrb[0].mxu0 %v6197
    %v6267 = vpop.f32.mrb[0].mxu0
    %v6268 = vadd.f32 0.0, %v6267
    %v6269 = vpop.f32.mrb[0].mxu0
    %6270 = vdwg.mxu0
    %v6271 = vmul.f32 %v6268, 0.35355338
    %v6272 = vadd.f32 %v6271, %v104
    %v6273 = vsel %vm206, %v6272, -inf
    %6274 = vmax.xlane.f32.xlu0 %v6273
    %v6275 = vpop.xlane.xlu0 %6274
    %v6276 = vsub.f32 %v6272, %v6275
    %v6277 = vmul.f32 %v6276, 1.442695
    %v6278 = vpow.pop %v6277
    %v6279 = vsel %vm206, %v6278, 0.0
    %6280 = vadd.xlane.f32.xlu0 %v6279
    %v6281 = vpop.xlane.xlu0 %6280
    %v6282 = vrcp.pop %v6281
    %v6283 = vmul.f32 %v6278, %v6282
    %6284 = vrot.lane.b32.xlu0 %v4743, 48
    %v6285 = vpop.permute.xlu0 %6284
    %v6288 = vsel %vm206, %v6283, 0
    %6290 = vmatprep.subr.mxu0 0.0
    %6291 = vmatpush1.msra.mxu0 %v6285
    %6292 = vmatprep.subr.mxu0 0.0
    %6293 = vmatpush1.msra.mxu0 0.0
    %6294 = vmatprep.subr.mxu0 0.0
    %6295 = vmatpush1.msra.mxu0 0.0
    %6296 = vmatprep.subr.mxu0 0.0
    %6297 = vmatpush1.msra.mxu0 0.0
    %6298 = vmatprep.subr.mxu0 0.0
    %6299 = vmatpush1.msra.mxu0 0.0
    %6300 = vmatprep.subr.mxu0 0.0
    %6301 = vmatpush1.msra.mxu0 0.0
    %6302 = vmatprep.subr.mxu0 0.0
    %6303 = vmatpush1.msra.mxu0 0.0
    %6304 = vmatprep.subr.mxu0 0.0
    %6305 = vmatpush1.msra.mxu0 0.0
    %6306 = vmatprep.subr.mxu0 0.0
    %6307 = vmatpush1.msra.mxu0 0.0
    %6308 = vmatprep.subr.mxu0 0.0
    %6309 = vmatpush1.msra.mxu0 0.0
    %6310 = vmatprep.subr.mxu0 0.0
    %6311 = vmatpush1.msra.mxu0 0.0
    %6312 = vmatprep.subr.mxu0 0.0
    %6313 = vmatpush1.msra.mxu0 0.0
    %6314 = vmatprep.subr.mxu0 0.0
    %6315 = vmatpush1.msra.mxu0 0.0
    %6316 = vmatprep.subr.mxu0 0.0
    %6317 = vmatpush1.msra.mxu0 0.0
    %6318 = vmatprep.subr.mxu0 0.0
    %6319 = vmatpush1.msra.mxu0 0.0
    %6320 = vmatprep.subr.mxu0 0.0
    %6321 = vmatpush1.msra.mxu0 0.0
    %6322 = vmatprep.subr.mxu0 0.0
    %6323 = vmatpush1.msra.mxu0 0.0
    %6324 = vmatprep.subr.mxu0 0.0
    %6325 = vmatpush1.msra.mxu0 0.0
    %6326 = vmatprep.subr.mxu0 0.0
    %6327 = vmatpush1.msra.mxu0 0.0
    %6328 = vmatprep.subr.mxu0 0.0
    %6329 = vmatpush1.msra.mxu0 0.0
    %6330 = vmatprep.subr.mxu0 0.0
    %6331 = vmatpush1.msra.mxu0 0.0
    %6332 = vmatprep.subr.mxu0 0.0
    %6333 = vmatpush1.msra.mxu0 0.0
    %6334 = vmatprep.subr.mxu0 0.0
    %6335 = vmatpush1.msra.mxu0 0.0
    %6336 = vmatprep.subr.mxu0 0.0
    %6337 = vmatpush1.msra.mxu0 0.0
    %6338 = vmatprep.subr.mxu0 0.0
    %6339 = vmatpush1.msra.mxu0 0.0
    %6340 = vmatprep.subr.mxu0 0.0
    %6341 = vmatpush1.msra.mxu0 0.0
    %6342 = vmatprep.subr.mxu0 0.0
    %6343 = vmatpush1.msra.mxu0 0.0
    %6344 = vmatprep.subr.mxu0 0.0
    %6345 = vmatpush1.msra.mxu0 0.0
    %6346 = vmatprep.subr.mxu0 0.0
    %6347 = vmatpush1.msra.mxu0 0.0
    %6348 = vmatprep.subr.mxu0 0.0
    %6349 = vmatpush1.msra.mxu0 0.0
    %6350 = vmatprep.subr.mxu0 0.0
    %6351 = vmatpush1.msra.mxu0 0.0
    %6352 = vmatprep.subr.mxu0 0.0
    %6353 = vmatpush1.msra.mxu0 0.0
    %6354 = vmatprep.mubr.f32.mxu0 0.0
    %6355 = vmatmul.mubr.f32.gmra.mrb[0].mxu0 %v6288
    %v6356 = vpop.f32.mrb[0].mxu0
    %v6357 = vadd.f32 0.0, %v6356
    %v6358 = vpop.f32.mrb[0].mxu0
    %6359 = vdwg.mxu0
    %v6361 = vsel %vm206, %v6357, 0
    %6363 = vmatprep.subr.mxu0 0.0
    %6364 = vmatpush1.msra.mxu0 %v4749
    %6365 = vmatprep.subr.mxu0 0.0
    %6366 = vmatpush1.msra.mxu0 0.0
    %6367 = vmatprep.subr.mxu0 0.0
    %6368 = vmatpush1.msra.mxu0 0.0
    %6369 = vmatprep.subr.mxu0 0.0
    %6370 = vmatpush1.msra.mxu0 0.0
    %6371 = vmatprep.subr.mxu0 0.0
    %6372 = vmatpush1.msra.mxu0 0.0
    %6373 = vmatprep.subr.mxu0 0.0
    %6374 = vmatpush1.msra.mxu0 0.0
    %6375 = vmatprep.subr.mxu0 0.0
    %6376 = vmatpush1.msra.mxu0 0.0
    %6377 = vmatprep.subr.mxu0 0.0
    %6378 = vmatpush1.msra.mxu0 0.0
    %6379 = vmatprep.subr.mxu0 0.0
    %6380 = vmatpush1.msra.mxu0 0.0
    %6381 = vmatprep.subr.mxu0 0.0
    %6382 = vmatpush1.msra.mxu0 0.0
    %6383 = vmatprep.subr.mxu0 0.0
    %6384 = vmatpush1.msra.mxu0 0.0
    %6385 = vmatprep.subr.mxu0 0.0
    %6386 = vmatpush1.msra.mxu0 0.0
    %6387 = vmatprep.subr.mxu0 0.0
    %6388 = vmatpush1.msra.mxu0 0.0
    %6389 = vmatprep.subr.mxu0 0.0
    %6390 = vmatpush1.msra.mxu0 0.0
    %6391 = vmatprep.subr.mxu0 0.0
    %6392 = vmatpush1.msra.mxu0 0.0
    %6393 = vmatprep.subr.mxu0 0.0
    %6394 = vmatpush1.msra.mxu0 0.0
    %6395 = vmatprep.subr.mxu0 0.0
    %6396 = vmatpush1.msra.mxu0 0.0
    %6397 = vmatprep.subr.mxu0 0.0
    %6398 = vmatpush1.msra.mxu0 0.0
    %6399 = vmatprep.subr.mxu0 0.0
    %6400 = vmatpush1.msra.mxu0 0.0
    %6401 = vmatprep.subr.mxu0 0.0
    %6402 = vmatpush1.msra.mxu0 0.0
    %6403 = vmatprep.subr.mxu0 0.0
    %6404 = vmatpush1.msra.mxu0 0.0
    %6405 = vmatprep.subr.mxu0 0.0
    %6406 = vmatpush1.msra.mxu0 0.0
    %6407 = vmatprep.subr.mxu0 0.0
    %6408 = vmatpush1.msra.mxu0 0.0
    %6409 = vmatprep.subr.mxu0 0.0
    %6410 = vmatpush1.msra.mxu0 0.0
    %6411 = vmatprep.subr.mxu0 0.0
    %6412 = vmatpush1.msra.mxu0 0.0
    %6413 = vmatprep.subr.mxu0 0.0
    %6414 = vmatpush1.msra.mxu0 0.0
    %6415 = vmatprep.subr.mxu0 0.0
    %6416 = vmatpush1.msra.mxu0 0.0
    %6417 = vmatprep.subr.mxu0 0.0
    %6418 = vmatpush1.msra.mxu0 0.0
    %6419 = vmatprep.subr.mxu0 0.0
    %6420 = vmatpush1.msra.mxu0 0.0
    %6421 = vmatprep.subr.mxu0 0.0
    %6422 = vmatpush1.msra.mxu0 0.0
    %6423 = vmatprep.subr.mxu0 0.0
    %6424 = vmatpush1.msra.mxu0 0.0
    %6425 = vmatprep.subr.mxu0 0.0
    %6426 = vmatpush1.msra.mxu0 0.0
    %6427 = vmatprep.mubr.f32.mxu0 0.0
    %6428 = vmatmul.mubr.f32.gmra.mrb[0].mxu0 %v6361
    %v6429 = vpop.f32.mrb[0].mxu0
    %v6430 = vadd.f32 0.0, %v6429
    %v6431 = vpop.f32.mrb[0].mxu0
    %6432 = vdwg.mxu0
    %v6433 = vadd.f32 %v6190, %v6430
    %6434 = vrot.lane.b32.xlu0 %v4743, 104
    %v6435 = vpop.permute.xlu0 %6434
    %6436 = vrot.lane.b32.xlu0 %v4743, 72
    %v6437 = vpop.permute.xlu0 %6436
    %v6438 = vsel %vm206, %v6435, 0
    %v6440 = vsel %vm206, %v6437, 0
    %6442 = vmatprep.subr.mxu0 0.0
    %6443 = vmatpush1.xpose.msra.mxu0 %v6440
    %6444 = vmatprep.subr.mxu0 0.0
    %6445 = vmatpush1.xpose.msra.mxu0 0.0
    %6446 = vmatprep.subr.mxu0 0.0
    %6447 = vmatpush1.xpose.msra.mxu0 0.0
    %6448 = vmatprep.subr.mxu0 0.0
    %6449 = vmatpush1.xpose.msra.mxu0 0.0
    %6450 = vmatprep.subr.mxu0 0.0
    %6451 = vmatpush1.xpose.msra.mxu0 0.0
    %6452 = vmatprep.subr.mxu0 0.0
    %6453 = vmatpush1.xpose.msra.mxu0 0.0
    %6454 = vmatprep.subr.mxu0 0.0
    %6455 = vmatpush1.xpose.msra.mxu0 0.0
    %6456 = vmatprep.subr.mxu0 0.0
    %6457 = vmatpush1.xpose.msra.mxu0 0.0
    %6458 = vmatprep.subr.mxu0 0.0
    %6459 = vmatpush1.xpose.msra.mxu0 0.0
    %6460 = vmatprep.subr.mxu0 0.0
    %6461 = vmatpush1.xpose.msra.mxu0 0.0
    %6462 = vmatprep.subr.mxu0 0.0
    %6463 = vmatpush1.xpose.msra.mxu0 0.0
    %6464 = vmatprep.subr.mxu0 0.0
    %6465 = vmatpush1.xpose.msra.mxu0 0.0
    %6466 = vmatprep.subr.mxu0 0.0
    %6467 = vmatpush1.xpose.msra.mxu0 0.0
    %6468 = vmatprep.subr.mxu0 0.0
    %6469 = vmatpush1.xpose.msra.mxu0 0.0
    %6470 = vmatprep.subr.mxu0 0.0
    %6471 = vmatpush1.xpose.msra.mxu0 0.0
    %6472 = vmatprep.subr.mxu0 0.0
    %6473 = vmatpush1.xpose.msra.mxu0 0.0
    %6474 = vmatprep.subr.mxu0 0.0
    %6475 = vmatpush1.xpose.msra.mxu0 0.0
    %6476 = vmatprep.subr.mxu0 0.0
    %6477 = vmatpush1.xpose.msra.mxu0 0.0
    %6478 = vmatprep.subr.mxu0 0.0
    %6479 = vmatpush1.xpose.msra.mxu0 0.0
    %6480 = vmatprep.subr.mxu0 0.0
    %6481 = vmatpush1.xpose.msra.mxu0 0.0
    %6482 = vmatprep.subr.mxu0 0.0
    %6483 = vmatpush1.xpose.msra.mxu0 0.0
    %6484 = vmatprep.subr.mxu0 0.0
    %6485 = vmatpush1.xpose.msra.mxu0 0.0
    %6486 = vmatprep.subr.mxu0 0.0
    %6487 = vmatpush1.xpose.msra.mxu0 0.0
    %6488 = vmatprep.subr.mxu0 0.0
    %6489 = vmatpush1.xpose.msra.mxu0 0.0
    %6490 = vmatprep.subr.mxu0 0.0
    %6491 = vmatpush1.xpose.msra.mxu0 0.0
    %6492 = vmatprep.subr.mxu0 0.0
    %6493 = vmatpush1.xpose.msra.mxu0 0.0
    %6494 = vmatprep.subr.mxu0 0.0
    %6495 = vmatpush1.xpose.msra.mxu0 0.0
    %6496 = vmatprep.subr.mxu0 0.0
    %6497 = vmatpush1.xpose.msra.mxu0 0.0
    %6498 = vmatprep.subr.mxu0 0.0
    %6499 = vmatpush1.xpose.msra.mxu0 0.0
    %6500 = vmatprep.subr.mxu0 0.0
    %6501 = vmatpush1.xpose.msra.mxu0 0.0
    %6502 = vmatprep.subr.mxu0 0.0
    %6503 = vmatpush1.xpose.msra.mxu0 0.0
    %6504 = vmatprep.subr.mxu0 0.0
    %6505 = vmatpush1.xpose.msra.mxu0 0.0
    %6506 = vmatprep.mubr.f32.mxu0 0.0
    %6507 = vmatmul.mubr.f32.gmra.mrb[0].mxu0 %v6438
    %v6508 = vpop.f32.mrb[0].mxu0
    %v6509 = vadd.f32 0.0, %v6508
    %v6510 = vpop.f32.mrb[0].mxu0
    %6511 = vdwg.mxu0
    %v6512 = vmul.f32 %v6509, 0.35355338
    %v6513 = vadd.f32 %v6512, %v104
    %v6514 = vsel %vm206, %v6513, -inf
    %6515 = vmax.xlane.f32.xlu0 %v6514
    %v6516 = vpop.xlane.xlu0 %6515
    %v6517 = vsub.f32 %v6513, %v6516
    %v6518 = vmul.f32 %v6517, 1.442695
    %v6519 = vpow.pop %v6518
    %v6520 = vsel %vm206, %v6519, 0.0
    %6521 = vadd.xlane.f32.xlu0 %v6520
    %v6522 = vpop.xlane.xlu0 %6521
    %v6523 = vrcp.pop %v6522
    %v6524 = vmul.f32 %v6519, %v6523
    %6525 = vrot.lane.b32.xlu0 %v4743, 40
    %v6526 = vpop.permute.xlu0 %6525
    %v6529 = vsel %vm206, %v6524, 0
    %6531 = vmatprep.subr.mxu0 0.0
    %6532 = vmatpush1.msra.mxu0 %v6526
    %6533 = vmatprep.subr.mxu0 0.0
    %6534 = vmatpush1.msra.mxu0 0.0
    %6535 = vmatprep.subr.mxu0 0.0
    %6536 = vmatpush1.msra.mxu0 0.0
    %6537 = vmatprep.subr.mxu0 0.0
    %6538 = vmatpush1.msra.mxu0 0.0
    %6539 = vmatprep.subr.mxu0 0.0
    %6540 = vmatpush1.msra.mxu0 0.0
    %6541 = vmatprep.subr.mxu0 0.0
    %6542 = vmatpush1.msra.mxu0 0.0
    %6543 = vmatprep.subr.mxu0 0.0
    %6544 = vmatpush1.msra.mxu0 0.0
    %6545 = vmatprep.subr.mxu0 0.0
    %6546 = vmatpush1.msra.mxu0 0.0
    %6547 = vmatprep.subr.mxu0 0.0
    %6548 = vmatpush1.msra.mxu0 0.0
    %6549 = vmatprep.subr.mxu0 0.0
    %6550 = vmatpush1.msra.mxu0 0.0
    %6551 = vmatprep.subr.mxu0 0.0
    %6552 = vmatpush1.msra.mxu0 0.0
    %6553 = vmatprep.subr.mxu0 0.0
    %6554 = vmatpush1.msra.mxu0 0.0
    %6555 = vmatprep.subr.mxu0 0.0
    %6556 = vmatpush1.msra.mxu0 0.0
    %6557 = vmatprep.subr.mxu0 0.0
    %6558 = vmatpush1.msra.mxu0 0.0
    %6559 = vmatprep.subr.mxu0 0.0
    %6560 = vmatpush1.msra.mxu0 0.0
    %6561 = vmatprep.subr.mxu0 0.0
    %6562 = vmatpush1.msra.mxu0 0.0
    %6563 = vmatprep.subr.mxu0 0.0
    %6564 = vmatpush1.msra.mxu0 0.0
    %6565 = vmatprep.subr.mxu0 0.0
    %6566 = vmatpush1.msra.mxu0 0.0
    %6567 = vmatprep.subr.mxu0 0.0
    %6568 = vmatpush1.msra.mxu0 0.0
    %6569 = vmatprep.subr.mxu0 0.0
    %6570 = vmatpush1.msra.mxu0 0.0
    %6571 = vmatprep.subr.mxu0 0.0
    %6572 = vmatpush1.msra.mxu0 0.0
    %6573 = vmatprep.subr.mxu0 0.0
    %6574 = vmatpush1.msra.mxu0 0.0
    %6575 = vmatprep.subr.mxu0 0.0
    %6576 = vmatpush1.msra.mxu0 0.0
    %6577 = vmatprep.subr.mxu0 0.0
    %6578 = vmatpush1.msra.mxu0 0.0
    %6579 = vmatprep.subr.mxu0 0.0
    %6580 = vmatpush1.msra.mxu0 0.0
    %6581 = vmatprep.subr.mxu0 0.0
    %6582 = vmatpush1.msra.mxu0 0.0
    %6583 = vmatprep.subr.mxu0 0.0
    %6584 = vmatpush1.msra.mxu0 0.0
    %6585 = vmatprep.subr.mxu0 0.0
    %6586 = vmatpush1.msra.mxu0 0.0
    %6587 = vmatprep.subr.mxu0 0.0
    %6588 = vmatpush1.msra.mxu0 0.0
    %6589 = vmatprep.subr.mxu0 0.0
    %6590 = vmatpush1.msra.mxu0 0.0
    %6591 = vmatprep.subr.mxu0 0.0
    %6592 = vmatpush1.msra.mxu0 0.0
    %6593 = vmatprep.subr.mxu0 0.0
    %6594 = vmatpush1.msra.mxu0 0.0
    %6595 = vmatprep.mubr.f32.mxu0 0.0
    %6596 = vmatmul.mubr.f32.gmra.mrb[0].mxu0 %v6529
    %v6597 = vpop.f32.mrb[0].mxu0
    %v6598 = vadd.f32 0.0, %v6597
    %v6599 = vpop.f32.mrb[0].mxu0
    %6600 = vdwg.mxu0
    %v6602 = vsel %vm206, %v6598, 0
    %6604 = vmatprep.subr.mxu0 0.0
    %6605 = vmatpush1.msra.mxu0 %v4750
    %6606 = vmatprep.subr.mxu0 0.0
    %6607 = vmatpush1.msra.mxu0 0.0
    %6608 = vmatprep.subr.mxu0 0.0
    %6609 = vmatpush1.msra.mxu0 0.0
    %6610 = vmatprep.subr.mxu0 0.0
    %6611 = vmatpush1.msra.mxu0 0.0
    %6612 = vmatprep.subr.mxu0 0.0
    %6613 = vmatpush1.msra.mxu0 0.0
    %6614 = vmatprep.subr.mxu0 0.0
    %6615 = vmatpush1.msra.mxu0 0.0
    %6616 = vmatprep.subr.mxu0 0.0
    %6617 = vmatpush1.msra.mxu0 0.0
    %6618 = vmatprep.subr.mxu0 0.0
    %6619 = vmatpush1.msra.mxu0 0.0
    %6620 = vmatprep.subr.mxu0 0.0
    %6621 = vmatpush1.msra.mxu0 0.0
    %6622 = vmatprep.subr.mxu0 0.0
    %6623 = vmatpush1.msra.mxu0 0.0
    %6624 = vmatprep.subr.mxu0 0.0
    %6625 = vmatpush1.msra.mxu0 0.0
    %6626 = vmatprep.subr.mxu0 0.0
    %6627 = vmatpush1.msra.mxu0 0.0
    %6628 = vmatprep.subr.mxu0 0.0
    %6629 = vmatpush1.msra.mxu0 0.0
    %6630 = vmatprep.subr.mxu0 0.0
    %6631 = vmatpush1.msra.mxu0 0.0
    %6632 = vmatprep.subr.mxu0 0.0
    %6633 = vmatpush1.msra.mxu0 0.0
    %6634 = vmatprep.subr.mxu0 0.0
    %6635 = vmatpush1.msra.mxu0 0.0
    %6636 = vmatprep.subr.mxu0 0.0
    %6637 = vmatpush1.msra.mxu0 0.0
    %6638 = vmatprep.subr.mxu0 0.0
    %6639 = vmatpush1.msra.mxu0 0.0
    %6640 = vmatprep.subr.mxu0 0.0
    %6641 = vmatpush1.msra.mxu0 0.0
    %6642 = vmatprep.subr.mxu0 0.0
    %6643 = vmatpush1.msra.mxu0 0.0
    %6644 = vmatprep.subr.mxu0 0.0
    %6645 = vmatpush1.msra.mxu0 0.0
    %6646 = vmatprep.subr.mxu0 0.0
    %6647 = vmatpush1.msra.mxu0 0.0
    %6648 = vmatprep.subr.mxu0 0.0
    %6649 = vmatpush1.msra.mxu0 0.0
    %6650 = vmatprep.subr.mxu0 0.0
    %6651 = vmatpush1.msra.mxu0 0.0
    %6652 = vmatprep.subr.mxu0 0.0
    %6653 = vmatpush1.msra.mxu0 0.0
    %6654 = vmatprep.subr.mxu0 0.0
    %6655 = vmatpush1.msra.mxu0 0.0
    %6656 = vmatprep.subr.mxu0 0.0
    %6657 = vmatpush1.msra.mxu0 0.0
    %6658 = vmatprep.subr.mxu0 0.0
    %6659 = vmatpush1.msra.mxu0 0.0
    %6660 = vmatprep.subr.mxu0 0.0
    %6661 = vmatpush1.msra.mxu0 0.0
    %6662 = vmatprep.subr.mxu0 0.0
    %6663 = vmatpush1.msra.mxu0 0.0
    %6664 = vmatprep.subr.mxu0 0.0
    %6665 = vmatpush1.msra.mxu0 0.0
    %6666 = vmatprep.subr.mxu0 0.0
    %6667 = vmatpush1.msra.mxu0 0.0
    %6668 = vmatprep.mubr.f32.mxu0 0.0
    %6669 = vmatmul.mubr.f32.gmra.mrb[0].mxu0 %v6602
    %v6670 = vpop.f32.mrb[0].mxu0
    %v6671 = vadd.f32 0.0, %v6670
    %v6672 = vpop.f32.mrb[0].mxu0
    %6673 = vdwg.mxu0
    %v6674 = vadd.f32 %v6433, %v6671
    %v6676 = vlaneseq
    %v6677 = vshrl.u32 %v6676, 7
    %v6678 = vsub.s32 0, %v6677
    %v6679 = vrot.slane %v4752, %v6678
    %v6681 = vadd.f32 %v5713, %v6679
    %v6682 = vadd.f32 %v6674, %v6679
    %v6683 = vadd.f32 %v4650, %v6681
    %v6684 = vadd.f32 %v4651, %v6682
    %s6685 = scalar_lea.vmem %s17, 1
    %v6686 = vld [vmem:[%s6685] sm:$0x1]
    %s6687 = scalar_lea.vmem %s18, 1
    %v6688 = vld [vmem:[%s6687] sm:$0x1]
    %v6689 = vsel %vm116, %v6683, 0.0
    %6690 = vadd.xlane.f32.xlu0 %v6689
    %v6691 = vpop.xlane.xlu0 %6690
    %v6692 = vsel %vm116, %v6684, 0.0
    %6693 = vadd.xlane.f32.xlu0 %v6692
    %v6694 = vpop.xlane.xlu0 %6693
    %v6695 = vmul.f32 %v6691, %v2144
    %v6696 = vmul.f32 %v6694, %v2144
    %v6697 = vsub.f32 %v6683, %v6695
    %v6698 = vsub.f32 %v6684, %v6696
    %v6699 = vmul.f32 %v6697, %v6697
    %v6700 = vmul.f32 %v6698, %v6698
    %v6701 = vsel %vm116, %v6699, 0.0
    %6702 = vadd.xlane.f32.xlu0 %v6701
    %v6703 = vpop.xlane.xlu0 %6702
    %v6704 = vsel %vm116, %v6700, 0.0
    %6705 = vadd.xlane.f32.xlu0 %v6704
    %v6706 = vpop.xlane.xlu0 %6705
    %v6707 = vmul.f32 %v6703, %v2144
    %v6708 = vmul.f32 %v6706, %v2144
    %v6709 = vadd.f32 %v6707, 1e-05
    %v6710 = vadd.f32 %v6708, 1e-05
    %v6711 = vrsqrt.pop %v6709
    %v6712 = vrsqrt.pop %v6710
    %v6713 = vmul.f32 %v6697, %v6711
    %v6714 = vmul.f32 %v6698, %v6712
    %v6716 = vlaneseq
    %v6717 = vshrl.u32 %v6716, 7
    %v6718 = vsub.s32 0, %v6717
    %v6719 = vrot.slane %v6686, %v6718
    %v6721 = vmul.f32 %v6713, %v6719
    %v6722 = vmul.f32 %v6714, %v6719
    %v6724 = vlaneseq
    %v6725 = vshrl.u32 %v6724, 7
    %v6726 = vsub.s32 0, %v6725
    %v6727 = vrot.slane %v6688, %v6726
    %v6729 = vadd.f32 %v6721, %v6727
    %v6730 = vadd.f32 %v6722, %v6727
    %s6731 = scalar_lea.vmem %s7, 32
    %v6732 = vld [vmem:[%s6731] sm:$0xff]
    %v6733 = vld [vmem:[%s6731 + $0x8] sm:$0xff]
    %v6734 = vld [vmem:[%s6731 + $0x10] sm:$0xff]
    %v6735 = vld [vmem:[%s6731 + $0x18] sm:$0xff]
    %s6736 = scalar_lea.vmem %s8, 1
    %v6737 = vld [vmem:[%s6736] sm:$0x1]
    %v6739 = vlaneseq
    %v6740 = vshrl.u32 %v6739, 7
    %v6741 = vsub.s32 0, %v6740
    %v6742 = vrot.slane %v6737, %v6741
    %v6745 = vsel %vm116, %v6729, 0
    %v6748 = vsel %vm116, %v6730, 0
    %6750 = vmatprep.subr.mxu0 0.0
    %6751 = vmatpush1.msra.mxu0 %v6732
    %6752 = vmatprep.subr.mxu0 0.0
    %6753 = vmatpush1.msra.mxu0 %v6733
    %6754 = vmatprep.subr.mxu0 0.0
    %6755 = vmatpush1.msra.mxu0 %v6734
    %6756 = vmatprep.subr.mxu0 0.0
    %6757 = vmatpush1.msra.mxu0 %v6735
    %6758 = vmatprep.subr.mxu0 0.0
    %6759 = vmatpush1.msra.mxu0 0.0
    %6760 = vmatprep.subr.mxu0 0.0
    %6761 = vmatpush1.msra.mxu0 0.0
    %6762 = vmatprep.subr.mxu0 0.0
    %6763 = vmatpush1.msra.mxu0 0.0
    %6764 = vmatprep.subr.mxu0 0.0
    %6765 = vmatpush1.msra.mxu0 0.0
    %6766 = vmatprep.subr.mxu0 0.0
    %6767 = vmatpush1.msra.mxu0 0.0
    %6768 = vmatprep.subr.mxu0 0.0
    %6769 = vmatpush1.msra.mxu0 0.0
    %6770 = vmatprep.subr.mxu0 0.0
    %6771 = vmatpush1.msra.mxu0 0.0
    %6772 = vmatprep.subr.mxu0 0.0
    %6773 = vmatpush1.msra.mxu0 0.0
    %6774 = vmatprep.subr.mxu0 0.0
    %6775 = vmatpush1.msra.mxu0 0.0
    %6776 = vmatprep.subr.mxu0 0.0
    %6777 = vmatpush1.msra.mxu0 0.0
    %6778 = vmatprep.subr.mxu0 0.0
    %6779 = vmatpush1.msra.mxu0 0.0
    %6780 = vmatprep.subr.mxu0 0.0
    %6781 = vmatpush1.msra.mxu0 0.0
    %6782 = vmatprep.subr.mxu0 0.0
    %6783 = vmatpush1.msra.mxu0 0.0
    %6784 = vmatprep.subr.mxu0 0.0
    %6785 = vmatpush1.msra.mxu0 0.0
    %6786 = vmatprep.subr.mxu0 0.0
    %6787 = vmatpush1.msra.mxu0 0.0
    %6788 = vmatprep.subr.mxu0 0.0
    %6789 = vmatpush1.msra.mxu0 0.0
    %6790 = vmatprep.subr.mxu0 0.0
    %6791 = vmatpush1.msra.mxu0 0.0
    %6792 = vmatprep.subr.mxu0 0.0
    %6793 = vmatpush1.msra.mxu0 0.0
    %6794 = vmatprep.subr.mxu0 0.0
    %6795 = vmatpush1.msra.mxu0 0.0
    %6796 = vmatprep.subr.mxu0 0.0
    %6797 = vmatpush1.msra.mxu0 0.0
    %6798 = vmatprep.subr.mxu0 0.0
    %6799 = vmatpush1.msra.mxu0 0.0
    %6800 = vmatprep.subr.mxu0 0.0
    %6801 = vmatpush1.msra.mxu0 0.0
    %6802 = vmatprep.subr.mxu0 0.0
    %6803 = vmatpush1.msra.mxu0 0.0
    %6804 = vmatprep.subr.mxu0 0.0
    %6805 = vmatpush1.msra.mxu0 0.0
    %6806 = vmatprep.subr.mxu0 0.0
    %6807 = vmatpush1.msra.mxu0 0.0
    %6808 = vmatprep.subr.mxu0 0.0
    %6809 = vmatpush1.msra.mxu0 0.0
    %6810 = vmatprep.subr.mxu0 0.0
    %6811 = vmatpush1.msra.mxu0 0.0
    %6812 = vmatprep.subr.mxu0 0.0
    %6813 = vmatpush1.msra.mxu0 0.0
    %6814 = vmatprep.mubr.f32.mxu0 0.0
    %6815 = vmatmul.mubr.f32.gmra.mrb[0].mxu0 %v6745
    %v6816 = vpop.f32.mrb[0].mxu0
    %v6817 = vadd.f32 %v6742, %v6816
    %v6818 = vpop.f32.mrb[0].mxu0
    %6819 = vmatprep.mubr.f32.mxu0 0.0
    %6820 = vmatmul.mubr.f32.gmra.mrb[0].mxu0 %v6748
    %v6821 = vpop.f32.mrb[0].mxu0
    %v6822 = vadd.f32 %v6742, %v6821
    %v6823 = vpop.f32.mrb[0].mxu0
    %6824 = vdwg.mxu0
    %s6825 = scalar_lea.vmem %s9, 32
    %v6826 = vld [vmem:[%s6825] sm:$0xff]
    %v6827 = vld [vmem:[%s6825 + $0x8] sm:$0xff]
    %v6828 = vld [vmem:[%s6825 + $0x10] sm:$0xff]
    %v6829 = vld [vmem:[%s6825 + $0x18] sm:$0xff]
    %s6830 = scalar_lea.vmem %s10, 1
    %v6831 = vld [vmem:[%s6830] sm:$0x1]
    %v6833 = vlaneseq
    %v6834 = vshrl.u32 %v6833, 7
    %v6835 = vsub.s32 0, %v6834
    %v6836 = vrot.slane %v6831, %v6835
    %6838 = vmatprep.subr.mxu0 0.0
    %6839 = vmatpush1.msra.mxu0 %v6826
    %6840 = vmatprep.subr.mxu0 0.0
    %6841 = vmatpush1.msra.mxu0 %v6827
    %6842 = vmatprep.subr.mxu0 0.0
    %6843 = vmatpush1.msra.mxu0 %v6828
    %6844 = vmatprep.subr.mxu0 0.0
    %6845 = vmatpush1.msra.mxu0 %v6829
    %6846 = vmatprep.subr.mxu0 0.0
    %6847 = vmatpush1.msra.mxu0 0.0
    %6848 = vmatprep.subr.mxu0 0.0
    %6849 = vmatpush1.msra.mxu0 0.0
    %6850 = vmatprep.subr.mxu0 0.0
    %6851 = vmatpush1.msra.mxu0 0.0
    %6852 = vmatprep.subr.mxu0 0.0
    %6853 = vmatpush1.msra.mxu0 0.0
    %6854 = vmatprep.subr.mxu0 0.0
    %6855 = vmatpush1.msra.mxu0 0.0
    %6856 = vmatprep.subr.mxu0 0.0
    %6857 = vmatpush1.msra.mxu0 0.0
    %6858 = vmatprep.subr.mxu0 0.0
    %6859 = vmatpush1.msra.mxu0 0.0
    %6860 = vmatprep.subr.mxu0 0.0
    %6861 = vmatpush1.msra.mxu0 0.0
    %6862 = vmatprep.subr.mxu0 0.0
    %6863 = vmatpush1.msra.mxu0 0.0
    %6864 = vmatprep.subr.mxu0 0.0
    %6865 = vmatpush1.msra.mxu0 0.0
    %6866 = vmatprep.subr.mxu0 0.0
    %6867 = vmatpush1.msra.mxu0 0.0
    %6868 = vmatprep.subr.mxu0 0.0
    %6869 = vmatpush1.msra.mxu0 0.0
    %6870 = vmatprep.subr.mxu0 0.0
    %6871 = vmatpush1.msra.mxu0 0.0
    %6872 = vmatprep.subr.mxu0 0.0
    %6873 = vmatpush1.msra.mxu0 0.0
    %6874 = vmatprep.subr.mxu0 0.0
    %6875 = vmatpush1.msra.mxu0 0.0
    %6876 = vmatprep.subr.mxu0 0.0
    %6877 = vmatpush1.msra.mxu0 0.0
    %6878 = vmatprep.subr.mxu0 0.0
    %6879 = vmatpush1.msra.mxu0 0.0
    %6880 = vmatprep.subr.mxu0 0.0
    %6881 = vmatpush1.msra.mxu0 0.0
    %6882 = vmatprep.subr.mxu0 0.0
    %6883 = vmatpush1.msra.mxu0 0.0
    %6884 = vmatprep.subr.mxu0 0.0
    %6885 = vmatpush1.msra.mxu0 0.0
    %6886 = vmatprep.subr.mxu0 0.0
    %6887 = vmatpush1.msra.mxu0 0.0
    %6888 = vmatprep.subr.mxu0 0.0
    %6889 = vmatpush1.msra.mxu0 0.0
    %6890 = vmatprep.subr.mxu0 0.0
    %6891 = vmatpush1.msra.mxu0 0.0
    %6892 = vmatprep.subr.mxu0 0.0
    %6893 = vmatpush1.msra.mxu0 0.0
    %6894 = vmatprep.subr.mxu0 0.0
    %6895 = vmatpush1.msra.mxu0 0.0
    %6896 = vmatprep.subr.mxu0 0.0
    %6897 = vmatpush1.msra.mxu0 0.0
    %6898 = vmatprep.subr.mxu0 0.0
    %6899 = vmatpush1.msra.mxu0 0.0
    %6900 = vmatprep.subr.mxu0 0.0
    %6901 = vmatpush1.msra.mxu0 0.0
    %6902 = vmatprep.mubr.f32.mxu0 0.0
    %6903 = vmatmul.mubr.f32.gmra.mrb[0].mxu0 %v2285
    %v6904 = vpop.f32.mrb[0].mxu0
    %v6905 = vadd.f32 %v6836, %v6904
    %v6906 = vpop.f32.mrb[0].mxu0
    %6907 = vmatprep.mubr.f32.mxu0 0.0
    %6908 = vmatmul.mubr.f32.gmra.mrb[0].mxu0 %v2288
    %v6909 = vpop.f32.mrb[0].mxu0
    %v6910 = vadd.f32 %v6836, %v6909
    %v6911 = vpop.f32.mrb[0].mxu0
    %6912 = vmatprep.mubr.f32.mxu0 0.0
    %6913 = vmatmul.mubr.f32.gmra.mrb[0].mxu0 %v2291
    %v6914 = vpop.f32.mrb[0].mxu0
    %v6915 = vadd.f32 %v6836, %v6914
    %v6916 = vpop.f32.mrb[0].mxu0
    %6917 = vmatprep.mubr.f32.mxu0 0.0
    %6918 = vmatmul.mubr.f32.gmra.mrb[0].mxu0 %v2294
    %v6919 = vpop.f32.mrb[0].mxu0
    %v6920 = vadd.f32 %v6836, %v6919
    %v6921 = vpop.f32.mrb[0].mxu0
    %6922 = vdwg.mxu0
    %s6923 = scalar_lea.vmem %s11, 32
    %v6924 = vld [vmem:[%s6923] sm:$0xff]
    %v6925 = vld [vmem:[%s6923 + $0x8] sm:$0xff]
    %v6926 = vld [vmem:[%s6923 + $0x10] sm:$0xff]
    %v6927 = vld [vmem:[%s6923 + $0x18] sm:$0xff]
    %s6928 = scalar_lea.vmem %s12, 1
    %v6929 = vld [vmem:[%s6928] sm:$0x1]
    %v6931 = vsel %vm206, %v6817, 0
    %v6934 = vsel %vm206, %v6905, 0
    %v6937 = vsel %vm206, %v6910, 0
    %6939 = vmatprep.subr.mxu0 0.0
    %6940 = vmatpush1.xpose.msra.mxu0 %v6934
    %6941 = vmatprep.subr.mxu0 0.0
    %6942 = vmatpush1.xpose.msra.mxu0 %v6937
    %6943 = vmatprep.subr.mxu0 0.0
    %6944 = vmatpush1.xpose.msra.mxu0 0.0
    %6945 = vmatprep.subr.mxu0 0.0
    %6946 = vmatpush1.xpose.msra.mxu0 0.0
    %6947 = vmatprep.subr.mxu0 0.0
    %6948 = vmatpush1.xpose.msra.mxu0 0.0
    %6949 = vmatprep.subr.mxu0 0.0
    %6950 = vmatpush1.xpose.msra.mxu0 0.0
    %6951 = vmatprep.subr.mxu0 0.0
    %6952 = vmatpush1.xpose.msra.mxu0 0.0
    %6953 = vmatprep.subr.mxu0 0.0
    %6954 = vmatpush1.xpose.msra.mxu0 0.0
    %6955 = vmatprep.subr.mxu0 0.0
    %6956 = vmatpush1.xpose.msra.mxu0 0.0
    %6957 = vmatprep.subr.mxu0 0.0
    %6958 = vmatpush1.xpose.msra.mxu0 0.0
    %6959 = vmatprep.subr.mxu0 0.0
    %6960 = vmatpush1.xpose.msra.mxu0 0.0
    %6961 = vmatprep.subr.mxu0 0.0
    %6962 = vmatpush1.xpose.msra.mxu0 0.0
    %6963 = vmatprep.subr.mxu0 0.0
    %6964 = vmatpush1.xpose.msra.mxu0 0.0
    %6965 = vmatprep.subr.mxu0 0.0
    %6966 = vmatpush1.xpose.msra.mxu0 0.0
    %6967 = vmatprep.subr.mxu0 0.0
    %6968 = vmatpush1.xpose.msra.mxu0 0.0
    %6969 = vmatprep.subr.mxu0 0.0
    %6970 = vmatpush1.xpose.msra.mxu0 0.0
    %6971 = vmatprep.subr.mxu0 0.0
    %6972 = vmatpush1.xpose.msra.mxu0 0.0
    %6973 = vmatprep.subr.mxu0 0.0
    %6974 = vmatpush1.xpose.msra.mxu0 0.0
    %6975 = vmatprep.subr.mxu0 0.0
    %6976 = vmatpush1.xpose.msra.mxu0 0.0
    %6977 = vmatprep.subr.mxu0 0.0
    %6978 = vmatpush1.xpose.msra.mxu0 0.0
    %6979 = vmatprep.subr.mxu0 0.0
    %6980 = vmatpush1.xpose.msra.mxu0 0.0
    %6981 = vmatprep.subr.mxu0 0.0
    %6982 = vmatpush1.xpose.msra.mxu0 0.0
    %6983 = vmatprep.subr.mxu0 0.0
    %6984 = vmatpush1.xpose.msra.mxu0 0.0
    %6985 = vmatprep.subr.mxu0 0.0
    %6986 = vmatpush1.xpose.msra.mxu0 0.0
    %6987 = vmatprep.subr.mxu0 0.0
    %6988 = vmatpush1.xpose.msra.mxu0 0.0
    %6989 = vmatprep.subr.mxu0 0.0
    %6990 = vmatpush1.xpose.msra.mxu0 0.0
    %6991 = vmatprep.subr.mxu0 0.0
    %6992 = vmatpush1.xpose.msra.mxu0 0.0
    %6993 = vmatprep.subr.mxu0 0.0
    %6994 = vmatpush1.xpose.msra.mxu0 0.0
    %6995 = vmatprep.subr.mxu0 0.0
    %6996 = vmatpush1.xpose.msra.mxu0 0.0
    %6997 = vmatprep.subr.mxu0 0.0
    %6998 = vmatpush1.xpose.msra.mxu0 0.0
    %6999 = vmatprep.subr.mxu0 0.0
    %7000 = vmatpush1.xpose.msra.mxu0 0.0
    %7001 = vmatprep.subr.mxu0 0.0
    %7002 = vmatpush1.xpose.msra.mxu0 0.0
    %7003 = vmatprep.mubr.f32.mxu0 0.0
    %7004 = vmatmul.mubr.f32.gmra.mrb[0].mxu0 %v6931
    %v7005 = vpop.f32.mrb[0].mxu0
    %v7006 = vadd.f32 0.0, %v7005
    %v7007 = vpop.f32.mrb[0].mxu0
    %7008 = vdwg.mxu0
    %v7009 = vmul.f32 %v7006, 0.35355338
    %v7010 = vsel %vm2466, %v7009, -inf
    %7011 = vmax.xlane.f32.xlu0 %v7010
    %v7012 = vpop.xlane.xlu0 %7011
    %v7013 = vsub.f32 %v7009, %v7012
    %v7014 = vmul.f32 %v7013, 1.442695
    %v7015 = vpow.pop %v7014
    %v7016 = vsel %vm2466, %v7015, 0.0
    %7017 = vadd.xlane.f32.xlu0 %v7016
    %v7018 = vpop.xlane.xlu0 %7017
    %v7019 = vrcp.pop %v7018
    %v7020 = vmul.f32 %v7015, %v7019
    %7021 = vrot.lane.b32.xlu0 %v6905, 96
    %v7022 = vpop.permute.xlu0 %7021
    %7023 = vrot.lane.b32.xlu0 %v6910, 96
    %v7024 = vpop.permute.xlu0 %7023
    %v7028 = vsel %vm2466, %v7020, 0
    %7030 = vmatprep.subr.mxu0 0.0
    %7031 = vmatpush1.msra.mxu0 %v7022
    %7032 = vmatprep.subr.mxu0 0.0
    %7033 = vmatpush1.msra.mxu0 %v7024
    %7034 = vmatprep.subr.mxu0 0.0
    %7035 = vmatpush1.msra.mxu0 0.0
    %7036 = vmatprep.subr.mxu0 0.0
    %7037 = vmatpush1.msra.mxu0 0.0
    %7038 = vmatprep.subr.mxu0 0.0
    %7039 = vmatpush1.msra.mxu0 0.0
    %7040 = vmatprep.subr.mxu0 0.0
    %7041 = vmatpush1.msra.mxu0 0.0
    %7042 = vmatprep.subr.mxu0 0.0
    %7043 = vmatpush1.msra.mxu0 0.0
    %7044 = vmatprep.subr.mxu0 0.0
    %7045 = vmatpush1.msra.mxu0 0.0
    %7046 = vmatprep.subr.mxu0 0.0
    %7047 = vmatpush1.msra.mxu0 0.0
    %7048 = vmatprep.subr.mxu0 0.0
    %7049 = vmatpush1.msra.mxu0 0.0
    %7050 = vmatprep.subr.mxu0 0.0
    %7051 = vmatpush1.msra.mxu0 0.0
    %7052 = vmatprep.subr.mxu0 0.0
    %7053 = vmatpush1.msra.mxu0 0.0
    %7054 = vmatprep.subr.mxu0 0.0
    %7055 = vmatpush1.msra.mxu0 0.0
    %7056 = vmatprep.subr.mxu0 0.0
    %7057 = vmatpush1.msra.mxu0 0.0
    %7058 = vmatprep.subr.mxu0 0.0
    %7059 = vmatpush1.msra.mxu0 0.0
    %7060 = vmatprep.subr.mxu0 0.0
    %7061 = vmatpush1.msra.mxu0 0.0
    %7062 = vmatprep.subr.mxu0 0.0
    %7063 = vmatpush1.msra.mxu0 0.0
    %7064 = vmatprep.subr.mxu0 0.0
    %7065 = vmatpush1.msra.mxu0 0.0
    %7066 = vmatprep.subr.mxu0 0.0
    %7067 = vmatpush1.msra.mxu0 0.0
    %7068 = vmatprep.subr.mxu0 0.0
    %7069 = vmatpush1.msra.mxu0 0.0
    %7070 = vmatprep.subr.mxu0 0.0
    %7071 = vmatpush1.msra.mxu0 0.0
    %7072 = vmatprep.subr.mxu0 0.0
    %7073 = vmatpush1.msra.mxu0 0.0
    %7074 = vmatprep.subr.mxu0 0.0
    %7075 = vmatpush1.msra.mxu0 0.0
    %7076 = vmatprep.subr.mxu0 0.0
    %7077 = vmatpush1.msra.mxu0 0.0
    %7078 = vmatprep.subr.mxu0 0.0
    %7079 = vmatpush1.msra.mxu0 0.0
    %7080 = vmatprep.subr.mxu0 0.0
    %7081 = vmatpush1.msra.mxu0 0.0
    %7082 = vmatprep.subr.mxu0 0.0
    %7083 = vmatpush1.msra.mxu0 0.0
    %7084 = vmatprep.subr.mxu0 0.0
    %7085 = vmatpush1.msra.mxu0 0.0
    %7086 = vmatprep.subr.mxu0 0.0
    %7087 = vmatpush1.msra.mxu0 0.0
    %7088 = vmatprep.subr.mxu0 0.0
    %7089 = vmatpush1.msra.mxu0 0.0
    %7090 = vmatprep.subr.mxu0 0.0
    %7091 = vmatpush1.msra.mxu0 0.0
    %7092 = vmatprep.subr.mxu0 0.0
    %7093 = vmatpush1.msra.mxu0 0.0
    %7094 = vmatprep.mubr.f32.mxu0 0.0
    %7095 = vmatmul.mubr.f32.gmra.mrb[0].mxu0 %v7028
    %v7096 = vpop.f32.mrb[0].mxu0
    %v7097 = vadd.f32 0.0, %v7096
    %v7098 = vpop.f32.mrb[0].mxu0
    %7099 = vdwg.mxu0
    %7100 = vrot.lane.b32.xlu0 %v6817, 120
    %v7101 = vpop.permute.xlu0 %7100
    %7102 = vrot.lane.b32.xlu0 %v6905, 120
    %v7103 = vpop.permute.xlu0 %7102
    %7104 = vrot.lane.b32.xlu0 %v6910, 120
    %v7105 = vpop.permute.xlu0 %7104
    %v7106 = vsel %vm206, %v7101, 0
    %v7108 = vsel %vm206, %v7103, 0
    %v7110 = vsel %vm206, %v7105, 0
    %7112 = vmatprep.subr.mxu0 0.0
    %7113 = vmatpush1.xpose.msra.mxu0 %v7108
    %7114 = vmatprep.subr.mxu0 0.0
    %7115 = vmatpush1.xpose.msra.mxu0 %v7110
    %7116 = vmatprep.subr.mxu0 0.0
    %7117 = vmatpush1.xpose.msra.mxu0 0.0
    %7118 = vmatprep.subr.mxu0 0.0
    %7119 = vmatpush1.xpose.msra.mxu0 0.0
    %7120 = vmatprep.subr.mxu0 0.0
    %7121 = vmatpush1.xpose.msra.mxu0 0.0
    %7122 = vmatprep.subr.mxu0 0.0
    %7123 = vmatpush1.xpose.msra.mxu0 0.0
    %7124 = vmatprep.subr.mxu0 0.0
    %7125 = vmatpush1.xpose.msra.mxu0 0.0
    %7126 = vmatprep.subr.mxu0 0.0
    %7127 = vmatpush1.xpose.msra.mxu0 0.0
    %7128 = vmatprep.subr.mxu0 0.0
    %7129 = vmatpush1.xpose.msra.mxu0 0.0
    %7130 = vmatprep.subr.mxu0 0.0
    %7131 = vmatpush1.xpose.msra.mxu0 0.0
    %7132 = vmatprep.subr.mxu0 0.0
    %7133 = vmatpush1.xpose.msra.mxu0 0.0
    %7134 = vmatprep.subr.mxu0 0.0
    %7135 = vmatpush1.xpose.msra.mxu0 0.0
    %7136 = vmatprep.subr.mxu0 0.0
    %7137 = vmatpush1.xpose.msra.mxu0 0.0
    %7138 = vmatprep.subr.mxu0 0.0
    %7139 = vmatpush1.xpose.msra.mxu0 0.0
    %7140 = vmatprep.subr.mxu0 0.0
    %7141 = vmatpush1.xpose.msra.mxu0 0.0
    %7142 = vmatprep.subr.mxu0 0.0
    %7143 = vmatpush1.xpose.msra.mxu0 0.0
    %7144 = vmatprep.subr.mxu0 0.0
    %7145 = vmatpush1.xpose.msra.mxu0 0.0
    %7146 = vmatprep.subr.mxu0 0.0
    %7147 = vmatpush1.xpose.msra.mxu0 0.0
    %7148 = vmatprep.subr.mxu0 0.0
    %7149 = vmatpush1.xpose.msra.mxu0 0.0
    %7150 = vmatprep.subr.mxu0 0.0
    %7151 = vmatpush1.xpose.msra.mxu0 0.0
    %7152 = vmatprep.subr.mxu0 0.0
    %7153 = vmatpush1.xpose.msra.mxu0 0.0
    %7154 = vmatprep.subr.mxu0 0.0
    %7155 = vmatpush1.xpose.msra.mxu0 0.0
    %7156 = vmatprep.subr.mxu0 0.0
    %7157 = vmatpush1.xpose.msra.mxu0 0.0
    %7158 = vmatprep.subr.mxu0 0.0
    %7159 = vmatpush1.xpose.msra.mxu0 0.0
    %7160 = vmatprep.subr.mxu0 0.0
    %7161 = vmatpush1.xpose.msra.mxu0 0.0
    %7162 = vmatprep.subr.mxu0 0.0
    %7163 = vmatpush1.xpose.msra.mxu0 0.0
    %7164 = vmatprep.subr.mxu0 0.0
    %7165 = vmatpush1.xpose.msra.mxu0 0.0
    %7166 = vmatprep.subr.mxu0 0.0
    %7167 = vmatpush1.xpose.msra.mxu0 0.0
    %7168 = vmatprep.subr.mxu0 0.0
    %7169 = vmatpush1.xpose.msra.mxu0 0.0
    %7170 = vmatprep.subr.mxu0 0.0
    %7171 = vmatpush1.xpose.msra.mxu0 0.0
    %7172 = vmatprep.subr.mxu0 0.0
    %7173 = vmatpush1.xpose.msra.mxu0 0.0
    %7174 = vmatprep.subr.mxu0 0.0
    %7175 = vmatpush1.xpose.msra.mxu0 0.0
    %7176 = vmatprep.mubr.f32.mxu0 0.0
    %7177 = vmatmul.mubr.f32.gmra.mrb[0].mxu0 %v7106
    %v7178 = vpop.f32.mrb[0].mxu0
    %v7179 = vadd.f32 0.0, %v7178
    %v7180 = vpop.f32.mrb[0].mxu0
    %7181 = vdwg.mxu0
    %v7182 = vmul.f32 %v7179, 0.35355338
    %v7183 = vsel %vm2466, %v7182, -inf
    %7184 = vmax.xlane.f32.xlu0 %v7183
    %v7185 = vpop.xlane.xlu0 %7184
    %v7186 = vsub.f32 %v7182, %v7185
    %v7187 = vmul.f32 %v7186, 1.442695
    %v7188 = vpow.pop %v7187
    %v7189 = vsel %vm2466, %v7188, 0.0
    %7190 = vadd.xlane.f32.xlu0 %v7189
    %v7191 = vpop.xlane.xlu0 %7190
    %v7192 = vrcp.pop %v7191
    %v7193 = vmul.f32 %v7188, %v7192
    %7194 = vrot.lane.b32.xlu0 %v6905, 88
    %v7195 = vpop.permute.xlu0 %7194
    %7196 = vrot.lane.b32.xlu0 %v6910, 88
    %v7197 = vpop.permute.xlu0 %7196
    %v7201 = vsel %vm2466, %v7193, 0
    %7203 = vmatprep.subr.mxu0 0.0
    %7204 = vmatpush1.msra.mxu0 %v7195
    %7205 = vmatprep.subr.mxu0 0.0
    %7206 = vmatpush1.msra.mxu0 %v7197
    %7207 = vmatprep.subr.mxu0 0.0
    %7208 = vmatpush1.msra.mxu0 0.0
    %7209 = vmatprep.subr.mxu0 0.0
    %7210 = vmatpush1.msra.mxu0 0.0
    %7211 = vmatprep.subr.mxu0 0.0
    %7212 = vmatpush1.msra.mxu0 0.0
    %7213 = vmatprep.subr.mxu0 0.0
    %7214 = vmatpush1.msra.mxu0 0.0
    %7215 = vmatprep.subr.mxu0 0.0
    %7216 = vmatpush1.msra.mxu0 0.0
    %7217 = vmatprep.subr.mxu0 0.0
    %7218 = vmatpush1.msra.mxu0 0.0
    %7219 = vmatprep.subr.mxu0 0.0
    %7220 = vmatpush1.msra.mxu0 0.0
    %7221 = vmatprep.subr.mxu0 0.0
    %7222 = vmatpush1.msra.mxu0 0.0
    %7223 = vmatprep.subr.mxu0 0.0
    %7224 = vmatpush1.msra.mxu0 0.0
    %7225 = vmatprep.subr.mxu0 0.0
    %7226 = vmatpush1.msra.mxu0 0.0
    %7227 = vmatprep.subr.mxu0 0.0
    %7228 = vmatpush1.msra.mxu0 0.0
    %7229 = vmatprep.subr.mxu0 0.0
    %7230 = vmatpush1.msra.mxu0 0.0
    %7231 = vmatprep.subr.mxu0 0.0
    %7232 = vmatpush1.msra.mxu0 0.0
    %7233 = vmatprep.subr.mxu0 0.0
    %7234 = vmatpush1.msra.mxu0 0.0
    %7235 = vmatprep.subr.mxu0 0.0
    %7236 = vmatpush1.msra.mxu0 0.0
    %7237 = vmatprep.subr.mxu0 0.0
    %7238 = vmatpush1.msra.mxu0 0.0
    %7239 = vmatprep.subr.mxu0 0.0
    %7240 = vmatpush1.msra.mxu0 0.0
    %7241 = vmatprep.subr.mxu0 0.0
    %7242 = vmatpush1.msra.mxu0 0.0
    %7243 = vmatprep.subr.mxu0 0.0
    %7244 = vmatpush1.msra.mxu0 0.0
    %7245 = vmatprep.subr.mxu0 0.0
    %7246 = vmatpush1.msra.mxu0 0.0
    %7247 = vmatprep.subr.mxu0 0.0
    %7248 = vmatpush1.msra.mxu0 0.0
    %7249 = vmatprep.subr.mxu0 0.0
    %7250 = vmatpush1.msra.mxu0 0.0
    %7251 = vmatprep.subr.mxu0 0.0
    %7252 = vmatpush1.msra.mxu0 0.0
    %7253 = vmatprep.subr.mxu0 0.0
    %7254 = vmatpush1.msra.mxu0 0.0
    %7255 = vmatprep.subr.mxu0 0.0
    %7256 = vmatpush1.msra.mxu0 0.0
    %7257 = vmatprep.subr.mxu0 0.0
    %7258 = vmatpush1.msra.mxu0 0.0
    %7259 = vmatprep.subr.mxu0 0.0
    %7260 = vmatpush1.msra.mxu0 0.0
    %7261 = vmatprep.subr.mxu0 0.0
    %7262 = vmatpush1.msra.mxu0 0.0
    %7263 = vmatprep.subr.mxu0 0.0
    %7264 = vmatpush1.msra.mxu0 0.0
    %7265 = vmatprep.subr.mxu0 0.0
    %7266 = vmatpush1.msra.mxu0 0.0
    %7267 = vmatprep.mubr.f32.mxu0 0.0
    %7268 = vmatmul.mubr.f32.gmra.mrb[0].mxu0 %v7201
    %v7269 = vpop.f32.mrb[0].mxu0
    %v7270 = vadd.f32 0.0, %v7269
    %v7271 = vpop.f32.mrb[0].mxu0
    %7272 = vdwg.mxu0
    %v7274 = vsel %vm206, %v7270, 0
    %7276 = vmatprep.subr.mxu0 0.0
    %7277 = vmatpush1.msra.mxu0 %v6925
    %7278 = vmatprep.subr.mxu0 0.0
    %7279 = vmatpush1.msra.mxu0 0.0
    %7280 = vmatprep.subr.mxu0 0.0
    %7281 = vmatpush1.msra.mxu0 0.0
    %7282 = vmatprep.subr.mxu0 0.0
    %7283 = vmatpush1.msra.mxu0 0.0
    %7284 = vmatprep.subr.mxu0 0.0
    %7285 = vmatpush1.msra.mxu0 0.0
    %7286 = vmatprep.subr.mxu0 0.0
    %7287 = vmatpush1.msra.mxu0 0.0
    %7288 = vmatprep.subr.mxu0 0.0
    %7289 = vmatpush1.msra.mxu0 0.0
    %7290 = vmatprep.subr.mxu0 0.0
    %7291 = vmatpush1.msra.mxu0 0.0
    %7292 = vmatprep.subr.mxu0 0.0
    %7293 = vmatpush1.msra.mxu0 0.0
    %7294 = vmatprep.subr.mxu0 0.0
    %7295 = vmatpush1.msra.mxu0 0.0
    %7296 = vmatprep.subr.mxu0 0.0
    %7297 = vmatpush1.msra.mxu0 0.0
    %7298 = vmatprep.subr.mxu0 0.0
    %7299 = vmatpush1.msra.mxu0 0.0
    %7300 = vmatprep.subr.mxu0 0.0
    %7301 = vmatpush1.msra.mxu0 0.0
    %7302 = vmatprep.subr.mxu0 0.0
    %7303 = vmatpush1.msra.mxu0 0.0
    %7304 = vmatprep.subr.mxu0 0.0
    %7305 = vmatpush1.msra.mxu0 0.0
    %7306 = vmatprep.subr.mxu0 0.0
    %7307 = vmatpush1.msra.mxu0 0.0
    %7308 = vmatprep.subr.mxu0 0.0
    %7309 = vmatpush1.msra.mxu0 0.0
    %7310 = vmatprep.subr.mxu0 0.0
    %7311 = vmatpush1.msra.mxu0 0.0
    %7312 = vmatprep.subr.mxu0 0.0
    %7313 = vmatpush1.msra.mxu0 0.0
    %7314 = vmatprep.subr.mxu0 0.0
    %7315 = vmatpush1.msra.mxu0 0.0
    %7316 = vmatprep.subr.mxu0 0.0
    %7317 = vmatpush1.msra.mxu0 0.0
    %7318 = vmatprep.subr.mxu0 0.0
    %7319 = vmatpush1.msra.mxu0 0.0
    %7320 = vmatprep.subr.mxu0 0.0
    %7321 = vmatpush1.msra.mxu0 0.0
    %7322 = vmatprep.subr.mxu0 0.0
    %7323 = vmatpush1.msra.mxu0 0.0
    %7324 = vmatprep.subr.mxu0 0.0
    %7325 = vmatpush1.msra.mxu0 0.0
    %7326 = vmatprep.subr.mxu0 0.0
    %7327 = vmatpush1.msra.mxu0 0.0
    %7328 = vmatprep.subr.mxu0 0.0
    %7329 = vmatpush1.msra.mxu0 0.0
    %7330 = vmatprep.subr.mxu0 0.0
    %7331 = vmatpush1.msra.mxu0 0.0
    %7332 = vmatprep.subr.mxu0 0.0
    %7333 = vmatpush1.msra.mxu0 0.0
    %7334 = vmatprep.subr.mxu0 0.0
    %7335 = vmatpush1.msra.mxu0 0.0
    %7336 = vmatprep.subr.mxu0 0.0
    %7337 = vmatpush1.msra.mxu0 0.0
    %7338 = vmatprep.subr.mxu0 0.0
    %7339 = vmatpush1.msra.mxu0 0.0
    %7340 = vmatprep.mubr.f32.mxu0 0.0
    %7341 = vmatmul.mubr.f32.gmra.mrb[0].mxu0 %v7274
    %v7342 = vpop.f32.mrb[0].mxu0
    %v7343 = vadd.f32 0.0, %v7342
    %v7344 = vpop.f32.mrb[0].mxu0
    %7345 = vdwg.mxu0
    %v7347 = vsel %vm206, %v7097, 0
    %7349 = vmatprep.subr.mxu0 0.0
    %7350 = vmatpush1.msra.mxu0 %v6924
    %7351 = vmatprep.subr.mxu0 0.0
    %7352 = vmatpush1.msra.mxu0 0.0
    %7353 = vmatprep.subr.mxu0 0.0
    %7354 = vmatpush1.msra.mxu0 0.0
    %7355 = vmatprep.subr.mxu0 0.0
    %7356 = vmatpush1.msra.mxu0 0.0
    %7357 = vmatprep.subr.mxu0 0.0
    %7358 = vmatpush1.msra.mxu0 0.0
    %7359 = vmatprep.subr.mxu0 0.0
    %7360 = vmatpush1.msra.mxu0 0.0
    %7361 = vmatprep.subr.mxu0 0.0
    %7362 = vmatpush1.msra.mxu0 0.0
    %7363 = vmatprep.subr.mxu0 0.0
    %7364 = vmatpush1.msra.mxu0 0.0
    %7365 = vmatprep.subr.mxu0 0.0
    %7366 = vmatpush1.msra.mxu0 0.0
    %7367 = vmatprep.subr.mxu0 0.0
    %7368 = vmatpush1.msra.mxu0 0.0
    %7369 = vmatprep.subr.mxu0 0.0
    %7370 = vmatpush1.msra.mxu0 0.0
    %7371 = vmatprep.subr.mxu0 0.0
    %7372 = vmatpush1.msra.mxu0 0.0
    %7373 = vmatprep.subr.mxu0 0.0
    %7374 = vmatpush1.msra.mxu0 0.0
    %7375 = vmatprep.subr.mxu0 0.0
    %7376 = vmatpush1.msra.mxu0 0.0
    %7377 = vmatprep.subr.mxu0 0.0
    %7378 = vmatpush1.msra.mxu0 0.0
    %7379 = vmatprep.subr.mxu0 0.0
    %7380 = vmatpush1.msra.mxu0 0.0
    %7381 = vmatprep.subr.mxu0 0.0
    %7382 = vmatpush1.msra.mxu0 0.0
    %7383 = vmatprep.subr.mxu0 0.0
    %7384 = vmatpush1.msra.mxu0 0.0
    %7385 = vmatprep.subr.mxu0 0.0
    %7386 = vmatpush1.msra.mxu0 0.0
    %7387 = vmatprep.subr.mxu0 0.0
    %7388 = vmatpush1.msra.mxu0 0.0
    %7389 = vmatprep.subr.mxu0 0.0
    %7390 = vmatpush1.msra.mxu0 0.0
    %7391 = vmatprep.subr.mxu0 0.0
    %7392 = vmatpush1.msra.mxu0 0.0
    %7393 = vmatprep.subr.mxu0 0.0
    %7394 = vmatpush1.msra.mxu0 0.0
    %7395 = vmatprep.subr.mxu0 0.0
    %7396 = vmatpush1.msra.mxu0 0.0
    %7397 = vmatprep.subr.mxu0 0.0
    %7398 = vmatpush1.msra.mxu0 0.0
    %7399 = vmatprep.subr.mxu0 0.0
    %7400 = vmatpush1.msra.mxu0 0.0
    %7401 = vmatprep.subr.mxu0 0.0
    %7402 = vmatpush1.msra.mxu0 0.0
    %7403 = vmatprep.subr.mxu0 0.0
    %7404 = vmatpush1.msra.mxu0 0.0
    %7405 = vmatprep.subr.mxu0 0.0
    %7406 = vmatpush1.msra.mxu0 0.0
    %7407 = vmatprep.subr.mxu0 0.0
    %7408 = vmatpush1.msra.mxu0 0.0
    %7409 = vmatprep.subr.mxu0 0.0
    %7410 = vmatpush1.msra.mxu0 0.0
    %7411 = vmatprep.subr.mxu0 0.0
    %7412 = vmatpush1.msra.mxu0 0.0
    %7413 = vmatprep.mubr.f32.mxu0 0.0
    %7414 = vmatmul.mubr.f32.gmra.mrb[0].mxu0 %v7347
    %v7415 = vpop.f32.mrb[0].mxu0
    %v7416 = vadd.f32 %v7343, %v7415
    %v7417 = vpop.f32.mrb[0].mxu0
    %7418 = vdwg.mxu0
    %7419 = vrot.lane.b32.xlu0 %v6817, 112
    %v7420 = vpop.permute.xlu0 %7419
    %7421 = vrot.lane.b32.xlu0 %v6905, 112
    %v7422 = vpop.permute.xlu0 %7421
    %7423 = vrot.lane.b32.xlu0 %v6910, 112
    %v7424 = vpop.permute.xlu0 %7423
    %v7425 = vsel %vm206, %v7420, 0
    %v7427 = vsel %vm206, %v7422, 0
    %v7429 = vsel %vm206, %v7424, 0
    %7431 = vmatprep.subr.mxu0 0.0
    %7432 = vmatpush1.xpose.msra.mxu0 %v7427
    %7433 = vmatprep.subr.mxu0 0.0
    %7434 = vmatpush1.xpose.msra.mxu0 %v7429
    %7435 = vmatprep.subr.mxu0 0.0
    %7436 = vmatpush1.xpose.msra.mxu0 0.0
    %7437 = vmatprep.subr.mxu0 0.0
    %7438 = vmatpush1.xpose.msra.mxu0 0.0
    %7439 = vmatprep.subr.mxu0 0.0
    %7440 = vmatpush1.xpose.msra.mxu0 0.0
    %7441 = vmatprep.subr.mxu0 0.0
    %7442 = vmatpush1.xpose.msra.mxu0 0.0
    %7443 = vmatprep.subr.mxu0 0.0
    %7444 = vmatpush1.xpose.msra.mxu0 0.0
    %7445 = vmatprep.subr.mxu0 0.0
    %7446 = vmatpush1.xpose.msra.mxu0 0.0
    %7447 = vmatprep.subr.mxu0 0.0
    %7448 = vmatpush1.xpose.msra.mxu0 0.0
    %7449 = vmatprep.subr.mxu0 0.0
    %7450 = vmatpush1.xpose.msra.mxu0 0.0
    %7451 = vmatprep.subr.mxu0 0.0
    %7452 = vmatpush1.xpose.msra.mxu0 0.0
    %7453 = vmatprep.subr.mxu0 0.0
    %7454 = vmatpush1.xpose.msra.mxu0 0.0
    %7455 = vmatprep.subr.mxu0 0.0
    %7456 = vmatpush1.xpose.msra.mxu0 0.0
    %7457 = vmatprep.subr.mxu0 0.0
    %7458 = vmatpush1.xpose.msra.mxu0 0.0
    %7459 = vmatprep.subr.mxu0 0.0
    %7460 = vmatpush1.xpose.msra.mxu0 0.0
    %7461 = vmatprep.subr.mxu0 0.0
    %7462 = vmatpush1.xpose.msra.mxu0 0.0
    %7463 = vmatprep.subr.mxu0 0.0
    %7464 = vmatpush1.xpose.msra.mxu0 0.0
    %7465 = vmatprep.subr.mxu0 0.0
    %7466 = vmatpush1.xpose.msra.mxu0 0.0
    %7467 = vmatprep.subr.mxu0 0.0
    %7468 = vmatpush1.xpose.msra.mxu0 0.0
    %7469 = vmatprep.subr.mxu0 0.0
    %7470 = vmatpush1.xpose.msra.mxu0 0.0
    %7471 = vmatprep.subr.mxu0 0.0
    %7472 = vmatpush1.xpose.msra.mxu0 0.0
    %7473 = vmatprep.subr.mxu0 0.0
    %7474 = vmatpush1.xpose.msra.mxu0 0.0
    %7475 = vmatprep.subr.mxu0 0.0
    %7476 = vmatpush1.xpose.msra.mxu0 0.0
    %7477 = vmatprep.subr.mxu0 0.0
    %7478 = vmatpush1.xpose.msra.mxu0 0.0
    %7479 = vmatprep.subr.mxu0 0.0
    %7480 = vmatpush1.xpose.msra.mxu0 0.0
    %7481 = vmatprep.subr.mxu0 0.0
    %7482 = vmatpush1.xpose.msra.mxu0 0.0
    %7483 = vmatprep.subr.mxu0 0.0
    %7484 = vmatpush1.xpose.msra.mxu0 0.0
    %7485 = vmatprep.subr.mxu0 0.0
    %7486 = vmatpush1.xpose.msra.mxu0 0.0
    %7487 = vmatprep.subr.mxu0 0.0
    %7488 = vmatpush1.xpose.msra.mxu0 0.0
    %7489 = vmatprep.subr.mxu0 0.0
    %7490 = vmatpush1.xpose.msra.mxu0 0.0
    %7491 = vmatprep.subr.mxu0 0.0
    %7492 = vmatpush1.xpose.msra.mxu0 0.0
    %7493 = vmatprep.subr.mxu0 0.0
    %7494 = vmatpush1.xpose.msra.mxu0 0.0
    %7495 = vmatprep.mubr.f32.mxu0 0.0
    %7496 = vmatmul.mubr.f32.gmra.mrb[0].mxu0 %v7425
    %v7497 = vpop.f32.mrb[0].mxu0
    %v7498 = vadd.f32 0.0, %v7497
    %v7499 = vpop.f32.mrb[0].mxu0
    %7500 = vdwg.mxu0
    %v7501 = vmul.f32 %v7498, 0.35355338
    %v7502 = vsel %vm2466, %v7501, -inf
    %7503 = vmax.xlane.f32.xlu0 %v7502
    %v7504 = vpop.xlane.xlu0 %7503
    %v7505 = vsub.f32 %v7501, %v7504
    %v7506 = vmul.f32 %v7505, 1.442695
    %v7507 = vpow.pop %v7506
    %v7508 = vsel %vm2466, %v7507, 0.0
    %7509 = vadd.xlane.f32.xlu0 %v7508
    %v7510 = vpop.xlane.xlu0 %7509
    %v7511 = vrcp.pop %v7510
    %v7512 = vmul.f32 %v7507, %v7511
    %7513 = vrot.lane.b32.xlu0 %v6905, 80
    %v7514 = vpop.permute.xlu0 %7513
    %7515 = vrot.lane.b32.xlu0 %v6910, 80
    %v7516 = vpop.permute.xlu0 %7515
    %v7520 = vsel %vm2466, %v7512, 0
    %7522 = vmatprep.subr.mxu0 0.0
    %7523 = vmatpush1.msra.mxu0 %v7514
    %7524 = vmatprep.subr.mxu0 0.0
    %7525 = vmatpush1.msra.mxu0 %v7516
    %7526 = vmatprep.subr.mxu0 0.0
    %7527 = vmatpush1.msra.mxu0 0.0
    %7528 = vmatprep.subr.mxu0 0.0
    %7529 = vmatpush1.msra.mxu0 0.0
    %7530 = vmatprep.subr.mxu0 0.0
    %7531 = vmatpush1.msra.mxu0 0.0
    %7532 = vmatprep.subr.mxu0 0.0
    %7533 = vmatpush1.msra.mxu0 0.0
    %7534 = vmatprep.subr.mxu0 0.0
    %7535 = vmatpush1.msra.mxu0 0.0
    %7536 = vmatprep.subr.mxu0 0.0
    %7537 = vmatpush1.msra.mxu0 0.0
    %7538 = vmatprep.subr.mxu0 0.0
    %7539 = vmatpush1.msra.mxu0 0.0
    %7540 = vmatprep.subr.mxu0 0.0
    %7541 = vmatpush1.msra.mxu0 0.0
    %7542 = vmatprep.subr.mxu0 0.0
    %7543 = vmatpush1.msra.mxu0 0.0
    %7544 = vmatprep.subr.mxu0 0.0
    %7545 = vmatpush1.msra.mxu0 0.0
    %7546 = vmatprep.subr.mxu0 0.0
    %7547 = vmatpush1.msra.mxu0 0.0
    %7548 = vmatprep.subr.mxu0 0.0
    %7549 = vmatpush1.msra.mxu0 0.0
    %7550 = vmatprep.subr.mxu0 0.0
    %7551 = vmatpush1.msra.mxu0 0.0
    %7552 = vmatprep.subr.mxu0 0.0
    %7553 = vmatpush1.msra.mxu0 0.0
    %7554 = vmatprep.subr.mxu0 0.0
    %7555 = vmatpush1.msra.mxu0 0.0
    %7556 = vmatprep.subr.mxu0 0.0
    %7557 = vmatpush1.msra.mxu0 0.0
    %7558 = vmatprep.subr.mxu0 0.0
    %7559 = vmatpush1.msra.mxu0 0.0
    %7560 = vmatprep.subr.mxu0 0.0
    %7561 = vmatpush1.msra.mxu0 0.0
    %7562 = vmatprep.subr.mxu0 0.0
    %7563 = vmatpush1.msra.mxu0 0.0
    %7564 = vmatprep.subr.mxu0 0.0
    %7565 = vmatpush1.msra.mxu0 0.0
    %7566 = vmatprep.subr.mxu0 0.0
    %7567 = vmatpush1.msra.mxu0 0.0
    %7568 = vmatprep.subr.mxu0 0.0
    %7569 = vmatpush1.msra.mxu0 0.0
    %7570 = vmatprep.subr.mxu0 0.0
    %7571 = vmatpush1.msra.mxu0 0.0
    %7572 = vmatprep.subr.mxu0 0.0
    %7573 = vmatpush1.msra.mxu0 0.0
    %7574 = vmatprep.subr.mxu0 0.0
    %7575 = vmatpush1.msra.mxu0 0.0
    %7576 = vmatprep.subr.mxu0 0.0
    %7577 = vmatpush1.msra.mxu0 0.0
    %7578 = vmatprep.subr.mxu0 0.0
    %7579 = vmatpush1.msra.mxu0 0.0
    %7580 = vmatprep.subr.mxu0 0.0
    %7581 = vmatpush1.msra.mxu0 0.0
    %7582 = vmatprep.subr.mxu0 0.0
    %7583 = vmatpush1.msra.mxu0 0.0
    %7584 = vmatprep.subr.mxu0 0.0
    %7585 = vmatpush1.msra.mxu0 0.0
    %7586 = vmatprep.mubr.f32.mxu0 0.0
    %7587 = vmatmul.mubr.f32.gmra.mrb[0].mxu0 %v7520
    %v7588 = vpop.f32.mrb[0].mxu0
    %v7589 = vadd.f32 0.0, %v7588
    %v7590 = vpop.f32.mrb[0].mxu0
    %7591 = vdwg.mxu0
    %v7593 = vsel %vm206, %v7589, 0
    %7595 = vmatprep.subr.mxu0 0.0
    %7596 = vmatpush1.msra.mxu0 %v6926
    %7597 = vmatprep.subr.mxu0 0.0
    %7598 = vmatpush1.msra.mxu0 0.0
    %7599 = vmatprep.subr.mxu0 0.0
    %7600 = vmatpush1.msra.mxu0 0.0
    %7601 = vmatprep.subr.mxu0 0.0
    %7602 = vmatpush1.msra.mxu0 0.0
    %7603 = vmatprep.subr.mxu0 0.0
    %7604 = vmatpush1.msra.mxu0 0.0
    %7605 = vmatprep.subr.mxu0 0.0
    %7606 = vmatpush1.msra.mxu0 0.0
    %7607 = vmatprep.subr.mxu0 0.0
    %7608 = vmatpush1.msra.mxu0 0.0
    %7609 = vmatprep.subr.mxu0 0.0
    %7610 = vmatpush1.msra.mxu0 0.0
    %7611 = vmatprep.subr.mxu0 0.0
    %7612 = vmatpush1.msra.mxu0 0.0
    %7613 = vmatprep.subr.mxu0 0.0
    %7614 = vmatpush1.msra.mxu0 0.0
    %7615 = vmatprep.subr.mxu0 0.0
    %7616 = vmatpush1.msra.mxu0 0.0
    %7617 = vmatprep.subr.mxu0 0.0
    %7618 = vmatpush1.msra.mxu0 0.0
    %7619 = vmatprep.subr.mxu0 0.0
    %7620 = vmatpush1.msra.mxu0 0.0
    %7621 = vmatprep.subr.mxu0 0.0
    %7622 = vmatpush1.msra.mxu0 0.0
    %7623 = vmatprep.subr.mxu0 0.0
    %7624 = vmatpush1.msra.mxu0 0.0
    %7625 = vmatprep.subr.mxu0 0.0
    %7626 = vmatpush1.msra.mxu0 0.0
    %7627 = vmatprep.subr.mxu0 0.0
    %7628 = vmatpush1.msra.mxu0 0.0
    %7629 = vmatprep.subr.mxu0 0.0
    %7630 = vmatpush1.msra.mxu0 0.0
    %7631 = vmatprep.subr.mxu0 0.0
    %7632 = vmatpush1.msra.mxu0 0.0
    %7633 = vmatprep.subr.mxu0 0.0
    %7634 = vmatpush1.msra.mxu0 0.0
    %7635 = vmatprep.subr.mxu0 0.0
    %7636 = vmatpush1.msra.mxu0 0.0
    %7637 = vmatprep.subr.mxu0 0.0
    %7638 = vmatpush1.msra.mxu0 0.0
    %7639 = vmatprep.subr.mxu0 0.0
    %7640 = vmatpush1.msra.mxu0 0.0
    %7641 = vmatprep.subr.mxu0 0.0
    %7642 = vmatpush1.msra.mxu0 0.0
    %7643 = vmatprep.subr.mxu0 0.0
    %7644 = vmatpush1.msra.mxu0 0.0
    %7645 = vmatprep.subr.mxu0 0.0
    %7646 = vmatpush1.msra.mxu0 0.0
    %7647 = vmatprep.subr.mxu0 0.0
    %7648 = vmatpush1.msra.mxu0 0.0
    %7649 = vmatprep.subr.mxu0 0.0
    %7650 = vmatpush1.msra.mxu0 0.0
    %7651 = vmatprep.subr.mxu0 0.0
    %7652 = vmatpush1.msra.mxu0 0.0
    %7653 = vmatprep.subr.mxu0 0.0
    %7654 = vmatpush1.msra.mxu0 0.0
    %7655 = vmatprep.subr.mxu0 0.0
    %7656 = vmatpush1.msra.mxu0 0.0
    %7657 = vmatprep.subr.mxu0 0.0
    %7658 = vmatpush1.msra.mxu0 0.0
    %7659 = vmatprep.mubr.f32.mxu0 0.0
    %7660 = vmatmul.mubr.f32.gmra.mrb[0].mxu0 %v7593
    %v7661 = vpop.f32.mrb[0].mxu0
    %v7662 = vadd.f32 0.0, %v7661
    %v7663 = vpop.f32.mrb[0].mxu0
    %7664 = vdwg.mxu0
    %v7665 = vadd.f32 %v7416, %v7662
    %7666 = vrot.lane.b32.xlu0 %v6817, 104
    %v7667 = vpop.permute.xlu0 %7666
    %7668 = vrot.lane.b32.xlu0 %v6905, 104
    %v7669 = vpop.permute.xlu0 %7668
    %7670 = vrot.lane.b32.xlu0 %v6910, 104
    %v7671 = vpop.permute.xlu0 %7670
    %v7672 = vsel %vm206, %v7667, 0
    %v7674 = vsel %vm206, %v7669, 0
    %v7676 = vsel %vm206, %v7671, 0
    %7678 = vmatprep.subr.mxu0 0.0
    %7679 = vmatpush1.xpose.msra.mxu0 %v7674
    %7680 = vmatprep.subr.mxu0 0.0
    %7681 = vmatpush1.xpose.msra.mxu0 %v7676
    %7682 = vmatprep.subr.mxu0 0.0
    %7683 = vmatpush1.xpose.msra.mxu0 0.0
    %7684 = vmatprep.subr.mxu0 0.0
    %7685 = vmatpush1.xpose.msra.mxu0 0.0
    %7686 = vmatprep.subr.mxu0 0.0
    %7687 = vmatpush1.xpose.msra.mxu0 0.0
    %7688 = vmatprep.subr.mxu0 0.0
    %7689 = vmatpush1.xpose.msra.mxu0 0.0
    %7690 = vmatprep.subr.mxu0 0.0
    %7691 = vmatpush1.xpose.msra.mxu0 0.0
    %7692 = vmatprep.subr.mxu0 0.0
    %7693 = vmatpush1.xpose.msra.mxu0 0.0
    %7694 = vmatprep.subr.mxu0 0.0
    %7695 = vmatpush1.xpose.msra.mxu0 0.0
    %7696 = vmatprep.subr.mxu0 0.0
    %7697 = vmatpush1.xpose.msra.mxu0 0.0
    %7698 = vmatprep.subr.mxu0 0.0
    %7699 = vmatpush1.xpose.msra.mxu0 0.0
    %7700 = vmatprep.subr.mxu0 0.0
    %7701 = vmatpush1.xpose.msra.mxu0 0.0
    %7702 = vmatprep.subr.mxu0 0.0
    %7703 = vmatpush1.xpose.msra.mxu0 0.0
    %7704 = vmatprep.subr.mxu0 0.0
    %7705 = vmatpush1.xpose.msra.mxu0 0.0
    %7706 = vmatprep.subr.mxu0 0.0
    %7707 = vmatpush1.xpose.msra.mxu0 0.0
    %7708 = vmatprep.subr.mxu0 0.0
    %7709 = vmatpush1.xpose.msra.mxu0 0.0
    %7710 = vmatprep.subr.mxu0 0.0
    %7711 = vmatpush1.xpose.msra.mxu0 0.0
    %7712 = vmatprep.subr.mxu0 0.0
    %7713 = vmatpush1.xpose.msra.mxu0 0.0
    %7714 = vmatprep.subr.mxu0 0.0
    %7715 = vmatpush1.xpose.msra.mxu0 0.0
    %7716 = vmatprep.subr.mxu0 0.0
    %7717 = vmatpush1.xpose.msra.mxu0 0.0
    %7718 = vmatprep.subr.mxu0 0.0
    %7719 = vmatpush1.xpose.msra.mxu0 0.0
    %7720 = vmatprep.subr.mxu0 0.0
    %7721 = vmatpush1.xpose.msra.mxu0 0.0
    %7722 = vmatprep.subr.mxu0 0.0
    %7723 = vmatpush1.xpose.msra.mxu0 0.0
    %7724 = vmatprep.subr.mxu0 0.0
    %7725 = vmatpush1.xpose.msra.mxu0 0.0
    %7726 = vmatprep.subr.mxu0 0.0
    %7727 = vmatpush1.xpose.msra.mxu0 0.0
    %7728 = vmatprep.subr.mxu0 0.0
    %7729 = vmatpush1.xpose.msra.mxu0 0.0
    %7730 = vmatprep.subr.mxu0 0.0
    %7731 = vmatpush1.xpose.msra.mxu0 0.0
    %7732 = vmatprep.subr.mxu0 0.0
    %7733 = vmatpush1.xpose.msra.mxu0 0.0
    %7734 = vmatprep.subr.mxu0 0.0
    %7735 = vmatpush1.xpose.msra.mxu0 0.0
    %7736 = vmatprep.subr.mxu0 0.0
    %7737 = vmatpush1.xpose.msra.mxu0 0.0
    %7738 = vmatprep.subr.mxu0 0.0
    %7739 = vmatpush1.xpose.msra.mxu0 0.0
    %7740 = vmatprep.subr.mxu0 0.0
    %7741 = vmatpush1.xpose.msra.mxu0 0.0
    %7742 = vmatprep.mubr.f32.mxu0 0.0
    %7743 = vmatmul.mubr.f32.gmra.mrb[0].mxu0 %v7672
    %v7744 = vpop.f32.mrb[0].mxu0
    %v7745 = vadd.f32 0.0, %v7744
    %v7746 = vpop.f32.mrb[0].mxu0
    %7747 = vdwg.mxu0
    %v7748 = vmul.f32 %v7745, 0.35355338
    %v7749 = vsel %vm2466, %v7748, -inf
    %7750 = vmax.xlane.f32.xlu0 %v7749
    %v7751 = vpop.xlane.xlu0 %7750
    %v7752 = vsub.f32 %v7748, %v7751
    %v7753 = vmul.f32 %v7752, 1.442695
    %v7754 = vpow.pop %v7753
    %v7755 = vsel %vm2466, %v7754, 0.0
    %7756 = vadd.xlane.f32.xlu0 %v7755
    %v7757 = vpop.xlane.xlu0 %7756
    %v7758 = vrcp.pop %v7757
    %v7759 = vmul.f32 %v7754, %v7758
    %7760 = vrot.lane.b32.xlu0 %v6905, 72
    %v7761 = vpop.permute.xlu0 %7760
    %7762 = vrot.lane.b32.xlu0 %v6910, 72
    %v7763 = vpop.permute.xlu0 %7762
    %v7767 = vsel %vm2466, %v7759, 0
    %7769 = vmatprep.subr.mxu0 0.0
    %7770 = vmatpush1.msra.mxu0 %v7761
    %7771 = vmatprep.subr.mxu0 0.0
    %7772 = vmatpush1.msra.mxu0 %v7763
    %7773 = vmatprep.subr.mxu0 0.0
    %7774 = vmatpush1.msra.mxu0 0.0
    %7775 = vmatprep.subr.mxu0 0.0
    %7776 = vmatpush1.msra.mxu0 0.0
    %7777 = vmatprep.subr.mxu0 0.0
    %7778 = vmatpush1.msra.mxu0 0.0
    %7779 = vmatprep.subr.mxu0 0.0
    %7780 = vmatpush1.msra.mxu0 0.0
    %7781 = vmatprep.subr.mxu0 0.0
    %7782 = vmatpush1.msra.mxu0 0.0
    %7783 = vmatprep.subr.mxu0 0.0
    %7784 = vmatpush1.msra.mxu0 0.0
    %7785 = vmatprep.subr.mxu0 0.0
    %7786 = vmatpush1.msra.mxu0 0.0
    %7787 = vmatprep.subr.mxu0 0.0
    %7788 = vmatpush1.msra.mxu0 0.0
    %7789 = vmatprep.subr.mxu0 0.0
    %7790 = vmatpush1.msra.mxu0 0.0
    %7791 = vmatprep.subr.mxu0 0.0
    %7792 = vmatpush1.msra.mxu0 0.0
    %7793 = vmatprep.subr.mxu0 0.0
    %7794 = vmatpush1.msra.mxu0 0.0
    %7795 = vmatprep.subr.mxu0 0.0
    %7796 = vmatpush1.msra.mxu0 0.0
    %7797 = vmatprep.subr.mxu0 0.0
    %7798 = vmatpush1.msra.mxu0 0.0
    %7799 = vmatprep.subr.mxu0 0.0
    %7800 = vmatpush1.msra.mxu0 0.0
    %7801 = vmatprep.subr.mxu0 0.0
    %7802 = vmatpush1.msra.mxu0 0.0
    %7803 = vmatprep.subr.mxu0 0.0
    %7804 = vmatpush1.msra.mxu0 0.0
    %7805 = vmatprep.subr.mxu0 0.0
    %7806 = vmatpush1.msra.mxu0 0.0
    %7807 = vmatprep.subr.mxu0 0.0
    %7808 = vmatpush1.msra.mxu0 0.0
    %7809 = vmatprep.subr.mxu0 0.0
    %7810 = vmatpush1.msra.mxu0 0.0
    %7811 = vmatprep.subr.mxu0 0.0
    %7812 = vmatpush1.msra.mxu0 0.0
    %7813 = vmatprep.subr.mxu0 0.0
    %7814 = vmatpush1.msra.mxu0 0.0
    %7815 = vmatprep.subr.mxu0 0.0
    %7816 = vmatpush1.msra.mxu0 0.0
    %7817 = vmatprep.subr.mxu0 0.0
    %7818 = vmatpush1.msra.mxu0 0.0
    %7819 = vmatprep.subr.mxu0 0.0
    %7820 = vmatpush1.msra.mxu0 0.0
    %7821 = vmatprep.subr.mxu0 0.0
    %7822 = vmatpush1.msra.mxu0 0.0
    %7823 = vmatprep.subr.mxu0 0.0
    %7824 = vmatpush1.msra.mxu0 0.0
    %7825 = vmatprep.subr.mxu0 0.0
    %7826 = vmatpush1.msra.mxu0 0.0
    %7827 = vmatprep.subr.mxu0 0.0
    %7828 = vmatpush1.msra.mxu0 0.0
    %7829 = vmatprep.subr.mxu0 0.0
    %7830 = vmatpush1.msra.mxu0 0.0
    %7831 = vmatprep.subr.mxu0 0.0
    %7832 = vmatpush1.msra.mxu0 0.0
    %7833 = vmatprep.mubr.f32.mxu0 0.0
    %7834 = vmatmul.mubr.f32.gmra.mrb[0].mxu0 %v7767
    %v7835 = vpop.f32.mrb[0].mxu0
    %v7836 = vadd.f32 0.0, %v7835
    %v7837 = vpop.f32.mrb[0].mxu0
    %7838 = vdwg.mxu0
    %v7840 = vsel %vm206, %v7836, 0
    %7842 = vmatprep.subr.mxu0 0.0
    %7843 = vmatpush1.msra.mxu0 %v6927
    %7844 = vmatprep.subr.mxu0 0.0
    %7845 = vmatpush1.msra.mxu0 0.0
    %7846 = vmatprep.subr.mxu0 0.0
    %7847 = vmatpush1.msra.mxu0 0.0
    %7848 = vmatprep.subr.mxu0 0.0
    %7849 = vmatpush1.msra.mxu0 0.0
    %7850 = vmatprep.subr.mxu0 0.0
    %7851 = vmatpush1.msra.mxu0 0.0
    %7852 = vmatprep.subr.mxu0 0.0
    %7853 = vmatpush1.msra.mxu0 0.0
    %7854 = vmatprep.subr.mxu0 0.0
    %7855 = vmatpush1.msra.mxu0 0.0
    %7856 = vmatprep.subr.mxu0 0.0
    %7857 = vmatpush1.msra.mxu0 0.0
    %7858 = vmatprep.subr.mxu0 0.0
    %7859 = vmatpush1.msra.mxu0 0.0
    %7860 = vmatprep.subr.mxu0 0.0
    %7861 = vmatpush1.msra.mxu0 0.0
    %7862 = vmatprep.subr.mxu0 0.0
    %7863 = vmatpush1.msra.mxu0 0.0
    %7864 = vmatprep.subr.mxu0 0.0
    %7865 = vmatpush1.msra.mxu0 0.0
    %7866 = vmatprep.subr.mxu0 0.0
    %7867 = vmatpush1.msra.mxu0 0.0
    %7868 = vmatprep.subr.mxu0 0.0
    %7869 = vmatpush1.msra.mxu0 0.0
    %7870 = vmatprep.subr.mxu0 0.0
    %7871 = vmatpush1.msra.mxu0 0.0
    %7872 = vmatprep.subr.mxu0 0.0
    %7873 = vmatpush1.msra.mxu0 0.0
    %7874 = vmatprep.subr.mxu0 0.0
    %7875 = vmatpush1.msra.mxu0 0.0
    %7876 = vmatprep.subr.mxu0 0.0
    %7877 = vmatpush1.msra.mxu0 0.0
    %7878 = vmatprep.subr.mxu0 0.0
    %7879 = vmatpush1.msra.mxu0 0.0
    %7880 = vmatprep.subr.mxu0 0.0
    %7881 = vmatpush1.msra.mxu0 0.0
    %7882 = vmatprep.subr.mxu0 0.0
    %7883 = vmatpush1.msra.mxu0 0.0
    %7884 = vmatprep.subr.mxu0 0.0
    %7885 = vmatpush1.msra.mxu0 0.0
    %7886 = vmatprep.subr.mxu0 0.0
    %7887 = vmatpush1.msra.mxu0 0.0
    %7888 = vmatprep.subr.mxu0 0.0
    %7889 = vmatpush1.msra.mxu0 0.0
    %7890 = vmatprep.subr.mxu0 0.0
    %7891 = vmatpush1.msra.mxu0 0.0
    %7892 = vmatprep.subr.mxu0 0.0
    %7893 = vmatpush1.msra.mxu0 0.0
    %7894 = vmatprep.subr.mxu0 0.0
    %7895 = vmatpush1.msra.mxu0 0.0
    %7896 = vmatprep.subr.mxu0 0.0
    %7897 = vmatpush1.msra.mxu0 0.0
    %7898 = vmatprep.subr.mxu0 0.0
    %7899 = vmatpush1.msra.mxu0 0.0
    %7900 = vmatprep.subr.mxu0 0.0
    %7901 = vmatpush1.msra.mxu0 0.0
    %7902 = vmatprep.subr.mxu0 0.0
    %7903 = vmatpush1.msra.mxu0 0.0
    %7904 = vmatprep.subr.mxu0 0.0
    %7905 = vmatpush1.msra.mxu0 0.0
    %7906 = vmatprep.mubr.f32.mxu0 0.0
    %7907 = vmatmul.mubr.f32.gmra.mrb[0].mxu0 %v7840
    %v7908 = vpop.f32.mrb[0].mxu0
    %v7909 = vadd.f32 0.0, %v7908
    %v7910 = vpop.f32.mrb[0].mxu0
    %7911 = vdwg.mxu0
    %v7912 = vadd.f32 %v7665, %v7909
    %v7914 = vsel %vm206, %v6822, 0
    %v7917 = vsel %vm206, %v6915, 0
    %v7920 = vsel %vm206, %v6920, 0
    %7922 = vmatprep.subr.mxu0 0.0
    %7923 = vmatpush1.xpose.msra.mxu0 %v7917
    %7924 = vmatprep.subr.mxu0 0.0
    %7925 = vmatpush1.xpose.msra.mxu0 %v7920
    %7926 = vmatprep.subr.mxu0 0.0
    %7927 = vmatpush1.xpose.msra.mxu0 0.0
    %7928 = vmatprep.subr.mxu0 0.0
    %7929 = vmatpush1.xpose.msra.mxu0 0.0
    %7930 = vmatprep.subr.mxu0 0.0
    %7931 = vmatpush1.xpose.msra.mxu0 0.0
    %7932 = vmatprep.subr.mxu0 0.0
    %7933 = vmatpush1.xpose.msra.mxu0 0.0
    %7934 = vmatprep.subr.mxu0 0.0
    %7935 = vmatpush1.xpose.msra.mxu0 0.0
    %7936 = vmatprep.subr.mxu0 0.0
    %7937 = vmatpush1.xpose.msra.mxu0 0.0
    %7938 = vmatprep.subr.mxu0 0.0
    %7939 = vmatpush1.xpose.msra.mxu0 0.0
    %7940 = vmatprep.subr.mxu0 0.0
    %7941 = vmatpush1.xpose.msra.mxu0 0.0
    %7942 = vmatprep.subr.mxu0 0.0
    %7943 = vmatpush1.xpose.msra.mxu0 0.0
    %7944 = vmatprep.subr.mxu0 0.0
    %7945 = vmatpush1.xpose.msra.mxu0 0.0
    %7946 = vmatprep.subr.mxu0 0.0
    %7947 = vmatpush1.xpose.msra.mxu0 0.0
    %7948 = vmatprep.subr.mxu0 0.0
    %7949 = vmatpush1.xpose.msra.mxu0 0.0
    %7950 = vmatprep.subr.mxu0 0.0
    %7951 = vmatpush1.xpose.msra.mxu0 0.0
    %7952 = vmatprep.subr.mxu0 0.0
    %7953 = vmatpush1.xpose.msra.mxu0 0.0
    %7954 = vmatprep.subr.mxu0 0.0
    %7955 = vmatpush1.xpose.msra.mxu0 0.0
    %7956 = vmatprep.subr.mxu0 0.0
    %7957 = vmatpush1.xpose.msra.mxu0 0.0
    %7958 = vmatprep.subr.mxu0 0.0
    %7959 = vmatpush1.xpose.msra.mxu0 0.0
    %7960 = vmatprep.subr.mxu0 0.0
    %7961 = vmatpush1.xpose.msra.mxu0 0.0
    %7962 = vmatprep.subr.mxu0 0.0
    %7963 = vmatpush1.xpose.msra.mxu0 0.0
    %7964 = vmatprep.subr.mxu0 0.0
    %7965 = vmatpush1.xpose.msra.mxu0 0.0
    %7966 = vmatprep.subr.mxu0 0.0
    %7967 = vmatpush1.xpose.msra.mxu0 0.0
    %7968 = vmatprep.subr.mxu0 0.0
    %7969 = vmatpush1.xpose.msra.mxu0 0.0
    %7970 = vmatprep.subr.mxu0 0.0
    %7971 = vmatpush1.xpose.msra.mxu0 0.0
    %7972 = vmatprep.subr.mxu0 0.0
    %7973 = vmatpush1.xpose.msra.mxu0 0.0
    %7974 = vmatprep.subr.mxu0 0.0
    %7975 = vmatpush1.xpose.msra.mxu0 0.0
    %7976 = vmatprep.subr.mxu0 0.0
    %7977 = vmatpush1.xpose.msra.mxu0 0.0
    %7978 = vmatprep.subr.mxu0 0.0
    %7979 = vmatpush1.xpose.msra.mxu0 0.0
    %7980 = vmatprep.subr.mxu0 0.0
    %7981 = vmatpush1.xpose.msra.mxu0 0.0
    %7982 = vmatprep.subr.mxu0 0.0
    %7983 = vmatpush1.xpose.msra.mxu0 0.0
    %7984 = vmatprep.subr.mxu0 0.0
    %7985 = vmatpush1.xpose.msra.mxu0 0.0
    %7986 = vmatprep.mubr.f32.mxu0 0.0
    %7987 = vmatmul.mubr.f32.gmra.mrb[0].mxu0 %v7914
    %v7988 = vpop.f32.mrb[0].mxu0
    %v7989 = vadd.f32 0.0, %v7988
    %v7990 = vpop.f32.mrb[0].mxu0
    %7991 = vdwg.mxu0
    %v7992 = vmul.f32 %v7989, 0.35355338
    %v7993 = vsel %vm2466, %v7992, -inf
    %7994 = vmax.xlane.f32.xlu0 %v7993
    %v7995 = vpop.xlane.xlu0 %7994
    %v7996 = vsub.f32 %v7992, %v7995
    %v7997 = vmul.f32 %v7996, 1.442695
    %v7998 = vpow.pop %v7997
    %v7999 = vsel %vm2466, %v7998, 0.0
    %8000 = vadd.xlane.f32.xlu0 %v7999
    %v8001 = vpop.xlane.xlu0 %8000
    %v8002 = vrcp.pop %v8001
    %v8003 = vmul.f32 %v7998, %v8002
    %8004 = vrot.lane.b32.xlu0 %v6915, 96
    %v8005 = vpop.permute.xlu0 %8004
    %8006 = vrot.lane.b32.xlu0 %v6920, 96
    %v8007 = vpop.permute.xlu0 %8006
    %v8011 = vsel %vm2466, %v8003, 0
    %8013 = vmatprep.subr.mxu0 0.0
    %8014 = vmatpush1.msra.mxu0 %v8005
    %8015 = vmatprep.subr.mxu0 0.0
    %8016 = vmatpush1.msra.mxu0 %v8007
    %8017 = vmatprep.subr.mxu0 0.0
    %8018 = vmatpush1.msra.mxu0 0.0
    %8019 = vmatprep.subr.mxu0 0.0
    %8020 = vmatpush1.msra.mxu0 0.0
    %8021 = vmatprep.subr.mxu0 0.0
    %8022 = vmatpush1.msra.mxu0 0.0
    %8023 = vmatprep.subr.mxu0 0.0
    %8024 = vmatpush1.msra.mxu0 0.0
    %8025 = vmatprep.subr.mxu0 0.0
    %8026 = vmatpush1.msra.mxu0 0.0
    %8027 = vmatprep.subr.mxu0 0.0
    %8028 = vmatpush1.msra.mxu0 0.0
    %8029 = vmatprep.subr.mxu0 0.0
    %8030 = vmatpush1.msra.mxu0 0.0
    %8031 = vmatprep.subr.mxu0 0.0
    %8032 = vmatpush1.msra.mxu0 0.0
    %8033 = vmatprep.subr.mxu0 0.0
    %8034 = vmatpush1.msra.mxu0 0.0
    %8035 = vmatprep.subr.mxu0 0.0
    %8036 = vmatpush1.msra.mxu0 0.0
    %8037 = vmatprep.subr.mxu0 0.0
    %8038 = vmatpush1.msra.mxu0 0.0
    %8039 = vmatprep.subr.mxu0 0.0
    %8040 = vmatpush1.msra.mxu0 0.0
    %8041 = vmatprep.subr.mxu0 0.0
    %8042 = vmatpush1.msra.mxu0 0.0
    %8043 = vmatprep.subr.mxu0 0.0
    %8044 = vmatpush1.msra.mxu0 0.0
    %8045 = vmatprep.subr.mxu0 0.0
    %8046 = vmatpush1.msra.mxu0 0.0
    %8047 = vmatprep.subr.mxu0 0.0
    %8048 = vmatpush1.msra.mxu0 0.0
    %8049 = vmatprep.subr.mxu0 0.0
    %8050 = vmatpush1.msra.mxu0 0.0
    %8051 = vmatprep.subr.mxu0 0.0
    %8052 = vmatpush1.msra.mxu0 0.0
    %8053 = vmatprep.subr.mxu0 0.0
    %8054 = vmatpush1.msra.mxu0 0.0
    %8055 = vmatprep.subr.mxu0 0.0
    %8056 = vmatpush1.msra.mxu0 0.0
    %8057 = vmatprep.subr.mxu0 0.0
    %8058 = vmatpush1.msra.mxu0 0.0
    %8059 = vmatprep.subr.mxu0 0.0
    %8060 = vmatpush1.msra.mxu0 0.0
    %8061 = vmatprep.subr.mxu0 0.0
    %8062 = vmatpush1.msra.mxu0 0.0
    %8063 = vmatprep.subr.mxu0 0.0
    %8064 = vmatpush1.msra.mxu0 0.0
    %8065 = vmatprep.subr.mxu0 0.0
    %8066 = vmatpush1.msra.mxu0 0.0
    %8067 = vmatprep.subr.mxu0 0.0
    %8068 = vmatpush1.msra.mxu0 0.0
    %8069 = vmatprep.subr.mxu0 0.0
    %8070 = vmatpush1.msra.mxu0 0.0
    %8071 = vmatprep.subr.mxu0 0.0
    %8072 = vmatpush1.msra.mxu0 0.0
    %8073 = vmatprep.subr.mxu0 0.0
    %8074 = vmatpush1.msra.mxu0 0.0
    %8075 = vmatprep.subr.mxu0 0.0
    %8076 = vmatpush1.msra.mxu0 0.0
    %8077 = vmatprep.mubr.f32.mxu0 0.0
    %8078 = vmatmul.mubr.f32.gmra.mrb[0].mxu0 %v8011
    %v8079 = vpop.f32.mrb[0].mxu0
    %v8080 = vadd.f32 0.0, %v8079
    %v8081 = vpop.f32.mrb[0].mxu0
    %8082 = vdwg.mxu0
    %8083 = vrot.lane.b32.xlu0 %v6822, 120
    %v8084 = vpop.permute.xlu0 %8083
    %8085 = vrot.lane.b32.xlu0 %v6915, 120
    %v8086 = vpop.permute.xlu0 %8085
    %8087 = vrot.lane.b32.xlu0 %v6920, 120
    %v8088 = vpop.permute.xlu0 %8087
    %v8089 = vsel %vm206, %v8084, 0
    %v8091 = vsel %vm206, %v8086, 0
    %v8093 = vsel %vm206, %v8088, 0
    %8095 = vmatprep.subr.mxu0 0.0
    %8096 = vmatpush1.xpose.msra.mxu0 %v8091
    %8097 = vmatprep.subr.mxu0 0.0
    %8098 = vmatpush1.xpose.msra.mxu0 %v8093
    %8099 = vmatprep.subr.mxu0 0.0
    %8100 = vmatpush1.xpose.msra.mxu0 0.0
    %8101 = vmatprep.subr.mxu0 0.0
    %8102 = vmatpush1.xpose.msra.mxu0 0.0
    %8103 = vmatprep.subr.mxu0 0.0
    %8104 = vmatpush1.xpose.msra.mxu0 0.0
    %8105 = vmatprep.subr.mxu0 0.0
    %8106 = vmatpush1.xpose.msra.mxu0 0.0
    %8107 = vmatprep.subr.mxu0 0.0
    %8108 = vmatpush1.xpose.msra.mxu0 0.0
    %8109 = vmatprep.subr.mxu0 0.0
    %8110 = vmatpush1.xpose.msra.mxu0 0.0
    %8111 = vmatprep.subr.mxu0 0.0
    %8112 = vmatpush1.xpose.msra.mxu0 0.0
    %8113 = vmatprep.subr.mxu0 0.0
    %8114 = vmatpush1.xpose.msra.mxu0 0.0
    %8115 = vmatprep.subr.mxu0 0.0
    %8116 = vmatpush1.xpose.msra.mxu0 0.0
    %8117 = vmatprep.subr.mxu0 0.0
    %8118 = vmatpush1.xpose.msra.mxu0 0.0
    %8119 = vmatprep.subr.mxu0 0.0
    %8120 = vmatpush1.xpose.msra.mxu0 0.0
    %8121 = vmatprep.subr.mxu0 0.0
    %8122 = vmatpush1.xpose.msra.mxu0 0.0
    %8123 = vmatprep.subr.mxu0 0.0
    %8124 = vmatpush1.xpose.msra.mxu0 0.0
    %8125 = vmatprep.subr.mxu0 0.0
    %8126 = vmatpush1.xpose.msra.mxu0 0.0
    %8127 = vmatprep.subr.mxu0 0.0
    %8128 = vmatpush1.xpose.msra.mxu0 0.0
    %8129 = vmatprep.subr.mxu0 0.0
    %8130 = vmatpush1.xpose.msra.mxu0 0.0
    %8131 = vmatprep.subr.mxu0 0.0
    %8132 = vmatpush1.xpose.msra.mxu0 0.0
    %8133 = vmatprep.subr.mxu0 0.0
    %8134 = vmatpush1.xpose.msra.mxu0 0.0
    %8135 = vmatprep.subr.mxu0 0.0
    %8136 = vmatpush1.xpose.msra.mxu0 0.0
    %8137 = vmatprep.subr.mxu0 0.0
    %8138 = vmatpush1.xpose.msra.mxu0 0.0
    %8139 = vmatprep.subr.mxu0 0.0
    %8140 = vmatpush1.xpose.msra.mxu0 0.0
    %8141 = vmatprep.subr.mxu0 0.0
    %8142 = vmatpush1.xpose.msra.mxu0 0.0
    %8143 = vmatprep.subr.mxu0 0.0
    %8144 = vmatpush1.xpose.msra.mxu0 0.0
    %8145 = vmatprep.subr.mxu0 0.0
    %8146 = vmatpush1.xpose.msra.mxu0 0.0
    %8147 = vmatprep.subr.mxu0 0.0
    %8148 = vmatpush1.xpose.msra.mxu0 0.0
    %8149 = vmatprep.subr.mxu0 0.0
    %8150 = vmatpush1.xpose.msra.mxu0 0.0
    %8151 = vmatprep.subr.mxu0 0.0
    %8152 = vmatpush1.xpose.msra.mxu0 0.0
    %8153 = vmatprep.subr.mxu0 0.0
    %8154 = vmatpush1.xpose.msra.mxu0 0.0
    %8155 = vmatprep.subr.mxu0 0.0
    %8156 = vmatpush1.xpose.msra.mxu0 0.0
    %8157 = vmatprep.subr.mxu0 0.0
    %8158 = vmatpush1.xpose.msra.mxu0 0.0
    %8159 = vmatprep.mubr.f32.mxu0 0.0
    %8160 = vmatmul.mubr.f32.gmra.mrb[0].mxu0 %v8089
    %v8161 = vpop.f32.mrb[0].mxu0
    %v8162 = vadd.f32 0.0, %v8161
    %v8163 = vpop.f32.mrb[0].mxu0
    %8164 = vdwg.mxu0
    %v8165 = vmul.f32 %v8162, 0.35355338
    %v8166 = vsel %vm2466, %v8165, -inf
    %8167 = vmax.xlane.f32.xlu0 %v8166
    %v8168 = vpop.xlane.xlu0 %8167
    %v8169 = vsub.f32 %v8165, %v8168
    %v8170 = vmul.f32 %v8169, 1.442695
    %v8171 = vpow.pop %v8170
    %v8172 = vsel %vm2466, %v8171, 0.0
    %8173 = vadd.xlane.f32.xlu0 %v8172
    %v8174 = vpop.xlane.xlu0 %8173
    %v8175 = vrcp.pop %v8174
    %v8176 = vmul.f32 %v8171, %v8175
    %8177 = vrot.lane.b32.xlu0 %v6915, 88
    %v8178 = vpop.permute.xlu0 %8177
    %8179 = vrot.lane.b32.xlu0 %v6920, 88
    %v8180 = vpop.permute.xlu0 %8179
    %v8184 = vsel %vm2466, %v8176, 0
    %8186 = vmatprep.subr.mxu0 0.0
    %8187 = vmatpush1.msra.mxu0 %v8178
    %8188 = vmatprep.subr.mxu0 0.0
    %8189 = vmatpush1.msra.mxu0 %v8180
    %8190 = vmatprep.subr.mxu0 0.0
    %8191 = vmatpush1.msra.mxu0 0.0
    %8192 = vmatprep.subr.mxu0 0.0
    %8193 = vmatpush1.msra.mxu0 0.0
    %8194 = vmatprep.subr.mxu0 0.0
    %8195 = vmatpush1.msra.mxu0 0.0
    %8196 = vmatprep.subr.mxu0 0.0
    %8197 = vmatpush1.msra.mxu0 0.0
    %8198 = vmatprep.subr.mxu0 0.0
    %8199 = vmatpush1.msra.mxu0 0.0
    %8200 = vmatprep.subr.mxu0 0.0
    %8201 = vmatpush1.msra.mxu0 0.0
    %8202 = vmatprep.subr.mxu0 0.0
    %8203 = vmatpush1.msra.mxu0 0.0
    %8204 = vmatprep.subr.mxu0 0.0
    %8205 = vmatpush1.msra.mxu0 0.0
    %8206 = vmatprep.subr.mxu0 0.0
    %8207 = vmatpush1.msra.mxu0 0.0
    %8208 = vmatprep.subr.mxu0 0.0
    %8209 = vmatpush1.msra.mxu0 0.0
    %8210 = vmatprep.subr.mxu0 0.0
    %8211 = vmatpush1.msra.mxu0 0.0
    %8212 = vmatprep.subr.mxu0 0.0
    %8213 = vmatpush1.msra.mxu0 0.0
    %8214 = vmatprep.subr.mxu0 0.0
    %8215 = vmatpush1.msra.mxu0 0.0
    %8216 = vmatprep.subr.mxu0 0.0
    %8217 = vmatpush1.msra.mxu0 0.0
    %8218 = vmatprep.subr.mxu0 0.0
    %8219 = vmatpush1.msra.mxu0 0.0
    %8220 = vmatprep.subr.mxu0 0.0
    %8221 = vmatpush1.msra.mxu0 0.0
    %8222 = vmatprep.subr.mxu0 0.0
    %8223 = vmatpush1.msra.mxu0 0.0
    %8224 = vmatprep.subr.mxu0 0.0
    %8225 = vmatpush1.msra.mxu0 0.0
    %8226 = vmatprep.subr.mxu0 0.0
    %8227 = vmatpush1.msra.mxu0 0.0
    %8228 = vmatprep.subr.mxu0 0.0
    %8229 = vmatpush1.msra.mxu0 0.0
    %8230 = vmatprep.subr.mxu0 0.0
    %8231 = vmatpush1.msra.mxu0 0.0
    %8232 = vmatprep.subr.mxu0 0.0
    %8233 = vmatpush1.msra.mxu0 0.0
    %8234 = vmatprep.subr.mxu0 0.0
    %8235 = vmatpush1.msra.mxu0 0.0
    %8236 = vmatprep.subr.mxu0 0.0
    %8237 = vmatpush1.msra.mxu0 0.0
    %8238 = vmatprep.subr.mxu0 0.0
    %8239 = vmatpush1.msra.mxu0 0.0
    %8240 = vmatprep.subr.mxu0 0.0
    %8241 = vmatpush1.msra.mxu0 0.0
    %8242 = vmatprep.subr.mxu0 0.0
    %8243 = vmatpush1.msra.mxu0 0.0
    %8244 = vmatprep.subr.mxu0 0.0
    %8245 = vmatpush1.msra.mxu0 0.0
    %8246 = vmatprep.subr.mxu0 0.0
    %8247 = vmatpush1.msra.mxu0 0.0
    %8248 = vmatprep.subr.mxu0 0.0
    %8249 = vmatpush1.msra.mxu0 0.0
    %8250 = vmatprep.mubr.f32.mxu0 0.0
    %8251 = vmatmul.mubr.f32.gmra.mrb[0].mxu0 %v8184
    %v8252 = vpop.f32.mrb[0].mxu0
    %v8253 = vadd.f32 0.0, %v8252
    %v8254 = vpop.f32.mrb[0].mxu0
    %8255 = vdwg.mxu0
    %v8257 = vsel %vm206, %v8253, 0
    %8259 = vmatprep.subr.mxu0 0.0
    %8260 = vmatpush1.msra.mxu0 %v6925
    %8261 = vmatprep.subr.mxu0 0.0
    %8262 = vmatpush1.msra.mxu0 0.0
    %8263 = vmatprep.subr.mxu0 0.0
    %8264 = vmatpush1.msra.mxu0 0.0
    %8265 = vmatprep.subr.mxu0 0.0
    %8266 = vmatpush1.msra.mxu0 0.0
    %8267 = vmatprep.subr.mxu0 0.0
    %8268 = vmatpush1.msra.mxu0 0.0
    %8269 = vmatprep.subr.mxu0 0.0
    %8270 = vmatpush1.msra.mxu0 0.0
    %8271 = vmatprep.subr.mxu0 0.0
    %8272 = vmatpush1.msra.mxu0 0.0
    %8273 = vmatprep.subr.mxu0 0.0
    %8274 = vmatpush1.msra.mxu0 0.0
    %8275 = vmatprep.subr.mxu0 0.0
    %8276 = vmatpush1.msra.mxu0 0.0
    %8277 = vmatprep.subr.mxu0 0.0
    %8278 = vmatpush1.msra.mxu0 0.0
    %8279 = vmatprep.subr.mxu0 0.0
    %8280 = vmatpush1.msra.mxu0 0.0
    %8281 = vmatprep.subr.mxu0 0.0
    %8282 = vmatpush1.msra.mxu0 0.0
    %8283 = vmatprep.subr.mxu0 0.0
    %8284 = vmatpush1.msra.mxu0 0.0
    %8285 = vmatprep.subr.mxu0 0.0
    %8286 = vmatpush1.msra.mxu0 0.0
    %8287 = vmatprep.subr.mxu0 0.0
    %8288 = vmatpush1.msra.mxu0 0.0
    %8289 = vmatprep.subr.mxu0 0.0
    %8290 = vmatpush1.msra.mxu0 0.0
    %8291 = vmatprep.subr.mxu0 0.0
    %8292 = vmatpush1.msra.mxu0 0.0
    %8293 = vmatprep.subr.mxu0 0.0
    %8294 = vmatpush1.msra.mxu0 0.0
    %8295 = vmatprep.subr.mxu0 0.0
    %8296 = vmatpush1.msra.mxu0 0.0
    %8297 = vmatprep.subr.mxu0 0.0
    %8298 = vmatpush1.msra.mxu0 0.0
    %8299 = vmatprep.subr.mxu0 0.0
    %8300 = vmatpush1.msra.mxu0 0.0
    %8301 = vmatprep.subr.mxu0 0.0
    %8302 = vmatpush1.msra.mxu0 0.0
    %8303 = vmatprep.subr.mxu0 0.0
    %8304 = vmatpush1.msra.mxu0 0.0
    %8305 = vmatprep.subr.mxu0 0.0
    %8306 = vmatpush1.msra.mxu0 0.0
    %8307 = vmatprep.subr.mxu0 0.0
    %8308 = vmatpush1.msra.mxu0 0.0
    %8309 = vmatprep.subr.mxu0 0.0
    %8310 = vmatpush1.msra.mxu0 0.0
    %8311 = vmatprep.subr.mxu0 0.0
    %8312 = vmatpush1.msra.mxu0 0.0
    %8313 = vmatprep.subr.mxu0 0.0
    %8314 = vmatpush1.msra.mxu0 0.0
    %8315 = vmatprep.subr.mxu0 0.0
    %8316 = vmatpush1.msra.mxu0 0.0
    %8317 = vmatprep.subr.mxu0 0.0
    %8318 = vmatpush1.msra.mxu0 0.0
    %8319 = vmatprep.subr.mxu0 0.0
    %8320 = vmatpush1.msra.mxu0 0.0
    %8321 = vmatprep.subr.mxu0 0.0
    %8322 = vmatpush1.msra.mxu0 0.0
    %8323 = vmatprep.mubr.f32.mxu0 0.0
    %8324 = vmatmul.mubr.f32.gmra.mrb[0].mxu0 %v8257
    %v8325 = vpop.f32.mrb[0].mxu0
    %v8326 = vadd.f32 0.0, %v8325
    %v8327 = vpop.f32.mrb[0].mxu0
    %8328 = vdwg.mxu0
    %v8330 = vsel %vm206, %v8080, 0
    %8332 = vmatprep.subr.mxu0 0.0
    %8333 = vmatpush1.msra.mxu0 %v6924
    %8334 = vmatprep.subr.mxu0 0.0
    %8335 = vmatpush1.msra.mxu0 0.0
    %8336 = vmatprep.subr.mxu0 0.0
    %8337 = vmatpush1.msra.mxu0 0.0
    %8338 = vmatprep.subr.mxu0 0.0
    %8339 = vmatpush1.msra.mxu0 0.0
    %8340 = vmatprep.subr.mxu0 0.0
    %8341 = vmatpush1.msra.mxu0 0.0
    %8342 = vmatprep.subr.mxu0 0.0
    %8343 = vmatpush1.msra.mxu0 0.0
    %8344 = vmatprep.subr.mxu0 0.0
    %8345 = vmatpush1.msra.mxu0 0.0
    %8346 = vmatprep.subr.mxu0 0.0
    %8347 = vmatpush1.msra.mxu0 0.0
    %8348 = vmatprep.subr.mxu0 0.0
    %8349 = vmatpush1.msra.mxu0 0.0
    %8350 = vmatprep.subr.mxu0 0.0
    %8351 = vmatpush1.msra.mxu0 0.0
    %8352 = vmatprep.subr.mxu0 0.0
    %8353 = vmatpush1.msra.mxu0 0.0
    %8354 = vmatprep.subr.mxu0 0.0
    %8355 = vmatpush1.msra.mxu0 0.0
    %8356 = vmatprep.subr.mxu0 0.0
    %8357 = vmatpush1.msra.mxu0 0.0
    %8358 = vmatprep.subr.mxu0 0.0
    %8359 = vmatpush1.msra.mxu0 0.0
    %8360 = vmatprep.subr.mxu0 0.0
    %8361 = vmatpush1.msra.mxu0 0.0
    %8362 = vmatprep.subr.mxu0 0.0
    %8363 = vmatpush1.msra.mxu0 0.0
    %8364 = vmatprep.subr.mxu0 0.0
    %8365 = vmatpush1.msra.mxu0 0.0
    %8366 = vmatprep.subr.mxu0 0.0
    %8367 = vmatpush1.msra.mxu0 0.0
    %8368 = vmatprep.subr.mxu0 0.0
    %8369 = vmatpush1.msra.mxu0 0.0
    %8370 = vmatprep.subr.mxu0 0.0
    %8371 = vmatpush1.msra.mxu0 0.0
    %8372 = vmatprep.subr.mxu0 0.0
    %8373 = vmatpush1.msra.mxu0 0.0
    %8374 = vmatprep.subr.mxu0 0.0
    %8375 = vmatpush1.msra.mxu0 0.0
    %8376 = vmatprep.subr.mxu0 0.0
    %8377 = vmatpush1.msra.mxu0 0.0
    %8378 = vmatprep.subr.mxu0 0.0
    %8379 = vmatpush1.msra.mxu0 0.0
    %8380 = vmatprep.subr.mxu0 0.0
    %8381 = vmatpush1.msra.mxu0 0.0
    %8382 = vmatprep.subr.mxu0 0.0
    %8383 = vmatpush1.msra.mxu0 0.0
    %8384 = vmatprep.subr.mxu0 0.0
    %8385 = vmatpush1.msra.mxu0 0.0
    %8386 = vmatprep.subr.mxu0 0.0
    %8387 = vmatpush1.msra.mxu0 0.0
    %8388 = vmatprep.subr.mxu0 0.0
    %8389 = vmatpush1.msra.mxu0 0.0
    %8390 = vmatprep.subr.mxu0 0.0
    %8391 = vmatpush1.msra.mxu0 0.0
    %8392 = vmatprep.subr.mxu0 0.0
    %8393 = vmatpush1.msra.mxu0 0.0
    %8394 = vmatprep.subr.mxu0 0.0
    %8395 = vmatpush1.msra.mxu0 0.0
    %8396 = vmatprep.mubr.f32.mxu0 0.0
    %8397 = vmatmul.mubr.f32.gmra.mrb[0].mxu0 %v8330
    %v8398 = vpop.f32.mrb[0].mxu0
    %v8399 = vadd.f32 %v8326, %v8398
    %v8400 = vpop.f32.mrb[0].mxu0
    %8401 = vdwg.mxu0
    %8402 = vrot.lane.b32.xlu0 %v6822, 112
    %v8403 = vpop.permute.xlu0 %8402
    %8404 = vrot.lane.b32.xlu0 %v6915, 112
    %v8405 = vpop.permute.xlu0 %8404
    %8406 = vrot.lane.b32.xlu0 %v6920, 112
    %v8407 = vpop.permute.xlu0 %8406
    %v8408 = vsel %vm206, %v8403, 0
    %v8410 = vsel %vm206, %v8405, 0
    %v8412 = vsel %vm206, %v8407, 0
    %8414 = vmatprep.subr.mxu0 0.0
    %8415 = vmatpush1.xpose.msra.mxu0 %v8410
    %8416 = vmatprep.subr.mxu0 0.0
    %8417 = vmatpush1.xpose.msra.mxu0 %v8412
    %8418 = vmatprep.subr.mxu0 0.0
    %8419 = vmatpush1.xpose.msra.mxu0 0.0
    %8420 = vmatprep.subr.mxu0 0.0
    %8421 = vmatpush1.xpose.msra.mxu0 0.0
    %8422 = vmatprep.subr.mxu0 0.0
    %8423 = vmatpush1.xpose.msra.mxu0 0.0
    %8424 = vmatprep.subr.mxu0 0.0
    %8425 = vmatpush1.xpose.msra.mxu0 0.0
    %8426 = vmatprep.subr.mxu0 0.0
    %8427 = vmatpush1.xpose.msra.mxu0 0.0
    %8428 = vmatprep.subr.mxu0 0.0
    %8429 = vmatpush1.xpose.msra.mxu0 0.0
    %8430 = vmatprep.subr.mxu0 0.0
    %8431 = vmatpush1.xpose.msra.mxu0 0.0
    %8432 = vmatprep.subr.mxu0 0.0
    %8433 = vmatpush1.xpose.msra.mxu0 0.0
    %8434 = vmatprep.subr.mxu0 0.0
    %8435 = vmatpush1.xpose.msra.mxu0 0.0
    %8436 = vmatprep.subr.mxu0 0.0
    %8437 = vmatpush1.xpose.msra.mxu0 0.0
    %8438 = vmatprep.subr.mxu0 0.0
    %8439 = vmatpush1.xpose.msra.mxu0 0.0
    %8440 = vmatprep.subr.mxu0 0.0
    %8441 = vmatpush1.xpose.msra.mxu0 0.0
    %8442 = vmatprep.subr.mxu0 0.0
    %8443 = vmatpush1.xpose.msra.mxu0 0.0
    %8444 = vmatprep.subr.mxu0 0.0
    %8445 = vmatpush1.xpose.msra.mxu0 0.0
    %8446 = vmatprep.subr.mxu0 0.0
    %8447 = vmatpush1.xpose.msra.mxu0 0.0
    %8448 = vmatprep.subr.mxu0 0.0
    %8449 = vmatpush1.xpose.msra.mxu0 0.0
    %8450 = vmatprep.subr.mxu0 0.0
    %8451 = vmatpush1.xpose.msra.mxu0 0.0
    %8452 = vmatprep.subr.mxu0 0.0
    %8453 = vmatpush1.xpose.msra.mxu0 0.0
    %8454 = vmatprep.subr.mxu0 0.0
    %8455 = vmatpush1.xpose.msra.mxu0 0.0
    %8456 = vmatprep.subr.mxu0 0.0
    %8457 = vmatpush1.xpose.msra.mxu0 0.0
    %8458 = vmatprep.subr.mxu0 0.0
    %8459 = vmatpush1.xpose.msra.mxu0 0.0
    %8460 = vmatprep.subr.mxu0 0.0
    %8461 = vmatpush1.xpose.msra.mxu0 0.0
    %8462 = vmatprep.subr.mxu0 0.0
    %8463 = vmatpush1.xpose.msra.mxu0 0.0
    %8464 = vmatprep.subr.mxu0 0.0
    %8465 = vmatpush1.xpose.msra.mxu0 0.0
    %8466 = vmatprep.subr.mxu0 0.0
    %8467 = vmatpush1.xpose.msra.mxu0 0.0
    %8468 = vmatprep.subr.mxu0 0.0
    %8469 = vmatpush1.xpose.msra.mxu0 0.0
    %8470 = vmatprep.subr.mxu0 0.0
    %8471 = vmatpush1.xpose.msra.mxu0 0.0
    %8472 = vmatprep.subr.mxu0 0.0
    %8473 = vmatpush1.xpose.msra.mxu0 0.0
    %8474 = vmatprep.subr.mxu0 0.0
    %8475 = vmatpush1.xpose.msra.mxu0 0.0
    %8476 = vmatprep.subr.mxu0 0.0
    %8477 = vmatpush1.xpose.msra.mxu0 0.0
    %8478 = vmatprep.mubr.f32.mxu0 0.0
    %8479 = vmatmul.mubr.f32.gmra.mrb[0].mxu0 %v8408
    %v8480 = vpop.f32.mrb[0].mxu0
    %v8481 = vadd.f32 0.0, %v8480
    %v8482 = vpop.f32.mrb[0].mxu0
    %8483 = vdwg.mxu0
    %v8484 = vmul.f32 %v8481, 0.35355338
    %v8485 = vsel %vm2466, %v8484, -inf
    %8486 = vmax.xlane.f32.xlu0 %v8485
    %v8487 = vpop.xlane.xlu0 %8486
    %v8488 = vsub.f32 %v8484, %v8487
    %v8489 = vmul.f32 %v8488, 1.442695
    %v8490 = vpow.pop %v8489
    %v8491 = vsel %vm2466, %v8490, 0.0
    %8492 = vadd.xlane.f32.xlu0 %v8491
    %v8493 = vpop.xlane.xlu0 %8492
    %v8494 = vrcp.pop %v8493
    %v8495 = vmul.f32 %v8490, %v8494
    %8496 = vrot.lane.b32.xlu0 %v6915, 80
    %v8497 = vpop.permute.xlu0 %8496
    %8498 = vrot.lane.b32.xlu0 %v6920, 80
    %v8499 = vpop.permute.xlu0 %8498
    %v8503 = vsel %vm2466, %v8495, 0
    %8505 = vmatprep.subr.mxu0 0.0
    %8506 = vmatpush1.msra.mxu0 %v8497
    %8507 = vmatprep.subr.mxu0 0.0
    %8508 = vmatpush1.msra.mxu0 %v8499
    %8509 = vmatprep.subr.mxu0 0.0
    %8510 = vmatpush1.msra.mxu0 0.0
    %8511 = vmatprep.subr.mxu0 0.0
    %8512 = vmatpush1.msra.mxu0 0.0
    %8513 = vmatprep.subr.mxu0 0.0
    %8514 = vmatpush1.msra.mxu0 0.0
    %8515 = vmatprep.subr.mxu0 0.0
    %8516 = vmatpush1.msra.mxu0 0.0
    %8517 = vmatprep.subr.mxu0 0.0
    %8518 = vmatpush1.msra.mxu0 0.0
    %8519 = vmatprep.subr.mxu0 0.0
    %8520 = vmatpush1.msra.mxu0 0.0
    %8521 = vmatprep.subr.mxu0 0.0
    %8522 = vmatpush1.msra.mxu0 0.0
    %8523 = vmatprep.subr.mxu0 0.0
    %8524 = vmatpush1.msra.mxu0 0.0
    %8525 = vmatprep.subr.mxu0 0.0
    %8526 = vmatpush1.msra.mxu0 0.0
    %8527 = vmatprep.subr.mxu0 0.0
    %8528 = vmatpush1.msra.mxu0 0.0
    %8529 = vmatprep.subr.mxu0 0.0
    %8530 = vmatpush1.msra.mxu0 0.0
    %8531 = vmatprep.subr.mxu0 0.0
    %8532 = vmatpush1.msra.mxu0 0.0
    %8533 = vmatprep.subr.mxu0 0.0
    %8534 = vmatpush1.msra.mxu0 0.0
    %8535 = vmatprep.subr.mxu0 0.0
    %8536 = vmatpush1.msra.mxu0 0.0
    %8537 = vmatprep.subr.mxu0 0.0
    %8538 = vmatpush1.msra.mxu0 0.0
    %8539 = vmatprep.subr.mxu0 0.0
    %8540 = vmatpush1.msra.mxu0 0.0
    %8541 = vmatprep.subr.mxu0 0.0
    %8542 = vmatpush1.msra.mxu0 0.0
    %8543 = vmatprep.subr.mxu0 0.0
    %8544 = vmatpush1.msra.mxu0 0.0
    %8545 = vmatprep.subr.mxu0 0.0
    %8546 = vmatpush1.msra.mxu0 0.0
    %8547 = vmatprep.subr.mxu0 0.0
    %8548 = vmatpush1.msra.mxu0 0.0
    %8549 = vmatprep.subr.mxu0 0.0
    %8550 = vmatpush1.msra.mxu0 0.0
    %8551 = vmatprep.subr.mxu0 0.0
    %8552 = vmatpush1.msra.mxu0 0.0
    %8553 = vmatprep.subr.mxu0 0.0
    %8554 = vmatpush1.msra.mxu0 0.0
    %8555 = vmatprep.subr.mxu0 0.0
    %8556 = vmatpush1.msra.mxu0 0.0
    %8557 = vmatprep.subr.mxu0 0.0
    %8558 = vmatpush1.msra.mxu0 0.0
    %8559 = vmatprep.subr.mxu0 0.0
    %8560 = vmatpush1.msra.mxu0 0.0
    %8561 = vmatprep.subr.mxu0 0.0
    %8562 = vmatpush1.msra.mxu0 0.0
    %8563 = vmatprep.subr.mxu0 0.0
    %8564 = vmatpush1.msra.mxu0 0.0
    %8565 = vmatprep.subr.mxu0 0.0
    %8566 = vmatpush1.msra.mxu0 0.0
    %8567 = vmatprep.subr.mxu0 0.0
    %8568 = vmatpush1.msra.mxu0 0.0
    %8569 = vmatprep.mubr.f32.mxu0 0.0
    %8570 = vmatmul.mubr.f32.gmra.mrb[0].mxu0 %v8503
    %v8571 = vpop.f32.mrb[0].mxu0
    %v8572 = vadd.f32 0.0, %v8571
    %v8573 = vpop.f32.mrb[0].mxu0
    %8574 = vdwg.mxu0
    %v8576 = vsel %vm206, %v8572, 0
    %8578 = vmatprep.subr.mxu0 0.0
    %8579 = vmatpush1.msra.mxu0 %v6926
    %8580 = vmatprep.subr.mxu0 0.0
    %8581 = vmatpush1.msra.mxu0 0.0
    %8582 = vmatprep.subr.mxu0 0.0
    %8583 = vmatpush1.msra.mxu0 0.0
    %8584 = vmatprep.subr.mxu0 0.0
    %8585 = vmatpush1.msra.mxu0 0.0
    %8586 = vmatprep.subr.mxu0 0.0
    %8587 = vmatpush1.msra.mxu0 0.0
    %8588 = vmatprep.subr.mxu0 0.0
    %8589 = vmatpush1.msra.mxu0 0.0
    %8590 = vmatprep.subr.mxu0 0.0
    %8591 = vmatpush1.msra.mxu0 0.0
    %8592 = vmatprep.subr.mxu0 0.0
    %8593 = vmatpush1.msra.mxu0 0.0
    %8594 = vmatprep.subr.mxu0 0.0
    %8595 = vmatpush1.msra.mxu0 0.0
    %8596 = vmatprep.subr.mxu0 0.0
    %8597 = vmatpush1.msra.mxu0 0.0
    %8598 = vmatprep.subr.mxu0 0.0
    %8599 = vmatpush1.msra.mxu0 0.0
    %8600 = vmatprep.subr.mxu0 0.0
    %8601 = vmatpush1.msra.mxu0 0.0
    %8602 = vmatprep.subr.mxu0 0.0
    %8603 = vmatpush1.msra.mxu0 0.0
    %8604 = vmatprep.subr.mxu0 0.0
    %8605 = vmatpush1.msra.mxu0 0.0
    %8606 = vmatprep.subr.mxu0 0.0
    %8607 = vmatpush1.msra.mxu0 0.0
    %8608 = vmatprep.subr.mxu0 0.0
    %8609 = vmatpush1.msra.mxu0 0.0
    %8610 = vmatprep.subr.mxu0 0.0
    %8611 = vmatpush1.msra.mxu0 0.0
    %8612 = vmatprep.subr.mxu0 0.0
    %8613 = vmatpush1.msra.mxu0 0.0
    %8614 = vmatprep.subr.mxu0 0.0
    %8615 = vmatpush1.msra.mxu0 0.0
    %8616 = vmatprep.subr.mxu0 0.0
    %8617 = vmatpush1.msra.mxu0 0.0
    %8618 = vmatprep.subr.mxu0 0.0
    %8619 = vmatpush1.msra.mxu0 0.0
    %8620 = vmatprep.subr.mxu0 0.0
    %8621 = vmatpush1.msra.mxu0 0.0
    %8622 = vmatprep.subr.mxu0 0.0
    %8623 = vmatpush1.msra.mxu0 0.0
    %8624 = vmatprep.subr.mxu0 0.0
    %8625 = vmatpush1.msra.mxu0 0.0
    %8626 = vmatprep.subr.mxu0 0.0
    %8627 = vmatpush1.msra.mxu0 0.0
    %8628 = vmatprep.subr.mxu0 0.0
    %8629 = vmatpush1.msra.mxu0 0.0
    %8630 = vmatprep.subr.mxu0 0.0
    %8631 = vmatpush1.msra.mxu0 0.0
    %8632 = vmatprep.subr.mxu0 0.0
    %8633 = vmatpush1.msra.mxu0 0.0
    %8634 = vmatprep.subr.mxu0 0.0
    %8635 = vmatpush1.msra.mxu0 0.0
    %8636 = vmatprep.subr.mxu0 0.0
    %8637 = vmatpush1.msra.mxu0 0.0
    %8638 = vmatprep.subr.mxu0 0.0
    %8639 = vmatpush1.msra.mxu0 0.0
    %8640 = vmatprep.subr.mxu0 0.0
    %8641 = vmatpush1.msra.mxu0 0.0
    %8642 = vmatprep.mubr.f32.mxu0 0.0
    %8643 = vmatmul.mubr.f32.gmra.mrb[0].mxu0 %v8576
    %v8644 = vpop.f32.mrb[0].mxu0
    %v8645 = vadd.f32 0.0, %v8644
    %v8646 = vpop.f32.mrb[0].mxu0
    %8647 = vdwg.mxu0
    %v8648 = vadd.f32 %v8399, %v8645
    %8649 = vrot.lane.b32.xlu0 %v6822, 104
    %v8650 = vpop.permute.xlu0 %8649
    %8651 = vrot.lane.b32.xlu0 %v6915, 104
    %v8652 = vpop.permute.xlu0 %8651
    %8653 = vrot.lane.b32.xlu0 %v6920, 104
    %v8654 = vpop.permute.xlu0 %8653
    %v8655 = vsel %vm206, %v8650, 0
    %v8657 = vsel %vm206, %v8652, 0
    %v8659 = vsel %vm206, %v8654, 0
    %8661 = vmatprep.subr.mxu0 0.0
    %8662 = vmatpush1.xpose.msra.mxu0 %v8657
    %8663 = vmatprep.subr.mxu0 0.0
    %8664 = vmatpush1.xpose.msra.mxu0 %v8659
    %8665 = vmatprep.subr.mxu0 0.0
    %8666 = vmatpush1.xpose.msra.mxu0 0.0
    %8667 = vmatprep.subr.mxu0 0.0
    %8668 = vmatpush1.xpose.msra.mxu0 0.0
    %8669 = vmatprep.subr.mxu0 0.0
    %8670 = vmatpush1.xpose.msra.mxu0 0.0
    %8671 = vmatprep.subr.mxu0 0.0
    %8672 = vmatpush1.xpose.msra.mxu0 0.0
    %8673 = vmatprep.subr.mxu0 0.0
    %8674 = vmatpush1.xpose.msra.mxu0 0.0
    %8675 = vmatprep.subr.mxu0 0.0
    %8676 = vmatpush1.xpose.msra.mxu0 0.0
    %8677 = vmatprep.subr.mxu0 0.0
    %8678 = vmatpush1.xpose.msra.mxu0 0.0
    %8679 = vmatprep.subr.mxu0 0.0
    %8680 = vmatpush1.xpose.msra.mxu0 0.0
    %8681 = vmatprep.subr.mxu0 0.0
    %8682 = vmatpush1.xpose.msra.mxu0 0.0
    %8683 = vmatprep.subr.mxu0 0.0
    %8684 = vmatpush1.xpose.msra.mxu0 0.0
    %8685 = vmatprep.subr.mxu0 0.0
    %8686 = vmatpush1.xpose.msra.mxu0 0.0
    %8687 = vmatprep.subr.mxu0 0.0
    %8688 = vmatpush1.xpose.msra.mxu0 0.0
    %8689 = vmatprep.subr.mxu0 0.0
    %8690 = vmatpush1.xpose.msra.mxu0 0.0
    %8691 = vmatprep.subr.mxu0 0.0
    %8692 = vmatpush1.xpose.msra.mxu0 0.0
    %8693 = vmatprep.subr.mxu0 0.0
    %8694 = vmatpush1.xpose.msra.mxu0 0.0
    %8695 = vmatprep.subr.mxu0 0.0
    %8696 = vmatpush1.xpose.msra.mxu0 0.0
    %8697 = vmatprep.subr.mxu0 0.0
    %8698 = vmatpush1.xpose.msra.mxu0 0.0
    %8699 = vmatprep.subr.mxu0 0.0
    %8700 = vmatpush1.xpose.msra.mxu0 0.0
    %8701 = vmatprep.subr.mxu0 0.0
    %8702 = vmatpush1.xpose.msra.mxu0 0.0
    %8703 = vmatprep.subr.mxu0 0.0
    %8704 = vmatpush1.xpose.msra.mxu0 0.0
    %8705 = vmatprep.subr.mxu0 0.0
    %8706 = vmatpush1.xpose.msra.mxu0 0.0
    %8707 = vmatprep.subr.mxu0 0.0
    %8708 = vmatpush1.xpose.msra.mxu0 0.0
    %8709 = vmatprep.subr.mxu0 0.0
    %8710 = vmatpush1.xpose.msra.mxu0 0.0
    %8711 = vmatprep.subr.mxu0 0.0
    %8712 = vmatpush1.xpose.msra.mxu0 0.0
    %8713 = vmatprep.subr.mxu0 0.0
    %8714 = vmatpush1.xpose.msra.mxu0 0.0
    %8715 = vmatprep.subr.mxu0 0.0
    %8716 = vmatpush1.xpose.msra.mxu0 0.0
    %8717 = vmatprep.subr.mxu0 0.0
    %8718 = vmatpush1.xpose.msra.mxu0 0.0
    %8719 = vmatprep.subr.mxu0 0.0
    %8720 = vmatpush1.xpose.msra.mxu0 0.0
    %8721 = vmatprep.subr.mxu0 0.0
    %8722 = vmatpush1.xpose.msra.mxu0 0.0
    %8723 = vmatprep.subr.mxu0 0.0
    %8724 = vmatpush1.xpose.msra.mxu0 0.0
    %8725 = vmatprep.mubr.f32.mxu0 0.0
    %8726 = vmatmul.mubr.f32.gmra.mrb[0].mxu0 %v8655
    %v8727 = vpop.f32.mrb[0].mxu0
    %v8728 = vadd.f32 0.0, %v8727
    %v8729 = vpop.f32.mrb[0].mxu0
    %8730 = vdwg.mxu0
    %v8731 = vmul.f32 %v8728, 0.35355338
    %v8732 = vsel %vm2466, %v8731, -inf
    %8733 = vmax.xlane.f32.xlu0 %v8732
    %v8734 = vpop.xlane.xlu0 %8733
    %v8735 = vsub.f32 %v8731, %v8734
    %v8736 = vmul.f32 %v8735, 1.442695
    %v8737 = vpow.pop %v8736
    %v8738 = vsel %vm2466, %v8737, 0.0
    %8739 = vadd.xlane.f32.xlu0 %v8738
    %v8740 = vpop.xlane.xlu0 %8739
    %v8741 = vrcp.pop %v8740
    %v8742 = vmul.f32 %v8737, %v8741
    %8743 = vrot.lane.b32.xlu0 %v6915, 72
    %v8744 = vpop.permute.xlu0 %8743
    %8745 = vrot.lane.b32.xlu0 %v6920, 72
    %v8746 = vpop.permute.xlu0 %8745
    %v8750 = vsel %vm2466, %v8742, 0
    %8752 = vmatprep.subr.mxu0 0.0
    %8753 = vmatpush1.msra.mxu0 %v8744
    %8754 = vmatprep.subr.mxu0 0.0
    %8755 = vmatpush1.msra.mxu0 %v8746
    %8756 = vmatprep.subr.mxu0 0.0
    %8757 = vmatpush1.msra.mxu0 0.0
    %8758 = vmatprep.subr.mxu0 0.0
    %8759 = vmatpush1.msra.mxu0 0.0
    %8760 = vmatprep.subr.mxu0 0.0
    %8761 = vmatpush1.msra.mxu0 0.0
    %8762 = vmatprep.subr.mxu0 0.0
    %8763 = vmatpush1.msra.mxu0 0.0
    %8764 = vmatprep.subr.mxu0 0.0
    %8765 = vmatpush1.msra.mxu0 0.0
    %8766 = vmatprep.subr.mxu0 0.0
    %8767 = vmatpush1.msra.mxu0 0.0
    %8768 = vmatprep.subr.mxu0 0.0
    %8769 = vmatpush1.msra.mxu0 0.0
    %8770 = vmatprep.subr.mxu0 0.0
    %8771 = vmatpush1.msra.mxu0 0.0
    %8772 = vmatprep.subr.mxu0 0.0
    %8773 = vmatpush1.msra.mxu0 0.0
    %8774 = vmatprep.subr.mxu0 0.0
    %8775 = vmatpush1.msra.mxu0 0.0
    %8776 = vmatprep.subr.mxu0 0.0
    %8777 = vmatpush1.msra.mxu0 0.0
    %8778 = vmatprep.subr.mxu0 0.0
    %8779 = vmatpush1.msra.mxu0 0.0
    %8780 = vmatprep.subr.mxu0 0.0
    %8781 = vmatpush1.msra.mxu0 0.0
    %8782 = vmatprep.subr.mxu0 0.0
    %8783 = vmatpush1.msra.mxu0 0.0
    %8784 = vmatprep.subr.mxu0 0.0
    %8785 = vmatpush1.msra.mxu0 0.0
    %8786 = vmatprep.subr.mxu0 0.0
    %8787 = vmatpush1.msra.mxu0 0.0
    %8788 = vmatprep.subr.mxu0 0.0
    %8789 = vmatpush1.msra.mxu0 0.0
    %8790 = vmatprep.subr.mxu0 0.0
    %8791 = vmatpush1.msra.mxu0 0.0
    %8792 = vmatprep.subr.mxu0 0.0
    %8793 = vmatpush1.msra.mxu0 0.0
    %8794 = vmatprep.subr.mxu0 0.0
    %8795 = vmatpush1.msra.mxu0 0.0
    %8796 = vmatprep.subr.mxu0 0.0
    %8797 = vmatpush1.msra.mxu0 0.0
    %8798 = vmatprep.subr.mxu0 0.0
    %8799 = vmatpush1.msra.mxu0 0.0
    %8800 = vmatprep.subr.mxu0 0.0
    %8801 = vmatpush1.msra.mxu0 0.0
    %8802 = vmatprep.subr.mxu0 0.0
    %8803 = vmatpush1.msra.mxu0 0.0
    %8804 = vmatprep.subr.mxu0 0.0
    %8805 = vmatpush1.msra.mxu0 0.0
    %8806 = vmatprep.subr.mxu0 0.0
    %8807 = vmatpush1.msra.mxu0 0.0
    %8808 = vmatprep.subr.mxu0 0.0
    %8809 = vmatpush1.msra.mxu0 0.0
    %8810 = vmatprep.subr.mxu0 0.0
    %8811 = vmatpush1.msra.mxu0 0.0
    %8812 = vmatprep.subr.mxu0 0.0
    %8813 = vmatpush1.msra.mxu0 0.0
    %8814 = vmatprep.subr.mxu0 0.0
    %8815 = vmatpush1.msra.mxu0 0.0
    %8816 = vmatprep.mubr.f32.mxu0 0.0
    %8817 = vmatmul.mubr.f32.gmra.mrb[0].mxu0 %v8750
    %v8818 = vpop.f32.mrb[0].mxu0
    %v8819 = vadd.f32 0.0, %v8818
    %v8820 = vpop.f32.mrb[0].mxu0
    %8821 = vdwg.mxu0
    %v8823 = vsel %vm206, %v8819, 0
    %8825 = vmatprep.subr.mxu0 0.0
    %8826 = vmatpush1.msra.mxu0 %v6927
    %8827 = vmatprep.subr.mxu0 0.0
    %8828 = vmatpush1.msra.mxu0 0.0
    %8829 = vmatprep.subr.mxu0 0.0
    %8830 = vmatpush1.msra.mxu0 0.0
    %8831 = vmatprep.subr.mxu0 0.0
    %8832 = vmatpush1.msra.mxu0 0.0
    %8833 = vmatprep.subr.mxu0 0.0
    %8834 = vmatpush1.msra.mxu0 0.0
    %8835 = vmatprep.subr.mxu0 0.0
    %8836 = vmatpush1.msra.mxu0 0.0
    %8837 = vmatprep.subr.mxu0 0.0
    %8838 = vmatpush1.msra.mxu0 0.0
    %8839 = vmatprep.subr.mxu0 0.0
    %8840 = vmatpush1.msra.mxu0 0.0
    %8841 = vmatprep.subr.mxu0 0.0
    %8842 = vmatpush1.msra.mxu0 0.0
    %8843 = vmatprep.subr.mxu0 0.0
    %8844 = vmatpush1.msra.mxu0 0.0
    %8845 = vmatprep.subr.mxu0 0.0
    %8846 = vmatpush1.msra.mxu0 0.0
    %8847 = vmatprep.subr.mxu0 0.0
    %8848 = vmatpush1.msra.mxu0 0.0
    %8849 = vmatprep.subr.mxu0 0.0
    %8850 = vmatpush1.msra.mxu0 0.0
    %8851 = vmatprep.subr.mxu0 0.0
    %8852 = vmatpush1.msra.mxu0 0.0
    %8853 = vmatprep.subr.mxu0 0.0
    %8854 = vmatpush1.msra.mxu0 0.0
    %8855 = vmatprep.subr.mxu0 0.0
    %8856 = vmatpush1.msra.mxu0 0.0
    %8857 = vmatprep.subr.mxu0 0.0
    %8858 = vmatpush1.msra.mxu0 0.0
    %8859 = vmatprep.subr.mxu0 0.0
    %8860 = vmatpush1.msra.mxu0 0.0
    %8861 = vmatprep.subr.mxu0 0.0
    %8862 = vmatpush1.msra.mxu0 0.0
    %8863 = vmatprep.subr.mxu0 0.0
    %8864 = vmatpush1.msra.mxu0 0.0
    %8865 = vmatprep.subr.mxu0 0.0
    %8866 = vmatpush1.msra.mxu0 0.0
    %8867 = vmatprep.subr.mxu0 0.0
    %8868 = vmatpush1.msra.mxu0 0.0
    %8869 = vmatprep.subr.mxu0 0.0
    %8870 = vmatpush1.msra.mxu0 0.0
    %8871 = vmatprep.subr.mxu0 0.0
    %8872 = vmatpush1.msra.mxu0 0.0
    %8873 = vmatprep.subr.mxu0 0.0
    %8874 = vmatpush1.msra.mxu0 0.0
    %8875 = vmatprep.subr.mxu0 0.0
    %8876 = vmatpush1.msra.mxu0 0.0
    %8877 = vmatprep.subr.mxu0 0.0
    %8878 = vmatpush1.msra.mxu0 0.0
    %8879 = vmatprep.subr.mxu0 0.0
    %8880 = vmatpush1.msra.mxu0 0.0
    %8881 = vmatprep.subr.mxu0 0.0
    %8882 = vmatpush1.msra.mxu0 0.0
    %8883 = vmatprep.subr.mxu0 0.0
    %8884 = vmatpush1.msra.mxu0 0.0
    %8885 = vmatprep.subr.mxu0 0.0
    %8886 = vmatpush1.msra.mxu0 0.0
    %8887 = vmatprep.subr.mxu0 0.0
    %8888 = vmatpush1.msra.mxu0 0.0
    %8889 = vmatprep.mubr.f32.mxu0 0.0
    %8890 = vmatmul.mubr.f32.gmra.mrb[0].mxu0 %v8823
    %v8891 = vpop.f32.mrb[0].mxu0
    %v8892 = vadd.f32 0.0, %v8891
    %v8893 = vpop.f32.mrb[0].mxu0
    %8894 = vdwg.mxu0
    %v8895 = vadd.f32 %v8648, %v8892
    %v8897 = vlaneseq
    %v8898 = vshrl.u32 %v8897, 7
    %v8899 = vsub.s32 0, %v8898
    %v8900 = vrot.slane %v6929, %v8899
    %v8902 = vadd.f32 %v7912, %v8900
    %v8903 = vadd.f32 %v8895, %v8900
    %v8904 = vadd.f32 %v6729, %v8902
    %v8905 = vadd.f32 %v6730, %v8903
    %s8906 = scalar_lea.vmem %s19, 1
    %v8907 = vld [vmem:[%s8906] sm:$0x1]
    %s8908 = scalar_lea.vmem %s20, 1
    %v8909 = vld [vmem:[%s8908] sm:$0x1]
    %v8910 = vsel %vm116, %v8904, 0.0
    %8911 = vadd.xlane.f32.xlu0 %v8910
    %v8912 = vpop.xlane.xlu0 %8911
    %v8913 = vsel %vm116, %v8905, 0.0
    %8914 = vadd.xlane.f32.xlu0 %v8913
    %v8915 = vpop.xlane.xlu0 %8914
    %v8916 = vmul.f32 %v8912, %v2144
    %v8917 = vmul.f32 %v8915, %v2144
    %v8918 = vsub.f32 %v8904, %v8916
    %v8919 = vsub.f32 %v8905, %v8917
    %v8920 = vmul.f32 %v8918, %v8918
    %v8921 = vmul.f32 %v8919, %v8919
    %v8922 = vsel %vm116, %v8920, 0.0
    %8923 = vadd.xlane.f32.xlu0 %v8922
    %v8924 = vpop.xlane.xlu0 %8923
    %v8925 = vsel %vm116, %v8921, 0.0
    %8926 = vadd.xlane.f32.xlu0 %v8925
    %v8927 = vpop.xlane.xlu0 %8926
    %v8928 = vmul.f32 %v8924, %v2144
    %v8929 = vmul.f32 %v8927, %v2144
    %v8930 = vadd.f32 %v8928, 1e-05
    %v8931 = vadd.f32 %v8929, 1e-05
    %v8932 = vrsqrt.pop %v8930
    %v8933 = vrsqrt.pop %v8931
    %v8934 = vmul.f32 %v8918, %v8932
    %v8935 = vmul.f32 %v8919, %v8933
    %v8937 = vlaneseq
    %v8938 = vshrl.u32 %v8937, 7
    %v8939 = vsub.s32 0, %v8938
    %v8940 = vrot.slane %v8907, %v8939
    %v8942 = vmul.f32 %v8934, %v8940
    %v8943 = vmul.f32 %v8935, %v8940
    %v8945 = vlaneseq
    %v8946 = vshrl.u32 %v8945, 7
    %v8947 = vsub.s32 0, %v8946
    %v8948 = vrot.slane %v8909, %v8947
    %v8950 = vadd.f32 %v8942, %v8948
    %v8951 = vadd.f32 %v8943, %v8948
    %s8952 = scalar_lea.vmem %s13, 32
    %v8953 = vld [vmem:[%s8952] sm:$0xff]
    %v8954 = vld [vmem:[%s8952 + $0x8] sm:$0xff]
    %v8955 = vld [vmem:[%s8952 + $0x10] sm:$0xff]
    %v8956 = vld [vmem:[%s8952 + $0x18] sm:$0xff]
    %s8957 = scalar_lea.vmem %s14, 1
    %v8958 = vld [vmem:[%s8957] sm:$0x1]
    %v8960 = vlaneseq
    %v8961 = vshrl.u32 %v8960, 7
    %v8962 = vsub.s32 0, %v8961
    %v8963 = vrot.slane %v8958, %v8962
    %v8966 = vsel %vm116, %v8950, 0
    %v8969 = vsel %vm116, %v8951, 0
    %8971 = vmatprep.subr.mxu0 0.0
    %8972 = vmatpush1.msra.mxu0 %v8953
    %8973 = vmatprep.subr.mxu0 0.0
    %8974 = vmatpush1.msra.mxu0 %v8954
    %8975 = vmatprep.subr.mxu0 0.0
    %8976 = vmatpush1.msra.mxu0 %v8955
    %8977 = vmatprep.subr.mxu0 0.0
    %8978 = vmatpush1.msra.mxu0 %v8956
    %8979 = vmatprep.subr.mxu0 0.0
    %8980 = vmatpush1.msra.mxu0 0.0
    %8981 = vmatprep.subr.mxu0 0.0
    %8982 = vmatpush1.msra.mxu0 0.0
    %8983 = vmatprep.subr.mxu0 0.0
    %8984 = vmatpush1.msra.mxu0 0.0
    %8985 = vmatprep.subr.mxu0 0.0
    %8986 = vmatpush1.msra.mxu0 0.0
    %8987 = vmatprep.subr.mxu0 0.0
    %8988 = vmatpush1.msra.mxu0 0.0
    %8989 = vmatprep.subr.mxu0 0.0
    %8990 = vmatpush1.msra.mxu0 0.0
    %8991 = vmatprep.subr.mxu0 0.0
    %8992 = vmatpush1.msra.mxu0 0.0
    %8993 = vmatprep.subr.mxu0 0.0
    %8994 = vmatpush1.msra.mxu0 0.0
    %8995 = vmatprep.subr.mxu0 0.0
    %8996 = vmatpush1.msra.mxu0 0.0
    %8997 = vmatprep.subr.mxu0 0.0
    %8998 = vmatpush1.msra.mxu0 0.0
    %8999 = vmatprep.subr.mxu0 0.0
    %9000 = vmatpush1.msra.mxu0 0.0
    %9001 = vmatprep.subr.mxu0 0.0
    %9002 = vmatpush1.msra.mxu0 0.0
    %9003 = vmatprep.subr.mxu0 0.0
    %9004 = vmatpush1.msra.mxu0 0.0
    %9005 = vmatprep.subr.mxu0 0.0
    %9006 = vmatpush1.msra.mxu0 0.0
    %9007 = vmatprep.subr.mxu0 0.0
    %9008 = vmatpush1.msra.mxu0 0.0
    %9009 = vmatprep.subr.mxu0 0.0
    %9010 = vmatpush1.msra.mxu0 0.0
    %9011 = vmatprep.subr.mxu0 0.0
    %9012 = vmatpush1.msra.mxu0 0.0
    %9013 = vmatprep.subr.mxu0 0.0
    %9014 = vmatpush1.msra.mxu0 0.0
    %9015 = vmatprep.subr.mxu0 0.0
    %9016 = vmatpush1.msra.mxu0 0.0
    %9017 = vmatprep.subr.mxu0 0.0
    %9018 = vmatpush1.msra.mxu0 0.0
    %9019 = vmatprep.subr.mxu0 0.0
    %9020 = vmatpush1.msra.mxu0 0.0
    %9021 = vmatprep.subr.mxu0 0.0
    %9022 = vmatpush1.msra.mxu0 0.0
    %9023 = vmatprep.subr.mxu0 0.0
    %9024 = vmatpush1.msra.mxu0 0.0
    %9025 = vmatprep.subr.mxu0 0.0
    %9026 = vmatpush1.msra.mxu0 0.0
    %9027 = vmatprep.subr.mxu0 0.0
    %9028 = vmatpush1.msra.mxu0 0.0
    %9029 = vmatprep.subr.mxu0 0.0
    %9030 = vmatpush1.msra.mxu0 0.0
    %9031 = vmatprep.subr.mxu0 0.0
    %9032 = vmatpush1.msra.mxu0 0.0
    %9033 = vmatprep.subr.mxu0 0.0
    %9034 = vmatpush1.msra.mxu0 0.0
    %9035 = vmatprep.mubr.f32.mxu0 0.0
    %9036 = vmatmul.mubr.f32.gmra.mrb[0].mxu0 %v8966
    %v9037 = vpop.f32.mrb[0].mxu0
    %v9038 = vadd.f32 %v8963, %v9037
    %v9039 = vpop.f32.mrb[0].mxu0
    %9040 = vmatprep.mubr.f32.mxu0 0.0
    %9041 = vmatmul.mubr.f32.gmra.mrb[0].mxu0 %v8969
    %v9042 = vpop.f32.mrb[0].mxu0
    %v9043 = vadd.f32 %v8963, %v9042
    %v9044 = vpop.f32.mrb[0].mxu0
    %9045 = vdwg.mxu0
    %v9046 = vmul.f32 %v9038, 0.5
    %v9047 = vmul.f32 %v9043, 0.5
    %v9048 = vmul.f32 %v9038, 0.70710677
    %v9049 = vmul.f32 %v9043, 0.70710677
    %v9050 = verf.f32.pop %v9048
    %v9051 = verf.f32.pop %v9049
    %v9052 = vadd.f32 %v9050, 1.0
    %v9053 = vadd.f32 %v9051, 1.0
    %v9054 = vmul.f32 %v9046, %v9052
    %v9055 = vmul.f32 %v9047, %v9053
    %s9056 = scalar_lea.vmem %s15, 64
    %v9057 = vld [vmem:[%s9056] sm:$0xff]
    %v9058 = vld [vmem:[%s9056 + $0x8] sm:$0xff]
    %v9059 = vld [vmem:[%s9056 + $0x10] sm:$0xff]
    %v9060 = vld [vmem:[%s9056 + $0x18] sm:$0xff]
    %v9061 = vld [vmem:[%s9056 + $0x20] sm:$0xff]
    %v9062 = vld [vmem:[%s9056 + $0x28] sm:$0xff]
    %v9063 = vld [vmem:[%s9056 + $0x30] sm:$0xff]
    %v9064 = vld [vmem:[%s9056 + $0x38] sm:$0xff]
    %s9065 = scalar_lea.vmem %s16, 1
    %v9066 = vld [vmem:[%s9065] sm:$0x1]
    %v9068 = vlaneseq
    %v9069 = vshrl.u32 %v9068, 7
    %v9070 = vsub.s32 0, %v9069
    %v9071 = vrot.slane %v9066, %v9070
    %v9074 = vsel %vm4524, %v9054, 0
    %v9077 = vsel %vm4524, %v9055, 0
    %9079 = vmatprep.subr.mxu0 0.0
    %9080 = vmatpush1.msra.mxu0 %v9057
    %9081 = vmatprep.subr.mxu0 0.0
    %9082 = vmatpush1.msra.mxu0 %v9058
    %9083 = vmatprep.subr.mxu0 0.0
    %9084 = vmatpush1.msra.mxu0 %v9059
    %9085 = vmatprep.subr.mxu0 0.0
    %9086 = vmatpush1.msra.mxu0 %v9060
    %9087 = vmatprep.subr.mxu0 0.0
    %9088 = vmatpush1.msra.mxu0 %v9061
    %9089 = vmatprep.subr.mxu0 0.0
    %9090 = vmatpush1.msra.mxu0 %v9062
    %9091 = vmatprep.subr.mxu0 0.0
    %9092 = vmatpush1.msra.mxu0 %v9063
    %9093 = vmatprep.subr.mxu0 0.0
    %9094 = vmatpush1.msra.mxu0 %v9064
    %9095 = vmatprep.subr.mxu0 0.0
    %9096 = vmatpush1.msra.mxu0 0.0
    %9097 = vmatprep.subr.mxu0 0.0
    %9098 = vmatpush1.msra.mxu0 0.0
    %9099 = vmatprep.subr.mxu0 0.0
    %9100 = vmatpush1.msra.mxu0 0.0
    %9101 = vmatprep.subr.mxu0 0.0
    %9102 = vmatpush1.msra.mxu0 0.0
    %9103 = vmatprep.subr.mxu0 0.0
    %9104 = vmatpush1.msra.mxu0 0.0
    %9105 = vmatprep.subr.mxu0 0.0
    %9106 = vmatpush1.msra.mxu0 0.0
    %9107 = vmatprep.subr.mxu0 0.0
    %9108 = vmatpush1.msra.mxu0 0.0
    %9109 = vmatprep.subr.mxu0 0.0
    %9110 = vmatpush1.msra.mxu0 0.0
    %9111 = vmatprep.subr.mxu0 0.0
    %9112 = vmatpush1.msra.mxu0 0.0
    %9113 = vmatprep.subr.mxu0 0.0
    %9114 = vmatpush1.msra.mxu0 0.0
    %9115 = vmatprep.subr.mxu0 0.0
    %9116 = vmatpush1.msra.mxu0 0.0
    %9117 = vmatprep.subr.mxu0 0.0
    %9118 = vmatpush1.msra.mxu0 0.0
    %9119 = vmatprep.subr.mxu0 0.0
    %9120 = vmatpush1.msra.mxu0 0.0
    %9121 = vmatprep.subr.mxu0 0.0
    %9122 = vmatpush1.msra.mxu0 0.0
    %9123 = vmatprep.subr.mxu0 0.0
    %9124 = vmatpush1.msra.mxu0 0.0
    %9125 = vmatprep.subr.mxu0 0.0
    %9126 = vmatpush1.msra.mxu0 0.0
    %9127 = vmatprep.subr.mxu0 0.0
    %9128 = vmatpush1.msra.mxu0 0.0
    %9129 = vmatprep.subr.mxu0 0.0
    %9130 = vmatpush1.msra.mxu0 0.0
    %9131 = vmatprep.subr.mxu0 0.0
    %9132 = vmatpush1.msra.mxu0 0.0
    %9133 = vmatprep.subr.mxu0 0.0
    %9134 = vmatpush1.msra.mxu0 0.0
    %9135 = vmatprep.subr.mxu0 0.0
    %9136 = vmatpush1.msra.mxu0 0.0
    %9137 = vmatprep.subr.mxu0 0.0
    %9138 = vmatpush1.msra.mxu0 0.0
    %9139 = vmatprep.subr.mxu0 0.0
    %9140 = vmatpush1.msra.mxu0 0.0
    %9141 = vmatprep.subr.mxu0 0.0
    %9142 = vmatpush1.msra.mxu0 0.0
    %9143 = vmatprep.mubr.f32.mxu0 0.0
    %9144 = vmatmul.mubr.f32.gmra.mrb[0].mxu0 %v9074
    %v9145 = vpop.f32.mrb[0].mxu0
    %v9146 = vadd.f32 %v9071, %v9145
    %v9147 = vpop.f32.mrb[0].mxu0
    %9148 = vmatprep.mubr.f32.mxu0 0.0
    %9149 = vmatmul.mubr.f32.gmra.mrb[0].mxu0 %v9077
    %v9150 = vpop.f32.mrb[0].mxu0
    %v9151 = vadd.f32 %v9071, %v9150
    %v9152 = vpop.f32.mrb[0].mxu0
    %9153 = vdwg.mxu0
    %v9154 = vadd.f32 %v8950, %v9146
    %v9155 = vadd.f32 %v8951, %v9151
    %s9156 = scalar_lea.vmem %s21, 1
    %v9157 = vld [vmem:[%s9156] sm:$0x1]
    %s9158 = scalar_lea.vmem %s22, 1
    %v9159 = vld [vmem:[%s9158] sm:$0x1]
    %v9160 = vsel %vm116, %v9154, 0.0
    %9161 = vadd.xlane.f32.xlu0 %v9160
    %v9162 = vpop.xlane.xlu0 %9161
    %v9163 = vsel %vm116, %v9155, 0.0
    %9164 = vadd.xlane.f32.xlu0 %v9163
    %v9165 = vpop.xlane.xlu0 %9164
    %v9166 = vmul.f32 %v9162, %v2144
    %v9167 = vmul.f32 %v9165, %v2144
    %v9168 = vsub.f32 %v9154, %v9166
    %v9169 = vsub.f32 %v9155, %v9167
    %v9170 = vmul.f32 %v9168, %v9168
    %v9171 = vmul.f32 %v9169, %v9169
    %v9172 = vsel %vm116, %v9170, 0.0
    %9173 = vadd.xlane.f32.xlu0 %v9172
    %v9174 = vpop.xlane.xlu0 %9173
    %v9175 = vsel %vm116, %v9171, 0.0
    %9176 = vadd.xlane.f32.xlu0 %v9175
    %v9177 = vpop.xlane.xlu0 %9176
    %v9178 = vmul.f32 %v9174, %v2144
    %v9179 = vmul.f32 %v9177, %v2144
    %v9180 = vadd.f32 %v9178, 1e-05
    %v9181 = vadd.f32 %v9179, 1e-05
    %v9182 = vrsqrt.pop %v9180
    %v9183 = vrsqrt.pop %v9181
    %v9184 = vmul.f32 %v9168, %v9182
    %v9185 = vmul.f32 %v9169, %v9183
    %v9187 = vlaneseq
    %v9188 = vshrl.u32 %v9187, 7
    %v9189 = vsub.s32 0, %v9188
    %v9190 = vrot.slane %v9157, %v9189
    %v9192 = vmul.f32 %v9184, %v9190
    %v9193 = vmul.f32 %v9185, %v9190
    %v9195 = vlaneseq
    %v9196 = vshrl.u32 %v9195, 7
    %v9197 = vsub.s32 0, %v9196
    %v9198 = vrot.slane %v9159, %v9197
    %v9200 = vadd.f32 %v9192, %v9198
    %v9201 = vadd.f32 %v9193, %v9198
    %v9202 = vld [vmem:[%s23] sm:$0x1]
    %v9203 = vld [vmem:[#allocation2] sm:$0x1]
    %v9204 = vsel %vm116, %v9200, 0.0
    %9205 = vadd.xlane.f32.xlu0 %v9204
    %v9206 = vpop.xlane.xlu0 %9205
    %v9207 = vsel %vm116, %v9201, 0.0
    %9208 = vadd.xlane.f32.xlu0 %v9207
    %v9209 = vpop.xlane.xlu0 %9208
    %v9210 = vmul.f32 %v9206, %v2144
    %v9211 = vmul.f32 %v9209, %v2144
    %v9212 = vsub.f32 %v9200, %v9210
    %v9213 = vsub.f32 %v9201, %v9211
    %v9214 = vmul.f32 %v9212, %v9212
    %v9215 = vmul.f32 %v9213, %v9213
    %v9216 = vsel %vm116, %v9214, 0.0
    %9217 = vadd.xlane.f32.xlu0 %v9216
    %v9218 = vpop.xlane.xlu0 %9217
    %v9219 = vsel %vm116, %v9215, 0.0
    %9220 = vadd.xlane.f32.xlu0 %v9219
    %v9221 = vpop.xlane.xlu0 %9220
    %v9222 = vmul.f32 %v9218, %v2144
    %v9223 = vmul.f32 %v9221, %v2144
    %v9224 = vadd.f32 %v9222, 1e-06
    %v9225 = vadd.f32 %v9223, 1e-06
    %v9226 = vrsqrt.pop %v9224
    %v9227 = vrsqrt.pop %v9225
    %v9228 = vmul.f32 %v9212, %v9226
    %v9229 = vmul.f32 %v9213, %v9227
    %v9231 = vlaneseq
    %v9232 = vshrl.u32 %v9231, 7
    %v9233 = vsub.s32 0, %v9232
    %v9234 = vrot.slane %v9202, %v9233
    %v9236 = vmul.f32 %v9228, %v9234
    %v9237 = vmul.f32 %v9229, %v9234
    %v9239 = vlaneseq
    %v9240 = vshrl.u32 %v9239, 7
    %v9241 = vsub.s32 0, %v9240
    %v9242 = vrot.slane %v9203, %v9241
    %v9244 = vadd.f32 %v9236, %v9242
    %v9245 = vadd.f32 %v9237, %v9242
    %v9246 = vld [vmem:[%s25] sm:$0xff]
    %v9247 = vld [vmem:[%s25 + $0x8] sm:$0xff]
    %v9248 = vld [vmem:[%s25 + $0x10] sm:$0xff]
    %v9249 = vld [vmem:[%s25 + $0x18] sm:$0xff]
    %v9250 = vld [vmem:[%s26] sm:$0x1]
    %v9252 = vlaneseq
    %v9253 = vshrl.u32 %v9252, 7
    %v9254 = vsub.s32 0, %v9253
    %v9255 = vrot.slane %v9250, %v9254
    %v9258 = vsel %vm116, %v9244, 0
    %v9261 = vsel %vm116, %v9245, 0
    %9263 = vmatprep.subr.mxu0 0.0
    %9264 = vmatpush1.msra.mxu0 %v9246
    %9265 = vmatprep.subr.mxu0 0.0
    %9266 = vmatpush1.msra.mxu0 %v9247
    %9267 = vmatprep.subr.mxu0 0.0
    %9268 = vmatpush1.msra.mxu0 %v9248
    %9269 = vmatprep.subr.mxu0 0.0
    %9270 = vmatpush1.msra.mxu0 %v9249
    %9271 = vmatprep.subr.mxu0 0.0
    %9272 = vmatpush1.msra.mxu0 0.0
    %9273 = vmatprep.subr.mxu0 0.0
    %9274 = vmatpush1.msra.mxu0 0.0
    %9275 = vmatprep.subr.mxu0 0.0
    %9276 = vmatpush1.msra.mxu0 0.0
    %9277 = vmatprep.subr.mxu0 0.0
    %9278 = vmatpush1.msra.mxu0 0.0
    %9279 = vmatprep.subr.mxu0 0.0
    %9280 = vmatpush1.msra.mxu0 0.0
    %9281 = vmatprep.subr.mxu0 0.0
    %9282 = vmatpush1.msra.mxu0 0.0
    %9283 = vmatprep.subr.mxu0 0.0
    %9284 = vmatpush1.msra.mxu0 0.0
    %9285 = vmatprep.subr.mxu0 0.0
    %9286 = vmatpush1.msra.mxu0 0.0
    %9287 = vmatprep.subr.mxu0 0.0
    %9288 = vmatpush1.msra.mxu0 0.0
    %9289 = vmatprep.subr.mxu0 0.0
    %9290 = vmatpush1.msra.mxu0 0.0
    %9291 = vmatprep.subr.mxu0 0.0
    %9292 = vmatpush1.msra.mxu0 0.0
    %9293 = vmatprep.subr.mxu0 0.0
    %9294 = vmatpush1.msra.mxu0 0.0
    %9295 = vmatprep.subr.mxu0 0.0
    %9296 = vmatpush1.msra.mxu0 0.0
    %9297 = vmatprep.subr.mxu0 0.0
    %9298 = vmatpush1.msra.mxu0 0.0
    %9299 = vmatprep.subr.mxu0 0.0
    %9300 = vmatpush1.msra.mxu0 0.0
    %9301 = vmatprep.subr.mxu0 0.0
    %9302 = vmatpush1.msra.mxu0 0.0
    %9303 = vmatprep.subr.mxu0 0.0
    %9304 = vmatpush1.msra.mxu0 0.0
    %9305 = vmatprep.subr.mxu0 0.0
    %9306 = vmatpush1.msra.mxu0 0.0
    %9307 = vmatprep.subr.mxu0 0.0
    %9308 = vmatpush1.msra.mxu0 0.0
    %9309 = vmatprep.subr.mxu0 0.0
    %9310 = vmatpush1.msra.mxu0 0.0
    %9311 = vmatprep.subr.mxu0 0.0
    %9312 = vmatpush1.msra.mxu0 0.0
    %9313 = vmatprep.subr.mxu0 0.0
    %9314 = vmatpush1.msra.mxu0 0.0
    %9315 = vmatprep.subr.mxu0 0.0
    %9316 = vmatpush1.msra.mxu0 0.0
    %9317 = vmatprep.subr.mxu0 0.0
    %9318 = vmatpush1.msra.mxu0 0.0
    %9319 = vmatprep.subr.mxu0 0.0
    %9320 = vmatpush1.msra.mxu0 0.0
    %9321 = vmatprep.subr.mxu0 0.0
    %9322 = vmatpush1.msra.mxu0 0.0
    %9323 = vmatprep.subr.mxu0 0.0
    %9324 = vmatpush1.msra.mxu0 0.0
    %9325 = vmatprep.subr.mxu0 0.0
    %9326 = vmatpush1.msra.mxu0 0.0
    %9327 = vmatprep.mubr.f32.mxu0 0.0
    %9328 = vmatmul.mubr.f32.gmra.mrb[0].mxu0 %v9258
    %v9329 = vpop.f32.mrb[0].mxu0
    %v9330 = vadd.f32 %v9255, %v9329
    %v9331 = vpop.f32.mrb[0].mxu0
    %9332 = vmatprep.mubr.f32.mxu0 0.0
    %9333 = vmatmul.mubr.f32.gmra.mrb[0].mxu0 %v9261
    %v9334 = vpop.f32.mrb[0].mxu0
    %v9335 = vadd.f32 %v9255, %v9334
    %v9336 = vpop.f32.mrb[0].mxu0
    %9337 = vdwg.mxu0
    %9338 = vst [vmem:[%s27] sm:$0xff] %v9330
    %9339 = vst [vmem:[%s27 + $0x8] sm:$0xff] %v9335
    // Predicated region
    $region114: #{latex_transformer_decoder.1} parent=1 // pred_check
      _
    $region115: #{latex_transformer_decoder.1} parent=1 // pred_check_branch
      %9341 = sbr.rel (0) target = $region117
    $region116: #{latex_transformer_decoder.1} parent=1 // pred_region
      _
    $region117: #{latex_transformer_decoder.1} parent=1 // pred_fallthru
      _
    // Predicated region
    $region118: #{latex_transformer_decoder.1} parent=1 // pred_check
      _
    $region119: #{latex_transformer_decoder.1} parent=1 // pred_check_branch
      %9343 = sbr.rel (0) target = $region121
    $region120: #{latex_transformer_decoder.1} parent=1 // pred_region
      _
    $region121: #{latex_transformer_decoder.1} parent=1 // pred_fallthru
      _
    %9344 = vsyncpa [#allocation3], 1

</llo_original>
